<compile_context>
chip_gen: v7x
topology: tpu7x:2x2x1
jax: 0.10.0
libtpu: 0.0.40
codegen_flags: <defaults>
</compile_context>

<pallas_src>
import functools

import jax
import jax.numpy as jnp
from jax.experimental import pallas as pl
from jax.experimental.pallas import tpu as pltpu

EPS = 1e-5  # torch.nn.LayerNorm default


def _pick_batch_tile(B, min_grid_steps=4):
    """Pick the largest batch tile that still yields >= `min_grid_steps` grid
    iterations (pipelining depth on a single TC; >=2 steps per core on v7x's two
    TCs). At these problem sizes the resident set is only a few MiB, so VMEM is
    not the binding constraint and `vmem_limit_bytes` acts only as a cap."""
    best = 1
    for bb in range(1, B + 1):
        if B % bb == 0 and B // bb >= min_grid_steps:
            best = bb
    return best


def _mha_kernel(x_ref, g_ref, b_ref, qkvw_ref, qkvb_ref, pw_ref, pb_ref,
                o_ref, *, heads):
    """Fused LN + QKV + multi-head softmax attention + merged output projection.

    x_ref:   (bb, N, C) f32 activations
    weights: qkv (C, 3C) / proj (C, C) stored bf16 (qk scale pre-folded into the
             q columns of qkv weight + bias); biases + LN params f32.
    """
    x = x_ref[...].astype(jnp.float32)
    bb, N, C = x.shape
    hd = C // heads

    # ---- LayerNorm (f32 statistics) fused in front of the QKV matmul ----
    mu = jnp.mean(x, axis=-1, keepdims=True)
    var = jnp.mean(jnp.square(x - mu), axis=-1, keepdims=True)
    xn = (x - mu) * jax.lax.rsqrt(var + EPS) * g_ref[...] + b_ref[...]

    # ---- QKV: one (bb*N, C) @ (C, 3C) matmul, bf16 operands, f32 accumulation ----
    xn2 = xn.reshape(bb * N, C).astype(jnp.bfloat16)
    qkv = jnp.dot(xn2, qkvw_ref[...], preferred_element_type=jnp.float32) + qkvb_ref[...]

    # Single bf16 cast of the whole qkv tensor; hoist lane-aligned 128-wide slabs
    # out of the head loop so per-head 16-wide slices come from aligned blocks.
    qkv_bf = qkv.astype(jnp.bfloat16)
    q_all = qkv_bf[:, :C].reshape(bb, N, C)          # scale already folded in
    k_all = qkv_bf[:, C:2 * C].reshape(bb, N, C)
    v_all = qkv_bf[:, 2 * C:].reshape(bb, N, C)

    # ---- per-head softmax attention (scores / softmax statistics in f32) ----
    outs = []
    for h in range(heads):
        sl = slice(h * hd, (h + 1) * hd)
        q = q_all[:, :, sl]
        k = k_all[:, :, sl]
        v = v_all[:, :, sl]
        s = jnp.einsum('bnd,bmd->bnm', q, k, preferred_element_type=jnp.float32)
        m = jnp.max(s, axis=-1, keepdims=True)
        e = jnp.exp(s - m)
        oh = jnp.einsum('bnm,bmd->bnd', e.astype(jnp.bfloat16), v,
                        preferred_element_type=jnp.float32)
        # Normalize AFTER the PV matmul on the (bb,N,hd) output instead of the
        # (bb,N,N) probability tile; approx reciprocal runs on the idle EUP slot.
        oh = oh * pl.reciprocal(jnp.sum(e, axis=-1, keepdims=True), approx=True)
        outs.append(oh)                              # 'b h n d -> b n (h d)' via concat

    # ---- single merged output projection (no scratch round-trip) ----
    ctx = jnp.concatenate(outs, axis=-1).reshape(bb * N, C).astype(jnp.bfloat16)
    out = jnp.dot(ctx, pw_ref[...], preferred_element_type=jnp.float32) + pb_ref[...]
    o_ref[...] = out.reshape(bb, N, C).astype(o_ref.dtype)
    # TODO(synk): attn_drop / proj_drop are 0.0 in this config -> identity (not implemented).


def multi_head_attention(x, params, heads):
    """x: (B, N, C) f32 -> (B, N, C) f32."""
    B, N, C = x.shape
    assert C % heads == 0
    hd = C // heads
    scale = hd ** -0.5

    # Fold the qk scale into the q columns of the QKV weight & bias (host-side,
    # tiny one-off transform; exact in bf16 when hd is a power of two).
    col_scale = jnp.concatenate(
        [jnp.full((C,), scale, jnp.float32), jnp.ones((2 * C,), jnp.float32)], axis=0)
    qkv_w = (params['qkv_w'].astype(jnp.float32) * col_scale).astype(params['qkv_w'].dtype)
    qkv_b = params['qkv_b'] * col_scale

    bb = _pick_batch_tile(B)
    kern = functools.partial(_mha_kernel, heads=heads)
    return pl.pallas_call(
        kern,
        out_shape=jax.ShapeDtypeStruct((B, N, C), x.dtype),
        grid=(B // bb,),
        in_specs=[
            pl.BlockSpec((bb, N, C), lambda i: (i, 0, 0)),   # x tile
            pl.BlockSpec((1, C), lambda i: (0, 0)),          # LN gamma
            pl.BlockSpec((1, C), lambda i: (0, 0)),          # LN beta
            pl.BlockSpec((C, 3 * C), lambda i: (0, 0)),      # qkv weight (bf16, VMEM-resident)
            pl.BlockSpec((1, 3 * C), lambda i: (0, 0)),      # qkv bias (scale-folded)
            pl.BlockSpec((C, C), lambda i: (0, 0)),          # proj weight (bf16, VMEM-resident)
            pl.BlockSpec((1, C), lambda i: (0, 0)),          # proj bias
        ],
        out_specs=pl.BlockSpec((bb, N, C), lambda i: (i, 0, 0)),
        compiler_params=pltpu.CompilerParams(
            dimension_semantics=("parallel",),   # independent batch tiles -> both v7x TCs
            vmem_limit_bytes=32 * 1024 * 1024,   # safe cap on v5e/v6e (128 MiB) and v7x (64 MiB)
        ),
    )(x,
      params['norm_g'].reshape(1, C), params['norm_b'].reshape(1, C),
      qkv_w, qkv_b.reshape(1, 3 * C),
      params['proj_w'], params['proj_b'].reshape(1, C))


# ----------------------------- pure-JAX reference -----------------------------

def mha_reference(x, p, heads):
    B, N, C = x.shape
    hd = C // heads
    scale = hd ** -0.5
    xf = x.astype(jnp.float32)
    mu = jnp.mean(xf, axis=-1, keepdims=True)
    var = jnp.mean((xf - mu) ** 2, axis=-1, keepdims=True)
    xn = (xf - mu) * jax.lax.rsqrt(var + EPS) * p['norm_g'] + p['norm_b']
    qkv = xn @ p['qkv_w'].astype(jnp.float32) + p['qkv_b']
    q, k, v = jnp.split(qkv, 3, axis=-1)
    q = q.reshape(B, N, heads, hd).transpose(0, 2, 1, 3)
    k = k.reshape(B, N, heads, hd).transpose(0, 2, 1, 3)
    v = v.reshape(B, N, heads, hd).transpose(0, 2, 1, 3)
    s = jnp.einsum('bhnd,bhmd->bhnm', q, k) * scale
    a = jax.nn.softmax(s, axis=-1)
    o = jnp.einsum('bhnm,bhmd->bhnd', a, v).transpose(0, 2, 1, 3).reshape(B, N, C)
    return o @ p['proj_w'].astype(jnp.float32) + p['proj_b']


# ----------------------------- parameter init -----------------------------

def init_params(key, dim, std=0.02):
    ks = jax.random.split(key, 6)
    return dict(
        norm_g=1.0 + std * jax.random.normal(ks[0], (dim,), jnp.float32),
        norm_b=std * jax.random.normal(ks[1], (dim,), jnp.float32),
        qkv_w=(std * jax.random.normal(ks[2], (dim, 3 * dim), jnp.float32)).astype(jnp.bfloat16),
        qkv_b=std * jax.random.normal(ks[3], (3 * dim,), jnp.float32),
        proj_w=(std * jax.random.normal(ks[4], (dim, dim), jnp.float32)).astype(jnp.bfloat16),
        proj_b=std * jax.random.normal(ks[5], (dim,), jnp.float32),
    )


# ----------------------------- main -----------------------------

if __name__ == "__main__":
    B, SEQ, DIM, HEADS = 8, 128, 128, 8   # [B, seq_len, dim] as the forward implies

    key = jax.random.PRNGKey(0)
    kx, kp = jax.random.split(key)
    params = init_params(kp, DIM)
    x = jax.random.normal(kx, (B, SEQ, DIM), dtype=jnp.float32)

    y = multi_head_attention(x, params, HEADS)
    jax.block_until_ready(y)
    assert y.shape == (B, SEQ, DIM), y.shape

    y_ref = mha_reference(x, params, HEADS)
    err = float(jnp.max(jnp.abs(y - y_ref)))
    assert err < 5e-2, f"max abs err {err}"

    print("KERNEL_OK")
</pallas_src>

<mosaic_0001>
module attributes {stable_mosaic.version = 11 : i64} {
  func.func @_mha_kernel(%arg0: i32, %arg1: memref<2x128x128xf32, #tpu.memory_space<vmem>>, %arg2: memref<1x128xf32, #tpu.memory_space<vmem>>, %arg3: memref<1x128xf32, #tpu.memory_space<vmem>>, %arg4: memref<128x384xbf16, #tpu.memory_space<vmem>>, %arg5: memref<1x384xf32, #tpu.memory_space<vmem>>, %arg6: memref<128x128xbf16, #tpu.memory_space<vmem>>, %arg7: memref<1x128xf32, #tpu.memory_space<vmem>>, %arg8: memref<2x128x128xf32, #tpu.memory_space<vmem>>) attributes {dimension_semantics = [#tpu.dimension_semantics<parallel>], iteration_bounds = array<i64: 4>, scalar_prefetch = 0 : i64, scratch_operands = 0 : i64, tpu.core_type = #tpu.core_type<tc>, window_params = [{transform_indices = @transform_0, window_bounds = array<i64: 2, 128, 128>}, {pipeline_mode = #tpu.pipeline_mode<synchronous>, transform_indices = @transform_1, window_bounds = array<i64: 1, 128>}, {pipeline_mode = #tpu.pipeline_mode<synchronous>, transform_indices = @transform_2, window_bounds = array<i64: 1, 128>}, {pipeline_mode = #tpu.pipeline_mode<synchronous>, transform_indices = @transform_3, window_bounds = array<i64: 128, 384>}, {pipeline_mode = #tpu.pipeline_mode<synchronous>, transform_indices = @transform_4, window_bounds = array<i64: 1, 384>}, {pipeline_mode = #tpu.pipeline_mode<synchronous>, transform_indices = @transform_5, window_bounds = array<i64: 128, 128>}, {pipeline_mode = #tpu.pipeline_mode<synchronous>, transform_indices = @transform_6, window_bounds = array<i64: 1, 128>}, {transform_indices = @transform_7, window_bounds = array<i64: 2, 128, 128>}]} {
    %c0 = arith.constant 0 : index
    %c0_0 = arith.constant 0 : index
    %c0_1 = arith.constant 0 : index
    %0 = vector.load %arg1[%c0, %c0_0, %c0_1] : memref<2x128x128xf32, #tpu.memory_space<vmem>>, vector<2x128x128xf32>
    %cst = arith.constant dense<0.000000e+00> : vector<2x128xf32>
    %1 = vector.multi_reduction <add>, %0, %cst [2] : vector<2x128x128xf32> to vector<2x128xf32>
    %2 = vector.shape_cast %1 : vector<2x128xf32> to vector<2x128x1xf32>
    %cst_2 = arith.constant 1.280000e+02 : f32
    %3 = vector.broadcast %cst_2 : f32 to vector<2x128x1xf32>
    %4 = arith.divf %2, %3 : vector<2x128x1xf32>
    %5 = vector.broadcast %4 : vector<2x128x1xf32> to vector<2x128x128xf32>
    %6 = arith.subf %0, %5 : vector<2x128x128xf32>
    %7 = arith.mulf %6, %6 : vector<2x128x128xf32>
    %cst_3 = arith.constant dense<0.000000e+00> : vector<2x128xf32>
    %8 = vector.multi_reduction <add>, %7, %cst_3 [2] : vector<2x128x128xf32> to vector<2x128xf32>
    %9 = vector.shape_cast %8 : vector<2x128xf32> to vector<2x128x1xf32>
    %cst_4 = arith.constant 1.280000e+02 : f32
    %10 = vector.broadcast %cst_4 : f32 to vector<2x128x1xf32>
    %11 = arith.divf %9, %10 : vector<2x128x1xf32>
    %12 = vector.broadcast %4 : vector<2x128x1xf32> to vector<2x128x128xf32>
    %13 = arith.subf %0, %12 : vector<2x128x128xf32>
    %cst_5 = arith.constant 9.99999974E-6 : f32
    %14 = vector.broadcast %cst_5 : f32 to vector<2x128x1xf32>
    %15 = arith.addf %11, %14 : vector<2x128x1xf32>
    %16 = math.rsqrt %15 : vector<2x128x1xf32>
    %17 = vector.broadcast %16 : vector<2x128x1xf32> to vector<2x128x128xf32>
    %18 = arith.mulf %13, %17 : vector<2x128x128xf32>
    %c0_6 = arith.constant 0 : index
    %c0_7 = arith.constant 0 : index
    %19 = vector.load %arg2[%c0_6, %c0_7] : memref<1x128xf32, #tpu.memory_space<vmem>>, vector<1x128xf32>
    %20 = vector.shape_cast %19 : vector<1x128xf32> to vector<1x1x128xf32>
    %21 = vector.broadcast %20 : vector<1x1x128xf32> to vector<2x128x128xf32>
    %22 = arith.mulf %18, %21 : vector<2x128x128xf32>
    %c0_8 = arith.constant 0 : index
    %c0_9 = arith.constant 0 : index
    %23 = vector.load %arg3[%c0_8, %c0_9] : memref<1x128xf32, #tpu.memory_space<vmem>>, vector<1x128xf32>
    %24 = vector.shape_cast %23 : vector<1x128xf32> to vector<1x1x128xf32>
    %25 = vector.broadcast %24 : vector<1x1x128xf32> to vector<2x128x128xf32>
    %26 = arith.addf %22, %25 : vector<2x128x128xf32>
    %27 = vector.shape_cast %26 : vector<2x128x128xf32> to vector<256x128xf32>
    %28 = arith.truncf %27 : vector<256x128xf32> to vector<256x128xbf16>
    %c0_10 = arith.constant 0 : index
    %c0_11 = arith.constant 0 : index
    %29 = vector.load %arg4[%c0_10, %c0_11] : memref<128x384xbf16, #tpu.memory_space<vmem>>, vector<128x384xbf16>
    %cst_12 = arith.constant dense<0.000000e+00> : vector<256x384xf32>
    %30 = tpu.matmul %28, %29, %cst_12 {dimension_numbers = #tpu.dot_dimension_numbers<[1], [0], [0], [1], [0, 0, 1, 1], [], []>} : vector<256x128xbf16>, vector<128x384xbf16>, vector<256x384xf32> -> vector<256x384xf32>
    %c0_13 = arith.constant 0 : index
    %c0_14 = arith.constant 0 : index
    %31 = vector.load %arg5[%c0_13, %c0_14] : memref<1x384xf32, #tpu.memory_space<vmem>>, vector<1x384xf32>
    %32 = vector.broadcast %31 : vector<1x384xf32> to vector<256x384xf32>
    %33 = arith.addf %30, %32 : vector<256x384xf32>
    %34 = arith.truncf %33 : vector<256x384xf32> to vector<256x384xbf16>
    %35 = vector.extract_strided_slice %34 {offsets = [0, 0], sizes = [256, 128], strides = [1, 1]} : vector<256x384xbf16> to vector<256x128xbf16>
    %36 = vector.shape_cast %35 : vector<256x128xbf16> to vector<2x128x128xbf16>
    %37 = vector.extract_strided_slice %34 {offsets = [0, 128], sizes = [256, 128], strides = [1, 1]} : vector<256x384xbf16> to vector<256x128xbf16>
    %38 = vector.shape_cast %37 : vector<256x128xbf16> to vector<2x128x128xbf16>
    %39 = vector.extract_strided_slice %34 {offsets = [0, 256], sizes = [256, 128], strides = [1, 1]} : vector<256x384xbf16> to vector<256x128xbf16>
    %40 = vector.shape_cast %39 : vector<256x128xbf16> to vector<2x128x128xbf16>
    %41 = vector.extract_strided_slice %36 {offsets = [0, 0, 0], sizes = [2, 128, 16], strides = [1, 1, 1]} : vector<2x128x128xbf16> to vector<2x128x16xbf16>
    %42 = vector.extract_strided_slice %38 {offsets = [0, 0, 0], sizes = [2, 128, 16], strides = [1, 1, 1]} : vector<2x128x128xbf16> to vector<2x128x16xbf16>
    %43 = vector.extract_strided_slice %40 {offsets = [0, 0, 0], sizes = [2, 128, 16], strides = [1, 1, 1]} : vector<2x128x128xbf16> to vector<2x128x16xbf16>
    "tpu.trace_start"() <{level = 10 : i32, message = "bnd,bmd->bnm"}> : () -> ()
    %cst_15 = arith.constant dense<0.000000e+00> : vector<2x128x128xf32>
    %44 = tpu.matmul %41, %42, %cst_15 {dimension_numbers = #tpu.dot_dimension_numbers<[2], [2], [1], [1], [0, 0, 0, 1, 1, 1], [0], [0]>} : vector<2x128x16xbf16>, vector<2x128x16xbf16>, vector<2x128x128xf32> -> vector<2x128x128xf32>
    "tpu.trace_stop"() : () -> ()
    %cst_16 = arith.constant dense<0xFF800000> : vector<2x128xf32>
    %45 = vector.multi_reduction <maximumf>, %44, %cst_16 [2] : vector<2x128x128xf32> to vector<2x128xf32>
    %46 = vector.shape_cast %45 : vector<2x128xf32> to vector<2x128x1xf32>
    %47 = vector.broadcast %46 : vector<2x128x1xf32> to vector<2x128x128xf32>
    %48 = arith.subf %44, %47 : vector<2x128x128xf32>
    %49 = math.exp %48 : vector<2x128x128xf32>
    %50 = arith.truncf %49 : vector<2x128x128xf32> to vector<2x128x128xbf16>
    "tpu.trace_start"() <{level = 10 : i32, message = "bnm,bmd->bnd"}> : () -> ()
    %cst_17 = arith.constant dense<0.000000e+00> : vector<2x128x16xf32>
    %51 = tpu.matmul %50, %43, %cst_17 {dimension_numbers = #tpu.dot_dimension_numbers<[2], [1], [1], [2], [0, 0, 0, 1, 1, 2], [0], [0]>} : vector<2x128x128xbf16>, vector<2x128x16xbf16>, vector<2x128x16xf32> -> vector<2x128x16xf32>
    "tpu.trace_stop"() : () -> ()
    %cst_18 = arith.constant dense<0.000000e+00> : vector<2x128xf32>
    %52 = vector.multi_reduction <add>, %49, %cst_18 [2] : vector<2x128x128xf32> to vector<2x128xf32>
    %53 = vector.shape_cast %52 : vector<2x128xf32> to vector<2x128x1xf32>
    %54 = tpu.reciprocal %53 {approx = true} : vector<2x128x1xf32> -> vector<2x128x1xf32>
    %55 = vector.broadcast %54 : vector<2x128x1xf32> to vector<2x128x16xf32>
    %56 = arith.mulf %51, %55 : vector<2x128x16xf32>
    %57 = vector.extract_strided_slice %36 {offsets = [0, 0, 16], sizes = [2, 128, 16], strides = [1, 1, 1]} : vector<2x128x128xbf16> to vector<2x128x16xbf16>
    %58 = vector.extract_strided_slice %38 {offsets = [0, 0, 16], sizes = [2, 128, 16], strides = [1, 1, 1]} : vector<2x128x128xbf16> to vector<2x128x16xbf16>
    %59 = vector.extract_strided_slice %40 {offsets = [0, 0, 16], sizes = [2, 128, 16], strides = [1, 1, 1]} : vector<2x128x128xbf16> to vector<2x128x16xbf16>
    "tpu.trace_start"() <{level = 10 : i32, message = "bnd,bmd->bnm"}> : () -> ()
    %cst_19 = arith.constant dense<0.000000e+00> : vector<2x128x128xf32>
    %60 = tpu.matmul %57, %58, %cst_19 {dimension_numbers = #tpu.dot_dimension_numbers<[2], [2], [1], [1], [0, 0, 0, 1, 1, 1], [0], [0]>} : vector<2x128x16xbf16>, vector<2x128x16xbf16>, vector<2x128x128xf32> -> vector<2x128x128xf32>
    "tpu.trace_stop"() : () -> ()
    %cst_20 = arith.constant dense<0xFF800000> : vector<2x128xf32>
    %61 = vector.multi_reduction <maximumf>, %60, %cst_20 [2] : vector<2x128x128xf32> to vector<2x128xf32>
    %62 = vector.shape_cast %61 : vector<2x128xf32> to vector<2x128x1xf32>
    %63 = vector.broadcast %62 : vector<2x128x1xf32> to vector<2x128x128xf32>
    %64 = arith.subf %60, %63 : vector<2x128x128xf32>
    %65 = math.exp %64 : vector<2x128x128xf32>
    %66 = arith.truncf %65 : vector<2x128x128xf32> to vector<2x128x128xbf16>
    "tpu.trace_start"() <{level = 10 : i32, message = "bnm,bmd->bnd"}> : () -> ()
    %cst_21 = arith.constant dense<0.000000e+00> : vector<2x128x16xf32>
    %67 = tpu.matmul %66, %59, %cst_21 {dimension_numbers = #tpu.dot_dimension_numbers<[2], [1], [1], [2], [0, 0, 0, 1, 1, 2], [0], [0]>} : vector<2x128x128xbf16>, vector<2x128x16xbf16>, vector<2x128x16xf32> -> vector<2x128x16xf32>
    "tpu.trace_stop"() : () -> ()
    %cst_22 = arith.constant dense<0.000000e+00> : vector<2x128xf32>
    %68 = vector.multi_reduction <add>, %65, %cst_22 [2] : vector<2x128x128xf32> to vector<2x128xf32>
    %69 = vector.shape_cast %68 : vector<2x128xf32> to vector<2x128x1xf32>
    %70 = tpu.reciprocal %69 {approx = true} : vector<2x128x1xf32> -> vector<2x128x1xf32>
    %71 = vector.broadcast %70 : vector<2x128x1xf32> to vector<2x128x16xf32>
    %72 = arith.mulf %67, %71 : vector<2x128x16xf32>
    %73 = vector.extract_strided_slice %36 {offsets = [0, 0, 32], sizes = [2, 128, 16], strides = [1, 1, 1]} : vector<2x128x128xbf16> to vector<2x128x16xbf16>
    %74 = vector.extract_strided_slice %38 {offsets = [0, 0, 32], sizes = [2, 128, 16], strides = [1, 1, 1]} : vector<2x128x128xbf16> to vector<2x128x16xbf16>
    %75 = vector.extract_strided_slice %40 {offsets = [0, 0, 32], sizes = [2, 128, 16], strides = [1, 1, 1]} : vector<2x128x128xbf16> to vector<2x128x16xbf16>
    "tpu.trace_start"() <{level = 10 : i32, message = "bnd,bmd->bnm"}> : () -> ()
    %cst_23 = arith.constant dense<0.000000e+00> : vector<2x128x128xf32>
    %76 = tpu.matmul %73, %74, %cst_23 {dimension_numbers = #tpu.dot_dimension_numbers<[2], [2], [1], [1], [0, 0, 0, 1, 1, 1], [0], [0]>} : vector<2x128x16xbf16>, vector<2x128x16xbf16>, vector<2x128x128xf32> -> vector<2x128x128xf32>
    "tpu.trace_stop"() : () -> ()
    %cst_24 = arith.constant dense<0xFF800000> : vector<2x128xf32>
    %77 = vector.multi_reduction <maximumf>, %76, %cst_24 [2] : vector<2x128x128xf32> to vector<2x128xf32>
    %78 = vector.shape_cast %77 : vector<2x128xf32> to vector<2x128x1xf32>
    %79 = vector.broadcast %78 : vector<2x128x1xf32> to vector<2x128x128xf32>
    %80 = arith.subf %76, %79 : vector<2x128x128xf32>
    %81 = math.exp %80 : vector<2x128x128xf32>
    %82 = arith.truncf %81 : vector<2x128x128xf32> to vector<2x128x128xbf16>
    "tpu.trace_start"() <{level = 10 : i32, message = "bnm,bmd->bnd"}> : () -> ()
    %cst_25 = arith.constant dense<0.000000e+00> : vector<2x128x16xf32>
    %83 = tpu.matmul %82, %75, %cst_25 {dimension_numbers = #tpu.dot_dimension_numbers<[2], [1], [1], [2], [0, 0, 0, 1, 1, 2], [0], [0]>} : vector<2x128x128xbf16>, vector<2x128x16xbf16>, vector<2x128x16xf32> -> vector<2x128x16xf32>
    "tpu.trace_stop"() : () -> ()
    %cst_26 = arith.constant dense<0.000000e+00> : vector<2x128xf32>
    %84 = vector.multi_reduction <add>, %81, %cst_26 [2] : vector<2x128x128xf32> to vector<2x128xf32>
    %85 = vector.shape_cast %84 : vector<2x128xf32> to vector<2x128x1xf32>
    %86 = tpu.reciprocal %85 {approx = true} : vector<2x128x1xf32> -> vector<2x128x1xf32>
    %87 = vector.broadcast %86 : vector<2x128x1xf32> to vector<2x128x16xf32>
    %88 = arith.mulf %83, %87 : vector<2x128x16xf32>
    %89 = vector.extract_strided_slice %36 {offsets = [0, 0, 48], sizes = [2, 128, 16], strides = [1, 1, 1]} : vector<2x128x128xbf16> to vector<2x128x16xbf16>
    %90 = vector.extract_strided_slice %38 {offsets = [0, 0, 48], sizes = [2, 128, 16], strides = [1, 1, 1]} : vector<2x128x128xbf16> to vector<2x128x16xbf16>
    %91 = vector.extract_strided_slice %40 {offsets = [0, 0, 48], sizes = [2, 128, 16], strides = [1, 1, 1]} : vector<2x128x128xbf16> to vector<2x128x16xbf16>
    "tpu.trace_start"() <{level = 10 : i32, message = "bnd,bmd->bnm"}> : () -> ()
    %cst_27 = arith.constant dense<0.000000e+00> : vector<2x128x128xf32>
    %92 = tpu.matmul %89, %90, %cst_27 {dimension_numbers = #tpu.dot_dimension_numbers<[2], [2], [1], [1], [0, 0, 0, 1, 1, 1], [0], [0]>} : vector<2x128x16xbf16>, vector<2x128x16xbf16>, vector<2x128x128xf32> -> vector<2x128x128xf32>
    "tpu.trace_stop"() : () -> ()
    %cst_28 = arith.constant dense<0xFF800000> : vector<2x128xf32>
    %93 = vector.multi_reduction <maximumf>, %92, %cst_28 [2] : vector<2x128x128xf32> to vector<2x128xf32>
    %94 = vector.shape_cast %93 : vector<2x128xf32> to vector<2x128x1xf32>
    %95 = vector.broadcast %94 : vector<2x128x1xf32> to vector<2x128x128xf32>
    %96 = arith.subf %92, %95 : vector<2x128x128xf32>
    %97 = math.exp %96 : vector<2x128x128xf32>
    %98 = arith.truncf %97 : vector<2x128x128xf32> to vector<2x128x128xbf16>
    "tpu.trace_start"() <{level = 10 : i32, message = "bnm,bmd->bnd"}> : () -> ()
    %cst_29 = arith.constant dense<0.000000e+00> : vector<2x128x16xf32>
    %99 = tpu.matmul %98, %91, %cst_29 {dimension_numbers = #tpu.dot_dimension_numbers<[2], [1], [1], [2], [0, 0, 0, 1, 1, 2], [0], [0]>} : vector<2x128x128xbf16>, vector<2x128x16xbf16>, vector<2x128x16xf32> -> vector<2x128x16xf32>
    "tpu.trace_stop"() : () -> ()
    %cst_30 = arith.constant dense<0.000000e+00> : vector<2x128xf32>
    %100 = vector.multi_reduction <add>, %97, %cst_30 [2] : vector<2x128x128xf32> to vector<2x128xf32>
    %101 = vector.shape_cast %100 : vector<2x128xf32> to vector<2x128x1xf32>
    %102 = tpu.reciprocal %101 {approx = true} : vector<2x128x1xf32> -> vector<2x128x1xf32>
    %103 = vector.broadcast %102 : vector<2x128x1xf32> to vector<2x128x16xf32>
    %104 = arith.mulf %99, %103 : vector<2x128x16xf32>
    %105 = vector.extract_strided_slice %36 {offsets = [0, 0, 64], sizes = [2, 128, 16], strides = [1, 1, 1]} : vector<2x128x128xbf16> to vector<2x128x16xbf16>
    %106 = vector.extract_strided_slice %38 {offsets = [0, 0, 64], sizes = [2, 128, 16], strides = [1, 1, 1]} : vector<2x128x128xbf16> to vector<2x128x16xbf16>
    %107 = vector.extract_strided_slice %40 {offsets = [0, 0, 64], sizes = [2, 128, 16], strides = [1, 1, 1]} : vector<2x128x128xbf16> to vector<2x128x16xbf16>
    "tpu.trace_start"() <{level = 10 : i32, message = "bnd,bmd->bnm"}> : () -> ()
    %cst_31 = arith.constant dense<0.000000e+00> : vector<2x128x128xf32>
    %108 = tpu.matmul %105, %106, %cst_31 {dimension_numbers = #tpu.dot_dimension_numbers<[2], [2], [1], [1], [0, 0, 0, 1, 1, 1], [0], [0]>} : vector<2x128x16xbf16>, vector<2x128x16xbf16>, vector<2x128x128xf32> -> vector<2x128x128xf32>
    "tpu.trace_stop"() : () -> ()
    %cst_32 = arith.constant dense<0xFF800000> : vector<2x128xf32>
    %109 = vector.multi_reduction <maximumf>, %108, %cst_32 [2] : vector<2x128x128xf32> to vector<2x128xf32>
    %110 = vector.shape_cast %109 : vector<2x128xf32> to vector<2x128x1xf32>
    %111 = vector.broadcast %110 : vector<2x128x1xf32> to vector<2x128x128xf32>
    %112 = arith.subf %108, %111 : vector<2x128x128xf32>
    %113 = math.exp %112 : vector<2x128x128xf32>
    %114 = arith.truncf %113 : vector<2x128x128xf32> to vector<2x128x128xbf16>
    "tpu.trace_start"() <{level = 10 : i32, message = "bnm,bmd->bnd"}> : () -> ()
    %cst_33 = arith.constant dense<0.000000e+00> : vector<2x128x16xf32>
    %115 = tpu.matmul %114, %107, %cst_33 {dimension_numbers = #tpu.dot_dimension_numbers<[2], [1], [1], [2], [0, 0, 0, 1, 1, 2], [0], [0]>} : vector<2x128x128xbf16>, vector<2x128x16xbf16>, vector<2x128x16xf32> -> vector<2x128x16xf32>
    "tpu.trace_stop"() : () -> ()
    %cst_34 = arith.constant dense<0.000000e+00> : vector<2x128xf32>
    %116 = vector.multi_reduction <add>, %113, %cst_34 [2] : vector<2x128x128xf32> to vector<2x128xf32>
    %117 = vector.shape_cast %116 : vector<2x128xf32> to vector<2x128x1xf32>
    %118 = tpu.reciprocal %117 {approx = true} : vector<2x128x1xf32> -> vector<2x128x1xf32>
    %119 = vector.broadcast %118 : vector<2x128x1xf32> to vector<2x128x16xf32>
    %120 = arith.mulf %115, %119 : vector<2x128x16xf32>
    %121 = vector.extract_strided_slice %36 {offsets = [0, 0, 80], sizes = [2, 128, 16], strides = [1, 1, 1]} : vector<2x128x128xbf16> to vector<2x128x16xbf16>
    %122 = vector.extract_strided_slice %38 {offsets = [0, 0, 80], sizes = [2, 128, 16], strides = [1, 1, 1]} : vector<2x128x128xbf16> to vector<2x128x16xbf16>
    %123 = vector.extract_strided_slice %40 {offsets = [0, 0, 80], sizes = [2, 128, 16], strides = [1, 1, 1]} : vector<2x128x128xbf16> to vector<2x128x16xbf16>
    "tpu.trace_start"() <{level = 10 : i32, message = "bnd,bmd->bnm"}> : () -> ()
    %cst_35 = arith.constant dense<0.000000e+00> : vector<2x128x128xf32>
    %124 = tpu.matmul %121, %122, %cst_35 {dimension_numbers = #tpu.dot_dimension_numbers<[2], [2], [1], [1], [0, 0, 0, 1, 1, 1], [0], [0]>} : vector<2x128x16xbf16>, vector<2x128x16xbf16>, vector<2x128x128xf32> -> vector<2x128x128xf32>
    "tpu.trace_stop"() : () -> ()
    %cst_36 = arith.constant dense<0xFF800000> : vector<2x128xf32>
    %125 = vector.multi_reduction <maximumf>, %124, %cst_36 [2] : vector<2x128x128xf32> to vector<2x128xf32>
    %126 = vector.shape_cast %125 : vector<2x128xf32> to vector<2x128x1xf32>
    %127 = vector.broadcast %126 : vector<2x128x1xf32> to vector<2x128x128xf32>
    %128 = arith.subf %124, %127 : vector<2x128x128xf32>
    %129 = math.exp %128 : vector<2x128x128xf32>
    %130 = arith.truncf %129 : vector<2x128x128xf32> to vector<2x128x128xbf16>
    "tpu.trace_start"() <{level = 10 : i32, message = "bnm,bmd->bnd"}> : () -> ()
    %cst_37 = arith.constant dense<0.000000e+00> : vector<2x128x16xf32>
    %131 = tpu.matmul %130, %123, %cst_37 {dimension_numbers = #tpu.dot_dimension_numbers<[2], [1], [1], [2], [0, 0, 0, 1, 1, 2], [0], [0]>} : vector<2x128x128xbf16>, vector<2x128x16xbf16>, vector<2x128x16xf32> -> vector<2x128x16xf32>
    "tpu.trace_stop"() : () -> ()
    %cst_38 = arith.constant dense<0.000000e+00> : vector<2x128xf32>
    %132 = vector.multi_reduction <add>, %129, %cst_38 [2] : vector<2x128x128xf32> to vector<2x128xf32>
    %133 = vector.shape_cast %132 : vector<2x128xf32> to vector<2x128x1xf32>
    %134 = tpu.reciprocal %133 {approx = true} : vector<2x128x1xf32> -> vector<2x128x1xf32>
    %135 = vector.broadcast %134 : vector<2x128x1xf32> to vector<2x128x16xf32>
    %136 = arith.mulf %131, %135 : vector<2x128x16xf32>
    %137 = vector.extract_strided_slice %36 {offsets = [0, 0, 96], sizes = [2, 128, 16], strides = [1, 1, 1]} : vector<2x128x128xbf16> to vector<2x128x16xbf16>
    %138 = vector.extract_strided_slice %38 {offsets = [0, 0, 96], sizes = [2, 128, 16], strides = [1, 1, 1]} : vector<2x128x128xbf16> to vector<2x128x16xbf16>
    %139 = vector.extract_strided_slice %40 {offsets = [0, 0, 96], sizes = [2, 128, 16], strides = [1, 1, 1]} : vector<2x128x128xbf16> to vector<2x128x16xbf16>
    "tpu.trace_start"() <{level = 10 : i32, message = "bnd,bmd->bnm"}> : () -> ()
    %cst_39 = arith.constant dense<0.000000e+00> : vector<2x128x128xf32>
    %140 = tpu.matmul %137, %138, %cst_39 {dimension_numbers = #tpu.dot_dimension_numbers<[2], [2], [1], [1], [0, 0, 0, 1, 1, 1], [0], [0]>} : vector<2x128x16xbf16>, vector<2x128x16xbf16>, vector<2x128x128xf32> -> vector<2x128x128xf32>
    "tpu.trace_stop"() : () -> ()
    %cst_40 = arith.constant dense<0xFF800000> : vector<2x128xf32>
    %141 = vector.multi_reduction <maximumf>, %140, %cst_40 [2] : vector<2x128x128xf32> to vector<2x128xf32>
    %142 = vector.shape_cast %141 : vector<2x128xf32> to vector<2x128x1xf32>
    %143 = vector.broadcast %142 : vector<2x128x1xf32> to vector<2x128x128xf32>
    %144 = arith.subf %140, %143 : vector<2x128x128xf32>
    %145 = math.exp %144 : vector<2x128x128xf32>
    %146 = arith.truncf %145 : vector<2x128x128xf32> to vector<2x128x128xbf16>
    "tpu.trace_start"() <{level = 10 : i32, message = "bnm,bmd->bnd"}> : () -> ()
    %cst_41 = arith.constant dense<0.000000e+00> : vector<2x128x16xf32>
    %147 = tpu.matmul %146, %139, %cst_41 {dimension_numbers = #tpu.dot_dimension_numbers<[2], [1], [1], [2], [0, 0, 0, 1, 1, 2], [0], [0]>} : vector<2x128x128xbf16>, vector<2x128x16xbf16>, vector<2x128x16xf32> -> vector<2x128x16xf32>
    "tpu.trace_stop"() : () -> ()
    %cst_42 = arith.constant dense<0.000000e+00> : vector<2x128xf32>
    %148 = vector.multi_reduction <add>, %145, %cst_42 [2] : vector<2x128x128xf32> to vector<2x128xf32>
    %149 = vector.shape_cast %148 : vector<2x128xf32> to vector<2x128x1xf32>
    %150 = tpu.reciprocal %149 {approx = true} : vector<2x128x1xf32> -> vector<2x128x1xf32>
    %151 = vector.broadcast %150 : vector<2x128x1xf32> to vector<2x128x16xf32>
    %152 = arith.mulf %147, %151 : vector<2x128x16xf32>
    %153 = vector.extract_strided_slice %36 {offsets = [0, 0, 112], sizes = [2, 128, 16], strides = [1, 1, 1]} : vector<2x128x128xbf16> to vector<2x128x16xbf16>
    %154 = vector.extract_strided_slice %38 {offsets = [0, 0, 112], sizes = [2, 128, 16], strides = [1, 1, 1]} : vector<2x128x128xbf16> to vector<2x128x16xbf16>
    %155 = vector.extract_strided_slice %40 {offsets = [0, 0, 112], sizes = [2, 128, 16], strides = [1, 1, 1]} : vector<2x128x128xbf16> to vector<2x128x16xbf16>
    "tpu.trace_start"() <{level = 10 : i32, message = "bnd,bmd->bnm"}> : () -> ()
    %cst_43 = arith.constant dense<0.000000e+00> : vector<2x128x128xf32>
    %156 = tpu.matmul %153, %154, %cst_43 {dimension_numbers = #tpu.dot_dimension_numbers<[2], [2], [1], [1], [0, 0, 0, 1, 1, 1], [0], [0]>} : vector<2x128x16xbf16>, vector<2x128x16xbf16>, vector<2x128x128xf32> -> vector<2x128x128xf32>
    "tpu.trace_stop"() : () -> ()
    %cst_44 = arith.constant dense<0xFF800000> : vector<2x128xf32>
    %157 = vector.multi_reduction <maximumf>, %156, %cst_44 [2] : vector<2x128x128xf32> to vector<2x128xf32>
    %158 = vector.shape_cast %157 : vector<2x128xf32> to vector<2x128x1xf32>
    %159 = vector.broadcast %158 : vector<2x128x1xf32> to vector<2x128x128xf32>
    %160 = arith.subf %156, %159 : vector<2x128x128xf32>
    %161 = math.exp %160 : vector<2x128x128xf32>
    %162 = arith.truncf %161 : vector<2x128x128xf32> to vector<2x128x128xbf16>
    "tpu.trace_start"() <{level = 10 : i32, message = "bnm,bmd->bnd"}> : () -> ()
    %cst_45 = arith.constant dense<0.000000e+00> : vector<2x128x16xf32>
    %163 = tpu.matmul %162, %155, %cst_45 {dimension_numbers = #tpu.dot_dimension_numbers<[2], [1], [1], [2], [0, 0, 0, 1, 1, 2], [0], [0]>} : vector<2x128x128xbf16>, vector<2x128x16xbf16>, vector<2x128x16xf32> -> vector<2x128x16xf32>
    "tpu.trace_stop"() : () -> ()
    %cst_46 = arith.constant dense<0.000000e+00> : vector<2x128xf32>
    %164 = vector.multi_reduction <add>, %161, %cst_46 [2] : vector<2x128x128xf32> to vector<2x128xf32>
    %165 = vector.shape_cast %164 : vector<2x128xf32> to vector<2x128x1xf32>
    %166 = tpu.reciprocal %165 {approx = true} : vector<2x128x1xf32> -> vector<2x128x1xf32>
    %167 = vector.broadcast %166 : vector<2x128x1xf32> to vector<2x128x16xf32>
    %168 = arith.mulf %163, %167 : vector<2x128x16xf32>
    %169 = tpu.concatenate %56, %72, %88, %104, %120, %136, %152, %168 in 2 : vector<2x128x16xf32>, vector<2x128x16xf32>, vector<2x128x16xf32>, vector<2x128x16xf32>, vector<2x128x16xf32>, vector<2x128x16xf32>, vector<2x128x16xf32>, vector<2x128x16xf32> -> vector<2x128x128xf32>
    %170 = vector.shape_cast %169 : vector<2x128x128xf32> to vector<256x128xf32>
    %171 = arith.truncf %170 : vector<256x128xf32> to vector<256x128xbf16>
    %c0_47 = arith.constant 0 : index
    %c0_48 = arith.constant 0 : index
    %172 = vector.load %arg6[%c0_47, %c0_48] : memref<128x128xbf16, #tpu.memory_space<vmem>>, vector<128x128xbf16>
    %cst_49 = arith.constant dense<0.000000e+00> : vector<256x128xf32>
    %173 = tpu.matmul %171, %172, %cst_49 {dimension_numbers = #tpu.dot_dimension_numbers<[1], [0], [0], [1], [0, 0, 1, 1], [], []>} : vector<256x128xbf16>, vector<128x128xbf16>, vector<256x128xf32> -> vector<256x128xf32>
    %c0_50 = arith.constant 0 : index
    %c0_51 = arith.constant 0 : index
    %174 = vector.load %arg7[%c0_50, %c0_51] : memref<1x128xf32, #tpu.memory_space<vmem>>, vector<1x128xf32>
    %175 = vector.broadcast %174 : vector<1x128xf32> to vector<256x128xf32>
    %176 = arith.addf %173, %175 : vector<256x128xf32>
    %177 = vector.shape_cast %176 : vector<256x128xf32> to vector<2x128x128xf32>
    %c0_52 = arith.constant 0 : index
    %c0_53 = arith.constant 0 : index
    %c0_54 = arith.constant 0 : index
    %178 = vector.load %arg8[%c0_52, %c0_53, %c0_54] : memref<2x128x128xf32, #tpu.memory_space<vmem>>, vector<2x128x128xf32>
    tpu.vector_store %arg8[%c0_52, %c0_53, %c0_54], %177 {strides = array<i32>} : memref<2x128x128xf32, #tpu.memory_space<vmem>>, vector<2x128x128xf32>,
    return
  }
  func.func @transform_0(%arg0: i32) -> (i32, i32, i32) {
    %c0_i32 = arith.constant 0 : i32
    %c0_i32_0 = arith.constant 0 : i32
    %c0_i32_1 = arith.constant 0 : i32
    return %arg0, %c0_i32, %c0_i32_0 : i32, i32, i32
  }
  func.func @transform_1(%arg0: i32) -> (i32, i32) {
    %c0_i32 = arith.constant 0 : i32
    %c0_i32_0 = arith.constant 0 : i32
    %c0_i32_1 = arith.constant 0 : i32
    return %c0_i32, %c0_i32_0 : i32, i32
  }
  func.func @transform_2(%arg0: i32) -> (i32, i32) {
    %c0_i32 = arith.constant 0 : i32
    %c0_i32_0 = arith.constant 0 : i32
    %c0_i32_1 = arith.constant 0 : i32
    return %c0_i32, %c0_i32_0 : i32, i32
  }
  func.func @transform_3(%arg0: i32) -> (i32, i32) {
    %c0_i32 = arith.constant 0 : i32
    %c0_i32_0 = arith.constant 0 : i32
    %c0_i32_1 = arith.constant 0 : i32
    return %c0_i32, %c0_i32_0 : i32, i32
  }
  func.func @transform_4(%arg0: i32) -> (i32, i32) {
    %c0_i32 = arith.constant 0 : i32
    %c0_i32_0 = arith.constant 0 : i32
    %c0_i32_1 = arith.constant 0 : i32
    return %c0_i32, %c0_i32_0 : i32, i32
  }
  func.func @transform_5(%arg0: i32) -> (i32, i32) {
    %c0_i32 = arith.constant 0 : i32
    %c0_i32_0 = arith.constant 0 : i32
    %c0_i32_1 = arith.constant 0 : i32
    return %c0_i32, %c0_i32_0 : i32, i32
  }
  func.func @transform_6(%arg0: i32) -> (i32, i32) {
    %c0_i32 = arith.constant 0 : i32
    %c0_i32_0 = arith.constant 0 : i32
    %c0_i32_1 = arith.constant 0 : i32
    return %c0_i32, %c0_i32_0 : i32, i32
  }
  func.func @transform_7(%arg0: i32) -> (i32, i32, i32) {
    %c0_i32 = arith.constant 0 : i32
    %c0_i32_0 = arith.constant 0 : i32
    %c0_i32_1 = arith.constant 0 : i32
    return %arg0, %c0_i32, %c0_i32_0 : i32, i32, i32
  }
}

</mosaic_0001>

<llo_original>
// kernel: tpu_custom_call.1
$region0: #{tpu_custom_call.1}
  #allocation0 [shape = 'u32[]', space=smem, size = 0x4, offset = 0x4, fixed_abs, tag = 'smem constant byte address 0x4 - core index']
  #allocation1 [shape = 'u32[144,128]{1,0:T(1,128)}', space=vmem, size = 0x12000, scoped, tag = 'internal scratch']
  %s0 = inlined_call_operand.hbm [shape: f32[8,128,128], index: 0, kind: input, shape index: {}]
  %s1 = inlined_call_operand.vmem [shape: f32[1,128], index: 1, kind: input, shape index: {}]
  %s2 = inlined_call_operand.vmem [shape: f32[1,128], index: 2, kind: input, shape index: {}]
  %s3 = inlined_call_operand.hbm [shape: bf16[128,384], index: 3, kind: input, shape index: {}]
  %s4 = inlined_call_operand.vmem [shape: f32[1,384], index: 4, kind: input, shape index: {}]
  %s5 = inlined_call_operand.hbm [shape: bf16[128,128], index: 5, kind: input, shape index: {}]
  %s6 = inlined_call_operand.vmem [shape: f32[1,128], index: 6, kind: input, shape index: {}]
  %s7 = inlined_call_operand.hbm [shape: f32[8,128,128], index: 7, kind: output, shape index: {}]
  %s8 = sld [smem:[#allocation0]]
  $region73: #{tpu_custom_call.1} parent=0
    _
  %s10 = ssub.s32 1, %s8
  %s11 = scalar_select 0, %s10, %s8
  $region1: #{tpu_custom_call.1} parent=0
    #allocation2 [shape = 'u8[262144]{0}', space=vmem, size = 0x40000, scoped, tag = 'input window, operand 0']
    #allocation3 [shape = 's32[2]{0}', space=sflag, size = 0x8, scoped, tag = 'scoped memory for tpu_custom_call.1']
    #allocation4 [shape = 's32[2]{0}', space=sflag, size = 0x8, scoped, tag = 'scoped memory for tpu_custom_call.1']
    #allocation5 [shape = 'u8[98304]{0}', space=vmem, size = 0x18000, scoped, tag = 'input window, operand 3, single buffered']
    #allocation6 [shape = 's32[1]{0}', space=sflag, size = 0x4, scoped, tag = 'scoped memory for tpu_custom_call.1']
    #allocation7 [shape = 'u8[32768]{0}', space=vmem, size = 0x8000, scoped, tag = 'input window, operand 5, single buffered']
    #allocation8 [shape = 'u8[262144]{0}', space=vmem, size = 0x40000, scoped, tag = 'output window, operand 0']
    %12 = vsyncpa [#allocation3], 0
    %s13 = scalar_lea.sflag [#allocation3], 1
    %14 = vsyncpa %s13, 0
    %15 = vsyncpa [#allocation6], 0
    %16 = vsyncpa [#allocation4], 0
    %s17 = scalar_lea.sflag [#allocation4], 1
    %18 = vsyncpa %s17, 0
    loop: start=0, step=1, limit=6
    $region2: #{tpu_custom_call.1} parent=1 // loop_pre_header
      _
    $region3: #{tpu_custom_call.1} parent=1 // loop_header
      %s20 = sphi 0, %s24
      %p21 = scmp.ge.s32.totalorder %s20, 6
      %s30 = sphi 0, %s32
      %s33 = sphi 0, %s30
      %s34 = sphi 0, %s33
      %s50 = sphi 0, %s34
      %s54 = sphi 0, %s54
      %s56 = sphi 0, %s54
      %s57 = sphi 0, %s56
      %s71 = sphi 0, %s57
      %s75 = sphi 0, %s75
      %s77 = sphi 0, %s75
      %s78 = sphi 0, %s77
      %s92 = sphi 0, %s78
      %s96 = sphi 0, %s96
      %s98 = sphi 0, %s96
      %s99 = sphi 0, %s98
      %s113 = sphi 0, %s99
      %s117 = sphi 0, %s117
      %s119 = sphi 0, %s117
      %s120 = sphi 0, %s119
      %s134 = sphi 0, %s120
      %s138 = sphi 0, %s138
      %s140 = sphi 0, %s138
      %s141 = sphi 0, %s140
      %s155 = sphi 0, %s141
      %s159 = sphi 0, %s159
      %s161 = sphi 0, %s159
      %s162 = sphi 0, %s161
      %s176 = sphi 0, %s162
      %s182 = sphi 0, %s184
      %s185 = sphi 0, %s182
      %s186 = sphi 0, %s185
      %s202 = sphi 0, %s186
    $region4: #{tpu_custom_call.1} parent=1 // loop_header_branch
      %23 = sbr.rel (%p21) target = $region8
    $region5: #{tpu_custom_call.1} parent=1 // loop_body
      %s25 = ssub.s32 %s20, 1
      %s26 = ssub.s32 %s20, 2
      %s27 = sadd.s32 %s20, 1
      %s28 = ssub.s32 %s20, %s27
      %p29 = scmp.eq.s32.totalorder %s28, 0
      %s31 = sadd.s32 %s30, 1
      %s32 = scalar_select %p29, %s30, %s31
      %p35 = pneg %p29
      %p36 = scmp.eq.s32.totalorder %s20, 3
      %p37 = por %p35, %p36
      %p38 = scmp.ne.s32.totalorder %s30, %s33
      %p39 = scmp.eq.s32.totalorder %s20, 0
      %p40 = por %p38, %p39
      %p41 = scmp.ne.s32.totalorder %s30, %s33
      %p42 = scmp.eq.s32.totalorder %s25, 3
      %p43 = por %p41, %p42
      %p44 = scmp.ne.s32.totalorder %s33, %s34
      %p45 = scmp.eq.s32.totalorder %s25, 0
      %p46 = por %p44, %p45
      %p47 = scmp.ne.s32.totalorder %s33, %s34
      %p48 = scmp.eq.s32.totalorder %s26, 3
      %p49 = por %p47, %p48
      %p51 = scmp.ne.s32.totalorder %s34, %s50
      %p52 = scmp.eq.s32.totalorder %s26, 0
      %p53 = por %p51, %p52
      %s55 = sadd.s32 %s54, 1
      %p58 = scmp.eq.s32.totalorder %s20, 3
      %p59 = scmp.ne.s32.totalorder %s54, %s56
      %p60 = scmp.eq.s32.totalorder %s20, 0
      %p61 = por %p59, %p60
      %p62 = scmp.ne.s32.totalorder %s54, %s56
      %p63 = scmp.eq.s32.totalorder %s25, 3
      %p64 = por %p62, %p63
      %p65 = scmp.ne.s32.totalorder %s56, %s57
      %p66 = scmp.eq.s32.totalorder %s25, 0
      %p67 = por %p65, %p66
      %p68 = scmp.ne.s32.totalorder %s56, %s57
      %p69 = scmp.eq.s32.totalorder %s26, 3
      %p70 = por %p68, %p69
      %p72 = scmp.ne.s32.totalorder %s57, %s71
      %p73 = scmp.eq.s32.totalorder %s26, 0
      %p74 = por %p72, %p73
      %s76 = sadd.s32 %s75, 1
      %p79 = scmp.eq.s32.totalorder %s20, 3
      %p80 = scmp.ne.s32.totalorder %s75, %s77
      %p81 = scmp.eq.s32.totalorder %s20, 0
      %p82 = por %p80, %p81
      %p83 = scmp.ne.s32.totalorder %s75, %s77
      %p84 = scmp.eq.s32.totalorder %s25, 3
      %p85 = por %p83, %p84
      %p86 = scmp.ne.s32.totalorder %s77, %s78
      %p87 = scmp.eq.s32.totalorder %s25, 0
      %p88 = por %p86, %p87
      %p89 = scmp.ne.s32.totalorder %s77, %s78
      %p90 = scmp.eq.s32.totalorder %s26, 3
      %p91 = por %p89, %p90
      %p93 = scmp.ne.s32.totalorder %s78, %s92
      %p94 = scmp.eq.s32.totalorder %s26, 0
      %p95 = por %p93, %p94
      %s97 = sadd.s32 %s96, 1
      %p100 = scmp.eq.s32.totalorder %s20, 3
      %p101 = scmp.ne.s32.totalorder %s96, %s98
      %p102 = scmp.eq.s32.totalorder %s20, 0
      %p103 = por %p101, %p102
      %p104 = scmp.ne.s32.totalorder %s96, %s98
      %p105 = scmp.eq.s32.totalorder %s25, 3
      %p106 = por %p104, %p105
      %p107 = scmp.ne.s32.totalorder %s98, %s99
      %p108 = scmp.eq.s32.totalorder %s25, 0
      %p109 = por %p107, %p108
      %p110 = scmp.ne.s32.totalorder %s98, %s99
      %p111 = scmp.eq.s32.totalorder %s26, 3
      %p112 = por %p110, %p111
      %p114 = scmp.ne.s32.totalorder %s99, %s113
      %p115 = scmp.eq.s32.totalorder %s26, 0
      %p116 = por %p114, %p115
      %s118 = sadd.s32 %s117, 1
      %p121 = scmp.eq.s32.totalorder %s20, 3
      %p122 = scmp.ne.s32.totalorder %s117, %s119
      %p123 = scmp.eq.s32.totalorder %s20, 0
      %p124 = por %p122, %p123
      %p125 = scmp.ne.s32.totalorder %s117, %s119
      %p126 = scmp.eq.s32.totalorder %s25, 3
      %p127 = por %p125, %p126
      %p128 = scmp.ne.s32.totalorder %s119, %s120
      %p129 = scmp.eq.s32.totalorder %s25, 0
      %p130 = por %p128, %p129
      %p131 = scmp.ne.s32.totalorder %s119, %s120
      %p132 = scmp.eq.s32.totalorder %s26, 3
      %p133 = por %p131, %p132
      %p135 = scmp.ne.s32.totalorder %s120, %s134
      %p136 = scmp.eq.s32.totalorder %s26, 0
      %p137 = por %p135, %p136
      %s139 = sadd.s32 %s138, 1
      %p142 = scmp.eq.s32.totalorder %s20, 3
      %p143 = scmp.ne.s32.totalorder %s138, %s140
      %p144 = scmp.eq.s32.totalorder %s20, 0
      %p145 = por %p143, %p144
      %p146 = scmp.ne.s32.totalorder %s138, %s140
      %p147 = scmp.eq.s32.totalorder %s25, 3
      %p148 = por %p146, %p147
      %p149 = scmp.ne.s32.totalorder %s140, %s141
      %p150 = scmp.eq.s32.totalorder %s25, 0
      %p151 = por %p149, %p150
      %p152 = scmp.ne.s32.totalorder %s140, %s141
      %p153 = scmp.eq.s32.totalorder %s26, 3
      %p154 = por %p152, %p153
      %p156 = scmp.ne.s32.totalorder %s141, %s155
      %p157 = scmp.eq.s32.totalorder %s26, 0
      %p158 = por %p156, %p157
      %s160 = sadd.s32 %s159, 1
      %p163 = scmp.eq.s32.totalorder %s20, 3
      %p164 = scmp.ne.s32.totalorder %s159, %s161
      %p165 = scmp.eq.s32.totalorder %s20, 0
      %p166 = por %p164, %p165
      %p167 = scmp.ne.s32.totalorder %s159, %s161
      %p168 = scmp.eq.s32.totalorder %s25, 3
      %p169 = por %p167, %p168
      %p170 = scmp.ne.s32.totalorder %s161, %s162
      %p171 = scmp.eq.s32.totalorder %s25, 0
      %p172 = por %p170, %p171
      %p173 = scmp.ne.s32.totalorder %s161, %s162
      %p174 = scmp.eq.s32.totalorder %s26, 3
      %p175 = por %p173, %p174
      %p177 = scmp.ne.s32.totalorder %s162, %s176
      %p178 = scmp.eq.s32.totalorder %s26, 0
      %p179 = por %p177, %p178
      %s180 = ssub.s32 %s20, %s27
      %p181 = scmp.eq.s32.totalorder %s180, 0
      %s183 = sadd.s32 %s182, 1
      %s184 = scalar_select %p181, %s182, %s183
      %p187 = pneg %p181
      %p188 = scmp.eq.s32.totalorder %s20, 3
      %p189 = por %p187, %p188
      %p190 = scmp.ne.s32.totalorder %s182, %s185
      %p191 = scmp.eq.s32.totalorder %s20, 0
      %p192 = por %p190, %p191
      %p193 = scmp.ne.s32.totalorder %s182, %s185
      %p194 = scmp.eq.s32.totalorder %s25, 3
      %p195 = por %p193, %p194
      %p196 = scmp.ne.s32.totalorder %s185, %s186
      %p197 = scmp.eq.s32.totalorder %s25, 0
      %p198 = por %p196, %p197
      %p199 = scmp.ne.s32.totalorder %s185, %s186
      %p200 = scmp.eq.s32.totalorder %s26, 3
      %p201 = por %p199, %p200
      %p203 = scmp.ne.s32.totalorder %s186, %s202
      %p204 = scmp.eq.s32.totalorder %s26, 0
      %p205 = por %p203, %p204
      %p206 = scmp.le.s32.totalorder 1, %s20
      %p207 = scmp.lt.s32.totalorder %s20, 5
      %p208 = pnand %p206, %p207
      %p209 = pneg %p208
      // Predicated region
      $region9: #{tpu_custom_call.1} parent=5 // pred_check
        _
      $region10: #{tpu_custom_call.1} parent=5 // pred_check_branch
        %211 = sbr.rel (%p208) target = $region12
      $region11: #{tpu_custom_call.1} parent=5 // pred_region
        %s212 = ssub.s32 %s20, 1
        // Predicated region
        $region13: #{tpu_custom_call.1} parent=11 // pred_check
          %p213 = pneg %p67
        $region14: #{tpu_custom_call.1} parent=11 // pred_check_branch
          %215 = sbr.rel (%p213) target = $region16
        $region15: #{tpu_custom_call.1} parent=11 // pred_region
          _
        $region16: #{tpu_custom_call.1} parent=11 // pred_fallthru
          _
        // Predicated region
        $region17: #{tpu_custom_call.1} parent=11 // pred_check
          %p216 = pneg %p88
        $region18: #{tpu_custom_call.1} parent=11 // pred_check_branch
          %218 = sbr.rel (%p216) target = $region20
        $region19: #{tpu_custom_call.1} parent=11 // pred_region
          _
        $region20: #{tpu_custom_call.1} parent=11 // pred_fallthru
          _
        // Predicated region
        $region21: #{tpu_custom_call.1} parent=11 // pred_check
          %p219 = pneg %p109
        $region22: #{tpu_custom_call.1} parent=11 // pred_check_branch
          %221 = sbr.rel (%p219) target = $region24
        $region23: #{tpu_custom_call.1} parent=11 // pred_region
          %s223 = ssub.s32 3072, 3072
          %224 = vsyncadd [#allocation6], %s223
          %s225 = sshll.u32 [#allocation5], 4
          %s226 = int_to_ptr.vmem [resolvable:$true] %s225
          %231 = dma.hbm_to_vmem [thread:$0]  %s3, 3072, %s226, [#allocation6], 192, 192, 12
        $region24: #{tpu_custom_call.1} parent=11 // pred_fallthru
          _
        // Predicated region
        $region25: #{tpu_custom_call.1} parent=11 // pred_check
          %p232 = pneg %p130
        $region26: #{tpu_custom_call.1} parent=11 // pred_check_branch
          %234 = sbr.rel (%p232) target = $region28
        $region27: #{tpu_custom_call.1} parent=11 // pred_region
          _
        $region28: #{tpu_custom_call.1} parent=11 // pred_fallthru
          _
        // Predicated region
        $region29: #{tpu_custom_call.1} parent=11 // pred_check
          %p235 = pneg %p151
        $region30: #{tpu_custom_call.1} parent=11 // pred_check_branch
          %237 = sbr.rel (%p235) target = $region32
        $region31: #{tpu_custom_call.1} parent=11 // pred_region
          %s239 = ssub.s32 1024, 1024
          %240 = vsyncadd [#allocation6], %s239
          %s241 = sshll.u32 [#allocation7], 4
          %s242 = int_to_ptr.vmem [resolvable:$true] %s241
          %247 = dma.hbm_to_vmem [thread:$0]  %s5, 1024, %s242, [#allocation6], 64, 64, 4
        $region32: #{tpu_custom_call.1} parent=11 // pred_fallthru
          _
        // Predicated region
        $region33: #{tpu_custom_call.1} parent=11 // pred_check
          %p248 = pneg %p172
        $region34: #{tpu_custom_call.1} parent=11 // pred_check_branch
          %250 = sbr.rel (%p248) target = $region36
        $region35: #{tpu_custom_call.1} parent=11 // pred_region
          _
        $region36: #{tpu_custom_call.1} parent=11 // pred_fallthru
          _
      $region12: #{tpu_custom_call.1} parent=5 // pred_fallthru
        _
      %p251 = scmp.lt.s32.totalorder %s20, 4
      // Predicated region
      $region37: #{tpu_custom_call.1} parent=5 // pred_check
        %p252 = pneg %p251
      $region38: #{tpu_custom_call.1} parent=5 // pred_check_branch
        %254 = sbr.rel (%p252) target = $region40
      $region39: #{tpu_custom_call.1} parent=5 // pred_region
        // Predicated region
        $region41: #{tpu_custom_call.1} parent=39 // pred_check
          %p255 = pneg %p40
        $region42: #{tpu_custom_call.1} parent=39 // pred_check_branch
          %257 = sbr.rel (%p255) target = $region44
        $region43: #{tpu_custom_call.1} parent=39 // pred_region
          %s258 = sand.u32 %s30, 1
          %s259 = scalar_lea.sflag [#allocation3], %s258
          %s260 = sand.u32 %s30, 1
          %s261 = smul.addr %s260, 256
          %s262 = scalar_lea.vmem [#allocation2], %s261
          %s263 = smul.u32 2, %s20
          %s265 = ssub.s32 4096, 4096
          %266 = vsyncadd %s259, %s265
          %s267 = smul.addr %s263, 16
          %s268 = smul.addr %s267, 128
          %s269 = scalar_lea.hbm %s0, %s268
          %s270 = sshll.u32 %s262, 4
          %s271 = int_to_ptr.vmem [resolvable:$true] %s270
          %276 = dma.hbm_to_vmem [thread:$0]  %s269, 4096, %s271, %s259, 128, 128, 8
        $region44: #{tpu_custom_call.1} parent=39 // pred_fallthru
          _
      $region40: #{tpu_custom_call.1} parent=5 // pred_fallthru
        _
      %p277 = scmp.le.s32.totalorder 1, %s20
      %p278 = scmp.lt.s32.totalorder %s20, 5
      %p279 = pnand %p277, %p278
      %p280 = pneg %p279
      // Predicated region
      $region45: #{tpu_custom_call.1} parent=5 // pred_check
        _
      $region46: #{tpu_custom_call.1} parent=5 // pred_check_branch
        %282 = sbr.rel (%p279) target = $region48
      $region47: #{tpu_custom_call.1} parent=5 // pred_region
        %s283 = ssub.s32 %s20, 1
        %s284 = sand.u32 %s33, 1
        %s285 = scalar_lea.sflag [#allocation3], %s284
        %s286 = sand.u32 %s33, 1
        %s287 = smul.addr %s286, 256
        %s288 = scalar_lea.vmem [#allocation2], %s287
        // Predicated region
        $region49: #{tpu_custom_call.1} parent=47 // pred_check
          %p289 = pneg %p46
        $region50: #{tpu_custom_call.1} parent=47 // pred_check_branch
          %291 = sbr.rel (%p289) target = $region52
        $region51: #{tpu_custom_call.1} parent=47 // pred_region
          %292 = dma.done %s285, 4096
        $region52: #{tpu_custom_call.1} parent=47 // pred_fallthru
          _
        // Predicated region
        $region53: #{tpu_custom_call.1} parent=47 // pred_check
          %p293 = pneg %p109
        $region54: #{tpu_custom_call.1} parent=47 // pred_check_branch
          %295 = sbr.rel (%p293) target = $region56
        $region55: #{tpu_custom_call.1} parent=47 // pred_region
          %296 = dma.done [#allocation6], 3072
        $region56: #{tpu_custom_call.1} parent=47 // pred_fallthru
          _
        // Predicated region
        $region57: #{tpu_custom_call.1} parent=47 // pred_check
          %p297 = pneg %p151
        $region58: #{tpu_custom_call.1} parent=47 // pred_check_branch
          %299 = sbr.rel (%p297) target = $region60
        $region59: #{tpu_custom_call.1} parent=47 // pred_region
          %300 = dma.done [#allocation6], 1024
        $region60: #{tpu_custom_call.1} parent=47 // pred_fallthru
          _
        %s301 = sand.u32 %s33, 1
        %s302 = scalar_lea.sflag [#allocation3], %s301
        %s303 = sand.u32 %s33, 1
        %s304 = smul.addr %s303, 256
        %s305 = scalar_lea.vmem [#allocation2], %s304
        %p306 = pneg %p46
        %p307 = pneg %p43
        %p308 = pneg %p67
        %p309 = pneg %p64
        %p310 = pneg %p88
        %p311 = pneg %p85
        %p312 = pneg %p109
        %p313 = pneg %p106
        %p314 = pneg %p130
        %p315 = pneg %p127
        %p316 = pneg %p151
        %p317 = pneg %p148
        %p318 = pneg %p172
        %p319 = pneg %p169
        %p320 = pneg %p198
        %p321 = pneg %p195
        %s322 = sand.u32 %s185, 1
        %s323 = scalar_lea.sflag [#allocation4], %s322
        %s324 = sand.u32 %s185, 1
        %s325 = smul.addr %s324, 256
        %s326 = scalar_lea.vmem [#allocation8], %s325
        %s327 = smul.u32 2, %s25
        %s328 = smul.u32 2, %s25
        %v330 = vld [vmem:[%s288] sm:$0xff]
        %v331 = vld [vmem:[%s288 + $0x8] sm:$0xff]
        %v332 = vld [vmem:[%s288 + $0x10] sm:$0xff]
        %v333 = vld [vmem:[%s288 + $0x18] sm:$0xff]
        %v334 = vld [vmem:[%s288 + $0x20] sm:$0xff]
        %v335 = vld [vmem:[%s288 + $0x28] sm:$0xff]
        %v336 = vld [vmem:[%s288 + $0x30] sm:$0xff]
        %v337 = vld [vmem:[%s288 + $0x38] sm:$0xff]
        %v338 = vld [vmem:[%s288 + $0x40] sm:$0xff]
        %v339 = vld [vmem:[%s288 + $0x48] sm:$0xff]
        %v340 = vld [vmem:[%s288 + $0x50] sm:$0xff]
        %v341 = vld [vmem:[%s288 + $0x58] sm:$0xff]
        %v342 = vld [vmem:[%s288 + $0x60] sm:$0xff]
        %v343 = vld [vmem:[%s288 + $0x68] sm:$0xff]
        %v344 = vld [vmem:[%s288 + $0x70] sm:$0xff]
        %v345 = vld [vmem:[%s288 + $0x78] sm:$0xff]
        %v346 = vld [vmem:[%s288 + $0x80] sm:$0xff]
        %v347 = vld [vmem:[%s288 + $0x88] sm:$0xff]
        %v348 = vld [vmem:[%s288 + $0x90] sm:$0xff]
        %v349 = vld [vmem:[%s288 + $0x98] sm:$0xff]
        %v350 = vld [vmem:[%s288 + $0xa0] sm:$0xff]
        %v351 = vld [vmem:[%s288 + $0xa8] sm:$0xff]
        %v352 = vld [vmem:[%s288 + $0xb0] sm:$0xff]
        %v353 = vld [vmem:[%s288 + $0xb8] sm:$0xff]
        %v354 = vld [vmem:[%s288 + $0xc0] sm:$0xff]
        %v355 = vld [vmem:[%s288 + $0xc8] sm:$0xff]
        %v356 = vld [vmem:[%s288 + $0xd0] sm:$0xff]
        %v357 = vld [vmem:[%s288 + $0xd8] sm:$0xff]
        %v358 = vld [vmem:[%s288 + $0xe0] sm:$0xff]
        %v359 = vld [vmem:[%s288 + $0xe8] sm:$0xff]
        %v360 = vld [vmem:[%s288 + $0xf0] sm:$0xff]
        %v361 = vld [vmem:[%s288 + $0xf8] sm:$0xff]
        %362 = vadd.xlane.f32.xlu0 %v330
        %v363 = vpop.xlane.xlu0 %362
        %364 = vadd.xlane.f32.xlu0 %v331
        %v365 = vpop.xlane.xlu0 %364
        %366 = vadd.xlane.f32.xlu0 %v332
        %v367 = vpop.xlane.xlu0 %366
        %368 = vadd.xlane.f32.xlu0 %v333
        %v369 = vpop.xlane.xlu0 %368
        %370 = vadd.xlane.f32.xlu0 %v334
        %v371 = vpop.xlane.xlu0 %370
        %372 = vadd.xlane.f32.xlu0 %v335
        %v373 = vpop.xlane.xlu0 %372
        %374 = vadd.xlane.f32.xlu0 %v336
        %v375 = vpop.xlane.xlu0 %374
        %376 = vadd.xlane.f32.xlu0 %v337
        %v377 = vpop.xlane.xlu0 %376
        %378 = vadd.xlane.f32.xlu0 %v338
        %v379 = vpop.xlane.xlu0 %378
        %380 = vadd.xlane.f32.xlu0 %v339
        %v381 = vpop.xlane.xlu0 %380
        %382 = vadd.xlane.f32.xlu0 %v340
        %v383 = vpop.xlane.xlu0 %382
        %384 = vadd.xlane.f32.xlu0 %v341
        %v385 = vpop.xlane.xlu0 %384
        %386 = vadd.xlane.f32.xlu0 %v342
        %v387 = vpop.xlane.xlu0 %386
        %388 = vadd.xlane.f32.xlu0 %v343
        %v389 = vpop.xlane.xlu0 %388
        %390 = vadd.xlane.f32.xlu0 %v344
        %v391 = vpop.xlane.xlu0 %390
        %392 = vadd.xlane.f32.xlu0 %v345
        %v393 = vpop.xlane.xlu0 %392
        %394 = vadd.xlane.f32.xlu0 %v346
        %v395 = vpop.xlane.xlu0 %394
        %396 = vadd.xlane.f32.xlu0 %v347
        %v397 = vpop.xlane.xlu0 %396
        %398 = vadd.xlane.f32.xlu0 %v348
        %v399 = vpop.xlane.xlu0 %398
        %400 = vadd.xlane.f32.xlu0 %v349
        %v401 = vpop.xlane.xlu0 %400
        %402 = vadd.xlane.f32.xlu0 %v350
        %v403 = vpop.xlane.xlu0 %402
        %404 = vadd.xlane.f32.xlu0 %v351
        %v405 = vpop.xlane.xlu0 %404
        %406 = vadd.xlane.f32.xlu0 %v352
        %v407 = vpop.xlane.xlu0 %406
        %408 = vadd.xlane.f32.xlu0 %v353
        %v409 = vpop.xlane.xlu0 %408
        %410 = vadd.xlane.f32.xlu0 %v354
        %v411 = vpop.xlane.xlu0 %410
        %412 = vadd.xlane.f32.xlu0 %v355
        %v413 = vpop.xlane.xlu0 %412
        %414 = vadd.xlane.f32.xlu0 %v356
        %v415 = vpop.xlane.xlu0 %414
        %416 = vadd.xlane.f32.xlu0 %v357
        %v417 = vpop.xlane.xlu0 %416
        %418 = vadd.xlane.f32.xlu0 %v358
        %v419 = vpop.xlane.xlu0 %418
        %420 = vadd.xlane.f32.xlu0 %v359
        %v421 = vpop.xlane.xlu0 %420
        %422 = vadd.xlane.f32.xlu0 %v360
        %v423 = vpop.xlane.xlu0 %422
        %424 = vadd.xlane.f32.xlu0 %v361
        %v425 = vpop.xlane.xlu0 %424
        %v426 = vrcp.pop 128.0
        %v427 = vmul.f32 %v363, %v426
        %v428 = vmul.f32 %v365, %v426
        %v429 = vmul.f32 %v367, %v426
        %v430 = vmul.f32 %v369, %v426
        %v431 = vmul.f32 %v371, %v426
        %v432 = vmul.f32 %v373, %v426
        %v433 = vmul.f32 %v375, %v426
        %v434 = vmul.f32 %v377, %v426
        %v435 = vmul.f32 %v379, %v426
        %v436 = vmul.f32 %v381, %v426
        %v437 = vmul.f32 %v383, %v426
        %v438 = vmul.f32 %v385, %v426
        %v439 = vmul.f32 %v387, %v426
        %v440 = vmul.f32 %v389, %v426
        %v441 = vmul.f32 %v391, %v426
        %v442 = vmul.f32 %v393, %v426
        %v443 = vmul.f32 %v395, %v426
        %v444 = vmul.f32 %v397, %v426
        %v445 = vmul.f32 %v399, %v426
        %v446 = vmul.f32 %v401, %v426
        %v447 = vmul.f32 %v403, %v426
        %v448 = vmul.f32 %v405, %v426
        %v449 = vmul.f32 %v407, %v426
        %v450 = vmul.f32 %v409, %v426
        %v451 = vmul.f32 %v411, %v426
        %v452 = vmul.f32 %v413, %v426
        %v453 = vmul.f32 %v415, %v426
        %v454 = vmul.f32 %v417, %v426
        %v455 = vmul.f32 %v419, %v426
        %v456 = vmul.f32 %v421, %v426
        %v457 = vmul.f32 %v423, %v426
        %v458 = vmul.f32 %v425, %v426
        %v459 = vsub.f32 %v330, %v427
        %v460 = vsub.f32 %v331, %v428
        %v461 = vsub.f32 %v332, %v429
        %v462 = vsub.f32 %v333, %v430
        %v463 = vsub.f32 %v334, %v431
        %v464 = vsub.f32 %v335, %v432
        %v465 = vsub.f32 %v336, %v433
        %v466 = vsub.f32 %v337, %v434
        %v467 = vsub.f32 %v338, %v435
        %v468 = vsub.f32 %v339, %v436
        %v469 = vsub.f32 %v340, %v437
        %v470 = vsub.f32 %v341, %v438
        %v471 = vsub.f32 %v342, %v439
        %v472 = vsub.f32 %v343, %v440
        %v473 = vsub.f32 %v344, %v441
        %v474 = vsub.f32 %v345, %v442
        %v475 = vsub.f32 %v346, %v443
        %v476 = vsub.f32 %v347, %v444
        %v477 = vsub.f32 %v348, %v445
        %v478 = vsub.f32 %v349, %v446
        %v479 = vsub.f32 %v350, %v447
        %v480 = vsub.f32 %v351, %v448
        %v481 = vsub.f32 %v352, %v449
        %v482 = vsub.f32 %v353, %v450
        %v483 = vsub.f32 %v354, %v451
        %v484 = vsub.f32 %v355, %v452
        %v485 = vsub.f32 %v356, %v453
        %v486 = vsub.f32 %v357, %v454
        %v487 = vsub.f32 %v358, %v455
        %v488 = vsub.f32 %v359, %v456
        %v489 = vsub.f32 %v360, %v457
        %v490 = vsub.f32 %v361, %v458
        %v491 = vmul.f32 %v459, %v459
        %v492 = vmul.f32 %v460, %v460
        %v493 = vmul.f32 %v461, %v461
        %v494 = vmul.f32 %v462, %v462
        %v495 = vmul.f32 %v463, %v463
        %v496 = vmul.f32 %v464, %v464
        %v497 = vmul.f32 %v465, %v465
        %v498 = vmul.f32 %v466, %v466
        %v499 = vmul.f32 %v467, %v467
        %v500 = vmul.f32 %v468, %v468
        %v501 = vmul.f32 %v469, %v469
        %v502 = vmul.f32 %v470, %v470
        %v503 = vmul.f32 %v471, %v471
        %v504 = vmul.f32 %v472, %v472
        %v505 = vmul.f32 %v473, %v473
        %v506 = vmul.f32 %v474, %v474
        %v507 = vmul.f32 %v475, %v475
        %v508 = vmul.f32 %v476, %v476
        %v509 = vmul.f32 %v477, %v477
        %v510 = vmul.f32 %v478, %v478
        %v511 = vmul.f32 %v479, %v479
        %v512 = vmul.f32 %v480, %v480
        %v513 = vmul.f32 %v481, %v481
        %v514 = vmul.f32 %v482, %v482
        %v515 = vmul.f32 %v483, %v483
        %v516 = vmul.f32 %v484, %v484
        %v517 = vmul.f32 %v485, %v485
        %v518 = vmul.f32 %v486, %v486
        %v519 = vmul.f32 %v487, %v487
        %v520 = vmul.f32 %v488, %v488
        %v521 = vmul.f32 %v489, %v489
        %v522 = vmul.f32 %v490, %v490
        %523 = vadd.xlane.f32.xlu0 %v491
        %v524 = vpop.xlane.xlu0 %523
        %525 = vadd.xlane.f32.xlu0 %v492
        %v526 = vpop.xlane.xlu0 %525
        %527 = vadd.xlane.f32.xlu0 %v493
        %v528 = vpop.xlane.xlu0 %527
        %529 = vadd.xlane.f32.xlu0 %v494
        %v530 = vpop.xlane.xlu0 %529
        %531 = vadd.xlane.f32.xlu0 %v495
        %v532 = vpop.xlane.xlu0 %531
        %533 = vadd.xlane.f32.xlu0 %v496
        %v534 = vpop.xlane.xlu0 %533
        %535 = vadd.xlane.f32.xlu0 %v497
        %v536 = vpop.xlane.xlu0 %535
        %537 = vadd.xlane.f32.xlu0 %v498
        %v538 = vpop.xlane.xlu0 %537
        %539 = vadd.xlane.f32.xlu0 %v499
        %v540 = vpop.xlane.xlu0 %539
        %541 = vadd.xlane.f32.xlu0 %v500
        %v542 = vpop.xlane.xlu0 %541
        %543 = vadd.xlane.f32.xlu0 %v501
        %v544 = vpop.xlane.xlu0 %543
        %545 = vadd.xlane.f32.xlu0 %v502
        %v546 = vpop.xlane.xlu0 %545
        %547 = vadd.xlane.f32.xlu0 %v503
        %v548 = vpop.xlane.xlu0 %547
        %549 = vadd.xlane.f32.xlu0 %v504
        %v550 = vpop.xlane.xlu0 %549
        %551 = vadd.xlane.f32.xlu0 %v505
        %v552 = vpop.xlane.xlu0 %551
        %553 = vadd.xlane.f32.xlu0 %v506
        %v554 = vpop.xlane.xlu0 %553
        %555 = vadd.xlane.f32.xlu0 %v507
        %v556 = vpop.xlane.xlu0 %555
        %557 = vadd.xlane.f32.xlu0 %v508
        %v558 = vpop.xlane.xlu0 %557
        %559 = vadd.xlane.f32.xlu0 %v509
        %v560 = vpop.xlane.xlu0 %559
        %561 = vadd.xlane.f32.xlu0 %v510
        %v562 = vpop.xlane.xlu0 %561
        %563 = vadd.xlane.f32.xlu0 %v511
        %v564 = vpop.xlane.xlu0 %563
        %565 = vadd.xlane.f32.xlu0 %v512
        %v566 = vpop.xlane.xlu0 %565
        %567 = vadd.xlane.f32.xlu0 %v513
        %v568 = vpop.xlane.xlu0 %567
        %569 = vadd.xlane.f32.xlu0 %v514
        %v570 = vpop.xlane.xlu0 %569
        %571 = vadd.xlane.f32.xlu0 %v515
        %v572 = vpop.xlane.xlu0 %571
        %573 = vadd.xlane.f32.xlu0 %v516
        %v574 = vpop.xlane.xlu0 %573
        %575 = vadd.xlane.f32.xlu0 %v517
        %v576 = vpop.xlane.xlu0 %575
        %577 = vadd.xlane.f32.xlu0 %v518
        %v578 = vpop.xlane.xlu0 %577
        %579 = vadd.xlane.f32.xlu0 %v519
        %v580 = vpop.xlane.xlu0 %579
        %581 = vadd.xlane.f32.xlu0 %v520
        %v582 = vpop.xlane.xlu0 %581
        %583 = vadd.xlane.f32.xlu0 %v521
        %v584 = vpop.xlane.xlu0 %583
        %585 = vadd.xlane.f32.xlu0 %v522
        %v586 = vpop.xlane.xlu0 %585
        %v587 = vmul.f32 %v524, %v426
        %v588 = vmul.f32 %v526, %v426
        %v589 = vmul.f32 %v528, %v426
        %v590 = vmul.f32 %v530, %v426
        %v591 = vmul.f32 %v532, %v426
        %v592 = vmul.f32 %v534, %v426
        %v593 = vmul.f32 %v536, %v426
        %v594 = vmul.f32 %v538, %v426
        %v595 = vmul.f32 %v540, %v426
        %v596 = vmul.f32 %v542, %v426
        %v597 = vmul.f32 %v544, %v426
        %v598 = vmul.f32 %v546, %v426
        %v599 = vmul.f32 %v548, %v426
        %v600 = vmul.f32 %v550, %v426
        %v601 = vmul.f32 %v552, %v426
        %v602 = vmul.f32 %v554, %v426
        %v603 = vmul.f32 %v556, %v426
        %v604 = vmul.f32 %v558, %v426
        %v605 = vmul.f32 %v560, %v426
        %v606 = vmul.f32 %v562, %v426
        %v607 = vmul.f32 %v564, %v426
        %v608 = vmul.f32 %v566, %v426
        %v609 = vmul.f32 %v568, %v426
        %v610 = vmul.f32 %v570, %v426
        %v611 = vmul.f32 %v572, %v426
        %v612 = vmul.f32 %v574, %v426
        %v613 = vmul.f32 %v576, %v426
        %v614 = vmul.f32 %v578, %v426
        %v615 = vmul.f32 %v580, %v426
        %v616 = vmul.f32 %v582, %v426
        %v617 = vmul.f32 %v584, %v426
        %v618 = vmul.f32 %v586, %v426
        %v619 = vadd.f32 %v587, 1e-05
        %v620 = vadd.f32 %v588, 1e-05
        %v621 = vadd.f32 %v589, 1e-05
        %v622 = vadd.f32 %v590, 1e-05
        %v623 = vadd.f32 %v591, 1e-05
        %v624 = vadd.f32 %v592, 1e-05
        %v625 = vadd.f32 %v593, 1e-05
        %v626 = vadd.f32 %v594, 1e-05
        %v627 = vadd.f32 %v595, 1e-05
        %v628 = vadd.f32 %v596, 1e-05
        %v629 = vadd.f32 %v597, 1e-05
        %v630 = vadd.f32 %v598, 1e-05
        %v631 = vadd.f32 %v599, 1e-05
        %v632 = vadd.f32 %v600, 1e-05
        %v633 = vadd.f32 %v601, 1e-05
        %v634 = vadd.f32 %v602, 1e-05
        %v635 = vadd.f32 %v603, 1e-05
        %v636 = vadd.f32 %v604, 1e-05
        %v637 = vadd.f32 %v605, 1e-05
        %v638 = vadd.f32 %v606, 1e-05
        %v639 = vadd.f32 %v607, 1e-05
        %v640 = vadd.f32 %v608, 1e-05
        %v641 = vadd.f32 %v609, 1e-05
        %v642 = vadd.f32 %v610, 1e-05
        %v643 = vadd.f32 %v611, 1e-05
        %v644 = vadd.f32 %v612, 1e-05
        %v645 = vadd.f32 %v613, 1e-05
        %v646 = vadd.f32 %v614, 1e-05
        %v647 = vadd.f32 %v615, 1e-05
        %v648 = vadd.f32 %v616, 1e-05
        %v649 = vadd.f32 %v617, 1e-05
        %v650 = vadd.f32 %v618, 1e-05
        %v651 = vrsqrt.pop %v619
        %v652 = vrsqrt.pop %v620
        %v653 = vrsqrt.pop %v621
        %v654 = vrsqrt.pop %v622
        %v655 = vrsqrt.pop %v623
        %v656 = vrsqrt.pop %v624
        %v657 = vrsqrt.pop %v625
        %v658 = vrsqrt.pop %v626
        %v659 = vrsqrt.pop %v627
        %v660 = vrsqrt.pop %v628
        %v661 = vrsqrt.pop %v629
        %v662 = vrsqrt.pop %v630
        %v663 = vrsqrt.pop %v631
        %v664 = vrsqrt.pop %v632
        %v665 = vrsqrt.pop %v633
        %v666 = vrsqrt.pop %v634
        %v667 = vrsqrt.pop %v635
        %v668 = vrsqrt.pop %v636
        %v669 = vrsqrt.pop %v637
        %v670 = vrsqrt.pop %v638
        %v671 = vrsqrt.pop %v639
        %v672 = vrsqrt.pop %v640
        %v673 = vrsqrt.pop %v641
        %v674 = vrsqrt.pop %v642
        %v675 = vrsqrt.pop %v643
        %v676 = vrsqrt.pop %v644
        %v677 = vrsqrt.pop %v645
        %v678 = vrsqrt.pop %v646
        %v679 = vrsqrt.pop %v647
        %v680 = vrsqrt.pop %v648
        %v681 = vrsqrt.pop %v649
        %v682 = vrsqrt.pop %v650
        %v683 = vmul.f32 %v459, %v651
        %v684 = vmul.f32 %v460, %v652
        %v685 = vmul.f32 %v461, %v653
        %v686 = vmul.f32 %v462, %v654
        %v687 = vmul.f32 %v463, %v655
        %v688 = vmul.f32 %v464, %v656
        %v689 = vmul.f32 %v465, %v657
        %v690 = vmul.f32 %v466, %v658
        %v691 = vmul.f32 %v467, %v659
        %v692 = vmul.f32 %v468, %v660
        %v693 = vmul.f32 %v469, %v661
        %v694 = vmul.f32 %v470, %v662
        %v695 = vmul.f32 %v471, %v663
        %v696 = vmul.f32 %v472, %v664
        %v697 = vmul.f32 %v473, %v665
        %v698 = vmul.f32 %v474, %v666
        %v699 = vmul.f32 %v475, %v667
        %v700 = vmul.f32 %v476, %v668
        %v701 = vmul.f32 %v477, %v669
        %v702 = vmul.f32 %v478, %v670
        %v703 = vmul.f32 %v479, %v671
        %v704 = vmul.f32 %v480, %v672
        %v705 = vmul.f32 %v481, %v673
        %v706 = vmul.f32 %v482, %v674
        %v707 = vmul.f32 %v483, %v675
        %v708 = vmul.f32 %v484, %v676
        %v709 = vmul.f32 %v485, %v677
        %v710 = vmul.f32 %v486, %v678
        %v711 = vmul.f32 %v487, %v679
        %v712 = vmul.f32 %v488, %v680
        %v713 = vmul.f32 %v489, %v681
        %v714 = vmul.f32 %v490, %v682
        %v715 = vld [vmem:[%s1] sm:$0x1]
        %v717 = vlaneseq
        %v718 = vshrl.u32 %v717, 7
        %v719 = vsub.s32 0, %v718
        %v720 = vrot.slane %v715, %v719
        %v722 = vmul.f32 %v683, %v720
        %v723 = vmul.f32 %v684, %v720
        %v724 = vmul.f32 %v685, %v720
        %v725 = vmul.f32 %v686, %v720
        %v726 = vmul.f32 %v687, %v720
        %v727 = vmul.f32 %v688, %v720
        %v728 = vmul.f32 %v689, %v720
        %v729 = vmul.f32 %v690, %v720
        %v730 = vmul.f32 %v691, %v720
        %v731 = vmul.f32 %v692, %v720
        %v732 = vmul.f32 %v693, %v720
        %v733 = vmul.f32 %v694, %v720
        %v734 = vmul.f32 %v695, %v720
        %v735 = vmul.f32 %v696, %v720
        %v736 = vmul.f32 %v697, %v720
        %v737 = vmul.f32 %v698, %v720
        %v738 = vmul.f32 %v699, %v720
        %v739 = vmul.f32 %v700, %v720
        %v740 = vmul.f32 %v701, %v720
        %v741 = vmul.f32 %v702, %v720
        %v742 = vmul.f32 %v703, %v720
        %v743 = vmul.f32 %v704, %v720
        %v744 = vmul.f32 %v705, %v720
        %v745 = vmul.f32 %v706, %v720
        %v746 = vmul.f32 %v707, %v720
        %v747 = vmul.f32 %v708, %v720
        %v748 = vmul.f32 %v709, %v720
        %v749 = vmul.f32 %v710, %v720
        %v750 = vmul.f32 %v711, %v720
        %v751 = vmul.f32 %v712, %v720
        %v752 = vmul.f32 %v713, %v720
        %v753 = vmul.f32 %v714, %v720
        %v754 = vld [vmem:[%s2] sm:$0x1]
        %v756 = vlaneseq
        %v757 = vshrl.u32 %v756, 7
        %v758 = vsub.s32 0, %v757
        %v759 = vrot.slane %v754, %v758
        %v761 = vadd.f32 %v722, %v759
        %v762 = vadd.f32 %v723, %v759
        %v763 = vadd.f32 %v724, %v759
        %v764 = vadd.f32 %v725, %v759
        %v765 = vadd.f32 %v726, %v759
        %v766 = vadd.f32 %v727, %v759
        %v767 = vadd.f32 %v728, %v759
        %v768 = vadd.f32 %v729, %v759
        %v769 = vadd.f32 %v730, %v759
        %v770 = vadd.f32 %v731, %v759
        %v771 = vadd.f32 %v732, %v759
        %v772 = vadd.f32 %v733, %v759
        %v773 = vadd.f32 %v734, %v759
        %v774 = vadd.f32 %v735, %v759
        %v775 = vadd.f32 %v736, %v759
        %v776 = vadd.f32 %v737, %v759
        %v777 = vadd.f32 %v738, %v759
        %v778 = vadd.f32 %v739, %v759
        %v779 = vadd.f32 %v740, %v759
        %v780 = vadd.f32 %v741, %v759
        %v781 = vadd.f32 %v742, %v759
        %v782 = vadd.f32 %v743, %v759
        %v783 = vadd.f32 %v744, %v759
        %v784 = vadd.f32 %v745, %v759
        %v785 = vadd.f32 %v746, %v759
        %v786 = vadd.f32 %v747, %v759
        %v787 = vadd.f32 %v748, %v759
        %v788 = vadd.f32 %v749, %v759
        %v789 = vadd.f32 %v750, %v759
        %v790 = vadd.f32 %v751, %v759
        %v791 = vadd.f32 %v752, %v759
        %v792 = vadd.f32 %v753, %v759
        %v793 = vpack.c.bf16 %v762, %v761
        %v794 = vpack.c.bf16 %v764, %v763
        %v795 = vpack.c.bf16 %v766, %v765
        %v796 = vpack.c.bf16 %v768, %v767
        %v797 = vpack.c.bf16 %v770, %v769
        %v798 = vpack.c.bf16 %v772, %v771
        %v799 = vpack.c.bf16 %v774, %v773
        %v800 = vpack.c.bf16 %v776, %v775
        %v801 = vpack.c.bf16 %v778, %v777
        %v802 = vpack.c.bf16 %v780, %v779
        %v803 = vpack.c.bf16 %v782, %v781
        %v804 = vpack.c.bf16 %v784, %v783
        %v805 = vpack.c.bf16 %v786, %v785
        %v806 = vpack.c.bf16 %v788, %v787
        %v807 = vpack.c.bf16 %v790, %v789
        %v808 = vpack.c.bf16 %v792, %v791
        %v809 = vld [vmem:[#allocation5] sm:$0xff]
        %v810 = vld [vmem:[#allocation5 + $0x8] sm:$0xf]
        %v811 = vld [vmem:[#allocation5 + $0xc] sm:$0xff]
        %v812 = vld [vmem:[#allocation5 + $0x14] sm:$0xf]
        %v813 = vld [vmem:[#allocation5 + $0x18] sm:$0xff]
        %v814 = vld [vmem:[#allocation5 + $0x20] sm:$0xf]
        %v815 = vld [vmem:[#allocation5 + $0x24] sm:$0xff]
        %v816 = vld [vmem:[#allocation5 + $0x2c] sm:$0xf]
        %v817 = vld [vmem:[#allocation5 + $0x30] sm:$0xff]
        %v818 = vld [vmem:[#allocation5 + $0x38] sm:$0xf]
        %v819 = vld [vmem:[#allocation5 + $0x3c] sm:$0xff]
        %v820 = vld [vmem:[#allocation5 + $0x44] sm:$0xf]
        %v821 = vld [vmem:[#allocation5 + $0x48] sm:$0xff]
        %v822 = vld [vmem:[#allocation5 + $0x50] sm:$0xf]
        %v823 = vld [vmem:[#allocation5 + $0x54] sm:$0xff]
        %v824 = vld [vmem:[#allocation5 + $0x5c] sm:$0xf]
        %v825 = vld [vmem:[#allocation5 + $0x60] sm:$0xff]
        %v826 = vld [vmem:[#allocation5 + $0x68] sm:$0xf]
        %v827 = vld [vmem:[#allocation5 + $0x6c] sm:$0xff]
        %v828 = vld [vmem:[#allocation5 + $0x74] sm:$0xf]
        %v829 = vld [vmem:[#allocation5 + $0x78] sm:$0xff]
        %v830 = vld [vmem:[#allocation5 + $0x80] sm:$0xf]
        %v831 = vld [vmem:[#allocation5 + $0x84] sm:$0xff]
        %v832 = vld [vmem:[#allocation5 + $0x8c] sm:$0xf]
        %v833 = vld [vmem:[#allocation5 + $0x90] sm:$0xff]
        %v834 = vld [vmem:[#allocation5 + $0x98] sm:$0xf]
        %v835 = vld [vmem:[#allocation5 + $0x9c] sm:$0xff]
        %v836 = vld [vmem:[#allocation5 + $0xa4] sm:$0xf]
        %v837 = vld [vmem:[#allocation5 + $0xa8] sm:$0xff]
        %v838 = vld [vmem:[#allocation5 + $0xb0] sm:$0xf]
        %v839 = vld [vmem:[#allocation5 + $0xb4] sm:$0xff]
        %v840 = vld [vmem:[#allocation5 + $0xbc] sm:$0xf]
        %v841 = vld [vmem:[%s4] sm:$0x7]
        %v843 = vlaneseq
        %v844 = vshrl.u32 %v843, 7
        %v845 = vsub.s32 0, %v844
        %v846 = vrot.slane %v841, %v845
        %v847 = vlaneseq
        %v848 = vshrl.u32 %v847, 7
        %v849 = vsub.s32 1, %v848
        %v850 = vrot.slane %v841, %v849
        %v851 = vlaneseq
        %v852 = vshrl.u32 %v851, 7
        %v853 = vsub.s32 2, %v852
        %v854 = vrot.slane %v841, %v853
        %v890 = vunpack.c.l.b16 %v809
        %v891 = vunpack.c.h.b16 %v809
        %v892 = vunpack.c.l.b16 %v810
        %v893 = vunpack.c.l.b16 %v811
        %v894 = vunpack.c.h.b16 %v811
        %v895 = vunpack.c.l.b16 %v812
        %v896 = vunpack.c.l.b16 %v813
        %v897 = vunpack.c.h.b16 %v813
        %v898 = vunpack.c.l.b16 %v814
        %v899 = vunpack.c.l.b16 %v815
        %v900 = vunpack.c.h.b16 %v815
        %v901 = vunpack.c.l.b16 %v816
        %v902 = vunpack.c.l.b16 %v817
        %v903 = vunpack.c.h.b16 %v817
        %v904 = vunpack.c.l.b16 %v818
        %v905 = vunpack.c.l.b16 %v819
        %v906 = vunpack.c.h.b16 %v819
        %v907 = vunpack.c.l.b16 %v820
        %v908 = vunpack.c.l.b16 %v821
        %v909 = vunpack.c.h.b16 %v821
        %v910 = vunpack.c.l.b16 %v822
        %v911 = vunpack.c.l.b16 %v823
        %v912 = vunpack.c.h.b16 %v823
        %v913 = vunpack.c.l.b16 %v824
        %v914 = vunpack.c.l.b16 %v825
        %v915 = vunpack.c.h.b16 %v825
        %v916 = vunpack.c.l.b16 %v826
        %v917 = vunpack.c.l.b16 %v827
        %v918 = vunpack.c.h.b16 %v827
        %v919 = vunpack.c.l.b16 %v828
        %v920 = vunpack.c.l.b16 %v829
        %v921 = vunpack.c.h.b16 %v829
        %v922 = vunpack.c.l.b16 %v830
        %v923 = vunpack.c.l.b16 %v831
        %v924 = vunpack.c.h.b16 %v831
        %v925 = vunpack.c.l.b16 %v832
        %v926 = vunpack.c.l.b16 %v833
        %v927 = vunpack.c.h.b16 %v833
        %v928 = vunpack.c.l.b16 %v834
        %v929 = vunpack.c.l.b16 %v835
        %v930 = vunpack.c.h.b16 %v835
        %v931 = vunpack.c.l.b16 %v836
        %v932 = vunpack.c.l.b16 %v837
        %v933 = vunpack.c.h.b16 %v837
        %v934 = vunpack.c.l.b16 %v838
        %v935 = vunpack.c.l.b16 %v839
        %v936 = vunpack.c.h.b16 %v839
        %v937 = vunpack.c.l.b16 %v840
        %v938 = vpack.c.b16 %v893, %v890
        %v939 = vpack.c.b16 %v894, %v891
        %v940 = vpack.c.b16 %v895, %v892
        %v941 = vpack.c.b16 %v899, %v896
        %v942 = vpack.c.b16 %v900, %v897
        %v943 = vpack.c.b16 %v901, %v898
        %v944 = vpack.c.b16 %v905, %v902
        %v945 = vpack.c.b16 %v906, %v903
        %v946 = vpack.c.b16 %v907, %v904
        %v947 = vpack.c.b16 %v911, %v908
        %v948 = vpack.c.b16 %v912, %v909
        %v949 = vpack.c.b16 %v913, %v910
        %v950 = vpack.c.b16 %v917, %v914
        %v951 = vpack.c.b16 %v918, %v915
        %v952 = vpack.c.b16 %v919, %v916
        %v953 = vpack.c.b16 %v923, %v920
        %v954 = vpack.c.b16 %v924, %v921
        %v955 = vpack.c.b16 %v925, %v922
        %v956 = vpack.c.b16 %v929, %v926
        %v957 = vpack.c.b16 %v930, %v927
        %v958 = vpack.c.b16 %v931, %v928
        %v959 = vpack.c.b16 %v935, %v932
        %v960 = vpack.c.b16 %v936, %v933
        %v961 = vpack.c.b16 %v937, %v934
        %986 = vmatprep.subr.bf16.mxu0 %v939
        %987 = vmatpush1.bf16.msra.mxu0 %v938
        %988 = vmatprep.subr.bf16.mxu0 %v942
        %989 = vmatpush1.bf16.msra.mxu0 %v941
        %990 = vmatprep.subr.bf16.mxu0 %v945
        %991 = vmatpush1.bf16.msra.mxu0 %v944
        %992 = vmatprep.subr.bf16.mxu0 %v948
        %993 = vmatpush1.bf16.msra.mxu0 %v947
        %994 = vmatprep.subr.bf16.mxu0 %v951
        %995 = vmatpush1.bf16.msra.mxu0 %v950
        %996 = vmatprep.subr.bf16.mxu0 %v954
        %997 = vmatpush1.bf16.msra.mxu0 %v953
        %998 = vmatprep.subr.bf16.mxu0 %v957
        %999 = vmatpush1.bf16.msra.mxu0 %v956
        %1000 = vmatprep.subr.bf16.mxu0 %v960
        %1001 = vmatpush1.bf16.msra.mxu0 %v959
        %1002 = vmatprep.subr.bf16.mxu0 0
        %1003 = vmatpush1.bf16.msra.mxu0 0
        %1004 = vmatprep.subr.bf16.mxu0 0
        %1005 = vmatpush1.bf16.msra.mxu0 0
        %1006 = vmatprep.subr.bf16.mxu0 0
        %1007 = vmatpush1.bf16.msra.mxu0 0
        %1008 = vmatprep.subr.bf16.mxu0 0
        %1009 = vmatpush1.bf16.msra.mxu0 0
        %1010 = vmatprep.subr.bf16.mxu0 0
        %1011 = vmatpush1.bf16.msra.mxu0 0
        %1012 = vmatprep.subr.bf16.mxu0 0
        %1013 = vmatpush1.bf16.msra.mxu0 0
        %1014 = vmatprep.subr.bf16.mxu0 0
        %1015 = vmatpush1.bf16.msra.mxu0 0
        %1016 = vmatprep.subr.bf16.mxu0 0
        %1017 = vmatpush1.bf16.msra.mxu0 0
        %1018 = vmatprep.mubr.bf16.mxu0 0
        %1019 = vmatmul.mubr.bf16.gmra.mrb[0].mxu0 %v793
        %v1020 = vpop.f32.mrb[0].mxu0
        %v1021 = vadd.f32 %v846, %v1020
        %v1022 = vpop.f32.mrb[0].mxu0
        %v1023 = vadd.f32 %v850, %v1022
        %v1024 = vpop.f32.mrb[0].mxu0
        %v1025 = vadd.f32 %v846, %v1024
        %v1026 = vpop.f32.mrb[0].mxu0
        %v1027 = vadd.f32 %v850, %v1026
        %1028 = vmatprep.mubr.bf16.mxu0 0
        %1029 = vmatmul.mubr.bf16.gmra.mrb[0].mxu0 %v794
        %v1030 = vpop.f32.mrb[0].mxu0
        %v1031 = vadd.f32 %v846, %v1030
        %v1032 = vpop.f32.mrb[0].mxu0
        %v1033 = vadd.f32 %v850, %v1032
        %v1034 = vpop.f32.mrb[0].mxu0
        %v1035 = vadd.f32 %v846, %v1034
        %v1036 = vpop.f32.mrb[0].mxu0
        %v1037 = vadd.f32 %v850, %v1036
        %1038 = vmatprep.mubr.bf16.mxu0 0
        %1039 = vmatmul.mubr.bf16.gmra.mrb[0].mxu0 %v795
        %v1040 = vpop.f32.mrb[0].mxu0
        %v1041 = vadd.f32 %v846, %v1040
        %v1042 = vpop.f32.mrb[0].mxu0
        %v1043 = vadd.f32 %v850, %v1042
        %v1044 = vpop.f32.mrb[0].mxu0
        %v1045 = vadd.f32 %v846, %v1044
        %v1046 = vpop.f32.mrb[0].mxu0
        %v1047 = vadd.f32 %v850, %v1046
        %1048 = vmatprep.mubr.bf16.mxu0 0
        %1049 = vmatmul.mubr.bf16.gmra.mrb[0].mxu0 %v796
        %v1050 = vpop.f32.mrb[0].mxu0
        %v1051 = vadd.f32 %v846, %v1050
        %v1052 = vpop.f32.mrb[0].mxu0
        %v1053 = vadd.f32 %v850, %v1052
        %v1054 = vpop.f32.mrb[0].mxu0
        %v1055 = vadd.f32 %v846, %v1054
        %v1056 = vpop.f32.mrb[0].mxu0
        %v1057 = vadd.f32 %v850, %v1056
        %1058 = vmatprep.mubr.bf16.mxu0 0
        %1059 = vmatmul.mubr.bf16.gmra.mrb[0].mxu0 %v797
        %v1060 = vpop.f32.mrb[0].mxu0
        %v1061 = vadd.f32 %v846, %v1060
        %v1062 = vpop.f32.mrb[0].mxu0
        %v1063 = vadd.f32 %v850, %v1062
        %v1064 = vpop.f32.mrb[0].mxu0
        %v1065 = vadd.f32 %v846, %v1064
        %v1066 = vpop.f32.mrb[0].mxu0
        %v1067 = vadd.f32 %v850, %v1066
        %1068 = vmatprep.mubr.bf16.mxu0 0
        %1069 = vmatmul.mubr.bf16.gmra.mrb[0].mxu0 %v798
        %v1070 = vpop.f32.mrb[0].mxu0
        %v1071 = vadd.f32 %v846, %v1070
        %v1072 = vpop.f32.mrb[0].mxu0
        %v1073 = vadd.f32 %v850, %v1072
        %v1074 = vpop.f32.mrb[0].mxu0
        %v1075 = vadd.f32 %v846, %v1074
        %v1076 = vpop.f32.mrb[0].mxu0
        %v1077 = vadd.f32 %v850, %v1076
        %1078 = vmatprep.mubr.bf16.mxu0 0
        %1079 = vmatmul.mubr.bf16.gmra.mrb[0].mxu0 %v799
        %v1080 = vpop.f32.mrb[0].mxu0
        %v1081 = vadd.f32 %v846, %v1080
        %v1082 = vpop.f32.mrb[0].mxu0
        %v1083 = vadd.f32 %v850, %v1082
        %v1084 = vpop.f32.mrb[0].mxu0
        %v1085 = vadd.f32 %v846, %v1084
        %v1086 = vpop.f32.mrb[0].mxu0
        %v1087 = vadd.f32 %v850, %v1086
        %1088 = vmatprep.mubr.bf16.mxu0 0
        %1089 = vmatmul.mubr.bf16.gmra.mrb[0].mxu0 %v800
        %v1090 = vpop.f32.mrb[0].mxu0
        %v1091 = vadd.f32 %v846, %v1090
        %v1092 = vpop.f32.mrb[0].mxu0
        %v1093 = vadd.f32 %v850, %v1092
        %v1094 = vpop.f32.mrb[0].mxu0
        %v1095 = vadd.f32 %v846, %v1094
        %v1096 = vpop.f32.mrb[0].mxu0
        %v1097 = vadd.f32 %v850, %v1096
        %1098 = vmatprep.mubr.bf16.mxu0 0
        %1099 = vmatmul.mubr.bf16.gmra.mrb[0].mxu0 %v801
        %v1100 = vpop.f32.mrb[0].mxu0
        %v1101 = vadd.f32 %v846, %v1100
        %v1102 = vpop.f32.mrb[0].mxu0
        %v1103 = vadd.f32 %v850, %v1102
        %v1104 = vpop.f32.mrb[0].mxu0
        %v1105 = vadd.f32 %v846, %v1104
        %v1106 = vpop.f32.mrb[0].mxu0
        %v1107 = vadd.f32 %v850, %v1106
        %1108 = vmatprep.mubr.bf16.mxu0 0
        %1109 = vmatmul.mubr.bf16.gmra.mrb[0].mxu0 %v802
        %v1110 = vpop.f32.mrb[0].mxu0
        %v1111 = vadd.f32 %v846, %v1110
        %v1112 = vpop.f32.mrb[0].mxu0
        %v1113 = vadd.f32 %v850, %v1112
        %v1114 = vpop.f32.mrb[0].mxu0
        %v1115 = vadd.f32 %v846, %v1114
        %v1116 = vpop.f32.mrb[0].mxu0
        %v1117 = vadd.f32 %v850, %v1116
        %1118 = vmatprep.mubr.bf16.mxu0 0
        %1119 = vmatmul.mubr.bf16.gmra.mrb[0].mxu0 %v803
        %v1120 = vpop.f32.mrb[0].mxu0
        %v1121 = vadd.f32 %v846, %v1120
        %v1122 = vpop.f32.mrb[0].mxu0
        %v1123 = vadd.f32 %v850, %v1122
        %v1124 = vpop.f32.mrb[0].mxu0
        %v1125 = vadd.f32 %v846, %v1124
        %v1126 = vpop.f32.mrb[0].mxu0
        %v1127 = vadd.f32 %v850, %v1126
        %1128 = vmatprep.mubr.bf16.mxu0 0
        %1129 = vmatmul.mubr.bf16.gmra.mrb[0].mxu0 %v804
        %v1130 = vpop.f32.mrb[0].mxu0
        %v1131 = vadd.f32 %v846, %v1130
        %v1132 = vpop.f32.mrb[0].mxu0
        %v1133 = vadd.f32 %v850, %v1132
        %v1134 = vpop.f32.mrb[0].mxu0
        %v1135 = vadd.f32 %v846, %v1134
        %v1136 = vpop.f32.mrb[0].mxu0
        %v1137 = vadd.f32 %v850, %v1136
        %1138 = vmatprep.mubr.bf16.mxu0 0
        %1139 = vmatmul.mubr.bf16.gmra.mrb[0].mxu0 %v805
        %v1140 = vpop.f32.mrb[0].mxu0
        %v1141 = vadd.f32 %v846, %v1140
        %v1142 = vpop.f32.mrb[0].mxu0
        %v1143 = vadd.f32 %v850, %v1142
        %v1144 = vpop.f32.mrb[0].mxu0
        %v1145 = vadd.f32 %v846, %v1144
        %v1146 = vpop.f32.mrb[0].mxu0
        %v1147 = vadd.f32 %v850, %v1146
        %1148 = vmatprep.mubr.bf16.mxu0 0
        %1149 = vmatmul.mubr.bf16.gmra.mrb[0].mxu0 %v806
        %v1150 = vpop.f32.mrb[0].mxu0
        %v1151 = vadd.f32 %v846, %v1150
        %v1152 = vpop.f32.mrb[0].mxu0
        %v1153 = vadd.f32 %v850, %v1152
        %v1154 = vpop.f32.mrb[0].mxu0
        %v1155 = vadd.f32 %v846, %v1154
        %v1156 = vpop.f32.mrb[0].mxu0
        %v1157 = vadd.f32 %v850, %v1156
        %1158 = vmatprep.mubr.bf16.mxu0 0
        %1159 = vmatmul.mubr.bf16.gmra.mrb[0].mxu0 %v807
        %v1160 = vpop.f32.mrb[0].mxu0
        %v1161 = vadd.f32 %v846, %v1160
        %v1162 = vpop.f32.mrb[0].mxu0
        %v1163 = vadd.f32 %v850, %v1162
        %v1164 = vpop.f32.mrb[0].mxu0
        %v1165 = vadd.f32 %v846, %v1164
        %v1166 = vpop.f32.mrb[0].mxu0
        %v1167 = vadd.f32 %v850, %v1166
        %1168 = vmatprep.mubr.bf16.mxu0 0
        %1169 = vmatmul.mubr.bf16.gmra.mrb[0].mxu0 %v808
        %v1170 = vpop.f32.mrb[0].mxu0
        %v1171 = vadd.f32 %v846, %v1170
        %v1172 = vpop.f32.mrb[0].mxu0
        %v1173 = vadd.f32 %v850, %v1172
        %v1174 = vpop.f32.mrb[0].mxu0
        %v1175 = vadd.f32 %v846, %v1174
        %v1176 = vpop.f32.mrb[0].mxu0
        %v1177 = vadd.f32 %v850, %v1176
        %1178 = vdwg.mxu0
        %1179 = vmatprep.subr.bf16.mxu0 0
        %1180 = vmatpush1.bf16.msra.mxu0 %v940
        %1181 = vmatprep.subr.bf16.mxu0 0
        %1182 = vmatpush1.bf16.msra.mxu0 %v943
        %1183 = vmatprep.subr.bf16.mxu0 0
        %1184 = vmatpush1.bf16.msra.mxu0 %v946
        %1185 = vmatprep.subr.bf16.mxu0 0
        %1186 = vmatpush1.bf16.msra.mxu0 %v949
        %1187 = vmatprep.subr.bf16.mxu0 0
        %1188 = vmatpush1.bf16.msra.mxu0 %v952
        %1189 = vmatprep.subr.bf16.mxu0 0
        %1190 = vmatpush1.bf16.msra.mxu0 %v955
        %1191 = vmatprep.subr.bf16.mxu0 0
        %1192 = vmatpush1.bf16.msra.mxu0 %v958
        %1193 = vmatprep.subr.bf16.mxu0 0
        %1194 = vmatpush1.bf16.msra.mxu0 %v961
        %1195 = vmatprep.subr.bf16.mxu0 0
        %1196 = vmatpush1.bf16.msra.mxu0 0
        %1197 = vmatprep.subr.bf16.mxu0 0
        %1198 = vmatpush1.bf16.msra.mxu0 0
        %1199 = vmatprep.subr.bf16.mxu0 0
        %1200 = vmatpush1.bf16.msra.mxu0 0
        %1201 = vmatprep.subr.bf16.mxu0 0
        %1202 = vmatpush1.bf16.msra.mxu0 0
        %1203 = vmatprep.subr.bf16.mxu0 0
        %1204 = vmatpush1.bf16.msra.mxu0 0
        %1205 = vmatprep.subr.bf16.mxu0 0
        %1206 = vmatpush1.bf16.msra.mxu0 0
        %1207 = vmatprep.subr.bf16.mxu0 0
        %1208 = vmatpush1.bf16.msra.mxu0 0
        %1209 = vmatprep.subr.bf16.mxu0 0
        %1210 = vmatpush1.bf16.msra.mxu0 0
        %1211 = vmatprep.mubr.bf16.mxu0 0
        %1212 = vmatmul.mubr.bf16.gmra.mrb[0].mxu0 %v793
        %v1213 = vpop.f32.mrb[0].mxu0
        %v1214 = vadd.f32 %v854, %v1213
        %v1215 = vpop.f32.mrb[0].mxu0
        %v1216 = vpop.f32.mrb[0].mxu0
        %v1217 = vadd.f32 %v854, %v1216
        %v1218 = vpop.f32.mrb[0].mxu0
        %1219 = vmatprep.mubr.bf16.mxu0 0
        %1220 = vmatmul.mubr.bf16.gmra.mrb[0].mxu0 %v794
        %v1221 = vpop.f32.mrb[0].mxu0
        %v1222 = vadd.f32 %v854, %v1221
        %v1223 = vpop.f32.mrb[0].mxu0
        %v1224 = vpop.f32.mrb[0].mxu0
        %v1225 = vadd.f32 %v854, %v1224
        %v1226 = vpop.f32.mrb[0].mxu0
        %1227 = vmatprep.mubr.bf16.mxu0 0
        %1228 = vmatmul.mubr.bf16.gmra.mrb[0].mxu0 %v795
        %v1229 = vpop.f32.mrb[0].mxu0
        %v1230 = vadd.f32 %v854, %v1229
        %v1231 = vpop.f32.mrb[0].mxu0
        %v1232 = vpop.f32.mrb[0].mxu0
        %v1233 = vadd.f32 %v854, %v1232
        %v1234 = vpop.f32.mrb[0].mxu0
        %1235 = vmatprep.mubr.bf16.mxu0 0
        %1236 = vmatmul.mubr.bf16.gmra.mrb[0].mxu0 %v796
        %v1237 = vpop.f32.mrb[0].mxu0
        %v1238 = vadd.f32 %v854, %v1237
        %v1239 = vpop.f32.mrb[0].mxu0
        %v1240 = vpop.f32.mrb[0].mxu0
        %v1241 = vadd.f32 %v854, %v1240
        %v1242 = vpop.f32.mrb[0].mxu0
        %1243 = vmatprep.mubr.bf16.mxu0 0
        %1244 = vmatmul.mubr.bf16.gmra.mrb[0].mxu0 %v797
        %v1245 = vpop.f32.mrb[0].mxu0
        %v1246 = vadd.f32 %v854, %v1245
        %v1247 = vpop.f32.mrb[0].mxu0
        %v1248 = vpop.f32.mrb[0].mxu0
        %v1249 = vadd.f32 %v854, %v1248
        %v1250 = vpop.f32.mrb[0].mxu0
        %1251 = vmatprep.mubr.bf16.mxu0 0
        %1252 = vmatmul.mubr.bf16.gmra.mrb[0].mxu0 %v798
        %v1253 = vpop.f32.mrb[0].mxu0
        %v1254 = vadd.f32 %v854, %v1253
        %v1255 = vpop.f32.mrb[0].mxu0
        %v1256 = vpop.f32.mrb[0].mxu0
        %v1257 = vadd.f32 %v854, %v1256
        %v1258 = vpop.f32.mrb[0].mxu0
        %1259 = vmatprep.mubr.bf16.mxu0 0
        %1260 = vmatmul.mubr.bf16.gmra.mrb[0].mxu0 %v799
        %v1261 = vpop.f32.mrb[0].mxu0
        %v1262 = vadd.f32 %v854, %v1261
        %v1263 = vpop.f32.mrb[0].mxu0
        %v1264 = vpop.f32.mrb[0].mxu0
        %v1265 = vadd.f32 %v854, %v1264
        %v1266 = vpop.f32.mrb[0].mxu0
        %1267 = vmatprep.mubr.bf16.mxu0 0
        %1268 = vmatmul.mubr.bf16.gmra.mrb[0].mxu0 %v800
        %v1269 = vpop.f32.mrb[0].mxu0
        %v1270 = vadd.f32 %v854, %v1269
        %v1271 = vpop.f32.mrb[0].mxu0
        %v1272 = vpop.f32.mrb[0].mxu0
        %v1273 = vadd.f32 %v854, %v1272
        %v1274 = vpop.f32.mrb[0].mxu0
        %1275 = vmatprep.mubr.bf16.mxu0 0
        %1276 = vmatmul.mubr.bf16.gmra.mrb[0].mxu0 %v801
        %v1277 = vpop.f32.mrb[0].mxu0
        %v1278 = vadd.f32 %v854, %v1277
        %v1279 = vpop.f32.mrb[0].mxu0
        %v1280 = vpop.f32.mrb[0].mxu0
        %v1281 = vadd.f32 %v854, %v1280
        %v1282 = vpop.f32.mrb[0].mxu0
        %1283 = vmatprep.mubr.bf16.mxu0 0
        %1284 = vmatmul.mubr.bf16.gmra.mrb[0].mxu0 %v802
        %v1285 = vpop.f32.mrb[0].mxu0
        %v1286 = vadd.f32 %v854, %v1285
        %v1287 = vpop.f32.mrb[0].mxu0
        %v1288 = vpop.f32.mrb[0].mxu0
        %v1289 = vadd.f32 %v854, %v1288
        %v1290 = vpop.f32.mrb[0].mxu0
        %1291 = vmatprep.mubr.bf16.mxu0 0
        %1292 = vmatmul.mubr.bf16.gmra.mrb[0].mxu0 %v803
        %v1293 = vpop.f32.mrb[0].mxu0
        %v1294 = vadd.f32 %v854, %v1293
        %v1295 = vpop.f32.mrb[0].mxu0
        %v1296 = vpop.f32.mrb[0].mxu0
        %v1297 = vadd.f32 %v854, %v1296
        %v1298 = vpop.f32.mrb[0].mxu0
        %1299 = vmatprep.mubr.bf16.mxu0 0
        %1300 = vmatmul.mubr.bf16.gmra.mrb[0].mxu0 %v804
        %v1301 = vpop.f32.mrb[0].mxu0
        %v1302 = vadd.f32 %v854, %v1301
        %v1303 = vpop.f32.mrb[0].mxu0
        %v1304 = vpop.f32.mrb[0].mxu0
        %v1305 = vadd.f32 %v854, %v1304
        %v1306 = vpop.f32.mrb[0].mxu0
        %1307 = vmatprep.mubr.bf16.mxu0 0
        %1308 = vmatmul.mubr.bf16.gmra.mrb[0].mxu0 %v805
        %v1309 = vpop.f32.mrb[0].mxu0
        %v1310 = vadd.f32 %v854, %v1309
        %v1311 = vpop.f32.mrb[0].mxu0
        %v1312 = vpop.f32.mrb[0].mxu0
        %v1313 = vadd.f32 %v854, %v1312
        %v1314 = vpop.f32.mrb[0].mxu0
        %1315 = vmatprep.mubr.bf16.mxu0 0
        %1316 = vmatmul.mubr.bf16.gmra.mrb[0].mxu0 %v806
        %v1317 = vpop.f32.mrb[0].mxu0
        %v1318 = vadd.f32 %v854, %v1317
        %v1319 = vpop.f32.mrb[0].mxu0
        %v1320 = vpop.f32.mrb[0].mxu0
        %v1321 = vadd.f32 %v854, %v1320
        %v1322 = vpop.f32.mrb[0].mxu0
        %1323 = vmatprep.mubr.bf16.mxu0 0
        %1324 = vmatmul.mubr.bf16.gmra.mrb[0].mxu0 %v807
        %v1325 = vpop.f32.mrb[0].mxu0
        %v1326 = vadd.f32 %v854, %v1325
        %v1327 = vpop.f32.mrb[0].mxu0
        %v1328 = vpop.f32.mrb[0].mxu0
        %v1329 = vadd.f32 %v854, %v1328
        %v1330 = vpop.f32.mrb[0].mxu0
        %1331 = vmatprep.mubr.bf16.mxu0 0
        %1332 = vmatmul.mubr.bf16.gmra.mrb[0].mxu0 %v808
        %v1333 = vpop.f32.mrb[0].mxu0
        %v1334 = vadd.f32 %v854, %v1333
        %v1335 = vpop.f32.mrb[0].mxu0
        %v1336 = vpop.f32.mrb[0].mxu0
        %v1337 = vadd.f32 %v854, %v1336
        %v1338 = vpop.f32.mrb[0].mxu0
        %1339 = vdwg.mxu0
        %v1340 = vpack.c.bf16 %v1025, %v1021
        %v1341 = vpack.c.bf16 %v1027, %v1023
        %v1342 = vpack.c.bf16 %v1217, %v1214
        %v1343 = vpack.c.bf16 %v1035, %v1031
        %v1344 = vpack.c.bf16 %v1037, %v1033
        %v1345 = vpack.c.bf16 %v1225, %v1222
        %v1346 = vpack.c.bf16 %v1045, %v1041
        %v1347 = vpack.c.bf16 %v1047, %v1043
        %v1348 = vpack.c.bf16 %v1233, %v1230
        %v1349 = vpack.c.bf16 %v1055, %v1051
        %v1350 = vpack.c.bf16 %v1057, %v1053
        %v1351 = vpack.c.bf16 %v1241, %v1238
        %v1352 = vpack.c.bf16 %v1065, %v1061
        %v1353 = vpack.c.bf16 %v1067, %v1063
        %v1354 = vpack.c.bf16 %v1249, %v1246
        %v1355 = vpack.c.bf16 %v1075, %v1071
        %v1356 = vpack.c.bf16 %v1077, %v1073
        %v1357 = vpack.c.bf16 %v1257, %v1254
        %v1358 = vpack.c.bf16 %v1085, %v1081
        %v1359 = vpack.c.bf16 %v1087, %v1083
        %v1360 = vpack.c.bf16 %v1265, %v1262
        %v1361 = vpack.c.bf16 %v1095, %v1091
        %v1362 = vpack.c.bf16 %v1097, %v1093
        %v1363 = vpack.c.bf16 %v1273, %v1270
        %v1364 = vpack.c.bf16 %v1105, %v1101
        %v1365 = vpack.c.bf16 %v1107, %v1103
        %v1366 = vpack.c.bf16 %v1281, %v1278
        %v1367 = vpack.c.bf16 %v1115, %v1111
        %v1368 = vpack.c.bf16 %v1117, %v1113
        %v1369 = vpack.c.bf16 %v1289, %v1286
        %v1370 = vpack.c.bf16 %v1125, %v1121
        %v1371 = vpack.c.bf16 %v1127, %v1123
        %v1372 = vpack.c.bf16 %v1297, %v1294
        %v1373 = vpack.c.bf16 %v1135, %v1131
        %v1374 = vpack.c.bf16 %v1137, %v1133
        %v1375 = vpack.c.bf16 %v1305, %v1302
        %v1376 = vpack.c.bf16 %v1145, %v1141
        %v1377 = vpack.c.bf16 %v1147, %v1143
        %v1378 = vpack.c.bf16 %v1313, %v1310
        %v1379 = vpack.c.bf16 %v1155, %v1151
        %v1380 = vpack.c.bf16 %v1157, %v1153
        %v1381 = vpack.c.bf16 %v1321, %v1318
        %v1382 = vpack.c.bf16 %v1165, %v1161
        %v1383 = vpack.c.bf16 %v1167, %v1163
        %v1384 = vpack.c.bf16 %v1329, %v1326
        %v1385 = vpack.c.bf16 %v1175, %v1171
        %v1386 = vpack.c.bf16 %v1177, %v1173
        %v1387 = vpack.c.bf16 %v1337, %v1334
        %vm1388 = vcmask 130048
        %v1390 = vsel %vm1388, %v1340, 0
        %v1393 = vsel %vm1388, %v1343, 0
        %v1396 = vsel %vm1388, %v1346, 0
        %v1399 = vsel %vm1388, %v1349, 0
        %v1402 = vsel %vm1388, %v1352, 0
        %v1405 = vsel %vm1388, %v1355, 0
        %v1408 = vsel %vm1388, %v1358, 0
        %v1411 = vsel %vm1388, %v1361, 0
        %v1414 = vsel %vm1388, %v1341, 0
        %v1417 = vsel %vm1388, %v1344, 0
        %v1420 = vsel %vm1388, %v1347, 0
        %v1423 = vsel %vm1388, %v1350, 0
        %v1426 = vsel %vm1388, %v1353, 0
        %v1429 = vsel %vm1388, %v1356, 0
        %v1432 = vsel %vm1388, %v1359, 0
        %v1435 = vsel %vm1388, %v1362, 0
        %1437 = vmatprep.subr.bf16.mxu0 0
        %1438 = vmatpush1.bf16.xpose.msra.mxu0 %v1414
        %1439 = vmatprep.subr.bf16.mxu0 0
        %1440 = vmatpush1.bf16.xpose.msra.mxu0 %v1417
        %1441 = vmatprep.subr.bf16.mxu0 0
        %1442 = vmatpush1.bf16.xpose.msra.mxu0 %v1420
        %1443 = vmatprep.subr.bf16.mxu0 0
        %1444 = vmatpush1.bf16.xpose.msra.mxu0 %v1423
        %1445 = vmatprep.subr.bf16.mxu0 0
        %1446 = vmatpush1.bf16.xpose.msra.mxu0 %v1426
        %1447 = vmatprep.subr.bf16.mxu0 0
        %1448 = vmatpush1.bf16.xpose.msra.mxu0 %v1429
        %1449 = vmatprep.subr.bf16.mxu0 0
        %1450 = vmatpush1.bf16.xpose.msra.mxu0 %v1432
        %1451 = vmatprep.subr.bf16.mxu0 0
        %1452 = vmatpush1.bf16.xpose.msra.mxu0 %v1435
        %1453 = vmatprep.subr.bf16.mxu0 0
        %1454 = vmatpush1.bf16.xpose.msra.mxu0 0
        %1455 = vmatprep.subr.bf16.mxu0 0
        %1456 = vmatpush1.bf16.xpose.msra.mxu0 0
        %1457 = vmatprep.subr.bf16.mxu0 0
        %1458 = vmatpush1.bf16.xpose.msra.mxu0 0
        %1459 = vmatprep.subr.bf16.mxu0 0
        %1460 = vmatpush1.bf16.xpose.msra.mxu0 0
        %1461 = vmatprep.subr.bf16.mxu0 0
        %1462 = vmatpush1.bf16.xpose.msra.mxu0 0
        %1463 = vmatprep.subr.bf16.mxu0 0
        %1464 = vmatpush1.bf16.xpose.msra.mxu0 0
        %1465 = vmatprep.subr.bf16.mxu0 0
        %1466 = vmatpush1.bf16.xpose.msra.mxu0 0
        %1467 = vmatprep.subr.bf16.mxu0 0
        %1468 = vmatpush1.bf16.xpose.msra.mxu0 0
        %1469 = vmatprep.mubr.bf16.mxu0 0
        %1470 = vmatmul.mubr.bf16.gmra.mrb[0].mxu0 %v1390
        %v1471 = vpop.f32.mrb[0].mxu0
        %v1472 = vadd.f32 0.0, %v1471
        %v1473 = vpop.f32.mrb[0].mxu0
        %v1474 = vpop.f32.mrb[0].mxu0
        %v1475 = vadd.f32 0.0, %v1474
        %v1476 = vpop.f32.mrb[0].mxu0
        %1477 = vmatprep.mubr.bf16.mxu0 0
        %1478 = vmatmul.mubr.bf16.gmra.mrb[0].mxu0 %v1393
        %v1479 = vpop.f32.mrb[0].mxu0
        %v1480 = vadd.f32 0.0, %v1479
        %v1481 = vpop.f32.mrb[0].mxu0
        %v1482 = vpop.f32.mrb[0].mxu0
        %v1483 = vadd.f32 0.0, %v1482
        %v1484 = vpop.f32.mrb[0].mxu0
        %1485 = vmatprep.mubr.bf16.mxu0 0
        %1486 = vmatmul.mubr.bf16.gmra.mrb[0].mxu0 %v1396
        %v1487 = vpop.f32.mrb[0].mxu0
        %v1488 = vadd.f32 0.0, %v1487
        %v1489 = vpop.f32.mrb[0].mxu0
        %v1490 = vpop.f32.mrb[0].mxu0
        %v1491 = vadd.f32 0.0, %v1490
        %v1492 = vpop.f32.mrb[0].mxu0
        %1493 = vmatprep.mubr.bf16.mxu0 0
        %1494 = vmatmul.mubr.bf16.gmra.mrb[0].mxu0 %v1399
        %v1495 = vpop.f32.mrb[0].mxu0
        %v1496 = vadd.f32 0.0, %v1495
        %v1497 = vpop.f32.mrb[0].mxu0
        %v1498 = vpop.f32.mrb[0].mxu0
        %v1499 = vadd.f32 0.0, %v1498
        %v1500 = vpop.f32.mrb[0].mxu0
        %1501 = vmatprep.mubr.bf16.mxu0 0
        %1502 = vmatmul.mubr.bf16.gmra.mrb[0].mxu0 %v1402
        %v1503 = vpop.f32.mrb[0].mxu0
        %v1504 = vadd.f32 0.0, %v1503
        %v1505 = vpop.f32.mrb[0].mxu0
        %v1506 = vpop.f32.mrb[0].mxu0
        %v1507 = vadd.f32 0.0, %v1506
        %v1508 = vpop.f32.mrb[0].mxu0
        %1509 = vmatprep.mubr.bf16.mxu0 0
        %1510 = vmatmul.mubr.bf16.gmra.mrb[0].mxu0 %v1405
        %v1511 = vpop.f32.mrb[0].mxu0
        %v1512 = vadd.f32 0.0, %v1511
        %v1513 = vpop.f32.mrb[0].mxu0
        %v1514 = vpop.f32.mrb[0].mxu0
        %v1515 = vadd.f32 0.0, %v1514
        %v1516 = vpop.f32.mrb[0].mxu0
        %1517 = vmatprep.mubr.bf16.mxu0 0
        %1518 = vmatmul.mubr.bf16.gmra.mrb[0].mxu0 %v1408
        %v1519 = vpop.f32.mrb[0].mxu0
        %v1520 = vadd.f32 0.0, %v1519
        %v1521 = vpop.f32.mrb[0].mxu0
        %v1522 = vpop.f32.mrb[0].mxu0
        %v1523 = vadd.f32 0.0, %v1522
        %v1524 = vpop.f32.mrb[0].mxu0
        %1525 = vmatprep.mubr.bf16.mxu0 0
        %1526 = vmatmul.mubr.bf16.gmra.mrb[0].mxu0 %v1411
        %v1527 = vpop.f32.mrb[0].mxu0
        %v1528 = vadd.f32 0.0, %v1527
        %v1529 = vpop.f32.mrb[0].mxu0
        %v1530 = vpop.f32.mrb[0].mxu0
        %v1531 = vadd.f32 0.0, %v1530
        %v1532 = vpop.f32.mrb[0].mxu0
        %1533 = vdwg.mxu0
        %v1535 = vsel %vm1388, %v1364, 0
        %v1538 = vsel %vm1388, %v1367, 0
        %v1541 = vsel %vm1388, %v1370, 0
        %v1544 = vsel %vm1388, %v1373, 0
        %v1547 = vsel %vm1388, %v1376, 0
        %v1550 = vsel %vm1388, %v1379, 0
        %v1553 = vsel %vm1388, %v1382, 0
        %v1556 = vsel %vm1388, %v1385, 0
        %v1559 = vsel %vm1388, %v1365, 0
        %v1562 = vsel %vm1388, %v1368, 0
        %v1565 = vsel %vm1388, %v1371, 0
        %v1568 = vsel %vm1388, %v1374, 0
        %v1571 = vsel %vm1388, %v1377, 0
        %v1574 = vsel %vm1388, %v1380, 0
        %v1577 = vsel %vm1388, %v1383, 0
        %v1580 = vsel %vm1388, %v1386, 0
        %1582 = vmatprep.subr.bf16.mxu0 0
        %1583 = vmatpush1.bf16.xpose.msra.mxu0 %v1559
        %1584 = vmatprep.subr.bf16.mxu0 0
        %1585 = vmatpush1.bf16.xpose.msra.mxu0 %v1562
        %1586 = vmatprep.subr.bf16.mxu0 0
        %1587 = vmatpush1.bf16.xpose.msra.mxu0 %v1565
        %1588 = vmatprep.subr.bf16.mxu0 0
        %1589 = vmatpush1.bf16.xpose.msra.mxu0 %v1568
        %1590 = vmatprep.subr.bf16.mxu0 0
        %1591 = vmatpush1.bf16.xpose.msra.mxu0 %v1571
        %1592 = vmatprep.subr.bf16.mxu0 0
        %1593 = vmatpush1.bf16.xpose.msra.mxu0 %v1574
        %1594 = vmatprep.subr.bf16.mxu0 0
        %1595 = vmatpush1.bf16.xpose.msra.mxu0 %v1577
        %1596 = vmatprep.subr.bf16.mxu0 0
        %1597 = vmatpush1.bf16.xpose.msra.mxu0 %v1580
        %1598 = vmatprep.subr.bf16.mxu0 0
        %1599 = vmatpush1.bf16.xpose.msra.mxu0 0
        %1600 = vmatprep.subr.bf16.mxu0 0
        %1601 = vmatpush1.bf16.xpose.msra.mxu0 0
        %1602 = vmatprep.subr.bf16.mxu0 0
        %1603 = vmatpush1.bf16.xpose.msra.mxu0 0
        %1604 = vmatprep.subr.bf16.mxu0 0
        %1605 = vmatpush1.bf16.xpose.msra.mxu0 0
        %1606 = vmatprep.subr.bf16.mxu0 0
        %1607 = vmatpush1.bf16.xpose.msra.mxu0 0
        %1608 = vmatprep.subr.bf16.mxu0 0
        %1609 = vmatpush1.bf16.xpose.msra.mxu0 0
        %1610 = vmatprep.subr.bf16.mxu0 0
        %1611 = vmatpush1.bf16.xpose.msra.mxu0 0
        %1612 = vmatprep.subr.bf16.mxu0 0
        %1613 = vmatpush1.bf16.xpose.msra.mxu0 0
        %1614 = vmatprep.mubr.bf16.mxu0 0
        %1615 = vmatmul.mubr.bf16.gmra.mrb[0].mxu0 %v1535
        %v1616 = vpop.f32.mrb[0].mxu0
        %v1617 = vadd.f32 0.0, %v1616
        %v1618 = vpop.f32.mrb[0].mxu0
        %v1619 = vpop.f32.mrb[0].mxu0
        %v1620 = vadd.f32 0.0, %v1619
        %v1621 = vpop.f32.mrb[0].mxu0
        %1622 = vmatprep.mubr.bf16.mxu0 0
        %1623 = vmatmul.mubr.bf16.gmra.mrb[0].mxu0 %v1538
        %v1624 = vpop.f32.mrb[0].mxu0
        %v1625 = vadd.f32 0.0, %v1624
        %v1626 = vpop.f32.mrb[0].mxu0
        %v1627 = vpop.f32.mrb[0].mxu0
        %v1628 = vadd.f32 0.0, %v1627
        %v1629 = vpop.f32.mrb[0].mxu0
        %1630 = vmatprep.mubr.bf16.mxu0 0
        %1631 = vmatmul.mubr.bf16.gmra.mrb[0].mxu0 %v1541
        %v1632 = vpop.f32.mrb[0].mxu0
        %v1633 = vadd.f32 0.0, %v1632
        %v1634 = vpop.f32.mrb[0].mxu0
        %v1635 = vpop.f32.mrb[0].mxu0
        %v1636 = vadd.f32 0.0, %v1635
        %v1637 = vpop.f32.mrb[0].mxu0
        %1638 = vmatprep.mubr.bf16.mxu0 0
        %1639 = vmatmul.mubr.bf16.gmra.mrb[0].mxu0 %v1544
        %v1640 = vpop.f32.mrb[0].mxu0
        %v1641 = vadd.f32 0.0, %v1640
        %v1642 = vpop.f32.mrb[0].mxu0
        %v1643 = vpop.f32.mrb[0].mxu0
        %v1644 = vadd.f32 0.0, %v1643
        %v1645 = vpop.f32.mrb[0].mxu0
        %1646 = vmatprep.mubr.bf16.mxu0 0
        %1647 = vmatmul.mubr.bf16.gmra.mrb[0].mxu0 %v1547
        %v1648 = vpop.f32.mrb[0].mxu0
        %v1649 = vadd.f32 0.0, %v1648
        %v1650 = vpop.f32.mrb[0].mxu0
        %v1651 = vpop.f32.mrb[0].mxu0
        %v1652 = vadd.f32 0.0, %v1651
        %v1653 = vpop.f32.mrb[0].mxu0
        %1654 = vmatprep.mubr.bf16.mxu0 0
        %1655 = vmatmul.mubr.bf16.gmra.mrb[0].mxu0 %v1550
        %v1656 = vpop.f32.mrb[0].mxu0
        %v1657 = vadd.f32 0.0, %v1656
        %v1658 = vpop.f32.mrb[0].mxu0
        %v1659 = vpop.f32.mrb[0].mxu0
        %v1660 = vadd.f32 0.0, %v1659
        %v1661 = vpop.f32.mrb[0].mxu0
        %1662 = vmatprep.mubr.bf16.mxu0 0
        %1663 = vmatmul.mubr.bf16.gmra.mrb[0].mxu0 %v1553
        %v1664 = vpop.f32.mrb[0].mxu0
        %v1665 = vadd.f32 0.0, %v1664
        %v1666 = vpop.f32.mrb[0].mxu0
        %v1667 = vpop.f32.mrb[0].mxu0
        %v1668 = vadd.f32 0.0, %v1667
        %v1669 = vpop.f32.mrb[0].mxu0
        %1670 = vmatprep.mubr.bf16.mxu0 0
        %1671 = vmatmul.mubr.bf16.gmra.mrb[0].mxu0 %v1556
        %v1672 = vpop.f32.mrb[0].mxu0
        %v1673 = vadd.f32 0.0, %v1672
        %v1674 = vpop.f32.mrb[0].mxu0
        %v1675 = vpop.f32.mrb[0].mxu0
        %v1676 = vadd.f32 0.0, %v1675
        %v1677 = vpop.f32.mrb[0].mxu0
        %1678 = vdwg.mxu0
        %1679 = vmax.xlane.f32.xlu0 %v1472
        %v1680 = vpop.xlane.xlu0 %1679
        %1681 = vmax.xlane.f32.xlu0 %v1475
        %v1682 = vpop.xlane.xlu0 %1681
        %1683 = vmax.xlane.f32.xlu0 %v1480
        %v1684 = vpop.xlane.xlu0 %1683
        %1685 = vmax.xlane.f32.xlu0 %v1483
        %v1686 = vpop.xlane.xlu0 %1685
        %1687 = vmax.xlane.f32.xlu0 %v1488
        %v1688 = vpop.xlane.xlu0 %1687
        %1689 = vmax.xlane.f32.xlu0 %v1491
        %v1690 = vpop.xlane.xlu0 %1689
        %1691 = vmax.xlane.f32.xlu0 %v1496
        %v1692 = vpop.xlane.xlu0 %1691
        %1693 = vmax.xlane.f32.xlu0 %v1499
        %v1694 = vpop.xlane.xlu0 %1693
        %1695 = vmax.xlane.f32.xlu0 %v1504
        %v1696 = vpop.xlane.xlu0 %1695
        %1697 = vmax.xlane.f32.xlu0 %v1507
        %v1698 = vpop.xlane.xlu0 %1697
        %1699 = vmax.xlane.f32.xlu0 %v1512
        %v1700 = vpop.xlane.xlu0 %1699
        %1701 = vmax.xlane.f32.xlu0 %v1515
        %v1702 = vpop.xlane.xlu0 %1701
        %1703 = vmax.xlane.f32.xlu0 %v1520
        %v1704 = vpop.xlane.xlu0 %1703
        %1705 = vmax.xlane.f32.xlu0 %v1523
        %v1706 = vpop.xlane.xlu0 %1705
        %1707 = vmax.xlane.f32.xlu0 %v1528
        %v1708 = vpop.xlane.xlu0 %1707
        %1709 = vmax.xlane.f32.xlu0 %v1531
        %v1710 = vpop.xlane.xlu0 %1709
        %1711 = vmax.xlane.f32.xlu0 %v1617
        %v1712 = vpop.xlane.xlu0 %1711
        %1713 = vmax.xlane.f32.xlu0 %v1620
        %v1714 = vpop.xlane.xlu0 %1713
        %1715 = vmax.xlane.f32.xlu0 %v1625
        %v1716 = vpop.xlane.xlu0 %1715
        %1717 = vmax.xlane.f32.xlu0 %v1628
        %v1718 = vpop.xlane.xlu0 %1717
        %1719 = vmax.xlane.f32.xlu0 %v1633
        %v1720 = vpop.xlane.xlu0 %1719
        %1721 = vmax.xlane.f32.xlu0 %v1636
        %v1722 = vpop.xlane.xlu0 %1721
        %1723 = vmax.xlane.f32.xlu0 %v1641
        %v1724 = vpop.xlane.xlu0 %1723
        %1725 = vmax.xlane.f32.xlu0 %v1644
        %v1726 = vpop.xlane.xlu0 %1725
        %1727 = vmax.xlane.f32.xlu0 %v1649
        %v1728 = vpop.xlane.xlu0 %1727
        %1729 = vmax.xlane.f32.xlu0 %v1652
        %v1730 = vpop.xlane.xlu0 %1729
        %1731 = vmax.xlane.f32.xlu0 %v1657
        %v1732 = vpop.xlane.xlu0 %1731
        %1733 = vmax.xlane.f32.xlu0 %v1660
        %v1734 = vpop.xlane.xlu0 %1733
        %1735 = vmax.xlane.f32.xlu0 %v1665
        %v1736 = vpop.xlane.xlu0 %1735
        %1737 = vmax.xlane.f32.xlu0 %v1668
        %v1738 = vpop.xlane.xlu0 %1737
        %1739 = vmax.xlane.f32.xlu0 %v1673
        %v1740 = vpop.xlane.xlu0 %1739
        %1741 = vmax.xlane.f32.xlu0 %v1676
        %v1742 = vpop.xlane.xlu0 %1741
        %v1743 = vsub.f32 %v1472, %v1680
        %v1744 = vsub.f32 %v1475, %v1682
        %v1745 = vsub.f32 %v1480, %v1684
        %v1746 = vsub.f32 %v1483, %v1686
        %v1747 = vsub.f32 %v1488, %v1688
        %v1748 = vsub.f32 %v1491, %v1690
        %v1749 = vsub.f32 %v1496, %v1692
        %v1750 = vsub.f32 %v1499, %v1694
        %v1751 = vsub.f32 %v1504, %v1696
        %v1752 = vsub.f32 %v1507, %v1698
        %v1753 = vsub.f32 %v1512, %v1700
        %v1754 = vsub.f32 %v1515, %v1702
        %v1755 = vsub.f32 %v1520, %v1704
        %v1756 = vsub.f32 %v1523, %v1706
        %v1757 = vsub.f32 %v1528, %v1708
        %v1758 = vsub.f32 %v1531, %v1710
        %v1759 = vsub.f32 %v1617, %v1712
        %v1760 = vsub.f32 %v1620, %v1714
        %v1761 = vsub.f32 %v1625, %v1716
        %v1762 = vsub.f32 %v1628, %v1718
        %v1763 = vsub.f32 %v1633, %v1720
        %v1764 = vsub.f32 %v1636, %v1722
        %v1765 = vsub.f32 %v1641, %v1724
        %v1766 = vsub.f32 %v1644, %v1726
        %v1767 = vsub.f32 %v1649, %v1728
        %v1768 = vsub.f32 %v1652, %v1730
        %v1769 = vsub.f32 %v1657, %v1732
        %v1770 = vsub.f32 %v1660, %v1734
        %v1771 = vsub.f32 %v1665, %v1736
        %v1772 = vsub.f32 %v1668, %v1738
        %v1773 = vsub.f32 %v1673, %v1740
        %v1774 = vsub.f32 %v1676, %v1742
        %v1775 = vmul.f32 %v1743, 1.442695
        %v1776 = vpow.pop %v1775
        %v1777 = vmul.f32 %v1744, 1.442695
        %v1778 = vpow.pop %v1777
        %v1779 = vmul.f32 %v1745, 1.442695
        %v1780 = vpow.pop %v1779
        %v1781 = vmul.f32 %v1746, 1.442695
        %v1782 = vpow.pop %v1781
        %v1783 = vmul.f32 %v1747, 1.442695
        %v1784 = vpow.pop %v1783
        %v1785 = vmul.f32 %v1748, 1.442695
        %v1786 = vpow.pop %v1785
        %v1787 = vmul.f32 %v1749, 1.442695
        %v1788 = vpow.pop %v1787
        %v1789 = vmul.f32 %v1750, 1.442695
        %v1790 = vpow.pop %v1789
        %v1791 = vmul.f32 %v1751, 1.442695
        %v1792 = vpow.pop %v1791
        %v1793 = vmul.f32 %v1752, 1.442695
        %v1794 = vpow.pop %v1793
        %v1795 = vmul.f32 %v1753, 1.442695
        %v1796 = vpow.pop %v1795
        %v1797 = vmul.f32 %v1754, 1.442695
        %v1798 = vpow.pop %v1797
        %v1799 = vmul.f32 %v1755, 1.442695
        %v1800 = vpow.pop %v1799
        %v1801 = vmul.f32 %v1756, 1.442695
        %v1802 = vpow.pop %v1801
        %v1803 = vmul.f32 %v1757, 1.442695
        %v1804 = vpow.pop %v1803
        %v1805 = vmul.f32 %v1758, 1.442695
        %v1806 = vpow.pop %v1805
        %v1807 = vmul.f32 %v1759, 1.442695
        %v1808 = vpow.pop %v1807
        %v1809 = vmul.f32 %v1760, 1.442695
        %v1810 = vpow.pop %v1809
        %v1811 = vmul.f32 %v1761, 1.442695
        %v1812 = vpow.pop %v1811
        %v1813 = vmul.f32 %v1762, 1.442695
        %v1814 = vpow.pop %v1813
        %v1815 = vmul.f32 %v1763, 1.442695
        %v1816 = vpow.pop %v1815
        %v1817 = vmul.f32 %v1764, 1.442695
        %v1818 = vpow.pop %v1817
        %v1819 = vmul.f32 %v1765, 1.442695
        %v1820 = vpow.pop %v1819
        %v1821 = vmul.f32 %v1766, 1.442695
        %v1822 = vpow.pop %v1821
        %v1823 = vmul.f32 %v1767, 1.442695
        %v1824 = vpow.pop %v1823
        %v1825 = vmul.f32 %v1768, 1.442695
        %v1826 = vpow.pop %v1825
        %v1827 = vmul.f32 %v1769, 1.442695
        %v1828 = vpow.pop %v1827
        %v1829 = vmul.f32 %v1770, 1.442695
        %v1830 = vpow.pop %v1829
        %v1831 = vmul.f32 %v1771, 1.442695
        %v1832 = vpow.pop %v1831
        %v1833 = vmul.f32 %v1772, 1.442695
        %v1834 = vpow.pop %v1833
        %v1835 = vmul.f32 %v1773, 1.442695
        %v1836 = vpow.pop %v1835
        %v1837 = vmul.f32 %v1774, 1.442695
        %v1838 = vpow.pop %v1837
        %v1839 = vpack.c.bf16 %v1778, %v1776
        %v1840 = vpack.c.bf16 %v1782, %v1780
        %v1841 = vpack.c.bf16 %v1786, %v1784
        %v1842 = vpack.c.bf16 %v1790, %v1788
        %v1843 = vpack.c.bf16 %v1794, %v1792
        %v1844 = vpack.c.bf16 %v1798, %v1796
        %v1845 = vpack.c.bf16 %v1802, %v1800
        %v1846 = vpack.c.bf16 %v1806, %v1804
        %v1847 = vpack.c.bf16 %v1810, %v1808
        %v1848 = vpack.c.bf16 %v1814, %v1812
        %v1849 = vpack.c.bf16 %v1818, %v1816
        %v1850 = vpack.c.bf16 %v1822, %v1820
        %v1851 = vpack.c.bf16 %v1826, %v1824
        %v1852 = vpack.c.bf16 %v1830, %v1828
        %v1853 = vpack.c.bf16 %v1834, %v1832
        %v1854 = vpack.c.bf16 %v1838, %v1836
        %1855 = vmatprep.subr.bf16.mxu0 0
        %1856 = vmatpush1.bf16.msra.mxu0 %v1342
        %1857 = vmatprep.subr.bf16.mxu0 0
        %1858 = vmatpush1.bf16.msra.mxu0 %v1345
        %1859 = vmatprep.subr.bf16.mxu0 0
        %1860 = vmatpush1.bf16.msra.mxu0 %v1348
        %1861 = vmatprep.subr.bf16.mxu0 0
        %1862 = vmatpush1.bf16.msra.mxu0 %v1351
        %1863 = vmatprep.subr.bf16.mxu0 0
        %1864 = vmatpush1.bf16.msra.mxu0 %v1354
        %1865 = vmatprep.subr.bf16.mxu0 0
        %1866 = vmatpush1.bf16.msra.mxu0 %v1357
        %1867 = vmatprep.subr.bf16.mxu0 0
        %1868 = vmatpush1.bf16.msra.mxu0 %v1360
        %1869 = vmatprep.subr.bf16.mxu0 0
        %1870 = vmatpush1.bf16.msra.mxu0 %v1363
        %1871 = vmatprep.subr.bf16.mxu0 0
        %1872 = vmatpush1.bf16.msra.mxu0 0
        %1873 = vmatprep.subr.bf16.mxu0 0
        %1874 = vmatpush1.bf16.msra.mxu0 0
        %1875 = vmatprep.subr.bf16.mxu0 0
        %1876 = vmatpush1.bf16.msra.mxu0 0
        %1877 = vmatprep.subr.bf16.mxu0 0
        %1878 = vmatpush1.bf16.msra.mxu0 0
        %1879 = vmatprep.subr.bf16.mxu0 0
        %1880 = vmatpush1.bf16.msra.mxu0 0
        %1881 = vmatprep.subr.bf16.mxu0 0
        %1882 = vmatpush1.bf16.msra.mxu0 0
        %1883 = vmatprep.subr.bf16.mxu0 0
        %1884 = vmatpush1.bf16.msra.mxu0 0
        %1885 = vmatprep.subr.bf16.mxu0 0
        %1886 = vmatpush1.bf16.msra.mxu0 0
        %1887 = vmatprep.mubr.bf16.mxu0 0
        %1888 = vmatmul.mubr.bf16.gmra.mrb[0].mxu0 %v1839
        %v1889 = vpop.f32.mrb[0].mxu0
        %v1890 = vadd.f32 0.0, %v1889
        %v1891 = vpop.f32.mrb[0].mxu0
        %v1892 = vpop.f32.mrb[0].mxu0
        %v1893 = vadd.f32 0.0, %v1892
        %v1894 = vpop.f32.mrb[0].mxu0
        %1895 = vmatprep.mubr.bf16.mxu0 0
        %1896 = vmatmul.mubr.bf16.gmra.mrb[0].mxu0 %v1840
        %v1897 = vpop.f32.mrb[0].mxu0
        %v1898 = vadd.f32 0.0, %v1897
        %v1899 = vpop.f32.mrb[0].mxu0
        %v1900 = vpop.f32.mrb[0].mxu0
        %v1901 = vadd.f32 0.0, %v1900
        %v1902 = vpop.f32.mrb[0].mxu0
        %1903 = vmatprep.mubr.bf16.mxu0 0
        %1904 = vmatmul.mubr.bf16.gmra.mrb[0].mxu0 %v1841
        %v1905 = vpop.f32.mrb[0].mxu0
        %v1906 = vadd.f32 0.0, %v1905
        %v1907 = vpop.f32.mrb[0].mxu0
        %v1908 = vpop.f32.mrb[0].mxu0
        %v1909 = vadd.f32 0.0, %v1908
        %v1910 = vpop.f32.mrb[0].mxu0
        %1911 = vmatprep.mubr.bf16.mxu0 0
        %1912 = vmatmul.mubr.bf16.gmra.mrb[0].mxu0 %v1842
        %v1913 = vpop.f32.mrb[0].mxu0
        %v1914 = vadd.f32 0.0, %v1913
        %v1915 = vpop.f32.mrb[0].mxu0
        %v1916 = vpop.f32.mrb[0].mxu0
        %v1917 = vadd.f32 0.0, %v1916
        %v1918 = vpop.f32.mrb[0].mxu0
        %1919 = vmatprep.mubr.bf16.mxu0 0
        %1920 = vmatmul.mubr.bf16.gmra.mrb[0].mxu0 %v1843
        %v1921 = vpop.f32.mrb[0].mxu0
        %v1922 = vadd.f32 0.0, %v1921
        %v1923 = vpop.f32.mrb[0].mxu0
        %v1924 = vpop.f32.mrb[0].mxu0
        %v1925 = vadd.f32 0.0, %v1924
        %v1926 = vpop.f32.mrb[0].mxu0
        %1927 = vmatprep.mubr.bf16.mxu0 0
        %1928 = vmatmul.mubr.bf16.gmra.mrb[0].mxu0 %v1844
        %v1929 = vpop.f32.mrb[0].mxu0
        %v1930 = vadd.f32 0.0, %v1929
        %v1931 = vpop.f32.mrb[0].mxu0
        %v1932 = vpop.f32.mrb[0].mxu0
        %v1933 = vadd.f32 0.0, %v1932
        %v1934 = vpop.f32.mrb[0].mxu0
        %1935 = vmatprep.mubr.bf16.mxu0 0
        %1936 = vmatmul.mubr.bf16.gmra.mrb[0].mxu0 %v1845
        %v1937 = vpop.f32.mrb[0].mxu0
        %v1938 = vadd.f32 0.0, %v1937
        %v1939 = vpop.f32.mrb[0].mxu0
        %v1940 = vpop.f32.mrb[0].mxu0
        %v1941 = vadd.f32 0.0, %v1940
        %v1942 = vpop.f32.mrb[0].mxu0
        %1943 = vmatprep.mubr.bf16.mxu0 0
        %1944 = vmatmul.mubr.bf16.gmra.mrb[0].mxu0 %v1846
        %v1945 = vpop.f32.mrb[0].mxu0
        %v1946 = vadd.f32 0.0, %v1945
        %v1947 = vpop.f32.mrb[0].mxu0
        %v1948 = vpop.f32.mrb[0].mxu0
        %v1949 = vadd.f32 0.0, %v1948
        %v1950 = vpop.f32.mrb[0].mxu0
        %1951 = vdwg.mxu0
        %1952 = vmatprep.subr.bf16.mxu0 0
        %1953 = vmatpush1.bf16.msra.mxu0 %v1366
        %1954 = vmatprep.subr.bf16.mxu0 0
        %1955 = vmatpush1.bf16.msra.mxu0 %v1369
        %1956 = vmatprep.subr.bf16.mxu0 0
        %1957 = vmatpush1.bf16.msra.mxu0 %v1372
        %1958 = vmatprep.subr.bf16.mxu0 0
        %1959 = vmatpush1.bf16.msra.mxu0 %v1375
        %1960 = vmatprep.subr.bf16.mxu0 0
        %1961 = vmatpush1.bf16.msra.mxu0 %v1378
        %1962 = vmatprep.subr.bf16.mxu0 0
        %1963 = vmatpush1.bf16.msra.mxu0 %v1381
        %1964 = vmatprep.subr.bf16.mxu0 0
        %1965 = vmatpush1.bf16.msra.mxu0 %v1384
        %1966 = vmatprep.subr.bf16.mxu0 0
        %1967 = vmatpush1.bf16.msra.mxu0 %v1387
        %1968 = vmatprep.subr.bf16.mxu0 0
        %1969 = vmatpush1.bf16.msra.mxu0 0
        %1970 = vmatprep.subr.bf16.mxu0 0
        %1971 = vmatpush1.bf16.msra.mxu0 0
        %1972 = vmatprep.subr.bf16.mxu0 0
        %1973 = vmatpush1.bf16.msra.mxu0 0
        %1974 = vmatprep.subr.bf16.mxu0 0
        %1975 = vmatpush1.bf16.msra.mxu0 0
        %1976 = vmatprep.subr.bf16.mxu0 0
        %1977 = vmatpush1.bf16.msra.mxu0 0
        %1978 = vmatprep.subr.bf16.mxu0 0
        %1979 = vmatpush1.bf16.msra.mxu0 0
        %1980 = vmatprep.subr.bf16.mxu0 0
        %1981 = vmatpush1.bf16.msra.mxu0 0
        %1982 = vmatprep.subr.bf16.mxu0 0
        %1983 = vmatpush1.bf16.msra.mxu0 0
        %1984 = vmatprep.mubr.bf16.mxu0 0
        %1985 = vmatmul.mubr.bf16.gmra.mrb[0].mxu0 %v1847
        %v1986 = vpop.f32.mrb[0].mxu0
        %v1987 = vadd.f32 0.0, %v1986
        %v1988 = vpop.f32.mrb[0].mxu0
        %v1989 = vpop.f32.mrb[0].mxu0
        %v1990 = vadd.f32 0.0, %v1989
        %v1991 = vpop.f32.mrb[0].mxu0
        %1992 = vmatprep.mubr.bf16.mxu0 0
        %1993 = vmatmul.mubr.bf16.gmra.mrb[0].mxu0 %v1848
        %v1994 = vpop.f32.mrb[0].mxu0
        %v1995 = vadd.f32 0.0, %v1994
        %v1996 = vpop.f32.mrb[0].mxu0
        %v1997 = vpop.f32.mrb[0].mxu0
        %v1998 = vadd.f32 0.0, %v1997
        %v1999 = vpop.f32.mrb[0].mxu0
        %2000 = vmatprep.mubr.bf16.mxu0 0
        %2001 = vmatmul.mubr.bf16.gmra.mrb[0].mxu0 %v1849
        %v2002 = vpop.f32.mrb[0].mxu0
        %v2003 = vadd.f32 0.0, %v2002
        %v2004 = vpop.f32.mrb[0].mxu0
        %v2005 = vpop.f32.mrb[0].mxu0
        %v2006 = vadd.f32 0.0, %v2005
        %v2007 = vpop.f32.mrb[0].mxu0
        %2008 = vmatprep.mubr.bf16.mxu0 0
        %2009 = vmatmul.mubr.bf16.gmra.mrb[0].mxu0 %v1850
        %v2010 = vpop.f32.mrb[0].mxu0
        %v2011 = vadd.f32 0.0, %v2010
        %v2012 = vpop.f32.mrb[0].mxu0
        %v2013 = vpop.f32.mrb[0].mxu0
        %v2014 = vadd.f32 0.0, %v2013
        %v2015 = vpop.f32.mrb[0].mxu0
        %2016 = vmatprep.mubr.bf16.mxu0 0
        %2017 = vmatmul.mubr.bf16.gmra.mrb[0].mxu0 %v1851
        %v2018 = vpop.f32.mrb[0].mxu0
        %v2019 = vadd.f32 0.0, %v2018
        %v2020 = vpop.f32.mrb[0].mxu0
        %v2021 = vpop.f32.mrb[0].mxu0
        %v2022 = vadd.f32 0.0, %v2021
        %v2023 = vpop.f32.mrb[0].mxu0
        %2024 = vmatprep.mubr.bf16.mxu0 0
        %2025 = vmatmul.mubr.bf16.gmra.mrb[0].mxu0 %v1852
        %v2026 = vpop.f32.mrb[0].mxu0
        %v2027 = vadd.f32 0.0, %v2026
        %v2028 = vpop.f32.mrb[0].mxu0
        %v2029 = vpop.f32.mrb[0].mxu0
        %v2030 = vadd.f32 0.0, %v2029
        %v2031 = vpop.f32.mrb[0].mxu0
        %2032 = vmatprep.mubr.bf16.mxu0 0
        %2033 = vmatmul.mubr.bf16.gmra.mrb[0].mxu0 %v1853
        %v2034 = vpop.f32.mrb[0].mxu0
        %v2035 = vadd.f32 0.0, %v2034
        %v2036 = vpop.f32.mrb[0].mxu0
        %v2037 = vpop.f32.mrb[0].mxu0
        %v2038 = vadd.f32 0.0, %v2037
        %v2039 = vpop.f32.mrb[0].mxu0
        %2040 = vmatprep.mubr.bf16.mxu0 0
        %2041 = vmatmul.mubr.bf16.gmra.mrb[0].mxu0 %v1854
        %v2042 = vpop.f32.mrb[0].mxu0
        %v2043 = vadd.f32 0.0, %v2042
        %v2044 = vpop.f32.mrb[0].mxu0
        %v2045 = vpop.f32.mrb[0].mxu0
        %v2046 = vadd.f32 0.0, %v2045
        %v2047 = vpop.f32.mrb[0].mxu0
        %2048 = vdwg.mxu0
        %2049 = vadd.xlane.f32.xlu0 %v1776
        %v2050 = vpop.xlane.xlu0 %2049
        %2051 = vadd.xlane.f32.xlu0 %v1778
        %v2052 = vpop.xlane.xlu0 %2051
        %2053 = vadd.xlane.f32.xlu0 %v1780
        %v2054 = vpop.xlane.xlu0 %2053
        %2055 = vadd.xlane.f32.xlu0 %v1782
        %v2056 = vpop.xlane.xlu0 %2055
        %2057 = vadd.xlane.f32.xlu0 %v1784
        %v2058 = vpop.xlane.xlu0 %2057
        %2059 = vadd.xlane.f32.xlu0 %v1786
        %v2060 = vpop.xlane.xlu0 %2059
        %2061 = vadd.xlane.f32.xlu0 %v1788
        %v2062 = vpop.xlane.xlu0 %2061
        %2063 = vadd.xlane.f32.xlu0 %v1790
        %v2064 = vpop.xlane.xlu0 %2063
        %2065 = vadd.xlane.f32.xlu0 %v1792
        %v2066 = vpop.xlane.xlu0 %2065
        %2067 = vadd.xlane.f32.xlu0 %v1794
        %v2068 = vpop.xlane.xlu0 %2067
        %2069 = vadd.xlane.f32.xlu0 %v1796
        %v2070 = vpop.xlane.xlu0 %2069
        %2071 = vadd.xlane.f32.xlu0 %v1798
        %v2072 = vpop.xlane.xlu0 %2071
        %2073 = vadd.xlane.f32.xlu0 %v1800
        %v2074 = vpop.xlane.xlu0 %2073
        %2075 = vadd.xlane.f32.xlu0 %v1802
        %v2076 = vpop.xlane.xlu0 %2075
        %2077 = vadd.xlane.f32.xlu0 %v1804
        %v2078 = vpop.xlane.xlu0 %2077
        %2079 = vadd.xlane.f32.xlu0 %v1806
        %v2080 = vpop.xlane.xlu0 %2079
        %2081 = vadd.xlane.f32.xlu0 %v1808
        %v2082 = vpop.xlane.xlu0 %2081
        %2083 = vadd.xlane.f32.xlu0 %v1810
        %v2084 = vpop.xlane.xlu0 %2083
        %2085 = vadd.xlane.f32.xlu0 %v1812
        %v2086 = vpop.xlane.xlu0 %2085
        %2087 = vadd.xlane.f32.xlu0 %v1814
        %v2088 = vpop.xlane.xlu0 %2087
        %2089 = vadd.xlane.f32.xlu0 %v1816
        %v2090 = vpop.xlane.xlu0 %2089
        %2091 = vadd.xlane.f32.xlu0 %v1818
        %v2092 = vpop.xlane.xlu0 %2091
        %2093 = vadd.xlane.f32.xlu0 %v1820
        %v2094 = vpop.xlane.xlu0 %2093
        %2095 = vadd.xlane.f32.xlu0 %v1822
        %v2096 = vpop.xlane.xlu0 %2095
        %2097 = vadd.xlane.f32.xlu0 %v1824
        %v2098 = vpop.xlane.xlu0 %2097
        %2099 = vadd.xlane.f32.xlu0 %v1826
        %v2100 = vpop.xlane.xlu0 %2099
        %2101 = vadd.xlane.f32.xlu0 %v1828
        %v2102 = vpop.xlane.xlu0 %2101
        %2103 = vadd.xlane.f32.xlu0 %v1830
        %v2104 = vpop.xlane.xlu0 %2103
        %2105 = vadd.xlane.f32.xlu0 %v1832
        %v2106 = vpop.xlane.xlu0 %2105
        %2107 = vadd.xlane.f32.xlu0 %v1834
        %v2108 = vpop.xlane.xlu0 %2107
        %2109 = vadd.xlane.f32.xlu0 %v1836
        %v2110 = vpop.xlane.xlu0 %2109
        %2111 = vadd.xlane.f32.xlu0 %v1838
        %v2112 = vpop.xlane.xlu0 %2111
        %v2113 = vrcp.pop %v2050
        %v2114 = vrcp.pop %v2052
        %v2115 = vrcp.pop %v2054
        %v2116 = vrcp.pop %v2056
        %v2117 = vrcp.pop %v2058
        %v2118 = vrcp.pop %v2060
        %v2119 = vrcp.pop %v2062
        %v2120 = vrcp.pop %v2064
        %v2121 = vrcp.pop %v2066
        %v2122 = vrcp.pop %v2068
        %v2123 = vrcp.pop %v2070
        %v2124 = vrcp.pop %v2072
        %v2125 = vrcp.pop %v2074
        %v2126 = vrcp.pop %v2076
        %v2127 = vrcp.pop %v2078
        %v2128 = vrcp.pop %v2080
        %v2129 = vrcp.pop %v2082
        %v2130 = vrcp.pop %v2084
        %v2131 = vrcp.pop %v2086
        %v2132 = vrcp.pop %v2088
        %v2133 = vrcp.pop %v2090
        %v2134 = vrcp.pop %v2092
        %v2135 = vrcp.pop %v2094
        %v2136 = vrcp.pop %v2096
        %v2137 = vrcp.pop %v2098
        %v2138 = vrcp.pop %v2100
        %v2139 = vrcp.pop %v2102
        %v2140 = vrcp.pop %v2104
        %v2141 = vrcp.pop %v2106
        %v2142 = vrcp.pop %v2108
        %v2143 = vrcp.pop %v2110
        %v2144 = vrcp.pop %v2112
        %v2145 = vmul.f32 %v1890, %v2113
        %v2146 = vmul.f32 %v1893, %v2114
        %v2147 = vmul.f32 %v1898, %v2115
        %v2148 = vmul.f32 %v1901, %v2116
        %v2149 = vmul.f32 %v1906, %v2117
        %v2150 = vmul.f32 %v1909, %v2118
        %v2151 = vmul.f32 %v1914, %v2119
        %v2152 = vmul.f32 %v1917, %v2120
        %v2153 = vmul.f32 %v1922, %v2121
        %v2154 = vmul.f32 %v1925, %v2122
        %v2155 = vmul.f32 %v1930, %v2123
        %v2156 = vmul.f32 %v1933, %v2124
        %v2157 = vmul.f32 %v1938, %v2125
        %v2158 = vmul.f32 %v1941, %v2126
        %v2159 = vmul.f32 %v1946, %v2127
        %v2160 = vmul.f32 %v1949, %v2128
        %v2161 = vmul.f32 %v1987, %v2129
        %v2162 = vmul.f32 %v1990, %v2130
        %v2163 = vmul.f32 %v1995, %v2131
        %v2164 = vmul.f32 %v1998, %v2132
        %v2165 = vmul.f32 %v2003, %v2133
        %v2166 = vmul.f32 %v2006, %v2134
        %v2167 = vmul.f32 %v2011, %v2135
        %v2168 = vmul.f32 %v2014, %v2136
        %v2169 = vmul.f32 %v2019, %v2137
        %v2170 = vmul.f32 %v2022, %v2138
        %v2171 = vmul.f32 %v2027, %v2139
        %v2172 = vmul.f32 %v2030, %v2140
        %v2173 = vmul.f32 %v2035, %v2141
        %v2174 = vmul.f32 %v2038, %v2142
        %v2175 = vmul.f32 %v2043, %v2143
        %v2176 = vmul.f32 %v2046, %v2144
        %2185 = vrot.lane.b32.xlu0 %v1340, 112
        %v2186 = vpop.permute.xlu0 %2185
        %2187 = vrot.lane.b32.xlu0 %v1343, 112
        %v2188 = vpop.permute.xlu0 %2187
        %2189 = vrot.lane.b32.xlu0 %v1346, 112
        %v2190 = vpop.permute.xlu0 %2189
        %2191 = vrot.lane.b32.xlu0 %v1349, 112
        %v2192 = vpop.permute.xlu0 %2191
        %2193 = vrot.lane.b32.xlu0 %v1352, 112
        %v2194 = vpop.permute.xlu0 %2193
        %2195 = vrot.lane.b32.xlu0 %v1355, 112
        %v2196 = vpop.permute.xlu0 %2195
        %2197 = vrot.lane.b32.xlu0 %v1358, 112
        %v2198 = vpop.permute.xlu0 %2197
        %2199 = vrot.lane.b32.xlu0 %v1361, 112
        %v2200 = vpop.permute.xlu0 %2199
        %2209 = vrot.lane.b32.xlu0 %v1341, 112
        %v2210 = vpop.permute.xlu0 %2209
        %2211 = vrot.lane.b32.xlu0 %v1344, 112
        %v2212 = vpop.permute.xlu0 %2211
        %2213 = vrot.lane.b32.xlu0 %v1347, 112
        %v2214 = vpop.permute.xlu0 %2213
        %2215 = vrot.lane.b32.xlu0 %v1350, 112
        %v2216 = vpop.permute.xlu0 %2215
        %2217 = vrot.lane.b32.xlu0 %v1353, 112
        %v2218 = vpop.permute.xlu0 %2217
        %2219 = vrot.lane.b32.xlu0 %v1356, 112
        %v2220 = vpop.permute.xlu0 %2219
        %2221 = vrot.lane.b32.xlu0 %v1359, 112
        %v2222 = vpop.permute.xlu0 %2221
        %2223 = vrot.lane.b32.xlu0 %v1362, 112
        %v2224 = vpop.permute.xlu0 %2223
        %v2226 = vsel %vm1388, %v2186, 0
        %v2229 = vsel %vm1388, %v2188, 0
        %v2232 = vsel %vm1388, %v2190, 0
        %v2235 = vsel %vm1388, %v2192, 0
        %v2238 = vsel %vm1388, %v2194, 0
        %v2241 = vsel %vm1388, %v2196, 0
        %v2244 = vsel %vm1388, %v2198, 0
        %v2247 = vsel %vm1388, %v2200, 0
        %v2250 = vsel %vm1388, %v2210, 0
        %v2253 = vsel %vm1388, %v2212, 0
        %v2256 = vsel %vm1388, %v2214, 0
        %v2259 = vsel %vm1388, %v2216, 0
        %v2262 = vsel %vm1388, %v2218, 0
        %v2265 = vsel %vm1388, %v2220, 0
        %v2268 = vsel %vm1388, %v2222, 0
        %v2271 = vsel %vm1388, %v2224, 0
        %2273 = vmatprep.subr.bf16.mxu0 0
        %2274 = vmatpush1.bf16.xpose.msra.mxu0 %v2250
        %2275 = vmatprep.subr.bf16.mxu0 0
        %2276 = vmatpush1.bf16.xpose.msra.mxu0 %v2253
        %2277 = vmatprep.subr.bf16.mxu0 0
        %2278 = vmatpush1.bf16.xpose.msra.mxu0 %v2256
        %2279 = vmatprep.subr.bf16.mxu0 0
        %2280 = vmatpush1.bf16.xpose.msra.mxu0 %v2259
        %2281 = vmatprep.subr.bf16.mxu0 0
        %2282 = vmatpush1.bf16.xpose.msra.mxu0 %v2262
        %2283 = vmatprep.subr.bf16.mxu0 0
        %2284 = vmatpush1.bf16.xpose.msra.mxu0 %v2265
        %2285 = vmatprep.subr.bf16.mxu0 0
        %2286 = vmatpush1.bf16.xpose.msra.mxu0 %v2268
        %2287 = vmatprep.subr.bf16.mxu0 0
        %2288 = vmatpush1.bf16.xpose.msra.mxu0 %v2271
        %2289 = vmatprep.subr.bf16.mxu0 0
        %2290 = vmatpush1.bf16.xpose.msra.mxu0 0
        %2291 = vmatprep.subr.bf16.mxu0 0
        %2292 = vmatpush1.bf16.xpose.msra.mxu0 0
        %2293 = vmatprep.subr.bf16.mxu0 0
        %2294 = vmatpush1.bf16.xpose.msra.mxu0 0
        %2295 = vmatprep.subr.bf16.mxu0 0
        %2296 = vmatpush1.bf16.xpose.msra.mxu0 0
        %2297 = vmatprep.subr.bf16.mxu0 0
        %2298 = vmatpush1.bf16.xpose.msra.mxu0 0
        %2299 = vmatprep.subr.bf16.mxu0 0
        %2300 = vmatpush1.bf16.xpose.msra.mxu0 0
        %2301 = vmatprep.subr.bf16.mxu0 0
        %2302 = vmatpush1.bf16.xpose.msra.mxu0 0
        %2303 = vmatprep.subr.bf16.mxu0 0
        %2304 = vmatpush1.bf16.xpose.msra.mxu0 0
        %2305 = vmatprep.mubr.bf16.mxu0 0
        %2306 = vmatmul.mubr.bf16.gmra.mrb[0].mxu0 %v2226
        %v2307 = vpop.f32.mrb[0].mxu0
        %v2308 = vadd.f32 0.0, %v2307
        %v2309 = vpop.f32.mrb[0].mxu0
        %v2310 = vpop.f32.mrb[0].mxu0
        %v2311 = vadd.f32 0.0, %v2310
        %v2312 = vpop.f32.mrb[0].mxu0
        %2313 = vmatprep.mubr.bf16.mxu0 0
        %2314 = vmatmul.mubr.bf16.gmra.mrb[0].mxu0 %v2229
        %v2315 = vpop.f32.mrb[0].mxu0
        %v2316 = vadd.f32 0.0, %v2315
        %v2317 = vpop.f32.mrb[0].mxu0
        %v2318 = vpop.f32.mrb[0].mxu0
        %v2319 = vadd.f32 0.0, %v2318
        %v2320 = vpop.f32.mrb[0].mxu0
        %2321 = vmatprep.mubr.bf16.mxu0 0
        %2322 = vmatmul.mubr.bf16.gmra.mrb[0].mxu0 %v2232
        %v2323 = vpop.f32.mrb[0].mxu0
        %v2324 = vadd.f32 0.0, %v2323
        %v2325 = vpop.f32.mrb[0].mxu0
        %v2326 = vpop.f32.mrb[0].mxu0
        %v2327 = vadd.f32 0.0, %v2326
        %v2328 = vpop.f32.mrb[0].mxu0
        %2329 = vmatprep.mubr.bf16.mxu0 0
        %2330 = vmatmul.mubr.bf16.gmra.mrb[0].mxu0 %v2235
        %v2331 = vpop.f32.mrb[0].mxu0
        %v2332 = vadd.f32 0.0, %v2331
        %v2333 = vpop.f32.mrb[0].mxu0
        %v2334 = vpop.f32.mrb[0].mxu0
        %v2335 = vadd.f32 0.0, %v2334
        %v2336 = vpop.f32.mrb[0].mxu0
        %2337 = vmatprep.mubr.bf16.mxu0 0
        %2338 = vmatmul.mubr.bf16.gmra.mrb[0].mxu0 %v2238
        %v2339 = vpop.f32.mrb[0].mxu0
        %v2340 = vadd.f32 0.0, %v2339
        %v2341 = vpop.f32.mrb[0].mxu0
        %v2342 = vpop.f32.mrb[0].mxu0
        %v2343 = vadd.f32 0.0, %v2342
        %v2344 = vpop.f32.mrb[0].mxu0
        %2345 = vmatprep.mubr.bf16.mxu0 0
        %2346 = vmatmul.mubr.bf16.gmra.mrb[0].mxu0 %v2241
        %v2347 = vpop.f32.mrb[0].mxu0
        %v2348 = vadd.f32 0.0, %v2347
        %v2349 = vpop.f32.mrb[0].mxu0
        %v2350 = vpop.f32.mrb[0].mxu0
        %v2351 = vadd.f32 0.0, %v2350
        %v2352 = vpop.f32.mrb[0].mxu0
        %2353 = vmatprep.mubr.bf16.mxu0 0
        %2354 = vmatmul.mubr.bf16.gmra.mrb[0].mxu0 %v2244
        %v2355 = vpop.f32.mrb[0].mxu0
        %v2356 = vadd.f32 0.0, %v2355
        %v2357 = vpop.f32.mrb[0].mxu0
        %v2358 = vpop.f32.mrb[0].mxu0
        %v2359 = vadd.f32 0.0, %v2358
        %v2360 = vpop.f32.mrb[0].mxu0
        %2361 = vmatprep.mubr.bf16.mxu0 0
        %2362 = vmatmul.mubr.bf16.gmra.mrb[0].mxu0 %v2247
        %v2363 = vpop.f32.mrb[0].mxu0
        %v2364 = vadd.f32 0.0, %v2363
        %v2365 = vpop.f32.mrb[0].mxu0
        %v2366 = vpop.f32.mrb[0].mxu0
        %v2367 = vadd.f32 0.0, %v2366
        %v2368 = vpop.f32.mrb[0].mxu0
        %2369 = vdwg.mxu0
        %2378 = vrot.lane.b32.xlu0 %v1364, 112
        %v2379 = vpop.permute.xlu0 %2378
        %2380 = vrot.lane.b32.xlu0 %v1367, 112
        %v2381 = vpop.permute.xlu0 %2380
        %2382 = vrot.lane.b32.xlu0 %v1370, 112
        %v2383 = vpop.permute.xlu0 %2382
        %2384 = vrot.lane.b32.xlu0 %v1373, 112
        %v2385 = vpop.permute.xlu0 %2384
        %2386 = vrot.lane.b32.xlu0 %v1376, 112
        %v2387 = vpop.permute.xlu0 %2386
        %2388 = vrot.lane.b32.xlu0 %v1379, 112
        %v2389 = vpop.permute.xlu0 %2388
        %2390 = vrot.lane.b32.xlu0 %v1382, 112
        %v2391 = vpop.permute.xlu0 %2390
        %2392 = vrot.lane.b32.xlu0 %v1385, 112
        %v2393 = vpop.permute.xlu0 %2392
        %2402 = vrot.lane.b32.xlu0 %v1365, 112
        %v2403 = vpop.permute.xlu0 %2402
        %2404 = vrot.lane.b32.xlu0 %v1368, 112
        %v2405 = vpop.permute.xlu0 %2404
        %2406 = vrot.lane.b32.xlu0 %v1371, 112
        %v2407 = vpop.permute.xlu0 %2406
        %2408 = vrot.lane.b32.xlu0 %v1374, 112
        %v2409 = vpop.permute.xlu0 %2408
        %2410 = vrot.lane.b32.xlu0 %v1377, 112
        %v2411 = vpop.permute.xlu0 %2410
        %2412 = vrot.lane.b32.xlu0 %v1380, 112
        %v2413 = vpop.permute.xlu0 %2412
        %2414 = vrot.lane.b32.xlu0 %v1383, 112
        %v2415 = vpop.permute.xlu0 %2414
        %2416 = vrot.lane.b32.xlu0 %v1386, 112
        %v2417 = vpop.permute.xlu0 %2416
        %v2419 = vsel %vm1388, %v2379, 0
        %v2422 = vsel %vm1388, %v2381, 0
        %v2425 = vsel %vm1388, %v2383, 0
        %v2428 = vsel %vm1388, %v2385, 0
        %v2431 = vsel %vm1388, %v2387, 0
        %v2434 = vsel %vm1388, %v2389, 0
        %v2437 = vsel %vm1388, %v2391, 0
        %v2440 = vsel %vm1388, %v2393, 0
        %v2443 = vsel %vm1388, %v2403, 0
        %v2446 = vsel %vm1388, %v2405, 0
        %v2449 = vsel %vm1388, %v2407, 0
        %v2452 = vsel %vm1388, %v2409, 0
        %v2455 = vsel %vm1388, %v2411, 0
        %v2458 = vsel %vm1388, %v2413, 0
        %v2461 = vsel %vm1388, %v2415, 0
        %v2464 = vsel %vm1388, %v2417, 0
        %2466 = vmatprep.subr.bf16.mxu0 0
        %2467 = vmatpush1.bf16.xpose.msra.mxu0 %v2443
        %2468 = vmatprep.subr.bf16.mxu0 0
        %2469 = vmatpush1.bf16.xpose.msra.mxu0 %v2446
        %2470 = vmatprep.subr.bf16.mxu0 0
        %2471 = vmatpush1.bf16.xpose.msra.mxu0 %v2449
        %2472 = vmatprep.subr.bf16.mxu0 0
        %2473 = vmatpush1.bf16.xpose.msra.mxu0 %v2452
        %2474 = vmatprep.subr.bf16.mxu0 0
        %2475 = vmatpush1.bf16.xpose.msra.mxu0 %v2455
        %2476 = vmatprep.subr.bf16.mxu0 0
        %2477 = vmatpush1.bf16.xpose.msra.mxu0 %v2458
        %2478 = vmatprep.subr.bf16.mxu0 0
        %2479 = vmatpush1.bf16.xpose.msra.mxu0 %v2461
        %2480 = vmatprep.subr.bf16.mxu0 0
        %2481 = vmatpush1.bf16.xpose.msra.mxu0 %v2464
        %2482 = vmatprep.subr.bf16.mxu0 0
        %2483 = vmatpush1.bf16.xpose.msra.mxu0 0
        %2484 = vmatprep.subr.bf16.mxu0 0
        %2485 = vmatpush1.bf16.xpose.msra.mxu0 0
        %2486 = vmatprep.subr.bf16.mxu0 0
        %2487 = vmatpush1.bf16.xpose.msra.mxu0 0
        %2488 = vmatprep.subr.bf16.mxu0 0
        %2489 = vmatpush1.bf16.xpose.msra.mxu0 0
        %2490 = vmatprep.subr.bf16.mxu0 0
        %2491 = vmatpush1.bf16.xpose.msra.mxu0 0
        %2492 = vmatprep.subr.bf16.mxu0 0
        %2493 = vmatpush1.bf16.xpose.msra.mxu0 0
        %2494 = vmatprep.subr.bf16.mxu0 0
        %2495 = vmatpush1.bf16.xpose.msra.mxu0 0
        %2496 = vmatprep.subr.bf16.mxu0 0
        %2497 = vmatpush1.bf16.xpose.msra.mxu0 0
        %2498 = vmatprep.mubr.bf16.mxu0 0
        %2499 = vmatmul.mubr.bf16.gmra.mrb[0].mxu0 %v2419
        %v2500 = vpop.f32.mrb[0].mxu0
        %v2501 = vadd.f32 0.0, %v2500
        %v2502 = vpop.f32.mrb[0].mxu0
        %v2503 = vpop.f32.mrb[0].mxu0
        %v2504 = vadd.f32 0.0, %v2503
        %v2505 = vpop.f32.mrb[0].mxu0
        %2506 = vmatprep.mubr.bf16.mxu0 0
        %2507 = vmatmul.mubr.bf16.gmra.mrb[0].mxu0 %v2422
        %v2508 = vpop.f32.mrb[0].mxu0
        %v2509 = vadd.f32 0.0, %v2508
        %v2510 = vpop.f32.mrb[0].mxu0
        %v2511 = vpop.f32.mrb[0].mxu0
        %v2512 = vadd.f32 0.0, %v2511
        %v2513 = vpop.f32.mrb[0].mxu0
        %2514 = vmatprep.mubr.bf16.mxu0 0
        %2515 = vmatmul.mubr.bf16.gmra.mrb[0].mxu0 %v2425
        %v2516 = vpop.f32.mrb[0].mxu0
        %v2517 = vadd.f32 0.0, %v2516
        %v2518 = vpop.f32.mrb[0].mxu0
        %v2519 = vpop.f32.mrb[0].mxu0
        %v2520 = vadd.f32 0.0, %v2519
        %v2521 = vpop.f32.mrb[0].mxu0
        %2522 = vmatprep.mubr.bf16.mxu0 0
        %2523 = vmatmul.mubr.bf16.gmra.mrb[0].mxu0 %v2428
        %v2524 = vpop.f32.mrb[0].mxu0
        %v2525 = vadd.f32 0.0, %v2524
        %v2526 = vpop.f32.mrb[0].mxu0
        %v2527 = vpop.f32.mrb[0].mxu0
        %v2528 = vadd.f32 0.0, %v2527
        %v2529 = vpop.f32.mrb[0].mxu0
        %2530 = vmatprep.mubr.bf16.mxu0 0
        %2531 = vmatmul.mubr.bf16.gmra.mrb[0].mxu0 %v2431
        %v2532 = vpop.f32.mrb[0].mxu0
        %v2533 = vadd.f32 0.0, %v2532
        %v2534 = vpop.f32.mrb[0].mxu0
        %v2535 = vpop.f32.mrb[0].mxu0
        %v2536 = vadd.f32 0.0, %v2535
        %v2537 = vpop.f32.mrb[0].mxu0
        %2538 = vmatprep.mubr.bf16.mxu0 0
        %2539 = vmatmul.mubr.bf16.gmra.mrb[0].mxu0 %v2434
        %v2540 = vpop.f32.mrb[0].mxu0
        %v2541 = vadd.f32 0.0, %v2540
        %v2542 = vpop.f32.mrb[0].mxu0
        %v2543 = vpop.f32.mrb[0].mxu0
        %v2544 = vadd.f32 0.0, %v2543
        %v2545 = vpop.f32.mrb[0].mxu0
        %2546 = vmatprep.mubr.bf16.mxu0 0
        %2547 = vmatmul.mubr.bf16.gmra.mrb[0].mxu0 %v2437
        %v2548 = vpop.f32.mrb[0].mxu0
        %v2549 = vadd.f32 0.0, %v2548
        %v2550 = vpop.f32.mrb[0].mxu0
        %v2551 = vpop.f32.mrb[0].mxu0
        %v2552 = vadd.f32 0.0, %v2551
        %v2553 = vpop.f32.mrb[0].mxu0
        %2554 = vmatprep.mubr.bf16.mxu0 0
        %2555 = vmatmul.mubr.bf16.gmra.mrb[0].mxu0 %v2440
        %v2556 = vpop.f32.mrb[0].mxu0
        %v2557 = vadd.f32 0.0, %v2556
        %v2558 = vpop.f32.mrb[0].mxu0
        %v2559 = vpop.f32.mrb[0].mxu0
        %v2560 = vadd.f32 0.0, %v2559
        %v2561 = vpop.f32.mrb[0].mxu0
        %2562 = vdwg.mxu0
        %2563 = vmax.xlane.f32.xlu0 %v2308
        %v2564 = vpop.xlane.xlu0 %2563
        %2565 = vmax.xlane.f32.xlu0 %v2311
        %v2566 = vpop.xlane.xlu0 %2565
        %2567 = vmax.xlane.f32.xlu0 %v2316
        %v2568 = vpop.xlane.xlu0 %2567
        %2569 = vmax.xlane.f32.xlu0 %v2319
        %v2570 = vpop.xlane.xlu0 %2569
        %2571 = vmax.xlane.f32.xlu0 %v2324
        %v2572 = vpop.xlane.xlu0 %2571
        %2573 = vmax.xlane.f32.xlu0 %v2327
        %v2574 = vpop.xlane.xlu0 %2573
        %2575 = vmax.xlane.f32.xlu0 %v2332
        %v2576 = vpop.xlane.xlu0 %2575
        %2577 = vmax.xlane.f32.xlu0 %v2335
        %v2578 = vpop.xlane.xlu0 %2577
        %2579 = vmax.xlane.f32.xlu0 %v2340
        %v2580 = vpop.xlane.xlu0 %2579
        %2581 = vmax.xlane.f32.xlu0 %v2343
        %v2582 = vpop.xlane.xlu0 %2581
        %2583 = vmax.xlane.f32.xlu0 %v2348
        %v2584 = vpop.xlane.xlu0 %2583
        %2585 = vmax.xlane.f32.xlu0 %v2351
        %v2586 = vpop.xlane.xlu0 %2585
        %2587 = vmax.xlane.f32.xlu0 %v2356
        %v2588 = vpop.xlane.xlu0 %2587
        %2589 = vmax.xlane.f32.xlu0 %v2359
        %v2590 = vpop.xlane.xlu0 %2589
        %2591 = vmax.xlane.f32.xlu0 %v2364
        %v2592 = vpop.xlane.xlu0 %2591
        %2593 = vmax.xlane.f32.xlu0 %v2367
        %v2594 = vpop.xlane.xlu0 %2593
        %2595 = vmax.xlane.f32.xlu0 %v2501
        %v2596 = vpop.xlane.xlu0 %2595
        %2597 = vmax.xlane.f32.xlu0 %v2504
        %v2598 = vpop.xlane.xlu0 %2597
        %2599 = vmax.xlane.f32.xlu0 %v2509
        %v2600 = vpop.xlane.xlu0 %2599
        %2601 = vmax.xlane.f32.xlu0 %v2512
        %v2602 = vpop.xlane.xlu0 %2601
        %2603 = vmax.xlane.f32.xlu0 %v2517
        %v2604 = vpop.xlane.xlu0 %2603
        %2605 = vmax.xlane.f32.xlu0 %v2520
        %v2606 = vpop.xlane.xlu0 %2605
        %2607 = vmax.xlane.f32.xlu0 %v2525
        %v2608 = vpop.xlane.xlu0 %2607
        %2609 = vmax.xlane.f32.xlu0 %v2528
        %v2610 = vpop.xlane.xlu0 %2609
        %2611 = vmax.xlane.f32.xlu0 %v2533
        %v2612 = vpop.xlane.xlu0 %2611
        %2613 = vmax.xlane.f32.xlu0 %v2536
        %v2614 = vpop.xlane.xlu0 %2613
        %2615 = vmax.xlane.f32.xlu0 %v2541
        %v2616 = vpop.xlane.xlu0 %2615
        %2617 = vmax.xlane.f32.xlu0 %v2544
        %v2618 = vpop.xlane.xlu0 %2617
        %2619 = vmax.xlane.f32.xlu0 %v2549
        %v2620 = vpop.xlane.xlu0 %2619
        %2621 = vmax.xlane.f32.xlu0 %v2552
        %v2622 = vpop.xlane.xlu0 %2621
        %2623 = vmax.xlane.f32.xlu0 %v2557
        %v2624 = vpop.xlane.xlu0 %2623
        %2625 = vmax.xlane.f32.xlu0 %v2560
        %v2626 = vpop.xlane.xlu0 %2625
        %v2627 = vsub.f32 %v2308, %v2564
        %v2628 = vsub.f32 %v2311, %v2566
        %v2629 = vsub.f32 %v2316, %v2568
        %v2630 = vsub.f32 %v2319, %v2570
        %v2631 = vsub.f32 %v2324, %v2572
        %v2632 = vsub.f32 %v2327, %v2574
        %v2633 = vsub.f32 %v2332, %v2576
        %v2634 = vsub.f32 %v2335, %v2578
        %v2635 = vsub.f32 %v2340, %v2580
        %v2636 = vsub.f32 %v2343, %v2582
        %v2637 = vsub.f32 %v2348, %v2584
        %v2638 = vsub.f32 %v2351, %v2586
        %v2639 = vsub.f32 %v2356, %v2588
        %v2640 = vsub.f32 %v2359, %v2590
        %v2641 = vsub.f32 %v2364, %v2592
        %v2642 = vsub.f32 %v2367, %v2594
        %v2643 = vsub.f32 %v2501, %v2596
        %v2644 = vsub.f32 %v2504, %v2598
        %v2645 = vsub.f32 %v2509, %v2600
        %v2646 = vsub.f32 %v2512, %v2602
        %v2647 = vsub.f32 %v2517, %v2604
        %v2648 = vsub.f32 %v2520, %v2606
        %v2649 = vsub.f32 %v2525, %v2608
        %v2650 = vsub.f32 %v2528, %v2610
        %v2651 = vsub.f32 %v2533, %v2612
        %v2652 = vsub.f32 %v2536, %v2614
        %v2653 = vsub.f32 %v2541, %v2616
        %v2654 = vsub.f32 %v2544, %v2618
        %v2655 = vsub.f32 %v2549, %v2620
        %v2656 = vsub.f32 %v2552, %v2622
        %v2657 = vsub.f32 %v2557, %v2624
        %v2658 = vsub.f32 %v2560, %v2626
        %v2659 = vmul.f32 %v2627, 1.442695
        %v2660 = vpow.pop %v2659
        %v2661 = vmul.f32 %v2628, 1.442695
        %v2662 = vpow.pop %v2661
        %v2663 = vmul.f32 %v2629, 1.442695
        %v2664 = vpow.pop %v2663
        %v2665 = vmul.f32 %v2630, 1.442695
        %v2666 = vpow.pop %v2665
        %v2667 = vmul.f32 %v2631, 1.442695
        %v2668 = vpow.pop %v2667
        %v2669 = vmul.f32 %v2632, 1.442695
        %v2670 = vpow.pop %v2669
        %v2671 = vmul.f32 %v2633, 1.442695
        %v2672 = vpow.pop %v2671
        %v2673 = vmul.f32 %v2634, 1.442695
        %v2674 = vpow.pop %v2673
        %v2675 = vmul.f32 %v2635, 1.442695
        %v2676 = vpow.pop %v2675
        %v2677 = vmul.f32 %v2636, 1.442695
        %v2678 = vpow.pop %v2677
        %v2679 = vmul.f32 %v2637, 1.442695
        %v2680 = vpow.pop %v2679
        %v2681 = vmul.f32 %v2638, 1.442695
        %v2682 = vpow.pop %v2681
        %v2683 = vmul.f32 %v2639, 1.442695
        %v2684 = vpow.pop %v2683
        %v2685 = vmul.f32 %v2640, 1.442695
        %v2686 = vpow.pop %v2685
        %v2687 = vmul.f32 %v2641, 1.442695
        %v2688 = vpow.pop %v2687
        %v2689 = vmul.f32 %v2642, 1.442695
        %v2690 = vpow.pop %v2689
        %v2691 = vmul.f32 %v2643, 1.442695
        %v2692 = vpow.pop %v2691
        %v2693 = vmul.f32 %v2644, 1.442695
        %v2694 = vpow.pop %v2693
        %v2695 = vmul.f32 %v2645, 1.442695
        %v2696 = vpow.pop %v2695
        %v2697 = vmul.f32 %v2646, 1.442695
        %v2698 = vpow.pop %v2697
        %v2699 = vmul.f32 %v2647, 1.442695
        %v2700 = vpow.pop %v2699
        %v2701 = vmul.f32 %v2648, 1.442695
        %v2702 = vpow.pop %v2701
        %v2703 = vmul.f32 %v2649, 1.442695
        %v2704 = vpow.pop %v2703
        %v2705 = vmul.f32 %v2650, 1.442695
        %v2706 = vpow.pop %v2705
        %v2707 = vmul.f32 %v2651, 1.442695
        %v2708 = vpow.pop %v2707
        %v2709 = vmul.f32 %v2652, 1.442695
        %v2710 = vpow.pop %v2709
        %v2711 = vmul.f32 %v2653, 1.442695
        %v2712 = vpow.pop %v2711
        %v2713 = vmul.f32 %v2654, 1.442695
        %v2714 = vpow.pop %v2713
        %v2715 = vmul.f32 %v2655, 1.442695
        %v2716 = vpow.pop %v2715
        %v2717 = vmul.f32 %v2656, 1.442695
        %v2718 = vpow.pop %v2717
        %v2719 = vmul.f32 %v2657, 1.442695
        %v2720 = vpow.pop %v2719
        %v2721 = vmul.f32 %v2658, 1.442695
        %v2722 = vpow.pop %v2721
        %v2723 = vpack.c.bf16 %v2662, %v2660
        %v2724 = vpack.c.bf16 %v2666, %v2664
        %v2725 = vpack.c.bf16 %v2670, %v2668
        %v2726 = vpack.c.bf16 %v2674, %v2672
        %v2727 = vpack.c.bf16 %v2678, %v2676
        %v2728 = vpack.c.bf16 %v2682, %v2680
        %v2729 = vpack.c.bf16 %v2686, %v2684
        %v2730 = vpack.c.bf16 %v2690, %v2688
        %v2731 = vpack.c.bf16 %v2694, %v2692
        %v2732 = vpack.c.bf16 %v2698, %v2696
        %v2733 = vpack.c.bf16 %v2702, %v2700
        %v2734 = vpack.c.bf16 %v2706, %v2704
        %v2735 = vpack.c.bf16 %v2710, %v2708
        %v2736 = vpack.c.bf16 %v2714, %v2712
        %v2737 = vpack.c.bf16 %v2718, %v2716
        %v2738 = vpack.c.bf16 %v2722, %v2720
        %2747 = vrot.lane.b32.xlu0 %v1342, 112
        %v2748 = vpop.permute.xlu0 %2747
        %2749 = vrot.lane.b32.xlu0 %v1345, 112
        %v2750 = vpop.permute.xlu0 %2749
        %2751 = vrot.lane.b32.xlu0 %v1348, 112
        %v2752 = vpop.permute.xlu0 %2751
        %2753 = vrot.lane.b32.xlu0 %v1351, 112
        %v2754 = vpop.permute.xlu0 %2753
        %2755 = vrot.lane.b32.xlu0 %v1354, 112
        %v2756 = vpop.permute.xlu0 %2755
        %2757 = vrot.lane.b32.xlu0 %v1357, 112
        %v2758 = vpop.permute.xlu0 %2757
        %2759 = vrot.lane.b32.xlu0 %v1360, 112
        %v2760 = vpop.permute.xlu0 %2759
        %2761 = vrot.lane.b32.xlu0 %v1363, 112
        %v2762 = vpop.permute.xlu0 %2761
        %2771 = vmatprep.subr.bf16.mxu0 0
        %2772 = vmatpush1.bf16.msra.mxu0 %v2748
        %2773 = vmatprep.subr.bf16.mxu0 0
        %2774 = vmatpush1.bf16.msra.mxu0 %v2750
        %2775 = vmatprep.subr.bf16.mxu0 0
        %2776 = vmatpush1.bf16.msra.mxu0 %v2752
        %2777 = vmatprep.subr.bf16.mxu0 0
        %2778 = vmatpush1.bf16.msra.mxu0 %v2754
        %2779 = vmatprep.subr.bf16.mxu0 0
        %2780 = vmatpush1.bf16.msra.mxu0 %v2756
        %2781 = vmatprep.subr.bf16.mxu0 0
        %2782 = vmatpush1.bf16.msra.mxu0 %v2758
        %2783 = vmatprep.subr.bf16.mxu0 0
        %2784 = vmatpush1.bf16.msra.mxu0 %v2760
        %2785 = vmatprep.subr.bf16.mxu0 0
        %2786 = vmatpush1.bf16.msra.mxu0 %v2762
        %2787 = vmatprep.subr.bf16.mxu0 0
        %2788 = vmatpush1.bf16.msra.mxu0 0
        %2789 = vmatprep.subr.bf16.mxu0 0
        %2790 = vmatpush1.bf16.msra.mxu0 0
        %2791 = vmatprep.subr.bf16.mxu0 0
        %2792 = vmatpush1.bf16.msra.mxu0 0
        %2793 = vmatprep.subr.bf16.mxu0 0
        %2794 = vmatpush1.bf16.msra.mxu0 0
        %2795 = vmatprep.subr.bf16.mxu0 0
        %2796 = vmatpush1.bf16.msra.mxu0 0
        %2797 = vmatprep.subr.bf16.mxu0 0
        %2798 = vmatpush1.bf16.msra.mxu0 0
        %2799 = vmatprep.subr.bf16.mxu0 0
        %2800 = vmatpush1.bf16.msra.mxu0 0
        %2801 = vmatprep.subr.bf16.mxu0 0
        %2802 = vmatpush1.bf16.msra.mxu0 0
        %2803 = vmatprep.mubr.bf16.mxu0 0
        %2804 = vmatmul.mubr.bf16.gmra.mrb[0].mxu0 %v2723
        %v2805 = vpop.f32.mrb[0].mxu0
        %v2806 = vadd.f32 0.0, %v2805
        %v2807 = vpop.f32.mrb[0].mxu0
        %v2808 = vpop.f32.mrb[0].mxu0
        %v2809 = vadd.f32 0.0, %v2808
        %v2810 = vpop.f32.mrb[0].mxu0
        %2811 = vmatprep.mubr.bf16.mxu0 0
        %2812 = vmatmul.mubr.bf16.gmra.mrb[0].mxu0 %v2724
        %v2813 = vpop.f32.mrb[0].mxu0
        %v2814 = vadd.f32 0.0, %v2813
        %v2815 = vpop.f32.mrb[0].mxu0
        %v2816 = vpop.f32.mrb[0].mxu0
        %v2817 = vadd.f32 0.0, %v2816
        %v2818 = vpop.f32.mrb[0].mxu0
        %2819 = vmatprep.mubr.bf16.mxu0 0
        %2820 = vmatmul.mubr.bf16.gmra.mrb[0].mxu0 %v2725
        %v2821 = vpop.f32.mrb[0].mxu0
        %v2822 = vadd.f32 0.0, %v2821
        %v2823 = vpop.f32.mrb[0].mxu0
        %v2824 = vpop.f32.mrb[0].mxu0
        %v2825 = vadd.f32 0.0, %v2824
        %v2826 = vpop.f32.mrb[0].mxu0
        %2827 = vmatprep.mubr.bf16.mxu0 0
        %2828 = vmatmul.mubr.bf16.gmra.mrb[0].mxu0 %v2726
        %v2829 = vpop.f32.mrb[0].mxu0
        %v2830 = vadd.f32 0.0, %v2829
        %v2831 = vpop.f32.mrb[0].mxu0
        %v2832 = vpop.f32.mrb[0].mxu0
        %v2833 = vadd.f32 0.0, %v2832
        %v2834 = vpop.f32.mrb[0].mxu0
        %2835 = vmatprep.mubr.bf16.mxu0 0
        %2836 = vmatmul.mubr.bf16.gmra.mrb[0].mxu0 %v2727
        %v2837 = vpop.f32.mrb[0].mxu0
        %v2838 = vadd.f32 0.0, %v2837
        %v2839 = vpop.f32.mrb[0].mxu0
        %v2840 = vpop.f32.mrb[0].mxu0
        %v2841 = vadd.f32 0.0, %v2840
        %v2842 = vpop.f32.mrb[0].mxu0
        %2843 = vmatprep.mubr.bf16.mxu0 0
        %2844 = vmatmul.mubr.bf16.gmra.mrb[0].mxu0 %v2728
        %v2845 = vpop.f32.mrb[0].mxu0
        %v2846 = vadd.f32 0.0, %v2845
        %v2847 = vpop.f32.mrb[0].mxu0
        %v2848 = vpop.f32.mrb[0].mxu0
        %v2849 = vadd.f32 0.0, %v2848
        %v2850 = vpop.f32.mrb[0].mxu0
        %2851 = vmatprep.mubr.bf16.mxu0 0
        %2852 = vmatmul.mubr.bf16.gmra.mrb[0].mxu0 %v2729
        %v2853 = vpop.f32.mrb[0].mxu0
        %v2854 = vadd.f32 0.0, %v2853
        %v2855 = vpop.f32.mrb[0].mxu0
        %v2856 = vpop.f32.mrb[0].mxu0
        %v2857 = vadd.f32 0.0, %v2856
        %v2858 = vpop.f32.mrb[0].mxu0
        %2859 = vmatprep.mubr.bf16.mxu0 0
        %2860 = vmatmul.mubr.bf16.gmra.mrb[0].mxu0 %v2730
        %v2861 = vpop.f32.mrb[0].mxu0
        %v2862 = vadd.f32 0.0, %v2861
        %v2863 = vpop.f32.mrb[0].mxu0
        %v2864 = vpop.f32.mrb[0].mxu0
        %v2865 = vadd.f32 0.0, %v2864
        %v2866 = vpop.f32.mrb[0].mxu0
        %2867 = vdwg.mxu0
        %2876 = vrot.lane.b32.xlu0 %v1366, 112
        %v2877 = vpop.permute.xlu0 %2876
        %2878 = vrot.lane.b32.xlu0 %v1369, 112
        %v2879 = vpop.permute.xlu0 %2878
        %2880 = vrot.lane.b32.xlu0 %v1372, 112
        %v2881 = vpop.permute.xlu0 %2880
        %2882 = vrot.lane.b32.xlu0 %v1375, 112
        %v2883 = vpop.permute.xlu0 %2882
        %2884 = vrot.lane.b32.xlu0 %v1378, 112
        %v2885 = vpop.permute.xlu0 %2884
        %2886 = vrot.lane.b32.xlu0 %v1381, 112
        %v2887 = vpop.permute.xlu0 %2886
        %2888 = vrot.lane.b32.xlu0 %v1384, 112
        %v2889 = vpop.permute.xlu0 %2888
        %2890 = vrot.lane.b32.xlu0 %v1387, 112
        %v2891 = vpop.permute.xlu0 %2890
        %2900 = vmatprep.subr.bf16.mxu0 0
        %2901 = vmatpush1.bf16.msra.mxu0 %v2877
        %2902 = vmatprep.subr.bf16.mxu0 0
        %2903 = vmatpush1.bf16.msra.mxu0 %v2879
        %2904 = vmatprep.subr.bf16.mxu0 0
        %2905 = vmatpush1.bf16.msra.mxu0 %v2881
        %2906 = vmatprep.subr.bf16.mxu0 0
        %2907 = vmatpush1.bf16.msra.mxu0 %v2883
        %2908 = vmatprep.subr.bf16.mxu0 0
        %2909 = vmatpush1.bf16.msra.mxu0 %v2885
        %2910 = vmatprep.subr.bf16.mxu0 0
        %2911 = vmatpush1.bf16.msra.mxu0 %v2887
        %2912 = vmatprep.subr.bf16.mxu0 0
        %2913 = vmatpush1.bf16.msra.mxu0 %v2889
        %2914 = vmatprep.subr.bf16.mxu0 0
        %2915 = vmatpush1.bf16.msra.mxu0 %v2891
        %2916 = vmatprep.subr.bf16.mxu0 0
        %2917 = vmatpush1.bf16.msra.mxu0 0
        %2918 = vmatprep.subr.bf16.mxu0 0
        %2919 = vmatpush1.bf16.msra.mxu0 0
        %2920 = vmatprep.subr.bf16.mxu0 0
        %2921 = vmatpush1.bf16.msra.mxu0 0
        %2922 = vmatprep.subr.bf16.mxu0 0
        %2923 = vmatpush1.bf16.msra.mxu0 0
        %2924 = vmatprep.subr.bf16.mxu0 0
        %2925 = vmatpush1.bf16.msra.mxu0 0
        %2926 = vmatprep.subr.bf16.mxu0 0
        %2927 = vmatpush1.bf16.msra.mxu0 0
        %2928 = vmatprep.subr.bf16.mxu0 0
        %2929 = vmatpush1.bf16.msra.mxu0 0
        %2930 = vmatprep.subr.bf16.mxu0 0
        %2931 = vmatpush1.bf16.msra.mxu0 0
        %2932 = vmatprep.mubr.bf16.mxu0 0
        %2933 = vmatmul.mubr.bf16.gmra.mrb[0].mxu0 %v2731
        %v2934 = vpop.f32.mrb[0].mxu0
        %v2935 = vadd.f32 0.0, %v2934
        %v2936 = vpop.f32.mrb[0].mxu0
        %v2937 = vpop.f32.mrb[0].mxu0
        %v2938 = vadd.f32 0.0, %v2937
        %v2939 = vpop.f32.mrb[0].mxu0
        %2940 = vmatprep.mubr.bf16.mxu0 0
        %2941 = vmatmul.mubr.bf16.gmra.mrb[0].mxu0 %v2732
        %v2942 = vpop.f32.mrb[0].mxu0
        %v2943 = vadd.f32 0.0, %v2942
        %v2944 = vpop.f32.mrb[0].mxu0
        %v2945 = vpop.f32.mrb[0].mxu0
        %v2946 = vadd.f32 0.0, %v2945
        %v2947 = vpop.f32.mrb[0].mxu0
        %2948 = vmatprep.mubr.bf16.mxu0 0
        %2949 = vmatmul.mubr.bf16.gmra.mrb[0].mxu0 %v2733
        %v2950 = vpop.f32.mrb[0].mxu0
        %v2951 = vadd.f32 0.0, %v2950
        %v2952 = vpop.f32.mrb[0].mxu0
        %v2953 = vpop.f32.mrb[0].mxu0
        %v2954 = vadd.f32 0.0, %v2953
        %v2955 = vpop.f32.mrb[0].mxu0
        %2956 = vmatprep.mubr.bf16.mxu0 0
        %2957 = vmatmul.mubr.bf16.gmra.mrb[0].mxu0 %v2734
        %v2958 = vpop.f32.mrb[0].mxu0
        %v2959 = vadd.f32 0.0, %v2958
        %v2960 = vpop.f32.mrb[0].mxu0
        %v2961 = vpop.f32.mrb[0].mxu0
        %v2962 = vadd.f32 0.0, %v2961
        %v2963 = vpop.f32.mrb[0].mxu0
        %2964 = vmatprep.mubr.bf16.mxu0 0
        %2965 = vmatmul.mubr.bf16.gmra.mrb[0].mxu0 %v2735
        %v2966 = vpop.f32.mrb[0].mxu0
        %v2967 = vadd.f32 0.0, %v2966
        %v2968 = vpop.f32.mrb[0].mxu0
        %v2969 = vpop.f32.mrb[0].mxu0
        %v2970 = vadd.f32 0.0, %v2969
        %v2971 = vpop.f32.mrb[0].mxu0
        %2972 = vmatprep.mubr.bf16.mxu0 0
        %2973 = vmatmul.mubr.bf16.gmra.mrb[0].mxu0 %v2736
        %v2974 = vpop.f32.mrb[0].mxu0
        %v2975 = vadd.f32 0.0, %v2974
        %v2976 = vpop.f32.mrb[0].mxu0
        %v2977 = vpop.f32.mrb[0].mxu0
        %v2978 = vadd.f32 0.0, %v2977
        %v2979 = vpop.f32.mrb[0].mxu0
        %2980 = vmatprep.mubr.bf16.mxu0 0
        %2981 = vmatmul.mubr.bf16.gmra.mrb[0].mxu0 %v2737
        %v2982 = vpop.f32.mrb[0].mxu0
        %v2983 = vadd.f32 0.0, %v2982
        %v2984 = vpop.f32.mrb[0].mxu0
        %v2985 = vpop.f32.mrb[0].mxu0
        %v2986 = vadd.f32 0.0, %v2985
        %v2987 = vpop.f32.mrb[0].mxu0
        %2988 = vmatprep.mubr.bf16.mxu0 0
        %2989 = vmatmul.mubr.bf16.gmra.mrb[0].mxu0 %v2738
        %v2990 = vpop.f32.mrb[0].mxu0
        %v2991 = vadd.f32 0.0, %v2990
        %v2992 = vpop.f32.mrb[0].mxu0
        %v2993 = vpop.f32.mrb[0].mxu0
        %v2994 = vadd.f32 0.0, %v2993
        %v2995 = vpop.f32.mrb[0].mxu0
        %2996 = vdwg.mxu0
        %2997 = vadd.xlane.f32.xlu0 %v2660
        %v2998 = vpop.xlane.xlu0 %2997
        %2999 = vadd.xlane.f32.xlu0 %v2662
        %v3000 = vpop.xlane.xlu0 %2999
        %3001 = vadd.xlane.f32.xlu0 %v2664
        %v3002 = vpop.xlane.xlu0 %3001
        %3003 = vadd.xlane.f32.xlu0 %v2666
        %v3004 = vpop.xlane.xlu0 %3003
        %3005 = vadd.xlane.f32.xlu0 %v2668
        %v3006 = vpop.xlane.xlu0 %3005
        %3007 = vadd.xlane.f32.xlu0 %v2670
        %v3008 = vpop.xlane.xlu0 %3007
        %3009 = vadd.xlane.f32.xlu0 %v2672
        %v3010 = vpop.xlane.xlu0 %3009
        %3011 = vadd.xlane.f32.xlu0 %v2674
        %v3012 = vpop.xlane.xlu0 %3011
        %3013 = vadd.xlane.f32.xlu0 %v2676
        %v3014 = vpop.xlane.xlu0 %3013
        %3015 = vadd.xlane.f32.xlu0 %v2678
        %v3016 = vpop.xlane.xlu0 %3015
        %3017 = vadd.xlane.f32.xlu0 %v2680
        %v3018 = vpop.xlane.xlu0 %3017
        %3019 = vadd.xlane.f32.xlu0 %v2682
        %v3020 = vpop.xlane.xlu0 %3019
        %3021 = vadd.xlane.f32.xlu0 %v2684
        %v3022 = vpop.xlane.xlu0 %3021
        %3023 = vadd.xlane.f32.xlu0 %v2686
        %v3024 = vpop.xlane.xlu0 %3023
        %3025 = vadd.xlane.f32.xlu0 %v2688
        %v3026 = vpop.xlane.xlu0 %3025
        %3027 = vadd.xlane.f32.xlu0 %v2690
        %v3028 = vpop.xlane.xlu0 %3027
        %3029 = vadd.xlane.f32.xlu0 %v2692
        %v3030 = vpop.xlane.xlu0 %3029
        %3031 = vadd.xlane.f32.xlu0 %v2694
        %v3032 = vpop.xlane.xlu0 %3031
        %3033 = vadd.xlane.f32.xlu0 %v2696
        %v3034 = vpop.xlane.xlu0 %3033
        %3035 = vadd.xlane.f32.xlu0 %v2698
        %v3036 = vpop.xlane.xlu0 %3035
        %3037 = vadd.xlane.f32.xlu0 %v2700
        %v3038 = vpop.xlane.xlu0 %3037
        %3039 = vadd.xlane.f32.xlu0 %v2702
        %v3040 = vpop.xlane.xlu0 %3039
        %3041 = vadd.xlane.f32.xlu0 %v2704
        %v3042 = vpop.xlane.xlu0 %3041
        %3043 = vadd.xlane.f32.xlu0 %v2706
        %v3044 = vpop.xlane.xlu0 %3043
        %3045 = vadd.xlane.f32.xlu0 %v2708
        %v3046 = vpop.xlane.xlu0 %3045
        %3047 = vadd.xlane.f32.xlu0 %v2710
        %v3048 = vpop.xlane.xlu0 %3047
        %3049 = vadd.xlane.f32.xlu0 %v2712
        %v3050 = vpop.xlane.xlu0 %3049
        %3051 = vadd.xlane.f32.xlu0 %v2714
        %v3052 = vpop.xlane.xlu0 %3051
        %3053 = vadd.xlane.f32.xlu0 %v2716
        %v3054 = vpop.xlane.xlu0 %3053
        %3055 = vadd.xlane.f32.xlu0 %v2718
        %v3056 = vpop.xlane.xlu0 %3055
        %3057 = vadd.xlane.f32.xlu0 %v2720
        %v3058 = vpop.xlane.xlu0 %3057
        %3059 = vadd.xlane.f32.xlu0 %v2722
        %v3060 = vpop.xlane.xlu0 %3059
        %v3061 = vrcp.pop %v2998
        %v3062 = vrcp.pop %v3000
        %v3063 = vrcp.pop %v3002
        %v3064 = vrcp.pop %v3004
        %v3065 = vrcp.pop %v3006
        %v3066 = vrcp.pop %v3008
        %v3067 = vrcp.pop %v3010
        %v3068 = vrcp.pop %v3012
        %v3069 = vrcp.pop %v3014
        %v3070 = vrcp.pop %v3016
        %v3071 = vrcp.pop %v3018
        %v3072 = vrcp.pop %v3020
        %v3073 = vrcp.pop %v3022
        %v3074 = vrcp.pop %v3024
        %v3075 = vrcp.pop %v3026
        %v3076 = vrcp.pop %v3028
        %v3077 = vrcp.pop %v3030
        %v3078 = vrcp.pop %v3032
        %v3079 = vrcp.pop %v3034
        %v3080 = vrcp.pop %v3036
        %v3081 = vrcp.pop %v3038
        %v3082 = vrcp.pop %v3040
        %v3083 = vrcp.pop %v3042
        %v3084 = vrcp.pop %v3044
        %v3085 = vrcp.pop %v3046
        %v3086 = vrcp.pop %v3048
        %v3087 = vrcp.pop %v3050
        %v3088 = vrcp.pop %v3052
        %v3089 = vrcp.pop %v3054
        %v3090 = vrcp.pop %v3056
        %v3091 = vrcp.pop %v3058
        %v3092 = vrcp.pop %v3060
        %v3093 = vmul.f32 %v2806, %v3061
        %v3094 = vmul.f32 %v2809, %v3062
        %v3095 = vmul.f32 %v2814, %v3063
        %v3096 = vmul.f32 %v2817, %v3064
        %v3097 = vmul.f32 %v2822, %v3065
        %v3098 = vmul.f32 %v2825, %v3066
        %v3099 = vmul.f32 %v2830, %v3067
        %v3100 = vmul.f32 %v2833, %v3068
        %v3101 = vmul.f32 %v2838, %v3069
        %v3102 = vmul.f32 %v2841, %v3070
        %v3103 = vmul.f32 %v2846, %v3071
        %v3104 = vmul.f32 %v2849, %v3072
        %v3105 = vmul.f32 %v2854, %v3073
        %v3106 = vmul.f32 %v2857, %v3074
        %v3107 = vmul.f32 %v2862, %v3075
        %v3108 = vmul.f32 %v2865, %v3076
        %v3109 = vmul.f32 %v2935, %v3077
        %v3110 = vmul.f32 %v2938, %v3078
        %v3111 = vmul.f32 %v2943, %v3079
        %v3112 = vmul.f32 %v2946, %v3080
        %v3113 = vmul.f32 %v2951, %v3081
        %v3114 = vmul.f32 %v2954, %v3082
        %v3115 = vmul.f32 %v2959, %v3083
        %v3116 = vmul.f32 %v2962, %v3084
        %v3117 = vmul.f32 %v2967, %v3085
        %v3118 = vmul.f32 %v2970, %v3086
        %v3119 = vmul.f32 %v2975, %v3087
        %v3120 = vmul.f32 %v2978, %v3088
        %v3121 = vmul.f32 %v2983, %v3089
        %v3122 = vmul.f32 %v2986, %v3090
        %v3123 = vmul.f32 %v2991, %v3091
        %v3124 = vmul.f32 %v2994, %v3092
        %3125 = vrot.lane.b32.xlu0 %v1340, 96
        %v3126 = vpop.permute.xlu0 %3125
        %3127 = vrot.lane.b32.xlu0 %v1343, 96
        %v3128 = vpop.permute.xlu0 %3127
        %3129 = vrot.lane.b32.xlu0 %v1346, 96
        %v3130 = vpop.permute.xlu0 %3129
        %3131 = vrot.lane.b32.xlu0 %v1349, 96
        %v3132 = vpop.permute.xlu0 %3131
        %3133 = vrot.lane.b32.xlu0 %v1352, 96
        %v3134 = vpop.permute.xlu0 %3133
        %3135 = vrot.lane.b32.xlu0 %v1355, 96
        %v3136 = vpop.permute.xlu0 %3135
        %3137 = vrot.lane.b32.xlu0 %v1358, 96
        %v3138 = vpop.permute.xlu0 %3137
        %3139 = vrot.lane.b32.xlu0 %v1361, 96
        %v3140 = vpop.permute.xlu0 %3139
        %3141 = vrot.lane.b32.xlu0 %v1341, 96
        %v3142 = vpop.permute.xlu0 %3141
        %3143 = vrot.lane.b32.xlu0 %v1344, 96
        %v3144 = vpop.permute.xlu0 %3143
        %3145 = vrot.lane.b32.xlu0 %v1347, 96
        %v3146 = vpop.permute.xlu0 %3145
        %3147 = vrot.lane.b32.xlu0 %v1350, 96
        %v3148 = vpop.permute.xlu0 %3147
        %3149 = vrot.lane.b32.xlu0 %v1353, 96
        %v3150 = vpop.permute.xlu0 %3149
        %3151 = vrot.lane.b32.xlu0 %v1356, 96
        %v3152 = vpop.permute.xlu0 %3151
        %3153 = vrot.lane.b32.xlu0 %v1359, 96
        %v3154 = vpop.permute.xlu0 %3153
        %3155 = vrot.lane.b32.xlu0 %v1362, 96
        %v3156 = vpop.permute.xlu0 %3155
        %v3158 = vsel %vm1388, %v3126, 0
        %v3161 = vsel %vm1388, %v3128, 0
        %v3164 = vsel %vm1388, %v3130, 0
        %v3167 = vsel %vm1388, %v3132, 0
        %v3170 = vsel %vm1388, %v3134, 0
        %v3173 = vsel %vm1388, %v3136, 0
        %v3176 = vsel %vm1388, %v3138, 0
        %v3179 = vsel %vm1388, %v3140, 0
        %v3182 = vsel %vm1388, %v3142, 0
        %v3185 = vsel %vm1388, %v3144, 0
        %v3188 = vsel %vm1388, %v3146, 0
        %v3191 = vsel %vm1388, %v3148, 0
        %v3194 = vsel %vm1388, %v3150, 0
        %v3197 = vsel %vm1388, %v3152, 0
        %v3200 = vsel %vm1388, %v3154, 0
        %v3203 = vsel %vm1388, %v3156, 0
        %3205 = vmatprep.subr.bf16.mxu0 0
        %3206 = vmatpush1.bf16.xpose.msra.mxu0 %v3182
        %3207 = vmatprep.subr.bf16.mxu0 0
        %3208 = vmatpush1.bf16.xpose.msra.mxu0 %v3185
        %3209 = vmatprep.subr.bf16.mxu0 0
        %3210 = vmatpush1.bf16.xpose.msra.mxu0 %v3188
        %3211 = vmatprep.subr.bf16.mxu0 0
        %3212 = vmatpush1.bf16.xpose.msra.mxu0 %v3191
        %3213 = vmatprep.subr.bf16.mxu0 0
        %3214 = vmatpush1.bf16.xpose.msra.mxu0 %v3194
        %3215 = vmatprep.subr.bf16.mxu0 0
        %3216 = vmatpush1.bf16.xpose.msra.mxu0 %v3197
        %3217 = vmatprep.subr.bf16.mxu0 0
        %3218 = vmatpush1.bf16.xpose.msra.mxu0 %v3200
        %3219 = vmatprep.subr.bf16.mxu0 0
        %3220 = vmatpush1.bf16.xpose.msra.mxu0 %v3203
        %3221 = vmatprep.subr.bf16.mxu0 0
        %3222 = vmatpush1.bf16.xpose.msra.mxu0 0
        %3223 = vmatprep.subr.bf16.mxu0 0
        %3224 = vmatpush1.bf16.xpose.msra.mxu0 0
        %3225 = vmatprep.subr.bf16.mxu0 0
        %3226 = vmatpush1.bf16.xpose.msra.mxu0 0
        %3227 = vmatprep.subr.bf16.mxu0 0
        %3228 = vmatpush1.bf16.xpose.msra.mxu0 0
        %3229 = vmatprep.subr.bf16.mxu0 0
        %3230 = vmatpush1.bf16.xpose.msra.mxu0 0
        %3231 = vmatprep.subr.bf16.mxu0 0
        %3232 = vmatpush1.bf16.xpose.msra.mxu0 0
        %3233 = vmatprep.subr.bf16.mxu0 0
        %3234 = vmatpush1.bf16.xpose.msra.mxu0 0
        %3235 = vmatprep.subr.bf16.mxu0 0
        %3236 = vmatpush1.bf16.xpose.msra.mxu0 0
        %3237 = vmatprep.mubr.bf16.mxu0 0
        %3238 = vmatmul.mubr.bf16.gmra.mrb[0].mxu0 %v3158
        %v3239 = vpop.f32.mrb[0].mxu0
        %v3240 = vadd.f32 0.0, %v3239
        %v3241 = vpop.f32.mrb[0].mxu0
        %v3242 = vpop.f32.mrb[0].mxu0
        %v3243 = vadd.f32 0.0, %v3242
        %v3244 = vpop.f32.mrb[0].mxu0
        %3245 = vmatprep.mubr.bf16.mxu0 0
        %3246 = vmatmul.mubr.bf16.gmra.mrb[0].mxu0 %v3161
        %v3247 = vpop.f32.mrb[0].mxu0
        %v3248 = vadd.f32 0.0, %v3247
        %v3249 = vpop.f32.mrb[0].mxu0
        %v3250 = vpop.f32.mrb[0].mxu0
        %v3251 = vadd.f32 0.0, %v3250
        %v3252 = vpop.f32.mrb[0].mxu0
        %3253 = vmatprep.mubr.bf16.mxu0 0
        %3254 = vmatmul.mubr.bf16.gmra.mrb[0].mxu0 %v3164
        %v3255 = vpop.f32.mrb[0].mxu0
        %v3256 = vadd.f32 0.0, %v3255
        %v3257 = vpop.f32.mrb[0].mxu0
        %v3258 = vpop.f32.mrb[0].mxu0
        %v3259 = vadd.f32 0.0, %v3258
        %v3260 = vpop.f32.mrb[0].mxu0
        %3261 = vmatprep.mubr.bf16.mxu0 0
        %3262 = vmatmul.mubr.bf16.gmra.mrb[0].mxu0 %v3167
        %v3263 = vpop.f32.mrb[0].mxu0
        %v3264 = vadd.f32 0.0, %v3263
        %v3265 = vpop.f32.mrb[0].mxu0
        %v3266 = vpop.f32.mrb[0].mxu0
        %v3267 = vadd.f32 0.0, %v3266
        %v3268 = vpop.f32.mrb[0].mxu0
        %3269 = vmatprep.mubr.bf16.mxu0 0
        %3270 = vmatmul.mubr.bf16.gmra.mrb[0].mxu0 %v3170
        %v3271 = vpop.f32.mrb[0].mxu0
        %v3272 = vadd.f32 0.0, %v3271
        %v3273 = vpop.f32.mrb[0].mxu0
        %v3274 = vpop.f32.mrb[0].mxu0
        %v3275 = vadd.f32 0.0, %v3274
        %v3276 = vpop.f32.mrb[0].mxu0
        %3277 = vmatprep.mubr.bf16.mxu0 0
        %3278 = vmatmul.mubr.bf16.gmra.mrb[0].mxu0 %v3173
        %v3279 = vpop.f32.mrb[0].mxu0
        %v3280 = vadd.f32 0.0, %v3279
        %v3281 = vpop.f32.mrb[0].mxu0
        %v3282 = vpop.f32.mrb[0].mxu0
        %v3283 = vadd.f32 0.0, %v3282
        %v3284 = vpop.f32.mrb[0].mxu0
        %3285 = vmatprep.mubr.bf16.mxu0 0
        %3286 = vmatmul.mubr.bf16.gmra.mrb[0].mxu0 %v3176
        %v3287 = vpop.f32.mrb[0].mxu0
        %v3288 = vadd.f32 0.0, %v3287
        %v3289 = vpop.f32.mrb[0].mxu0
        %v3290 = vpop.f32.mrb[0].mxu0
        %v3291 = vadd.f32 0.0, %v3290
        %v3292 = vpop.f32.mrb[0].mxu0
        %3293 = vmatprep.mubr.bf16.mxu0 0
        %3294 = vmatmul.mubr.bf16.gmra.mrb[0].mxu0 %v3179
        %v3295 = vpop.f32.mrb[0].mxu0
        %v3296 = vadd.f32 0.0, %v3295
        %v3297 = vpop.f32.mrb[0].mxu0
        %v3298 = vpop.f32.mrb[0].mxu0
        %v3299 = vadd.f32 0.0, %v3298
        %v3300 = vpop.f32.mrb[0].mxu0
        %3301 = vdwg.mxu0
        %3302 = vrot.lane.b32.xlu0 %v1364, 96
        %v3303 = vpop.permute.xlu0 %3302
        %3304 = vrot.lane.b32.xlu0 %v1367, 96
        %v3305 = vpop.permute.xlu0 %3304
        %3306 = vrot.lane.b32.xlu0 %v1370, 96
        %v3307 = vpop.permute.xlu0 %3306
        %3308 = vrot.lane.b32.xlu0 %v1373, 96
        %v3309 = vpop.permute.xlu0 %3308
        %3310 = vrot.lane.b32.xlu0 %v1376, 96
        %v3311 = vpop.permute.xlu0 %3310
        %3312 = vrot.lane.b32.xlu0 %v1379, 96
        %v3313 = vpop.permute.xlu0 %3312
        %3314 = vrot.lane.b32.xlu0 %v1382, 96
        %v3315 = vpop.permute.xlu0 %3314
        %3316 = vrot.lane.b32.xlu0 %v1385, 96
        %v3317 = vpop.permute.xlu0 %3316
        %3318 = vrot.lane.b32.xlu0 %v1365, 96
        %v3319 = vpop.permute.xlu0 %3318
        %3320 = vrot.lane.b32.xlu0 %v1368, 96
        %v3321 = vpop.permute.xlu0 %3320
        %3322 = vrot.lane.b32.xlu0 %v1371, 96
        %v3323 = vpop.permute.xlu0 %3322
        %3324 = vrot.lane.b32.xlu0 %v1374, 96
        %v3325 = vpop.permute.xlu0 %3324
        %3326 = vrot.lane.b32.xlu0 %v1377, 96
        %v3327 = vpop.permute.xlu0 %3326
        %3328 = vrot.lane.b32.xlu0 %v1380, 96
        %v3329 = vpop.permute.xlu0 %3328
        %3330 = vrot.lane.b32.xlu0 %v1383, 96
        %v3331 = vpop.permute.xlu0 %3330
        %3332 = vrot.lane.b32.xlu0 %v1386, 96
        %v3333 = vpop.permute.xlu0 %3332
        %v3335 = vsel %vm1388, %v3303, 0
        %v3338 = vsel %vm1388, %v3305, 0
        %v3341 = vsel %vm1388, %v3307, 0
        %v3344 = vsel %vm1388, %v3309, 0
        %v3347 = vsel %vm1388, %v3311, 0
        %v3350 = vsel %vm1388, %v3313, 0
        %v3353 = vsel %vm1388, %v3315, 0
        %v3356 = vsel %vm1388, %v3317, 0
        %v3359 = vsel %vm1388, %v3319, 0
        %v3362 = vsel %vm1388, %v3321, 0
        %v3365 = vsel %vm1388, %v3323, 0
        %v3368 = vsel %vm1388, %v3325, 0
        %v3371 = vsel %vm1388, %v3327, 0
        %v3374 = vsel %vm1388, %v3329, 0
        %v3377 = vsel %vm1388, %v3331, 0
        %v3380 = vsel %vm1388, %v3333, 0
        %3382 = vmatprep.subr.bf16.mxu0 0
        %3383 = vmatpush1.bf16.xpose.msra.mxu0 %v3359
        %3384 = vmatprep.subr.bf16.mxu0 0
        %3385 = vmatpush1.bf16.xpose.msra.mxu0 %v3362
        %3386 = vmatprep.subr.bf16.mxu0 0
        %3387 = vmatpush1.bf16.xpose.msra.mxu0 %v3365
        %3388 = vmatprep.subr.bf16.mxu0 0
        %3389 = vmatpush1.bf16.xpose.msra.mxu0 %v3368
        %3390 = vmatprep.subr.bf16.mxu0 0
        %3391 = vmatpush1.bf16.xpose.msra.mxu0 %v3371
        %3392 = vmatprep.subr.bf16.mxu0 0
        %3393 = vmatpush1.bf16.xpose.msra.mxu0 %v3374
        %3394 = vmatprep.subr.bf16.mxu0 0
        %3395 = vmatpush1.bf16.xpose.msra.mxu0 %v3377
        %3396 = vmatprep.subr.bf16.mxu0 0
        %3397 = vmatpush1.bf16.xpose.msra.mxu0 %v3380
        %3398 = vmatprep.subr.bf16.mxu0 0
        %3399 = vmatpush1.bf16.xpose.msra.mxu0 0
        %3400 = vmatprep.subr.bf16.mxu0 0
        %3401 = vmatpush1.bf16.xpose.msra.mxu0 0
        %3402 = vmatprep.subr.bf16.mxu0 0
        %3403 = vmatpush1.bf16.xpose.msra.mxu0 0
        %3404 = vmatprep.subr.bf16.mxu0 0
        %3405 = vmatpush1.bf16.xpose.msra.mxu0 0
        %3406 = vmatprep.subr.bf16.mxu0 0
        %3407 = vmatpush1.bf16.xpose.msra.mxu0 0
        %3408 = vmatprep.subr.bf16.mxu0 0
        %3409 = vmatpush1.bf16.xpose.msra.mxu0 0
        %3410 = vmatprep.subr.bf16.mxu0 0
        %3411 = vmatpush1.bf16.xpose.msra.mxu0 0
        %3412 = vmatprep.subr.bf16.mxu0 0
        %3413 = vmatpush1.bf16.xpose.msra.mxu0 0
        %3414 = vmatprep.mubr.bf16.mxu0 0
        %3415 = vmatmul.mubr.bf16.gmra.mrb[0].mxu0 %v3335
        %v3416 = vpop.f32.mrb[0].mxu0
        %v3417 = vadd.f32 0.0, %v3416
        %v3418 = vpop.f32.mrb[0].mxu0
        %v3419 = vpop.f32.mrb[0].mxu0
        %v3420 = vadd.f32 0.0, %v3419
        %v3421 = vpop.f32.mrb[0].mxu0
        %3422 = vmatprep.mubr.bf16.mxu0 0
        %3423 = vmatmul.mubr.bf16.gmra.mrb[0].mxu0 %v3338
        %v3424 = vpop.f32.mrb[0].mxu0
        %v3425 = vadd.f32 0.0, %v3424
        %v3426 = vpop.f32.mrb[0].mxu0
        %v3427 = vpop.f32.mrb[0].mxu0
        %v3428 = vadd.f32 0.0, %v3427
        %v3429 = vpop.f32.mrb[0].mxu0
        %3430 = vmatprep.mubr.bf16.mxu0 0
        %3431 = vmatmul.mubr.bf16.gmra.mrb[0].mxu0 %v3341
        %v3432 = vpop.f32.mrb[0].mxu0
        %v3433 = vadd.f32 0.0, %v3432
        %v3434 = vpop.f32.mrb[0].mxu0
        %v3435 = vpop.f32.mrb[0].mxu0
        %v3436 = vadd.f32 0.0, %v3435
        %v3437 = vpop.f32.mrb[0].mxu0
        %3438 = vmatprep.mubr.bf16.mxu0 0
        %3439 = vmatmul.mubr.bf16.gmra.mrb[0].mxu0 %v3344
        %v3440 = vpop.f32.mrb[0].mxu0
        %v3441 = vadd.f32 0.0, %v3440
        %v3442 = vpop.f32.mrb[0].mxu0
        %v3443 = vpop.f32.mrb[0].mxu0
        %v3444 = vadd.f32 0.0, %v3443
        %v3445 = vpop.f32.mrb[0].mxu0
        %3446 = vmatprep.mubr.bf16.mxu0 0
        %3447 = vmatmul.mubr.bf16.gmra.mrb[0].mxu0 %v3347
        %v3448 = vpop.f32.mrb[0].mxu0
        %v3449 = vadd.f32 0.0, %v3448
        %v3450 = vpop.f32.mrb[0].mxu0
        %v3451 = vpop.f32.mrb[0].mxu0
        %v3452 = vadd.f32 0.0, %v3451
        %v3453 = vpop.f32.mrb[0].mxu0
        %3454 = vmatprep.mubr.bf16.mxu0 0
        %3455 = vmatmul.mubr.bf16.gmra.mrb[0].mxu0 %v3350
        %v3456 = vpop.f32.mrb[0].mxu0
        %v3457 = vadd.f32 0.0, %v3456
        %v3458 = vpop.f32.mrb[0].mxu0
        %v3459 = vpop.f32.mrb[0].mxu0
        %v3460 = vadd.f32 0.0, %v3459
        %v3461 = vpop.f32.mrb[0].mxu0
        %3462 = vmatprep.mubr.bf16.mxu0 0
        %3463 = vmatmul.mubr.bf16.gmra.mrb[0].mxu0 %v3353
        %v3464 = vpop.f32.mrb[0].mxu0
        %v3465 = vadd.f32 0.0, %v3464
        %v3466 = vpop.f32.mrb[0].mxu0
        %v3467 = vpop.f32.mrb[0].mxu0
        %v3468 = vadd.f32 0.0, %v3467
        %v3469 = vpop.f32.mrb[0].mxu0
        %3470 = vmatprep.mubr.bf16.mxu0 0
        %3471 = vmatmul.mubr.bf16.gmra.mrb[0].mxu0 %v3356
        %v3472 = vpop.f32.mrb[0].mxu0
        %v3473 = vadd.f32 0.0, %v3472
        %v3474 = vpop.f32.mrb[0].mxu0
        %v3475 = vpop.f32.mrb[0].mxu0
        %v3476 = vadd.f32 0.0, %v3475
        %v3477 = vpop.f32.mrb[0].mxu0
        %3478 = vdwg.mxu0
        %3479 = vmax.xlane.f32.xlu0 %v3240
        %v3480 = vpop.xlane.xlu0 %3479
        %3481 = vmax.xlane.f32.xlu0 %v3243
        %v3482 = vpop.xlane.xlu0 %3481
        %3483 = vmax.xlane.f32.xlu0 %v3248
        %v3484 = vpop.xlane.xlu0 %3483
        %3485 = vmax.xlane.f32.xlu0 %v3251
        %v3486 = vpop.xlane.xlu0 %3485
        %3487 = vmax.xlane.f32.xlu0 %v3256
        %v3488 = vpop.xlane.xlu0 %3487
        %3489 = vmax.xlane.f32.xlu0 %v3259
        %v3490 = vpop.xlane.xlu0 %3489
        %3491 = vmax.xlane.f32.xlu0 %v3264
        %v3492 = vpop.xlane.xlu0 %3491
        %3493 = vmax.xlane.f32.xlu0 %v3267
        %v3494 = vpop.xlane.xlu0 %3493
        %3495 = vmax.xlane.f32.xlu0 %v3272
        %v3496 = vpop.xlane.xlu0 %3495
        %3497 = vmax.xlane.f32.xlu0 %v3275
        %v3498 = vpop.xlane.xlu0 %3497
        %3499 = vmax.xlane.f32.xlu0 %v3280
        %v3500 = vpop.xlane.xlu0 %3499
        %3501 = vmax.xlane.f32.xlu0 %v3283
        %v3502 = vpop.xlane.xlu0 %3501
        %3503 = vmax.xlane.f32.xlu0 %v3288
        %v3504 = vpop.xlane.xlu0 %3503
        %3505 = vmax.xlane.f32.xlu0 %v3291
        %v3506 = vpop.xlane.xlu0 %3505
        %3507 = vmax.xlane.f32.xlu0 %v3296
        %v3508 = vpop.xlane.xlu0 %3507
        %3509 = vmax.xlane.f32.xlu0 %v3299
        %v3510 = vpop.xlane.xlu0 %3509
        %3511 = vmax.xlane.f32.xlu0 %v3417
        %v3512 = vpop.xlane.xlu0 %3511
        %3513 = vmax.xlane.f32.xlu0 %v3420
        %v3514 = vpop.xlane.xlu0 %3513
        %3515 = vmax.xlane.f32.xlu0 %v3425
        %v3516 = vpop.xlane.xlu0 %3515
        %3517 = vmax.xlane.f32.xlu0 %v3428
        %v3518 = vpop.xlane.xlu0 %3517
        %3519 = vmax.xlane.f32.xlu0 %v3433
        %v3520 = vpop.xlane.xlu0 %3519
        %3521 = vmax.xlane.f32.xlu0 %v3436
        %v3522 = vpop.xlane.xlu0 %3521
        %3523 = vmax.xlane.f32.xlu0 %v3441
        %v3524 = vpop.xlane.xlu0 %3523
        %3525 = vmax.xlane.f32.xlu0 %v3444
        %v3526 = vpop.xlane.xlu0 %3525
        %3527 = vmax.xlane.f32.xlu0 %v3449
        %v3528 = vpop.xlane.xlu0 %3527
        %3529 = vmax.xlane.f32.xlu0 %v3452
        %v3530 = vpop.xlane.xlu0 %3529
        %3531 = vmax.xlane.f32.xlu0 %v3457
        %v3532 = vpop.xlane.xlu0 %3531
        %3533 = vmax.xlane.f32.xlu0 %v3460
        %v3534 = vpop.xlane.xlu0 %3533
        %3535 = vmax.xlane.f32.xlu0 %v3465
        %v3536 = vpop.xlane.xlu0 %3535
        %3537 = vmax.xlane.f32.xlu0 %v3468
        %v3538 = vpop.xlane.xlu0 %3537
        %3539 = vmax.xlane.f32.xlu0 %v3473
        %v3540 = vpop.xlane.xlu0 %3539
        %3541 = vmax.xlane.f32.xlu0 %v3476
        %v3542 = vpop.xlane.xlu0 %3541
        %v3543 = vsub.f32 %v3240, %v3480
        %v3544 = vsub.f32 %v3243, %v3482
        %v3545 = vsub.f32 %v3248, %v3484
        %v3546 = vsub.f32 %v3251, %v3486
        %v3547 = vsub.f32 %v3256, %v3488
        %v3548 = vsub.f32 %v3259, %v3490
        %v3549 = vsub.f32 %v3264, %v3492
        %v3550 = vsub.f32 %v3267, %v3494
        %v3551 = vsub.f32 %v3272, %v3496
        %v3552 = vsub.f32 %v3275, %v3498
        %v3553 = vsub.f32 %v3280, %v3500
        %v3554 = vsub.f32 %v3283, %v3502
        %v3555 = vsub.f32 %v3288, %v3504
        %v3556 = vsub.f32 %v3291, %v3506
        %v3557 = vsub.f32 %v3296, %v3508
        %v3558 = vsub.f32 %v3299, %v3510
        %v3559 = vsub.f32 %v3417, %v3512
        %v3560 = vsub.f32 %v3420, %v3514
        %v3561 = vsub.f32 %v3425, %v3516
        %v3562 = vsub.f32 %v3428, %v3518
        %v3563 = vsub.f32 %v3433, %v3520
        %v3564 = vsub.f32 %v3436, %v3522
        %v3565 = vsub.f32 %v3441, %v3524
        %v3566 = vsub.f32 %v3444, %v3526
        %v3567 = vsub.f32 %v3449, %v3528
        %v3568 = vsub.f32 %v3452, %v3530
        %v3569 = vsub.f32 %v3457, %v3532
        %v3570 = vsub.f32 %v3460, %v3534
        %v3571 = vsub.f32 %v3465, %v3536
        %v3572 = vsub.f32 %v3468, %v3538
        %v3573 = vsub.f32 %v3473, %v3540
        %v3574 = vsub.f32 %v3476, %v3542
        %v3575 = vmul.f32 %v3543, 1.442695
        %v3576 = vpow.pop %v3575
        %v3577 = vmul.f32 %v3544, 1.442695
        %v3578 = vpow.pop %v3577
        %v3579 = vmul.f32 %v3545, 1.442695
        %v3580 = vpow.pop %v3579
        %v3581 = vmul.f32 %v3546, 1.442695
        %v3582 = vpow.pop %v3581
        %v3583 = vmul.f32 %v3547, 1.442695
        %v3584 = vpow.pop %v3583
        %v3585 = vmul.f32 %v3548, 1.442695
        %v3586 = vpow.pop %v3585
        %v3587 = vmul.f32 %v3549, 1.442695
        %v3588 = vpow.pop %v3587
        %v3589 = vmul.f32 %v3550, 1.442695
        %v3590 = vpow.pop %v3589
        %v3591 = vmul.f32 %v3551, 1.442695
        %v3592 = vpow.pop %v3591
        %v3593 = vmul.f32 %v3552, 1.442695
        %v3594 = vpow.pop %v3593
        %v3595 = vmul.f32 %v3553, 1.442695
        %v3596 = vpow.pop %v3595
        %v3597 = vmul.f32 %v3554, 1.442695
        %v3598 = vpow.pop %v3597
        %v3599 = vmul.f32 %v3555, 1.442695
        %v3600 = vpow.pop %v3599
        %v3601 = vmul.f32 %v3556, 1.442695
        %v3602 = vpow.pop %v3601
        %v3603 = vmul.f32 %v3557, 1.442695
        %v3604 = vpow.pop %v3603
        %v3605 = vmul.f32 %v3558, 1.442695
        %v3606 = vpow.pop %v3605
        %v3607 = vmul.f32 %v3559, 1.442695
        %v3608 = vpow.pop %v3607
        %v3609 = vmul.f32 %v3560, 1.442695
        %v3610 = vpow.pop %v3609
        %v3611 = vmul.f32 %v3561, 1.442695
        %v3612 = vpow.pop %v3611
        %v3613 = vmul.f32 %v3562, 1.442695
        %v3614 = vpow.pop %v3613
        %v3615 = vmul.f32 %v3563, 1.442695
        %v3616 = vpow.pop %v3615
        %v3617 = vmul.f32 %v3564, 1.442695
        %v3618 = vpow.pop %v3617
        %v3619 = vmul.f32 %v3565, 1.442695
        %v3620 = vpow.pop %v3619
        %v3621 = vmul.f32 %v3566, 1.442695
        %v3622 = vpow.pop %v3621
        %v3623 = vmul.f32 %v3567, 1.442695
        %v3624 = vpow.pop %v3623
        %v3625 = vmul.f32 %v3568, 1.442695
        %v3626 = vpow.pop %v3625
        %v3627 = vmul.f32 %v3569, 1.442695
        %v3628 = vpow.pop %v3627
        %v3629 = vmul.f32 %v3570, 1.442695
        %v3630 = vpow.pop %v3629
        %v3631 = vmul.f32 %v3571, 1.442695
        %v3632 = vpow.pop %v3631
        %v3633 = vmul.f32 %v3572, 1.442695
        %v3634 = vpow.pop %v3633
        %v3635 = vmul.f32 %v3573, 1.442695
        %v3636 = vpow.pop %v3635
        %v3637 = vmul.f32 %v3574, 1.442695
        %v3638 = vpow.pop %v3637
        %v3639 = vpack.c.bf16 %v3578, %v3576
        %v3640 = vpack.c.bf16 %v3582, %v3580
        %v3641 = vpack.c.bf16 %v3586, %v3584
        %v3642 = vpack.c.bf16 %v3590, %v3588
        %v3643 = vpack.c.bf16 %v3594, %v3592
        %v3644 = vpack.c.bf16 %v3598, %v3596
        %v3645 = vpack.c.bf16 %v3602, %v3600
        %v3646 = vpack.c.bf16 %v3606, %v3604
        %v3647 = vpack.c.bf16 %v3610, %v3608
        %v3648 = vpack.c.bf16 %v3614, %v3612
        %v3649 = vpack.c.bf16 %v3618, %v3616
        %v3650 = vpack.c.bf16 %v3622, %v3620
        %v3651 = vpack.c.bf16 %v3626, %v3624
        %v3652 = vpack.c.bf16 %v3630, %v3628
        %v3653 = vpack.c.bf16 %v3634, %v3632
        %v3654 = vpack.c.bf16 %v3638, %v3636
        %3655 = vrot.lane.b32.xlu0 %v1342, 96
        %v3656 = vpop.permute.xlu0 %3655
        %3657 = vrot.lane.b32.xlu0 %v1345, 96
        %v3658 = vpop.permute.xlu0 %3657
        %3659 = vrot.lane.b32.xlu0 %v1348, 96
        %v3660 = vpop.permute.xlu0 %3659
        %3661 = vrot.lane.b32.xlu0 %v1351, 96
        %v3662 = vpop.permute.xlu0 %3661
        %3663 = vrot.lane.b32.xlu0 %v1354, 96
        %v3664 = vpop.permute.xlu0 %3663
        %3665 = vrot.lane.b32.xlu0 %v1357, 96
        %v3666 = vpop.permute.xlu0 %3665
        %3667 = vrot.lane.b32.xlu0 %v1360, 96
        %v3668 = vpop.permute.xlu0 %3667
        %3669 = vrot.lane.b32.xlu0 %v1363, 96
        %v3670 = vpop.permute.xlu0 %3669
        %3679 = vmatprep.subr.bf16.mxu0 0
        %3680 = vmatpush1.bf16.msra.mxu0 %v3656
        %3681 = vmatprep.subr.bf16.mxu0 0
        %3682 = vmatpush1.bf16.msra.mxu0 %v3658
        %3683 = vmatprep.subr.bf16.mxu0 0
        %3684 = vmatpush1.bf16.msra.mxu0 %v3660
        %3685 = vmatprep.subr.bf16.mxu0 0
        %3686 = vmatpush1.bf16.msra.mxu0 %v3662
        %3687 = vmatprep.subr.bf16.mxu0 0
        %3688 = vmatpush1.bf16.msra.mxu0 %v3664
        %3689 = vmatprep.subr.bf16.mxu0 0
        %3690 = vmatpush1.bf16.msra.mxu0 %v3666
        %3691 = vmatprep.subr.bf16.mxu0 0
        %3692 = vmatpush1.bf16.msra.mxu0 %v3668
        %3693 = vmatprep.subr.bf16.mxu0 0
        %3694 = vmatpush1.bf16.msra.mxu0 %v3670
        %3695 = vmatprep.subr.bf16.mxu0 0
        %3696 = vmatpush1.bf16.msra.mxu0 0
        %3697 = vmatprep.subr.bf16.mxu0 0
        %3698 = vmatpush1.bf16.msra.mxu0 0
        %3699 = vmatprep.subr.bf16.mxu0 0
        %3700 = vmatpush1.bf16.msra.mxu0 0
        %3701 = vmatprep.subr.bf16.mxu0 0
        %3702 = vmatpush1.bf16.msra.mxu0 0
        %3703 = vmatprep.subr.bf16.mxu0 0
        %3704 = vmatpush1.bf16.msra.mxu0 0
        %3705 = vmatprep.subr.bf16.mxu0 0
        %3706 = vmatpush1.bf16.msra.mxu0 0
        %3707 = vmatprep.subr.bf16.mxu0 0
        %3708 = vmatpush1.bf16.msra.mxu0 0
        %3709 = vmatprep.subr.bf16.mxu0 0
        %3710 = vmatpush1.bf16.msra.mxu0 0
        %3711 = vmatprep.mubr.bf16.mxu0 0
        %3712 = vmatmul.mubr.bf16.gmra.mrb[0].mxu0 %v3639
        %v3713 = vpop.f32.mrb[0].mxu0
        %v3714 = vadd.f32 0.0, %v3713
        %v3715 = vpop.f32.mrb[0].mxu0
        %v3716 = vpop.f32.mrb[0].mxu0
        %v3717 = vadd.f32 0.0, %v3716
        %v3718 = vpop.f32.mrb[0].mxu0
        %3719 = vmatprep.mubr.bf16.mxu0 0
        %3720 = vmatmul.mubr.bf16.gmra.mrb[0].mxu0 %v3640
        %v3721 = vpop.f32.mrb[0].mxu0
        %v3722 = vadd.f32 0.0, %v3721
        %v3723 = vpop.f32.mrb[0].mxu0
        %v3724 = vpop.f32.mrb[0].mxu0
        %v3725 = vadd.f32 0.0, %v3724
        %v3726 = vpop.f32.mrb[0].mxu0
        %3727 = vmatprep.mubr.bf16.mxu0 0
        %3728 = vmatmul.mubr.bf16.gmra.mrb[0].mxu0 %v3641
        %v3729 = vpop.f32.mrb[0].mxu0
        %v3730 = vadd.f32 0.0, %v3729
        %v3731 = vpop.f32.mrb[0].mxu0
        %v3732 = vpop.f32.mrb[0].mxu0
        %v3733 = vadd.f32 0.0, %v3732
        %v3734 = vpop.f32.mrb[0].mxu0
        %3735 = vmatprep.mubr.bf16.mxu0 0
        %3736 = vmatmul.mubr.bf16.gmra.mrb[0].mxu0 %v3642
        %v3737 = vpop.f32.mrb[0].mxu0
        %v3738 = vadd.f32 0.0, %v3737
        %v3739 = vpop.f32.mrb[0].mxu0
        %v3740 = vpop.f32.mrb[0].mxu0
        %v3741 = vadd.f32 0.0, %v3740
        %v3742 = vpop.f32.mrb[0].mxu0
        %3743 = vmatprep.mubr.bf16.mxu0 0
        %3744 = vmatmul.mubr.bf16.gmra.mrb[0].mxu0 %v3643
        %v3745 = vpop.f32.mrb[0].mxu0
        %v3746 = vadd.f32 0.0, %v3745
        %v3747 = vpop.f32.mrb[0].mxu0
        %v3748 = vpop.f32.mrb[0].mxu0
        %v3749 = vadd.f32 0.0, %v3748
        %v3750 = vpop.f32.mrb[0].mxu0
        %3751 = vmatprep.mubr.bf16.mxu0 0
        %3752 = vmatmul.mubr.bf16.gmra.mrb[0].mxu0 %v3644
        %v3753 = vpop.f32.mrb[0].mxu0
        %v3754 = vadd.f32 0.0, %v3753
        %v3755 = vpop.f32.mrb[0].mxu0
        %v3756 = vpop.f32.mrb[0].mxu0
        %v3757 = vadd.f32 0.0, %v3756
        %v3758 = vpop.f32.mrb[0].mxu0
        %3759 = vmatprep.mubr.bf16.mxu0 0
        %3760 = vmatmul.mubr.bf16.gmra.mrb[0].mxu0 %v3645
        %v3761 = vpop.f32.mrb[0].mxu0
        %v3762 = vadd.f32 0.0, %v3761
        %v3763 = vpop.f32.mrb[0].mxu0
        %v3764 = vpop.f32.mrb[0].mxu0
        %v3765 = vadd.f32 0.0, %v3764
        %v3766 = vpop.f32.mrb[0].mxu0
        %3767 = vmatprep.mubr.bf16.mxu0 0
        %3768 = vmatmul.mubr.bf16.gmra.mrb[0].mxu0 %v3646
        %v3769 = vpop.f32.mrb[0].mxu0
        %v3770 = vadd.f32 0.0, %v3769
        %v3771 = vpop.f32.mrb[0].mxu0
        %v3772 = vpop.f32.mrb[0].mxu0
        %v3773 = vadd.f32 0.0, %v3772
        %v3774 = vpop.f32.mrb[0].mxu0
        %3775 = vdwg.mxu0
        %3776 = vrot.lane.b32.xlu0 %v1366, 96
        %v3777 = vpop.permute.xlu0 %3776
        %3778 = vrot.lane.b32.xlu0 %v1369, 96
        %v3779 = vpop.permute.xlu0 %3778
        %3780 = vrot.lane.b32.xlu0 %v1372, 96
        %v3781 = vpop.permute.xlu0 %3780
        %3782 = vrot.lane.b32.xlu0 %v1375, 96
        %v3783 = vpop.permute.xlu0 %3782
        %3784 = vrot.lane.b32.xlu0 %v1378, 96
        %v3785 = vpop.permute.xlu0 %3784
        %3786 = vrot.lane.b32.xlu0 %v1381, 96
        %v3787 = vpop.permute.xlu0 %3786
        %3788 = vrot.lane.b32.xlu0 %v1384, 96
        %v3789 = vpop.permute.xlu0 %3788
        %3790 = vrot.lane.b32.xlu0 %v1387, 96
        %v3791 = vpop.permute.xlu0 %3790
        %3800 = vmatprep.subr.bf16.mxu0 0
        %3801 = vmatpush1.bf16.msra.mxu0 %v3777
        %3802 = vmatprep.subr.bf16.mxu0 0
        %3803 = vmatpush1.bf16.msra.mxu0 %v3779
        %3804 = vmatprep.subr.bf16.mxu0 0
        %3805 = vmatpush1.bf16.msra.mxu0 %v3781
        %3806 = vmatprep.subr.bf16.mxu0 0
        %3807 = vmatpush1.bf16.msra.mxu0 %v3783
        %3808 = vmatprep.subr.bf16.mxu0 0
        %3809 = vmatpush1.bf16.msra.mxu0 %v3785
        %3810 = vmatprep.subr.bf16.mxu0 0
        %3811 = vmatpush1.bf16.msra.mxu0 %v3787
        %3812 = vmatprep.subr.bf16.mxu0 0
        %3813 = vmatpush1.bf16.msra.mxu0 %v3789
        %3814 = vmatprep.subr.bf16.mxu0 0
        %3815 = vmatpush1.bf16.msra.mxu0 %v3791
        %3816 = vmatprep.subr.bf16.mxu0 0
        %3817 = vmatpush1.bf16.msra.mxu0 0
        %3818 = vmatprep.subr.bf16.mxu0 0
        %3819 = vmatpush1.bf16.msra.mxu0 0
        %3820 = vmatprep.subr.bf16.mxu0 0
        %3821 = vmatpush1.bf16.msra.mxu0 0
        %3822 = vmatprep.subr.bf16.mxu0 0
        %3823 = vmatpush1.bf16.msra.mxu0 0
        %3824 = vmatprep.subr.bf16.mxu0 0
        %3825 = vmatpush1.bf16.msra.mxu0 0
        %3826 = vmatprep.subr.bf16.mxu0 0
        %3827 = vmatpush1.bf16.msra.mxu0 0
        %3828 = vmatprep.subr.bf16.mxu0 0
        %3829 = vmatpush1.bf16.msra.mxu0 0
        %3830 = vmatprep.subr.bf16.mxu0 0
        %3831 = vmatpush1.bf16.msra.mxu0 0
        %3832 = vmatprep.mubr.bf16.mxu0 0
        %3833 = vmatmul.mubr.bf16.gmra.mrb[0].mxu0 %v3647
        %v3834 = vpop.f32.mrb[0].mxu0
        %v3835 = vadd.f32 0.0, %v3834
        %v3836 = vpop.f32.mrb[0].mxu0
        %v3837 = vpop.f32.mrb[0].mxu0
        %v3838 = vadd.f32 0.0, %v3837
        %v3839 = vpop.f32.mrb[0].mxu0
        %3840 = vmatprep.mubr.bf16.mxu0 0
        %3841 = vmatmul.mubr.bf16.gmra.mrb[0].mxu0 %v3648
        %v3842 = vpop.f32.mrb[0].mxu0
        %v3843 = vadd.f32 0.0, %v3842
        %v3844 = vpop.f32.mrb[0].mxu0
        %v3845 = vpop.f32.mrb[0].mxu0
        %v3846 = vadd.f32 0.0, %v3845
        %v3847 = vpop.f32.mrb[0].mxu0
        %3848 = vmatprep.mubr.bf16.mxu0 0
        %3849 = vmatmul.mubr.bf16.gmra.mrb[0].mxu0 %v3649
        %v3850 = vpop.f32.mrb[0].mxu0
        %v3851 = vadd.f32 0.0, %v3850
        %v3852 = vpop.f32.mrb[0].mxu0
        %v3853 = vpop.f32.mrb[0].mxu0
        %v3854 = vadd.f32 0.0, %v3853
        %v3855 = vpop.f32.mrb[0].mxu0
        %3856 = vmatprep.mubr.bf16.mxu0 0
        %3857 = vmatmul.mubr.bf16.gmra.mrb[0].mxu0 %v3650
        %v3858 = vpop.f32.mrb[0].mxu0
        %v3859 = vadd.f32 0.0, %v3858
        %v3860 = vpop.f32.mrb[0].mxu0
        %v3861 = vpop.f32.mrb[0].mxu0
        %v3862 = vadd.f32 0.0, %v3861
        %v3863 = vpop.f32.mrb[0].mxu0
        %3864 = vmatprep.mubr.bf16.mxu0 0
        %3865 = vmatmul.mubr.bf16.gmra.mrb[0].mxu0 %v3651
        %v3866 = vpop.f32.mrb[0].mxu0
        %v3867 = vadd.f32 0.0, %v3866
        %v3868 = vpop.f32.mrb[0].mxu0
        %v3869 = vpop.f32.mrb[0].mxu0
        %v3870 = vadd.f32 0.0, %v3869
        %v3871 = vpop.f32.mrb[0].mxu0
        %3872 = vmatprep.mubr.bf16.mxu0 0
        %3873 = vmatmul.mubr.bf16.gmra.mrb[0].mxu0 %v3652
        %v3874 = vpop.f32.mrb[0].mxu0
        %v3875 = vadd.f32 0.0, %v3874
        %v3876 = vpop.f32.mrb[0].mxu0
        %v3877 = vpop.f32.mrb[0].mxu0
        %v3878 = vadd.f32 0.0, %v3877
        %v3879 = vpop.f32.mrb[0].mxu0
        %3880 = vmatprep.mubr.bf16.mxu0 0
        %3881 = vmatmul.mubr.bf16.gmra.mrb[0].mxu0 %v3653
        %v3882 = vpop.f32.mrb[0].mxu0
        %v3883 = vadd.f32 0.0, %v3882
        %v3884 = vpop.f32.mrb[0].mxu0
        %v3885 = vpop.f32.mrb[0].mxu0
        %v3886 = vadd.f32 0.0, %v3885
        %v3887 = vpop.f32.mrb[0].mxu0
        %3888 = vmatprep.mubr.bf16.mxu0 0
        %3889 = vmatmul.mubr.bf16.gmra.mrb[0].mxu0 %v3654
        %v3890 = vpop.f32.mrb[0].mxu0
        %v3891 = vadd.f32 0.0, %v3890
        %v3892 = vpop.f32.mrb[0].mxu0
        %v3893 = vpop.f32.mrb[0].mxu0
        %v3894 = vadd.f32 0.0, %v3893
        %v3895 = vpop.f32.mrb[0].mxu0
        %3896 = vdwg.mxu0
        %3897 = vadd.xlane.f32.xlu0 %v3576
        %v3898 = vpop.xlane.xlu0 %3897
        %3899 = vadd.xlane.f32.xlu0 %v3578
        %v3900 = vpop.xlane.xlu0 %3899
        %3901 = vadd.xlane.f32.xlu0 %v3580
        %v3902 = vpop.xlane.xlu0 %3901
        %3903 = vadd.xlane.f32.xlu0 %v3582
        %v3904 = vpop.xlane.xlu0 %3903
        %3905 = vadd.xlane.f32.xlu0 %v3584
        %v3906 = vpop.xlane.xlu0 %3905
        %3907 = vadd.xlane.f32.xlu0 %v3586
        %v3908 = vpop.xlane.xlu0 %3907
        %3909 = vadd.xlane.f32.xlu0 %v3588
        %v3910 = vpop.xlane.xlu0 %3909
        %3911 = vadd.xlane.f32.xlu0 %v3590
        %v3912 = vpop.xlane.xlu0 %3911
        %3913 = vadd.xlane.f32.xlu0 %v3592
        %v3914 = vpop.xlane.xlu0 %3913
        %3915 = vadd.xlane.f32.xlu0 %v3594
        %v3916 = vpop.xlane.xlu0 %3915
        %3917 = vadd.xlane.f32.xlu0 %v3596
        %v3918 = vpop.xlane.xlu0 %3917
        %3919 = vadd.xlane.f32.xlu0 %v3598
        %v3920 = vpop.xlane.xlu0 %3919
        %3921 = vadd.xlane.f32.xlu0 %v3600
        %v3922 = vpop.xlane.xlu0 %3921
        %3923 = vadd.xlane.f32.xlu0 %v3602
        %v3924 = vpop.xlane.xlu0 %3923
        %3925 = vadd.xlane.f32.xlu0 %v3604
        %v3926 = vpop.xlane.xlu0 %3925
        %3927 = vadd.xlane.f32.xlu0 %v3606
        %v3928 = vpop.xlane.xlu0 %3927
        %3929 = vadd.xlane.f32.xlu0 %v3608
        %v3930 = vpop.xlane.xlu0 %3929
        %3931 = vadd.xlane.f32.xlu0 %v3610
        %v3932 = vpop.xlane.xlu0 %3931
        %3933 = vadd.xlane.f32.xlu0 %v3612
        %v3934 = vpop.xlane.xlu0 %3933
        %3935 = vadd.xlane.f32.xlu0 %v3614
        %v3936 = vpop.xlane.xlu0 %3935
        %3937 = vadd.xlane.f32.xlu0 %v3616
        %v3938 = vpop.xlane.xlu0 %3937
        %3939 = vadd.xlane.f32.xlu0 %v3618
        %v3940 = vpop.xlane.xlu0 %3939
        %3941 = vadd.xlane.f32.xlu0 %v3620
        %v3942 = vpop.xlane.xlu0 %3941
        %3943 = vadd.xlane.f32.xlu0 %v3622
        %v3944 = vpop.xlane.xlu0 %3943
        %3945 = vadd.xlane.f32.xlu0 %v3624
        %v3946 = vpop.xlane.xlu0 %3945
        %3947 = vadd.xlane.f32.xlu0 %v3626
        %v3948 = vpop.xlane.xlu0 %3947
        %3949 = vadd.xlane.f32.xlu0 %v3628
        %v3950 = vpop.xlane.xlu0 %3949
        %3951 = vadd.xlane.f32.xlu0 %v3630
        %v3952 = vpop.xlane.xlu0 %3951
        %3953 = vadd.xlane.f32.xlu0 %v3632
        %v3954 = vpop.xlane.xlu0 %3953
        %3955 = vadd.xlane.f32.xlu0 %v3634
        %v3956 = vpop.xlane.xlu0 %3955
        %3957 = vadd.xlane.f32.xlu0 %v3636
        %v3958 = vpop.xlane.xlu0 %3957
        %3959 = vadd.xlane.f32.xlu0 %v3638
        %v3960 = vpop.xlane.xlu0 %3959
        %v3961 = vrcp.pop %v3898
        %v3962 = vrcp.pop %v3900
        %v3963 = vrcp.pop %v3902
        %v3964 = vrcp.pop %v3904
        %v3965 = vrcp.pop %v3906
        %v3966 = vrcp.pop %v3908
        %v3967 = vrcp.pop %v3910
        %v3968 = vrcp.pop %v3912
        %v3969 = vrcp.pop %v3914
        %v3970 = vrcp.pop %v3916
        %v3971 = vrcp.pop %v3918
        %v3972 = vrcp.pop %v3920
        %v3973 = vrcp.pop %v3922
        %v3974 = vrcp.pop %v3924
        %v3975 = vrcp.pop %v3926
        %v3976 = vrcp.pop %v3928
        %v3977 = vrcp.pop %v3930
        %v3978 = vrcp.pop %v3932
        %v3979 = vrcp.pop %v3934
        %v3980 = vrcp.pop %v3936
        %v3981 = vrcp.pop %v3938
        %v3982 = vrcp.pop %v3940
        %v3983 = vrcp.pop %v3942
        %v3984 = vrcp.pop %v3944
        %v3985 = vrcp.pop %v3946
        %v3986 = vrcp.pop %v3948
        %v3987 = vrcp.pop %v3950
        %v3988 = vrcp.pop %v3952
        %v3989 = vrcp.pop %v3954
        %v3990 = vrcp.pop %v3956
        %v3991 = vrcp.pop %v3958
        %v3992 = vrcp.pop %v3960
        %v3993 = vmul.f32 %v3714, %v3961
        %v3994 = vmul.f32 %v3717, %v3962
        %v3995 = vmul.f32 %v3722, %v3963
        %v3996 = vmul.f32 %v3725, %v3964
        %v3997 = vmul.f32 %v3730, %v3965
        %v3998 = vmul.f32 %v3733, %v3966
        %v3999 = vmul.f32 %v3738, %v3967
        %v4000 = vmul.f32 %v3741, %v3968
        %v4001 = vmul.f32 %v3746, %v3969
        %v4002 = vmul.f32 %v3749, %v3970
        %v4003 = vmul.f32 %v3754, %v3971
        %v4004 = vmul.f32 %v3757, %v3972
        %v4005 = vmul.f32 %v3762, %v3973
        %v4006 = vmul.f32 %v3765, %v3974
        %v4007 = vmul.f32 %v3770, %v3975
        %v4008 = vmul.f32 %v3773, %v3976
        %v4009 = vmul.f32 %v3835, %v3977
        %v4010 = vmul.f32 %v3838, %v3978
        %v4011 = vmul.f32 %v3843, %v3979
        %v4012 = vmul.f32 %v3846, %v3980
        %v4013 = vmul.f32 %v3851, %v3981
        %v4014 = vmul.f32 %v3854, %v3982
        %v4015 = vmul.f32 %v3859, %v3983
        %v4016 = vmul.f32 %v3862, %v3984
        %v4017 = vmul.f32 %v3867, %v3985
        %v4018 = vmul.f32 %v3870, %v3986
        %v4019 = vmul.f32 %v3875, %v3987
        %v4020 = vmul.f32 %v3878, %v3988
        %v4021 = vmul.f32 %v3883, %v3989
        %v4022 = vmul.f32 %v3886, %v3990
        %v4023 = vmul.f32 %v3891, %v3991
        %v4024 = vmul.f32 %v3894, %v3992
        %4025 = vrot.lane.b32.xlu0 %v1340, 80
        %v4026 = vpop.permute.xlu0 %4025
        %4027 = vrot.lane.b32.xlu0 %v1343, 80
        %v4028 = vpop.permute.xlu0 %4027
        %4029 = vrot.lane.b32.xlu0 %v1346, 80
        %v4030 = vpop.permute.xlu0 %4029
        %4031 = vrot.lane.b32.xlu0 %v1349, 80
        %v4032 = vpop.permute.xlu0 %4031
        %4033 = vrot.lane.b32.xlu0 %v1352, 80
        %v4034 = vpop.permute.xlu0 %4033
        %4035 = vrot.lane.b32.xlu0 %v1355, 80
        %v4036 = vpop.permute.xlu0 %4035
        %4037 = vrot.lane.b32.xlu0 %v1358, 80
        %v4038 = vpop.permute.xlu0 %4037
        %4039 = vrot.lane.b32.xlu0 %v1361, 80
        %v4040 = vpop.permute.xlu0 %4039
        %4041 = vrot.lane.b32.xlu0 %v1341, 80
        %v4042 = vpop.permute.xlu0 %4041
        %4043 = vrot.lane.b32.xlu0 %v1344, 80
        %v4044 = vpop.permute.xlu0 %4043
        %4045 = vrot.lane.b32.xlu0 %v1347, 80
        %v4046 = vpop.permute.xlu0 %4045
        %4047 = vrot.lane.b32.xlu0 %v1350, 80
        %v4048 = vpop.permute.xlu0 %4047
        %4049 = vrot.lane.b32.xlu0 %v1353, 80
        %v4050 = vpop.permute.xlu0 %4049
        %4051 = vrot.lane.b32.xlu0 %v1356, 80
        %v4052 = vpop.permute.xlu0 %4051
        %4053 = vrot.lane.b32.xlu0 %v1359, 80
        %v4054 = vpop.permute.xlu0 %4053
        %4055 = vrot.lane.b32.xlu0 %v1362, 80
        %v4056 = vpop.permute.xlu0 %4055
        %v4058 = vsel %vm1388, %v4026, 0
        %v4061 = vsel %vm1388, %v4028, 0
        %v4064 = vsel %vm1388, %v4030, 0
        %v4067 = vsel %vm1388, %v4032, 0
        %v4070 = vsel %vm1388, %v4034, 0
        %v4073 = vsel %vm1388, %v4036, 0
        %v4076 = vsel %vm1388, %v4038, 0
        %v4079 = vsel %vm1388, %v4040, 0
        %v4082 = vsel %vm1388, %v4042, 0
        %v4085 = vsel %vm1388, %v4044, 0
        %v4088 = vsel %vm1388, %v4046, 0
        %v4091 = vsel %vm1388, %v4048, 0
        %v4094 = vsel %vm1388, %v4050, 0
        %v4097 = vsel %vm1388, %v4052, 0
        %v4100 = vsel %vm1388, %v4054, 0
        %v4103 = vsel %vm1388, %v4056, 0
        %4105 = vmatprep.subr.bf16.mxu0 0
        %4106 = vmatpush1.bf16.xpose.msra.mxu0 %v4082
        %4107 = vmatprep.subr.bf16.mxu0 0
        %4108 = vmatpush1.bf16.xpose.msra.mxu0 %v4085
        %4109 = vmatprep.subr.bf16.mxu0 0
        %4110 = vmatpush1.bf16.xpose.msra.mxu0 %v4088
        %4111 = vmatprep.subr.bf16.mxu0 0
        %4112 = vmatpush1.bf16.xpose.msra.mxu0 %v4091
        %4113 = vmatprep.subr.bf16.mxu0 0
        %4114 = vmatpush1.bf16.xpose.msra.mxu0 %v4094
        %4115 = vmatprep.subr.bf16.mxu0 0
        %4116 = vmatpush1.bf16.xpose.msra.mxu0 %v4097
        %4117 = vmatprep.subr.bf16.mxu0 0
        %4118 = vmatpush1.bf16.xpose.msra.mxu0 %v4100
        %4119 = vmatprep.subr.bf16.mxu0 0
        %4120 = vmatpush1.bf16.xpose.msra.mxu0 %v4103
        %4121 = vmatprep.subr.bf16.mxu0 0
        %4122 = vmatpush1.bf16.xpose.msra.mxu0 0
        %4123 = vmatprep.subr.bf16.mxu0 0
        %4124 = vmatpush1.bf16.xpose.msra.mxu0 0
        %4125 = vmatprep.subr.bf16.mxu0 0
        %4126 = vmatpush1.bf16.xpose.msra.mxu0 0
        %4127 = vmatprep.subr.bf16.mxu0 0
        %4128 = vmatpush1.bf16.xpose.msra.mxu0 0
        %4129 = vmatprep.subr.bf16.mxu0 0
        %4130 = vmatpush1.bf16.xpose.msra.mxu0 0
        %4131 = vmatprep.subr.bf16.mxu0 0
        %4132 = vmatpush1.bf16.xpose.msra.mxu0 0
        %4133 = vmatprep.subr.bf16.mxu0 0
        %4134 = vmatpush1.bf16.xpose.msra.mxu0 0
        %4135 = vmatprep.subr.bf16.mxu0 0
        %4136 = vmatpush1.bf16.xpose.msra.mxu0 0
        %4137 = vmatprep.mubr.bf16.mxu0 0
        %4138 = vmatmul.mubr.bf16.gmra.mrb[0].mxu0 %v4058
        %v4139 = vpop.f32.mrb[0].mxu0
        %v4140 = vadd.f32 0.0, %v4139
        %v4141 = vpop.f32.mrb[0].mxu0
        %v4142 = vpop.f32.mrb[0].mxu0
        %v4143 = vadd.f32 0.0, %v4142
        %v4144 = vpop.f32.mrb[0].mxu0
        %4145 = vmatprep.mubr.bf16.mxu0 0
        %4146 = vmatmul.mubr.bf16.gmra.mrb[0].mxu0 %v4061
        %v4147 = vpop.f32.mrb[0].mxu0
        %v4148 = vadd.f32 0.0, %v4147
        %v4149 = vpop.f32.mrb[0].mxu0
        %v4150 = vpop.f32.mrb[0].mxu0
        %v4151 = vadd.f32 0.0, %v4150
        %v4152 = vpop.f32.mrb[0].mxu0
        %4153 = vmatprep.mubr.bf16.mxu0 0
        %4154 = vmatmul.mubr.bf16.gmra.mrb[0].mxu0 %v4064
        %v4155 = vpop.f32.mrb[0].mxu0
        %v4156 = vadd.f32 0.0, %v4155
        %v4157 = vpop.f32.mrb[0].mxu0
        %v4158 = vpop.f32.mrb[0].mxu0
        %v4159 = vadd.f32 0.0, %v4158
        %v4160 = vpop.f32.mrb[0].mxu0
        %4161 = vmatprep.mubr.bf16.mxu0 0
        %4162 = vmatmul.mubr.bf16.gmra.mrb[0].mxu0 %v4067
        %v4163 = vpop.f32.mrb[0].mxu0
        %v4164 = vadd.f32 0.0, %v4163
        %v4165 = vpop.f32.mrb[0].mxu0
        %v4166 = vpop.f32.mrb[0].mxu0
        %v4167 = vadd.f32 0.0, %v4166
        %v4168 = vpop.f32.mrb[0].mxu0
        %4169 = vmatprep.mubr.bf16.mxu0 0
        %4170 = vmatmul.mubr.bf16.gmra.mrb[0].mxu0 %v4070
        %v4171 = vpop.f32.mrb[0].mxu0
        %v4172 = vadd.f32 0.0, %v4171
        %v4173 = vpop.f32.mrb[0].mxu0
        %v4174 = vpop.f32.mrb[0].mxu0
        %v4175 = vadd.f32 0.0, %v4174
        %v4176 = vpop.f32.mrb[0].mxu0
        %4177 = vmatprep.mubr.bf16.mxu0 0
        %4178 = vmatmul.mubr.bf16.gmra.mrb[0].mxu0 %v4073
        %v4179 = vpop.f32.mrb[0].mxu0
        %v4180 = vadd.f32 0.0, %v4179
        %v4181 = vpop.f32.mrb[0].mxu0
        %v4182 = vpop.f32.mrb[0].mxu0
        %v4183 = vadd.f32 0.0, %v4182
        %v4184 = vpop.f32.mrb[0].mxu0
        %4185 = vmatprep.mubr.bf16.mxu0 0
        %4186 = vmatmul.mubr.bf16.gmra.mrb[0].mxu0 %v4076
        %v4187 = vpop.f32.mrb[0].mxu0
        %v4188 = vadd.f32 0.0, %v4187
        %v4189 = vpop.f32.mrb[0].mxu0
        %v4190 = vpop.f32.mrb[0].mxu0
        %v4191 = vadd.f32 0.0, %v4190
        %v4192 = vpop.f32.mrb[0].mxu0
        %4193 = vmatprep.mubr.bf16.mxu0 0
        %4194 = vmatmul.mubr.bf16.gmra.mrb[0].mxu0 %v4079
        %v4195 = vpop.f32.mrb[0].mxu0
        %v4196 = vadd.f32 0.0, %v4195
        %v4197 = vpop.f32.mrb[0].mxu0
        %v4198 = vpop.f32.mrb[0].mxu0
        %v4199 = vadd.f32 0.0, %v4198
        %v4200 = vpop.f32.mrb[0].mxu0
        %4201 = vdwg.mxu0
        %4202 = vrot.lane.b32.xlu0 %v1364, 80
        %v4203 = vpop.permute.xlu0 %4202
        %4204 = vrot.lane.b32.xlu0 %v1367, 80
        %v4205 = vpop.permute.xlu0 %4204
        %4206 = vrot.lane.b32.xlu0 %v1370, 80
        %v4207 = vpop.permute.xlu0 %4206
        %4208 = vrot.lane.b32.xlu0 %v1373, 80
        %v4209 = vpop.permute.xlu0 %4208
        %4210 = vrot.lane.b32.xlu0 %v1376, 80
        %v4211 = vpop.permute.xlu0 %4210
        %4212 = vrot.lane.b32.xlu0 %v1379, 80
        %v4213 = vpop.permute.xlu0 %4212
        %4214 = vrot.lane.b32.xlu0 %v1382, 80
        %v4215 = vpop.permute.xlu0 %4214
        %4216 = vrot.lane.b32.xlu0 %v1385, 80
        %v4217 = vpop.permute.xlu0 %4216
        %4218 = vrot.lane.b32.xlu0 %v1365, 80
        %v4219 = vpop.permute.xlu0 %4218
        %4220 = vrot.lane.b32.xlu0 %v1368, 80
        %v4221 = vpop.permute.xlu0 %4220
        %4222 = vrot.lane.b32.xlu0 %v1371, 80
        %v4223 = vpop.permute.xlu0 %4222
        %4224 = vrot.lane.b32.xlu0 %v1374, 80
        %v4225 = vpop.permute.xlu0 %4224
        %4226 = vrot.lane.b32.xlu0 %v1377, 80
        %v4227 = vpop.permute.xlu0 %4226
        %4228 = vrot.lane.b32.xlu0 %v1380, 80
        %v4229 = vpop.permute.xlu0 %4228
        %4230 = vrot.lane.b32.xlu0 %v1383, 80
        %v4231 = vpop.permute.xlu0 %4230
        %4232 = vrot.lane.b32.xlu0 %v1386, 80
        %v4233 = vpop.permute.xlu0 %4232
        %v4235 = vsel %vm1388, %v4203, 0
        %v4238 = vsel %vm1388, %v4205, 0
        %v4241 = vsel %vm1388, %v4207, 0
        %v4244 = vsel %vm1388, %v4209, 0
        %v4247 = vsel %vm1388, %v4211, 0
        %v4250 = vsel %vm1388, %v4213, 0
        %v4253 = vsel %vm1388, %v4215, 0
        %v4256 = vsel %vm1388, %v4217, 0
        %v4259 = vsel %vm1388, %v4219, 0
        %v4262 = vsel %vm1388, %v4221, 0
        %v4265 = vsel %vm1388, %v4223, 0
        %v4268 = vsel %vm1388, %v4225, 0
        %v4271 = vsel %vm1388, %v4227, 0
        %v4274 = vsel %vm1388, %v4229, 0
        %v4277 = vsel %vm1388, %v4231, 0
        %v4280 = vsel %vm1388, %v4233, 0
        %4282 = vmatprep.subr.bf16.mxu0 0
        %4283 = vmatpush1.bf16.xpose.msra.mxu0 %v4259
        %4284 = vmatprep.subr.bf16.mxu0 0
        %4285 = vmatpush1.bf16.xpose.msra.mxu0 %v4262
        %4286 = vmatprep.subr.bf16.mxu0 0
        %4287 = vmatpush1.bf16.xpose.msra.mxu0 %v4265
        %4288 = vmatprep.subr.bf16.mxu0 0
        %4289 = vmatpush1.bf16.xpose.msra.mxu0 %v4268
        %4290 = vmatprep.subr.bf16.mxu0 0
        %4291 = vmatpush1.bf16.xpose.msra.mxu0 %v4271
        %4292 = vmatprep.subr.bf16.mxu0 0
        %4293 = vmatpush1.bf16.xpose.msra.mxu0 %v4274
        %4294 = vmatprep.subr.bf16.mxu0 0
        %4295 = vmatpush1.bf16.xpose.msra.mxu0 %v4277
        %4296 = vmatprep.subr.bf16.mxu0 0
        %4297 = vmatpush1.bf16.xpose.msra.mxu0 %v4280
        %4298 = vmatprep.subr.bf16.mxu0 0
        %4299 = vmatpush1.bf16.xpose.msra.mxu0 0
        %4300 = vmatprep.subr.bf16.mxu0 0
        %4301 = vmatpush1.bf16.xpose.msra.mxu0 0
        %4302 = vmatprep.subr.bf16.mxu0 0
        %4303 = vmatpush1.bf16.xpose.msra.mxu0 0
        %4304 = vmatprep.subr.bf16.mxu0 0
        %4305 = vmatpush1.bf16.xpose.msra.mxu0 0
        %4306 = vmatprep.subr.bf16.mxu0 0
        %4307 = vmatpush1.bf16.xpose.msra.mxu0 0
        %4308 = vmatprep.subr.bf16.mxu0 0
        %4309 = vmatpush1.bf16.xpose.msra.mxu0 0
        %4310 = vmatprep.subr.bf16.mxu0 0
        %4311 = vmatpush1.bf16.xpose.msra.mxu0 0
        %4312 = vmatprep.subr.bf16.mxu0 0
        %4313 = vmatpush1.bf16.xpose.msra.mxu0 0
        %4314 = vmatprep.mubr.bf16.mxu0 0
        %4315 = vmatmul.mubr.bf16.gmra.mrb[0].mxu0 %v4235
        %v4316 = vpop.f32.mrb[0].mxu0
        %v4317 = vadd.f32 0.0, %v4316
        %v4318 = vpop.f32.mrb[0].mxu0
        %v4319 = vpop.f32.mrb[0].mxu0
        %v4320 = vadd.f32 0.0, %v4319
        %v4321 = vpop.f32.mrb[0].mxu0
        %4322 = vmatprep.mubr.bf16.mxu0 0
        %4323 = vmatmul.mubr.bf16.gmra.mrb[0].mxu0 %v4238
        %v4324 = vpop.f32.mrb[0].mxu0
        %v4325 = vadd.f32 0.0, %v4324
        %v4326 = vpop.f32.mrb[0].mxu0
        %v4327 = vpop.f32.mrb[0].mxu0
        %v4328 = vadd.f32 0.0, %v4327
        %v4329 = vpop.f32.mrb[0].mxu0
        %4330 = vmatprep.mubr.bf16.mxu0 0
        %4331 = vmatmul.mubr.bf16.gmra.mrb[0].mxu0 %v4241
        %v4332 = vpop.f32.mrb[0].mxu0
        %v4333 = vadd.f32 0.0, %v4332
        %v4334 = vpop.f32.mrb[0].mxu0
        %v4335 = vpop.f32.mrb[0].mxu0
        %v4336 = vadd.f32 0.0, %v4335
        %v4337 = vpop.f32.mrb[0].mxu0
        %4338 = vmatprep.mubr.bf16.mxu0 0
        %4339 = vmatmul.mubr.bf16.gmra.mrb[0].mxu0 %v4244
        %v4340 = vpop.f32.mrb[0].mxu0
        %v4341 = vadd.f32 0.0, %v4340
        %v4342 = vpop.f32.mrb[0].mxu0
        %v4343 = vpop.f32.mrb[0].mxu0
        %v4344 = vadd.f32 0.0, %v4343
        %v4345 = vpop.f32.mrb[0].mxu0
        %4346 = vmatprep.mubr.bf16.mxu0 0
        %4347 = vmatmul.mubr.bf16.gmra.mrb[0].mxu0 %v4247
        %v4348 = vpop.f32.mrb[0].mxu0
        %v4349 = vadd.f32 0.0, %v4348
        %v4350 = vpop.f32.mrb[0].mxu0
        %v4351 = vpop.f32.mrb[0].mxu0
        %v4352 = vadd.f32 0.0, %v4351
        %v4353 = vpop.f32.mrb[0].mxu0
        %4354 = vmatprep.mubr.bf16.mxu0 0
        %4355 = vmatmul.mubr.bf16.gmra.mrb[0].mxu0 %v4250
        %v4356 = vpop.f32.mrb[0].mxu0
        %v4357 = vadd.f32 0.0, %v4356
        %v4358 = vpop.f32.mrb[0].mxu0
        %v4359 = vpop.f32.mrb[0].mxu0
        %v4360 = vadd.f32 0.0, %v4359
        %v4361 = vpop.f32.mrb[0].mxu0
        %4362 = vmatprep.mubr.bf16.mxu0 0
        %4363 = vmatmul.mubr.bf16.gmra.mrb[0].mxu0 %v4253
        %v4364 = vpop.f32.mrb[0].mxu0
        %v4365 = vadd.f32 0.0, %v4364
        %v4366 = vpop.f32.mrb[0].mxu0
        %v4367 = vpop.f32.mrb[0].mxu0
        %v4368 = vadd.f32 0.0, %v4367
        %v4369 = vpop.f32.mrb[0].mxu0
        %4370 = vmatprep.mubr.bf16.mxu0 0
        %4371 = vmatmul.mubr.bf16.gmra.mrb[0].mxu0 %v4256
        %v4372 = vpop.f32.mrb[0].mxu0
        %v4373 = vadd.f32 0.0, %v4372
        %v4374 = vpop.f32.mrb[0].mxu0
        %v4375 = vpop.f32.mrb[0].mxu0
        %v4376 = vadd.f32 0.0, %v4375
        %v4377 = vpop.f32.mrb[0].mxu0
        %4378 = vdwg.mxu0
        %4379 = vmax.xlane.f32.xlu0 %v4140
        %v4380 = vpop.xlane.xlu0 %4379
        %4381 = vmax.xlane.f32.xlu0 %v4143
        %v4382 = vpop.xlane.xlu0 %4381
        %4383 = vmax.xlane.f32.xlu0 %v4148
        %v4384 = vpop.xlane.xlu0 %4383
        %4385 = vmax.xlane.f32.xlu0 %v4151
        %v4386 = vpop.xlane.xlu0 %4385
        %4387 = vmax.xlane.f32.xlu0 %v4156
        %v4388 = vpop.xlane.xlu0 %4387
        %4389 = vmax.xlane.f32.xlu0 %v4159
        %v4390 = vpop.xlane.xlu0 %4389
        %4391 = vmax.xlane.f32.xlu0 %v4164
        %v4392 = vpop.xlane.xlu0 %4391
        %4393 = vmax.xlane.f32.xlu0 %v4167
        %v4394 = vpop.xlane.xlu0 %4393
        %4395 = vmax.xlane.f32.xlu0 %v4172
        %v4396 = vpop.xlane.xlu0 %4395
        %4397 = vmax.xlane.f32.xlu0 %v4175
        %v4398 = vpop.xlane.xlu0 %4397
        %4399 = vmax.xlane.f32.xlu0 %v4180
        %v4400 = vpop.xlane.xlu0 %4399
        %4401 = vmax.xlane.f32.xlu0 %v4183
        %v4402 = vpop.xlane.xlu0 %4401
        %4403 = vmax.xlane.f32.xlu0 %v4188
        %v4404 = vpop.xlane.xlu0 %4403
        %4405 = vmax.xlane.f32.xlu0 %v4191
        %v4406 = vpop.xlane.xlu0 %4405
        %4407 = vmax.xlane.f32.xlu0 %v4196
        %v4408 = vpop.xlane.xlu0 %4407
        %4409 = vmax.xlane.f32.xlu0 %v4199
        %v4410 = vpop.xlane.xlu0 %4409
        %4411 = vmax.xlane.f32.xlu0 %v4317
        %v4412 = vpop.xlane.xlu0 %4411
        %4413 = vmax.xlane.f32.xlu0 %v4320
        %v4414 = vpop.xlane.xlu0 %4413
        %4415 = vmax.xlane.f32.xlu0 %v4325
        %v4416 = vpop.xlane.xlu0 %4415
        %4417 = vmax.xlane.f32.xlu0 %v4328
        %v4418 = vpop.xlane.xlu0 %4417
        %4419 = vmax.xlane.f32.xlu0 %v4333
        %v4420 = vpop.xlane.xlu0 %4419
        %4421 = vmax.xlane.f32.xlu0 %v4336
        %v4422 = vpop.xlane.xlu0 %4421
        %4423 = vmax.xlane.f32.xlu0 %v4341
        %v4424 = vpop.xlane.xlu0 %4423
        %4425 = vmax.xlane.f32.xlu0 %v4344
        %v4426 = vpop.xlane.xlu0 %4425
        %4427 = vmax.xlane.f32.xlu0 %v4349
        %v4428 = vpop.xlane.xlu0 %4427
        %4429 = vmax.xlane.f32.xlu0 %v4352
        %v4430 = vpop.xlane.xlu0 %4429
        %4431 = vmax.xlane.f32.xlu0 %v4357
        %v4432 = vpop.xlane.xlu0 %4431
        %4433 = vmax.xlane.f32.xlu0 %v4360
        %v4434 = vpop.xlane.xlu0 %4433
        %4435 = vmax.xlane.f32.xlu0 %v4365
        %v4436 = vpop.xlane.xlu0 %4435
        %4437 = vmax.xlane.f32.xlu0 %v4368
        %v4438 = vpop.xlane.xlu0 %4437
        %4439 = vmax.xlane.f32.xlu0 %v4373
        %v4440 = vpop.xlane.xlu0 %4439
        %4441 = vmax.xlane.f32.xlu0 %v4376
        %v4442 = vpop.xlane.xlu0 %4441
        %v4443 = vsub.f32 %v4140, %v4380
        %v4444 = vsub.f32 %v4143, %v4382
        %v4445 = vsub.f32 %v4148, %v4384
        %v4446 = vsub.f32 %v4151, %v4386
        %v4447 = vsub.f32 %v4156, %v4388
        %v4448 = vsub.f32 %v4159, %v4390
        %v4449 = vsub.f32 %v4164, %v4392
        %v4450 = vsub.f32 %v4167, %v4394
        %v4451 = vsub.f32 %v4172, %v4396
        %v4452 = vsub.f32 %v4175, %v4398
        %v4453 = vsub.f32 %v4180, %v4400
        %v4454 = vsub.f32 %v4183, %v4402
        %v4455 = vsub.f32 %v4188, %v4404
        %v4456 = vsub.f32 %v4191, %v4406
        %v4457 = vsub.f32 %v4196, %v4408
        %v4458 = vsub.f32 %v4199, %v4410
        %v4459 = vsub.f32 %v4317, %v4412
        %v4460 = vsub.f32 %v4320, %v4414
        %v4461 = vsub.f32 %v4325, %v4416
        %v4462 = vsub.f32 %v4328, %v4418
        %v4463 = vsub.f32 %v4333, %v4420
        %v4464 = vsub.f32 %v4336, %v4422
        %v4465 = vsub.f32 %v4341, %v4424
        %v4466 = vsub.f32 %v4344, %v4426
        %v4467 = vsub.f32 %v4349, %v4428
        %v4468 = vsub.f32 %v4352, %v4430
        %v4469 = vsub.f32 %v4357, %v4432
        %v4470 = vsub.f32 %v4360, %v4434
        %v4471 = vsub.f32 %v4365, %v4436
        %v4472 = vsub.f32 %v4368, %v4438
        %v4473 = vsub.f32 %v4373, %v4440
        %v4474 = vsub.f32 %v4376, %v4442
        %v4475 = vmul.f32 %v4443, 1.442695
        %v4476 = vpow.pop %v4475
        %v4477 = vmul.f32 %v4444, 1.442695
        %v4478 = vpow.pop %v4477
        %v4479 = vmul.f32 %v4445, 1.442695
        %v4480 = vpow.pop %v4479
        %v4481 = vmul.f32 %v4446, 1.442695
        %v4482 = vpow.pop %v4481
        %v4483 = vmul.f32 %v4447, 1.442695
        %v4484 = vpow.pop %v4483
        %v4485 = vmul.f32 %v4448, 1.442695
        %v4486 = vpow.pop %v4485
        %v4487 = vmul.f32 %v4449, 1.442695
        %v4488 = vpow.pop %v4487
        %v4489 = vmul.f32 %v4450, 1.442695
        %v4490 = vpow.pop %v4489
        %v4491 = vmul.f32 %v4451, 1.442695
        %v4492 = vpow.pop %v4491
        %v4493 = vmul.f32 %v4452, 1.442695
        %v4494 = vpow.pop %v4493
        %v4495 = vmul.f32 %v4453, 1.442695
        %v4496 = vpow.pop %v4495
        %v4497 = vmul.f32 %v4454, 1.442695
        %v4498 = vpow.pop %v4497
        %v4499 = vmul.f32 %v4455, 1.442695
        %v4500 = vpow.pop %v4499
        %v4501 = vmul.f32 %v4456, 1.442695
        %v4502 = vpow.pop %v4501
        %v4503 = vmul.f32 %v4457, 1.442695
        %v4504 = vpow.pop %v4503
        %v4505 = vmul.f32 %v4458, 1.442695
        %v4506 = vpow.pop %v4505
        %v4507 = vmul.f32 %v4459, 1.442695
        %v4508 = vpow.pop %v4507
        %v4509 = vmul.f32 %v4460, 1.442695
        %v4510 = vpow.pop %v4509
        %v4511 = vmul.f32 %v4461, 1.442695
        %v4512 = vpow.pop %v4511
        %v4513 = vmul.f32 %v4462, 1.442695
        %v4514 = vpow.pop %v4513
        %v4515 = vmul.f32 %v4463, 1.442695
        %v4516 = vpow.pop %v4515
        %v4517 = vmul.f32 %v4464, 1.442695
        %v4518 = vpow.pop %v4517
        %v4519 = vmul.f32 %v4465, 1.442695
        %v4520 = vpow.pop %v4519
        %v4521 = vmul.f32 %v4466, 1.442695
        %v4522 = vpow.pop %v4521
        %v4523 = vmul.f32 %v4467, 1.442695
        %v4524 = vpow.pop %v4523
        %v4525 = vmul.f32 %v4468, 1.442695
        %v4526 = vpow.pop %v4525
        %v4527 = vmul.f32 %v4469, 1.442695
        %v4528 = vpow.pop %v4527
        %v4529 = vmul.f32 %v4470, 1.442695
        %v4530 = vpow.pop %v4529
        %v4531 = vmul.f32 %v4471, 1.442695
        %v4532 = vpow.pop %v4531
        %v4533 = vmul.f32 %v4472, 1.442695
        %v4534 = vpow.pop %v4533
        %v4535 = vmul.f32 %v4473, 1.442695
        %v4536 = vpow.pop %v4535
        %v4537 = vmul.f32 %v4474, 1.442695
        %v4538 = vpow.pop %v4537
        %v4539 = vpack.c.bf16 %v4478, %v4476
        %v4540 = vpack.c.bf16 %v4482, %v4480
        %v4541 = vpack.c.bf16 %v4486, %v4484
        %v4542 = vpack.c.bf16 %v4490, %v4488
        %v4543 = vpack.c.bf16 %v4494, %v4492
        %v4544 = vpack.c.bf16 %v4498, %v4496
        %v4545 = vpack.c.bf16 %v4502, %v4500
        %v4546 = vpack.c.bf16 %v4506, %v4504
        %v4547 = vpack.c.bf16 %v4510, %v4508
        %v4548 = vpack.c.bf16 %v4514, %v4512
        %v4549 = vpack.c.bf16 %v4518, %v4516
        %v4550 = vpack.c.bf16 %v4522, %v4520
        %v4551 = vpack.c.bf16 %v4526, %v4524
        %v4552 = vpack.c.bf16 %v4530, %v4528
        %v4553 = vpack.c.bf16 %v4534, %v4532
        %v4554 = vpack.c.bf16 %v4538, %v4536
        %4555 = vrot.lane.b32.xlu0 %v1342, 80
        %v4556 = vpop.permute.xlu0 %4555
        %4557 = vrot.lane.b32.xlu0 %v1345, 80
        %v4558 = vpop.permute.xlu0 %4557
        %4559 = vrot.lane.b32.xlu0 %v1348, 80
        %v4560 = vpop.permute.xlu0 %4559
        %4561 = vrot.lane.b32.xlu0 %v1351, 80
        %v4562 = vpop.permute.xlu0 %4561
        %4563 = vrot.lane.b32.xlu0 %v1354, 80
        %v4564 = vpop.permute.xlu0 %4563
        %4565 = vrot.lane.b32.xlu0 %v1357, 80
        %v4566 = vpop.permute.xlu0 %4565
        %4567 = vrot.lane.b32.xlu0 %v1360, 80
        %v4568 = vpop.permute.xlu0 %4567
        %4569 = vrot.lane.b32.xlu0 %v1363, 80
        %v4570 = vpop.permute.xlu0 %4569
        %4579 = vmatprep.subr.bf16.mxu0 0
        %4580 = vmatpush1.bf16.msra.mxu0 %v4556
        %4581 = vmatprep.subr.bf16.mxu0 0
        %4582 = vmatpush1.bf16.msra.mxu0 %v4558
        %4583 = vmatprep.subr.bf16.mxu0 0
        %4584 = vmatpush1.bf16.msra.mxu0 %v4560
        %4585 = vmatprep.subr.bf16.mxu0 0
        %4586 = vmatpush1.bf16.msra.mxu0 %v4562
        %4587 = vmatprep.subr.bf16.mxu0 0
        %4588 = vmatpush1.bf16.msra.mxu0 %v4564
        %4589 = vmatprep.subr.bf16.mxu0 0
        %4590 = vmatpush1.bf16.msra.mxu0 %v4566
        %4591 = vmatprep.subr.bf16.mxu0 0
        %4592 = vmatpush1.bf16.msra.mxu0 %v4568
        %4593 = vmatprep.subr.bf16.mxu0 0
        %4594 = vmatpush1.bf16.msra.mxu0 %v4570
        %4595 = vmatprep.subr.bf16.mxu0 0
        %4596 = vmatpush1.bf16.msra.mxu0 0
        %4597 = vmatprep.subr.bf16.mxu0 0
        %4598 = vmatpush1.bf16.msra.mxu0 0
        %4599 = vmatprep.subr.bf16.mxu0 0
        %4600 = vmatpush1.bf16.msra.mxu0 0
        %4601 = vmatprep.subr.bf16.mxu0 0
        %4602 = vmatpush1.bf16.msra.mxu0 0
        %4603 = vmatprep.subr.bf16.mxu0 0
        %4604 = vmatpush1.bf16.msra.mxu0 0
        %4605 = vmatprep.subr.bf16.mxu0 0
        %4606 = vmatpush1.bf16.msra.mxu0 0
        %4607 = vmatprep.subr.bf16.mxu0 0
        %4608 = vmatpush1.bf16.msra.mxu0 0
        %4609 = vmatprep.subr.bf16.mxu0 0
        %4610 = vmatpush1.bf16.msra.mxu0 0
        %4611 = vmatprep.mubr.bf16.mxu0 0
        %4612 = vmatmul.mubr.bf16.gmra.mrb[0].mxu0 %v4539
        %v4613 = vpop.f32.mrb[0].mxu0
        %v4614 = vadd.f32 0.0, %v4613
        %v4615 = vpop.f32.mrb[0].mxu0
        %v4616 = vpop.f32.mrb[0].mxu0
        %v4617 = vadd.f32 0.0, %v4616
        %v4618 = vpop.f32.mrb[0].mxu0
        %4619 = vmatprep.mubr.bf16.mxu0 0
        %4620 = vmatmul.mubr.bf16.gmra.mrb[0].mxu0 %v4540
        %v4621 = vpop.f32.mrb[0].mxu0
        %v4622 = vadd.f32 0.0, %v4621
        %v4623 = vpop.f32.mrb[0].mxu0
        %v4624 = vpop.f32.mrb[0].mxu0
        %v4625 = vadd.f32 0.0, %v4624
        %v4626 = vpop.f32.mrb[0].mxu0
        %4627 = vmatprep.mubr.bf16.mxu0 0
        %4628 = vmatmul.mubr.bf16.gmra.mrb[0].mxu0 %v4541
        %v4629 = vpop.f32.mrb[0].mxu0
        %v4630 = vadd.f32 0.0, %v4629
        %v4631 = vpop.f32.mrb[0].mxu0
        %v4632 = vpop.f32.mrb[0].mxu0
        %v4633 = vadd.f32 0.0, %v4632
        %v4634 = vpop.f32.mrb[0].mxu0
        %4635 = vmatprep.mubr.bf16.mxu0 0
        %4636 = vmatmul.mubr.bf16.gmra.mrb[0].mxu0 %v4542
        %v4637 = vpop.f32.mrb[0].mxu0
        %v4638 = vadd.f32 0.0, %v4637
        %v4639 = vpop.f32.mrb[0].mxu0
        %v4640 = vpop.f32.mrb[0].mxu0
        %v4641 = vadd.f32 0.0, %v4640
        %v4642 = vpop.f32.mrb[0].mxu0
        %4643 = vmatprep.mubr.bf16.mxu0 0
        %4644 = vmatmul.mubr.bf16.gmra.mrb[0].mxu0 %v4543
        %v4645 = vpop.f32.mrb[0].mxu0
        %v4646 = vadd.f32 0.0, %v4645
        %v4647 = vpop.f32.mrb[0].mxu0
        %v4648 = vpop.f32.mrb[0].mxu0
        %v4649 = vadd.f32 0.0, %v4648
        %v4650 = vpop.f32.mrb[0].mxu0
        %4651 = vmatprep.mubr.bf16.mxu0 0
        %4652 = vmatmul.mubr.bf16.gmra.mrb[0].mxu0 %v4544
        %v4653 = vpop.f32.mrb[0].mxu0
        %v4654 = vadd.f32 0.0, %v4653
        %v4655 = vpop.f32.mrb[0].mxu0
        %v4656 = vpop.f32.mrb[0].mxu0
        %v4657 = vadd.f32 0.0, %v4656
        %v4658 = vpop.f32.mrb[0].mxu0
        %4659 = vmatprep.mubr.bf16.mxu0 0
        %4660 = vmatmul.mubr.bf16.gmra.mrb[0].mxu0 %v4545
        %v4661 = vpop.f32.mrb[0].mxu0
        %v4662 = vadd.f32 0.0, %v4661
        %v4663 = vpop.f32.mrb[0].mxu0
        %v4664 = vpop.f32.mrb[0].mxu0
        %v4665 = vadd.f32 0.0, %v4664
        %v4666 = vpop.f32.mrb[0].mxu0
        %4667 = vmatprep.mubr.bf16.mxu0 0
        %4668 = vmatmul.mubr.bf16.gmra.mrb[0].mxu0 %v4546
        %v4669 = vpop.f32.mrb[0].mxu0
        %v4670 = vadd.f32 0.0, %v4669
        %v4671 = vpop.f32.mrb[0].mxu0
        %v4672 = vpop.f32.mrb[0].mxu0
        %v4673 = vadd.f32 0.0, %v4672
        %v4674 = vpop.f32.mrb[0].mxu0
        %4675 = vdwg.mxu0
        %4676 = vrot.lane.b32.xlu0 %v1366, 80
        %v4677 = vpop.permute.xlu0 %4676
        %4678 = vrot.lane.b32.xlu0 %v1369, 80
        %v4679 = vpop.permute.xlu0 %4678
        %4680 = vrot.lane.b32.xlu0 %v1372, 80
        %v4681 = vpop.permute.xlu0 %4680
        %4682 = vrot.lane.b32.xlu0 %v1375, 80
        %v4683 = vpop.permute.xlu0 %4682
        %4684 = vrot.lane.b32.xlu0 %v1378, 80
        %v4685 = vpop.permute.xlu0 %4684
        %4686 = vrot.lane.b32.xlu0 %v1381, 80
        %v4687 = vpop.permute.xlu0 %4686
        %4688 = vrot.lane.b32.xlu0 %v1384, 80
        %v4689 = vpop.permute.xlu0 %4688
        %4690 = vrot.lane.b32.xlu0 %v1387, 80
        %v4691 = vpop.permute.xlu0 %4690
        %4700 = vmatprep.subr.bf16.mxu0 0
        %4701 = vmatpush1.bf16.msra.mxu0 %v4677
        %4702 = vmatprep.subr.bf16.mxu0 0
        %4703 = vmatpush1.bf16.msra.mxu0 %v4679
        %4704 = vmatprep.subr.bf16.mxu0 0
        %4705 = vmatpush1.bf16.msra.mxu0 %v4681
        %4706 = vmatprep.subr.bf16.mxu0 0
        %4707 = vmatpush1.bf16.msra.mxu0 %v4683
        %4708 = vmatprep.subr.bf16.mxu0 0
        %4709 = vmatpush1.bf16.msra.mxu0 %v4685
        %4710 = vmatprep.subr.bf16.mxu0 0
        %4711 = vmatpush1.bf16.msra.mxu0 %v4687
        %4712 = vmatprep.subr.bf16.mxu0 0
        %4713 = vmatpush1.bf16.msra.mxu0 %v4689
        %4714 = vmatprep.subr.bf16.mxu0 0
        %4715 = vmatpush1.bf16.msra.mxu0 %v4691
        %4716 = vmatprep.subr.bf16.mxu0 0
        %4717 = vmatpush1.bf16.msra.mxu0 0
        %4718 = vmatprep.subr.bf16.mxu0 0
        %4719 = vmatpush1.bf16.msra.mxu0 0
        %4720 = vmatprep.subr.bf16.mxu0 0
        %4721 = vmatpush1.bf16.msra.mxu0 0
        %4722 = vmatprep.subr.bf16.mxu0 0
        %4723 = vmatpush1.bf16.msra.mxu0 0
        %4724 = vmatprep.subr.bf16.mxu0 0
        %4725 = vmatpush1.bf16.msra.mxu0 0
        %4726 = vmatprep.subr.bf16.mxu0 0
        %4727 = vmatpush1.bf16.msra.mxu0 0
        %4728 = vmatprep.subr.bf16.mxu0 0
        %4729 = vmatpush1.bf16.msra.mxu0 0
        %4730 = vmatprep.subr.bf16.mxu0 0
        %4731 = vmatpush1.bf16.msra.mxu0 0
        %4732 = vmatprep.mubr.bf16.mxu0 0
        %4733 = vmatmul.mubr.bf16.gmra.mrb[0].mxu0 %v4547
        %v4734 = vpop.f32.mrb[0].mxu0
        %v4735 = vadd.f32 0.0, %v4734
        %v4736 = vpop.f32.mrb[0].mxu0
        %v4737 = vpop.f32.mrb[0].mxu0
        %v4738 = vadd.f32 0.0, %v4737
        %v4739 = vpop.f32.mrb[0].mxu0
        %4740 = vmatprep.mubr.bf16.mxu0 0
        %4741 = vmatmul.mubr.bf16.gmra.mrb[0].mxu0 %v4548
        %v4742 = vpop.f32.mrb[0].mxu0
        %v4743 = vadd.f32 0.0, %v4742
        %v4744 = vpop.f32.mrb[0].mxu0
        %v4745 = vpop.f32.mrb[0].mxu0
        %v4746 = vadd.f32 0.0, %v4745
        %v4747 = vpop.f32.mrb[0].mxu0
        %4748 = vmatprep.mubr.bf16.mxu0 0
        %4749 = vmatmul.mubr.bf16.gmra.mrb[0].mxu0 %v4549
        %v4750 = vpop.f32.mrb[0].mxu0
        %v4751 = vadd.f32 0.0, %v4750
        %v4752 = vpop.f32.mrb[0].mxu0
        %v4753 = vpop.f32.mrb[0].mxu0
        %v4754 = vadd.f32 0.0, %v4753
        %v4755 = vpop.f32.mrb[0].mxu0
        %4756 = vmatprep.mubr.bf16.mxu0 0
        %4757 = vmatmul.mubr.bf16.gmra.mrb[0].mxu0 %v4550
        %v4758 = vpop.f32.mrb[0].mxu0
        %v4759 = vadd.f32 0.0, %v4758
        %v4760 = vpop.f32.mrb[0].mxu0
        %v4761 = vpop.f32.mrb[0].mxu0
        %v4762 = vadd.f32 0.0, %v4761
        %v4763 = vpop.f32.mrb[0].mxu0
        %4764 = vmatprep.mubr.bf16.mxu0 0
        %4765 = vmatmul.mubr.bf16.gmra.mrb[0].mxu0 %v4551
        %v4766 = vpop.f32.mrb[0].mxu0
        %v4767 = vadd.f32 0.0, %v4766
        %v4768 = vpop.f32.mrb[0].mxu0
        %v4769 = vpop.f32.mrb[0].mxu0
        %v4770 = vadd.f32 0.0, %v4769
        %v4771 = vpop.f32.mrb[0].mxu0
        %4772 = vmatprep.mubr.bf16.mxu0 0
        %4773 = vmatmul.mubr.bf16.gmra.mrb[0].mxu0 %v4552
        %v4774 = vpop.f32.mrb[0].mxu0
        %v4775 = vadd.f32 0.0, %v4774
        %v4776 = vpop.f32.mrb[0].mxu0
        %v4777 = vpop.f32.mrb[0].mxu0
        %v4778 = vadd.f32 0.0, %v4777
        %v4779 = vpop.f32.mrb[0].mxu0
        %4780 = vmatprep.mubr.bf16.mxu0 0
        %4781 = vmatmul.mubr.bf16.gmra.mrb[0].mxu0 %v4553
        %v4782 = vpop.f32.mrb[0].mxu0
        %v4783 = vadd.f32 0.0, %v4782
        %v4784 = vpop.f32.mrb[0].mxu0
        %v4785 = vpop.f32.mrb[0].mxu0
        %v4786 = vadd.f32 0.0, %v4785
        %v4787 = vpop.f32.mrb[0].mxu0
        %4788 = vmatprep.mubr.bf16.mxu0 0
        %4789 = vmatmul.mubr.bf16.gmra.mrb[0].mxu0 %v4554
        %v4790 = vpop.f32.mrb[0].mxu0
        %v4791 = vadd.f32 0.0, %v4790
        %v4792 = vpop.f32.mrb[0].mxu0
        %v4793 = vpop.f32.mrb[0].mxu0
        %v4794 = vadd.f32 0.0, %v4793
        %v4795 = vpop.f32.mrb[0].mxu0
        %4796 = vdwg.mxu0
        %4797 = vadd.xlane.f32.xlu0 %v4476
        %v4798 = vpop.xlane.xlu0 %4797
        %4799 = vadd.xlane.f32.xlu0 %v4478
        %v4800 = vpop.xlane.xlu0 %4799
        %4801 = vadd.xlane.f32.xlu0 %v4480
        %v4802 = vpop.xlane.xlu0 %4801
        %4803 = vadd.xlane.f32.xlu0 %v4482
        %v4804 = vpop.xlane.xlu0 %4803
        %4805 = vadd.xlane.f32.xlu0 %v4484
        %v4806 = vpop.xlane.xlu0 %4805
        %4807 = vadd.xlane.f32.xlu0 %v4486
        %v4808 = vpop.xlane.xlu0 %4807
        %4809 = vadd.xlane.f32.xlu0 %v4488
        %v4810 = vpop.xlane.xlu0 %4809
        %4811 = vadd.xlane.f32.xlu0 %v4490
        %v4812 = vpop.xlane.xlu0 %4811
        %4813 = vadd.xlane.f32.xlu0 %v4492
        %v4814 = vpop.xlane.xlu0 %4813
        %4815 = vadd.xlane.f32.xlu0 %v4494
        %v4816 = vpop.xlane.xlu0 %4815
        %4817 = vadd.xlane.f32.xlu0 %v4496
        %v4818 = vpop.xlane.xlu0 %4817
        %4819 = vadd.xlane.f32.xlu0 %v4498
        %v4820 = vpop.xlane.xlu0 %4819
        %4821 = vadd.xlane.f32.xlu0 %v4500
        %v4822 = vpop.xlane.xlu0 %4821
        %4823 = vadd.xlane.f32.xlu0 %v4502
        %v4824 = vpop.xlane.xlu0 %4823
        %4825 = vadd.xlane.f32.xlu0 %v4504
        %v4826 = vpop.xlane.xlu0 %4825
        %4827 = vadd.xlane.f32.xlu0 %v4506
        %v4828 = vpop.xlane.xlu0 %4827
        %4829 = vadd.xlane.f32.xlu0 %v4508
        %v4830 = vpop.xlane.xlu0 %4829
        %4831 = vadd.xlane.f32.xlu0 %v4510
        %v4832 = vpop.xlane.xlu0 %4831
        %4833 = vadd.xlane.f32.xlu0 %v4512
        %v4834 = vpop.xlane.xlu0 %4833
        %4835 = vadd.xlane.f32.xlu0 %v4514
        %v4836 = vpop.xlane.xlu0 %4835
        %4837 = vadd.xlane.f32.xlu0 %v4516
        %v4838 = vpop.xlane.xlu0 %4837
        %4839 = vadd.xlane.f32.xlu0 %v4518
        %v4840 = vpop.xlane.xlu0 %4839
        %4841 = vadd.xlane.f32.xlu0 %v4520
        %v4842 = vpop.xlane.xlu0 %4841
        %4843 = vadd.xlane.f32.xlu0 %v4522
        %v4844 = vpop.xlane.xlu0 %4843
        %4845 = vadd.xlane.f32.xlu0 %v4524
        %v4846 = vpop.xlane.xlu0 %4845
        %4847 = vadd.xlane.f32.xlu0 %v4526
        %v4848 = vpop.xlane.xlu0 %4847
        %4849 = vadd.xlane.f32.xlu0 %v4528
        %v4850 = vpop.xlane.xlu0 %4849
        %4851 = vadd.xlane.f32.xlu0 %v4530
        %v4852 = vpop.xlane.xlu0 %4851
        %4853 = vadd.xlane.f32.xlu0 %v4532
        %v4854 = vpop.xlane.xlu0 %4853
        %4855 = vadd.xlane.f32.xlu0 %v4534
        %v4856 = vpop.xlane.xlu0 %4855
        %4857 = vadd.xlane.f32.xlu0 %v4536
        %v4858 = vpop.xlane.xlu0 %4857
        %4859 = vadd.xlane.f32.xlu0 %v4538
        %v4860 = vpop.xlane.xlu0 %4859
        %v4861 = vrcp.pop %v4798
        %v4862 = vrcp.pop %v4800
        %v4863 = vrcp.pop %v4802
        %v4864 = vrcp.pop %v4804
        %v4865 = vrcp.pop %v4806
        %v4866 = vrcp.pop %v4808
        %v4867 = vrcp.pop %v4810
        %v4868 = vrcp.pop %v4812
        %v4869 = vrcp.pop %v4814
        %v4870 = vrcp.pop %v4816
        %v4871 = vrcp.pop %v4818
        %v4872 = vrcp.pop %v4820
        %v4873 = vrcp.pop %v4822
        %v4874 = vrcp.pop %v4824
        %v4875 = vrcp.pop %v4826
        %v4876 = vrcp.pop %v4828
        %v4877 = vrcp.pop %v4830
        %v4878 = vrcp.pop %v4832
        %v4879 = vrcp.pop %v4834
        %v4880 = vrcp.pop %v4836
        %v4881 = vrcp.pop %v4838
        %v4882 = vrcp.pop %v4840
        %v4883 = vrcp.pop %v4842
        %v4884 = vrcp.pop %v4844
        %v4885 = vrcp.pop %v4846
        %v4886 = vrcp.pop %v4848
        %v4887 = vrcp.pop %v4850
        %v4888 = vrcp.pop %v4852
        %v4889 = vrcp.pop %v4854
        %v4890 = vrcp.pop %v4856
        %v4891 = vrcp.pop %v4858
        %v4892 = vrcp.pop %v4860
        %v4893 = vmul.f32 %v4614, %v4861
        %v4894 = vmul.f32 %v4617, %v4862
        %v4895 = vmul.f32 %v4622, %v4863
        %v4896 = vmul.f32 %v4625, %v4864
        %v4897 = vmul.f32 %v4630, %v4865
        %v4898 = vmul.f32 %v4633, %v4866
        %v4899 = vmul.f32 %v4638, %v4867
        %v4900 = vmul.f32 %v4641, %v4868
        %v4901 = vmul.f32 %v4646, %v4869
        %v4902 = vmul.f32 %v4649, %v4870
        %v4903 = vmul.f32 %v4654, %v4871
        %v4904 = vmul.f32 %v4657, %v4872
        %v4905 = vmul.f32 %v4662, %v4873
        %v4906 = vmul.f32 %v4665, %v4874
        %v4907 = vmul.f32 %v4670, %v4875
        %v4908 = vmul.f32 %v4673, %v4876
        %v4909 = vmul.f32 %v4735, %v4877
        %v4910 = vmul.f32 %v4738, %v4878
        %v4911 = vmul.f32 %v4743, %v4879
        %v4912 = vmul.f32 %v4746, %v4880
        %v4913 = vmul.f32 %v4751, %v4881
        %v4914 = vmul.f32 %v4754, %v4882
        %v4915 = vmul.f32 %v4759, %v4883
        %v4916 = vmul.f32 %v4762, %v4884
        %v4917 = vmul.f32 %v4767, %v4885
        %v4918 = vmul.f32 %v4770, %v4886
        %v4919 = vmul.f32 %v4775, %v4887
        %v4920 = vmul.f32 %v4778, %v4888
        %v4921 = vmul.f32 %v4783, %v4889
        %v4922 = vmul.f32 %v4786, %v4890
        %v4923 = vmul.f32 %v4791, %v4891
        %v4924 = vmul.f32 %v4794, %v4892
        %4925 = vrot.lane.b32.xlu0 %v1340, 64
        %v4926 = vpop.permute.xlu0 %4925
        %4927 = vrot.lane.b32.xlu0 %v1343, 64
        %v4928 = vpop.permute.xlu0 %4927
        %4929 = vrot.lane.b32.xlu0 %v1346, 64
        %v4930 = vpop.permute.xlu0 %4929
        %4931 = vrot.lane.b32.xlu0 %v1349, 64
        %v4932 = vpop.permute.xlu0 %4931
        %4933 = vrot.lane.b32.xlu0 %v1352, 64
        %v4934 = vpop.permute.xlu0 %4933
        %4935 = vrot.lane.b32.xlu0 %v1355, 64
        %v4936 = vpop.permute.xlu0 %4935
        %4937 = vrot.lane.b32.xlu0 %v1358, 64
        %v4938 = vpop.permute.xlu0 %4937
        %4939 = vrot.lane.b32.xlu0 %v1361, 64
        %v4940 = vpop.permute.xlu0 %4939
        %4941 = vrot.lane.b32.xlu0 %v1341, 64
        %v4942 = vpop.permute.xlu0 %4941
        %4943 = vrot.lane.b32.xlu0 %v1344, 64
        %v4944 = vpop.permute.xlu0 %4943
        %4945 = vrot.lane.b32.xlu0 %v1347, 64
        %v4946 = vpop.permute.xlu0 %4945
        %4947 = vrot.lane.b32.xlu0 %v1350, 64
        %v4948 = vpop.permute.xlu0 %4947
        %4949 = vrot.lane.b32.xlu0 %v1353, 64
        %v4950 = vpop.permute.xlu0 %4949
        %4951 = vrot.lane.b32.xlu0 %v1356, 64
        %v4952 = vpop.permute.xlu0 %4951
        %4953 = vrot.lane.b32.xlu0 %v1359, 64
        %v4954 = vpop.permute.xlu0 %4953
        %4955 = vrot.lane.b32.xlu0 %v1362, 64
        %v4956 = vpop.permute.xlu0 %4955
        %v4958 = vsel %vm1388, %v4926, 0
        %v4961 = vsel %vm1388, %v4928, 0
        %v4964 = vsel %vm1388, %v4930, 0
        %v4967 = vsel %vm1388, %v4932, 0
        %v4970 = vsel %vm1388, %v4934, 0
        %v4973 = vsel %vm1388, %v4936, 0
        %v4976 = vsel %vm1388, %v4938, 0
        %v4979 = vsel %vm1388, %v4940, 0
        %v4982 = vsel %vm1388, %v4942, 0
        %v4985 = vsel %vm1388, %v4944, 0
        %v4988 = vsel %vm1388, %v4946, 0
        %v4991 = vsel %vm1388, %v4948, 0
        %v4994 = vsel %vm1388, %v4950, 0
        %v4997 = vsel %vm1388, %v4952, 0
        %v5000 = vsel %vm1388, %v4954, 0
        %v5003 = vsel %vm1388, %v4956, 0
        %5005 = vmatprep.subr.bf16.mxu0 0
        %5006 = vmatpush1.bf16.xpose.msra.mxu0 %v4982
        %5007 = vmatprep.subr.bf16.mxu0 0
        %5008 = vmatpush1.bf16.xpose.msra.mxu0 %v4985
        %5009 = vmatprep.subr.bf16.mxu0 0
        %5010 = vmatpush1.bf16.xpose.msra.mxu0 %v4988
        %5011 = vmatprep.subr.bf16.mxu0 0
        %5012 = vmatpush1.bf16.xpose.msra.mxu0 %v4991
        %5013 = vmatprep.subr.bf16.mxu0 0
        %5014 = vmatpush1.bf16.xpose.msra.mxu0 %v4994
        %5015 = vmatprep.subr.bf16.mxu0 0
        %5016 = vmatpush1.bf16.xpose.msra.mxu0 %v4997
        %5017 = vmatprep.subr.bf16.mxu0 0
        %5018 = vmatpush1.bf16.xpose.msra.mxu0 %v5000
        %5019 = vmatprep.subr.bf16.mxu0 0
        %5020 = vmatpush1.bf16.xpose.msra.mxu0 %v5003
        %5021 = vmatprep.subr.bf16.mxu0 0
        %5022 = vmatpush1.bf16.xpose.msra.mxu0 0
        %5023 = vmatprep.subr.bf16.mxu0 0
        %5024 = vmatpush1.bf16.xpose.msra.mxu0 0
        %5025 = vmatprep.subr.bf16.mxu0 0
        %5026 = vmatpush1.bf16.xpose.msra.mxu0 0
        %5027 = vmatprep.subr.bf16.mxu0 0
        %5028 = vmatpush1.bf16.xpose.msra.mxu0 0
        %5029 = vmatprep.subr.bf16.mxu0 0
        %5030 = vmatpush1.bf16.xpose.msra.mxu0 0
        %5031 = vmatprep.subr.bf16.mxu0 0
        %5032 = vmatpush1.bf16.xpose.msra.mxu0 0
        %5033 = vmatprep.subr.bf16.mxu0 0
        %5034 = vmatpush1.bf16.xpose.msra.mxu0 0
        %5035 = vmatprep.subr.bf16.mxu0 0
        %5036 = vmatpush1.bf16.xpose.msra.mxu0 0
        %5037 = vmatprep.mubr.bf16.mxu0 0
        %5038 = vmatmul.mubr.bf16.gmra.mrb[0].mxu0 %v4958
        %v5039 = vpop.f32.mrb[0].mxu0
        %v5040 = vadd.f32 0.0, %v5039
        %v5041 = vpop.f32.mrb[0].mxu0
        %v5042 = vpop.f32.mrb[0].mxu0
        %v5043 = vadd.f32 0.0, %v5042
        %v5044 = vpop.f32.mrb[0].mxu0
        %5045 = vmatprep.mubr.bf16.mxu0 0
        %5046 = vmatmul.mubr.bf16.gmra.mrb[0].mxu0 %v4961
        %v5047 = vpop.f32.mrb[0].mxu0
        %v5048 = vadd.f32 0.0, %v5047
        %v5049 = vpop.f32.mrb[0].mxu0
        %v5050 = vpop.f32.mrb[0].mxu0
        %v5051 = vadd.f32 0.0, %v5050
        %v5052 = vpop.f32.mrb[0].mxu0
        %5053 = vmatprep.mubr.bf16.mxu0 0
        %5054 = vmatmul.mubr.bf16.gmra.mrb[0].mxu0 %v4964
        %v5055 = vpop.f32.mrb[0].mxu0
        %v5056 = vadd.f32 0.0, %v5055
        %v5057 = vpop.f32.mrb[0].mxu0
        %v5058 = vpop.f32.mrb[0].mxu0
        %v5059 = vadd.f32 0.0, %v5058
        %v5060 = vpop.f32.mrb[0].mxu0
        %5061 = vmatprep.mubr.bf16.mxu0 0
        %5062 = vmatmul.mubr.bf16.gmra.mrb[0].mxu0 %v4967
        %v5063 = vpop.f32.mrb[0].mxu0
        %v5064 = vadd.f32 0.0, %v5063
        %v5065 = vpop.f32.mrb[0].mxu0
        %v5066 = vpop.f32.mrb[0].mxu0
        %v5067 = vadd.f32 0.0, %v5066
        %v5068 = vpop.f32.mrb[0].mxu0
        %5069 = vmatprep.mubr.bf16.mxu0 0
        %5070 = vmatmul.mubr.bf16.gmra.mrb[0].mxu0 %v4970
        %v5071 = vpop.f32.mrb[0].mxu0
        %v5072 = vadd.f32 0.0, %v5071
        %v5073 = vpop.f32.mrb[0].mxu0
        %v5074 = vpop.f32.mrb[0].mxu0
        %v5075 = vadd.f32 0.0, %v5074
        %v5076 = vpop.f32.mrb[0].mxu0
        %5077 = vmatprep.mubr.bf16.mxu0 0
        %5078 = vmatmul.mubr.bf16.gmra.mrb[0].mxu0 %v4973
        %v5079 = vpop.f32.mrb[0].mxu0
        %v5080 = vadd.f32 0.0, %v5079
        %v5081 = vpop.f32.mrb[0].mxu0
        %v5082 = vpop.f32.mrb[0].mxu0
        %v5083 = vadd.f32 0.0, %v5082
        %v5084 = vpop.f32.mrb[0].mxu0
        %5085 = vmatprep.mubr.bf16.mxu0 0
        %5086 = vmatmul.mubr.bf16.gmra.mrb[0].mxu0 %v4976
        %v5087 = vpop.f32.mrb[0].mxu0
        %v5088 = vadd.f32 0.0, %v5087
        %v5089 = vpop.f32.mrb[0].mxu0
        %v5090 = vpop.f32.mrb[0].mxu0
        %v5091 = vadd.f32 0.0, %v5090
        %v5092 = vpop.f32.mrb[0].mxu0
        %5093 = vmatprep.mubr.bf16.mxu0 0
        %5094 = vmatmul.mubr.bf16.gmra.mrb[0].mxu0 %v4979
        %v5095 = vpop.f32.mrb[0].mxu0
        %v5096 = vadd.f32 0.0, %v5095
        %v5097 = vpop.f32.mrb[0].mxu0
        %v5098 = vpop.f32.mrb[0].mxu0
        %v5099 = vadd.f32 0.0, %v5098
        %v5100 = vpop.f32.mrb[0].mxu0
        %5101 = vdwg.mxu0
        %5102 = vrot.lane.b32.xlu0 %v1364, 64
        %v5103 = vpop.permute.xlu0 %5102
        %5104 = vrot.lane.b32.xlu0 %v1367, 64
        %v5105 = vpop.permute.xlu0 %5104
        %5106 = vrot.lane.b32.xlu0 %v1370, 64
        %v5107 = vpop.permute.xlu0 %5106
        %5108 = vrot.lane.b32.xlu0 %v1373, 64
        %v5109 = vpop.permute.xlu0 %5108
        %5110 = vrot.lane.b32.xlu0 %v1376, 64
        %v5111 = vpop.permute.xlu0 %5110
        %5112 = vrot.lane.b32.xlu0 %v1379, 64
        %v5113 = vpop.permute.xlu0 %5112
        %5114 = vrot.lane.b32.xlu0 %v1382, 64
        %v5115 = vpop.permute.xlu0 %5114
        %5116 = vrot.lane.b32.xlu0 %v1385, 64
        %v5117 = vpop.permute.xlu0 %5116
        %5118 = vrot.lane.b32.xlu0 %v1365, 64
        %v5119 = vpop.permute.xlu0 %5118
        %5120 = vrot.lane.b32.xlu0 %v1368, 64
        %v5121 = vpop.permute.xlu0 %5120
        %5122 = vrot.lane.b32.xlu0 %v1371, 64
        %v5123 = vpop.permute.xlu0 %5122
        %5124 = vrot.lane.b32.xlu0 %v1374, 64
        %v5125 = vpop.permute.xlu0 %5124
        %5126 = vrot.lane.b32.xlu0 %v1377, 64
        %v5127 = vpop.permute.xlu0 %5126
        %5128 = vrot.lane.b32.xlu0 %v1380, 64
        %v5129 = vpop.permute.xlu0 %5128
        %5130 = vrot.lane.b32.xlu0 %v1383, 64
        %v5131 = vpop.permute.xlu0 %5130
        %5132 = vrot.lane.b32.xlu0 %v1386, 64
        %v5133 = vpop.permute.xlu0 %5132
        %v5135 = vsel %vm1388, %v5103, 0
        %v5138 = vsel %vm1388, %v5105, 0
        %v5141 = vsel %vm1388, %v5107, 0
        %v5144 = vsel %vm1388, %v5109, 0
        %v5147 = vsel %vm1388, %v5111, 0
        %v5150 = vsel %vm1388, %v5113, 0
        %v5153 = vsel %vm1388, %v5115, 0
        %v5156 = vsel %vm1388, %v5117, 0
        %v5159 = vsel %vm1388, %v5119, 0
        %v5162 = vsel %vm1388, %v5121, 0
        %v5165 = vsel %vm1388, %v5123, 0
        %v5168 = vsel %vm1388, %v5125, 0
        %v5171 = vsel %vm1388, %v5127, 0
        %v5174 = vsel %vm1388, %v5129, 0
        %v5177 = vsel %vm1388, %v5131, 0
        %v5180 = vsel %vm1388, %v5133, 0
        %5182 = vmatprep.subr.bf16.mxu0 0
        %5183 = vmatpush1.bf16.xpose.msra.mxu0 %v5159
        %5184 = vmatprep.subr.bf16.mxu0 0
        %5185 = vmatpush1.bf16.xpose.msra.mxu0 %v5162
        %5186 = vmatprep.subr.bf16.mxu0 0
        %5187 = vmatpush1.bf16.xpose.msra.mxu0 %v5165
        %5188 = vmatprep.subr.bf16.mxu0 0
        %5189 = vmatpush1.bf16.xpose.msra.mxu0 %v5168
        %5190 = vmatprep.subr.bf16.mxu0 0
        %5191 = vmatpush1.bf16.xpose.msra.mxu0 %v5171
        %5192 = vmatprep.subr.bf16.mxu0 0
        %5193 = vmatpush1.bf16.xpose.msra.mxu0 %v5174
        %5194 = vmatprep.subr.bf16.mxu0 0
        %5195 = vmatpush1.bf16.xpose.msra.mxu0 %v5177
        %5196 = vmatprep.subr.bf16.mxu0 0
        %5197 = vmatpush1.bf16.xpose.msra.mxu0 %v5180
        %5198 = vmatprep.subr.bf16.mxu0 0
        %5199 = vmatpush1.bf16.xpose.msra.mxu0 0
        %5200 = vmatprep.subr.bf16.mxu0 0
        %5201 = vmatpush1.bf16.xpose.msra.mxu0 0
        %5202 = vmatprep.subr.bf16.mxu0 0
        %5203 = vmatpush1.bf16.xpose.msra.mxu0 0
        %5204 = vmatprep.subr.bf16.mxu0 0
        %5205 = vmatpush1.bf16.xpose.msra.mxu0 0
        %5206 = vmatprep.subr.bf16.mxu0 0
        %5207 = vmatpush1.bf16.xpose.msra.mxu0 0
        %5208 = vmatprep.subr.bf16.mxu0 0
        %5209 = vmatpush1.bf16.xpose.msra.mxu0 0
        %5210 = vmatprep.subr.bf16.mxu0 0
        %5211 = vmatpush1.bf16.xpose.msra.mxu0 0
        %5212 = vmatprep.subr.bf16.mxu0 0
        %5213 = vmatpush1.bf16.xpose.msra.mxu0 0
        %5214 = vmatprep.mubr.bf16.mxu0 0
        %5215 = vmatmul.mubr.bf16.gmra.mrb[0].mxu0 %v5135
        %v5216 = vpop.f32.mrb[0].mxu0
        %v5217 = vadd.f32 0.0, %v5216
        %v5218 = vpop.f32.mrb[0].mxu0
        %v5219 = vpop.f32.mrb[0].mxu0
        %v5220 = vadd.f32 0.0, %v5219
        %v5221 = vpop.f32.mrb[0].mxu0
        %5222 = vmatprep.mubr.bf16.mxu0 0
        %5223 = vmatmul.mubr.bf16.gmra.mrb[0].mxu0 %v5138
        %v5224 = vpop.f32.mrb[0].mxu0
        %v5225 = vadd.f32 0.0, %v5224
        %v5226 = vpop.f32.mrb[0].mxu0
        %v5227 = vpop.f32.mrb[0].mxu0
        %v5228 = vadd.f32 0.0, %v5227
        %v5229 = vpop.f32.mrb[0].mxu0
        %5230 = vmatprep.mubr.bf16.mxu0 0
        %5231 = vmatmul.mubr.bf16.gmra.mrb[0].mxu0 %v5141
        %v5232 = vpop.f32.mrb[0].mxu0
        %v5233 = vadd.f32 0.0, %v5232
        %v5234 = vpop.f32.mrb[0].mxu0
        %v5235 = vpop.f32.mrb[0].mxu0
        %v5236 = vadd.f32 0.0, %v5235
        %v5237 = vpop.f32.mrb[0].mxu0
        %5238 = vmatprep.mubr.bf16.mxu0 0
        %5239 = vmatmul.mubr.bf16.gmra.mrb[0].mxu0 %v5144
        %v5240 = vpop.f32.mrb[0].mxu0
        %v5241 = vadd.f32 0.0, %v5240
        %v5242 = vpop.f32.mrb[0].mxu0
        %v5243 = vpop.f32.mrb[0].mxu0
        %v5244 = vadd.f32 0.0, %v5243
        %v5245 = vpop.f32.mrb[0].mxu0
        %5246 = vmatprep.mubr.bf16.mxu0 0
        %5247 = vmatmul.mubr.bf16.gmra.mrb[0].mxu0 %v5147
        %v5248 = vpop.f32.mrb[0].mxu0
        %v5249 = vadd.f32 0.0, %v5248
        %v5250 = vpop.f32.mrb[0].mxu0
        %v5251 = vpop.f32.mrb[0].mxu0
        %v5252 = vadd.f32 0.0, %v5251
        %v5253 = vpop.f32.mrb[0].mxu0
        %5254 = vmatprep.mubr.bf16.mxu0 0
        %5255 = vmatmul.mubr.bf16.gmra.mrb[0].mxu0 %v5150
        %v5256 = vpop.f32.mrb[0].mxu0
        %v5257 = vadd.f32 0.0, %v5256
        %v5258 = vpop.f32.mrb[0].mxu0
        %v5259 = vpop.f32.mrb[0].mxu0
        %v5260 = vadd.f32 0.0, %v5259
        %v5261 = vpop.f32.mrb[0].mxu0
        %5262 = vmatprep.mubr.bf16.mxu0 0
        %5263 = vmatmul.mubr.bf16.gmra.mrb[0].mxu0 %v5153
        %v5264 = vpop.f32.mrb[0].mxu0
        %v5265 = vadd.f32 0.0, %v5264
        %v5266 = vpop.f32.mrb[0].mxu0
        %v5267 = vpop.f32.mrb[0].mxu0
        %v5268 = vadd.f32 0.0, %v5267
        %v5269 = vpop.f32.mrb[0].mxu0
        %5270 = vmatprep.mubr.bf16.mxu0 0
        %5271 = vmatmul.mubr.bf16.gmra.mrb[0].mxu0 %v5156
        %v5272 = vpop.f32.mrb[0].mxu0
        %v5273 = vadd.f32 0.0, %v5272
        %v5274 = vpop.f32.mrb[0].mxu0
        %v5275 = vpop.f32.mrb[0].mxu0
        %v5276 = vadd.f32 0.0, %v5275
        %v5277 = vpop.f32.mrb[0].mxu0
        %5278 = vdwg.mxu0
        %5279 = vmax.xlane.f32.xlu0 %v5040
        %v5280 = vpop.xlane.xlu0 %5279
        %5281 = vmax.xlane.f32.xlu0 %v5043
        %v5282 = vpop.xlane.xlu0 %5281
        %5283 = vmax.xlane.f32.xlu0 %v5048
        %v5284 = vpop.xlane.xlu0 %5283
        %5285 = vmax.xlane.f32.xlu0 %v5051
        %v5286 = vpop.xlane.xlu0 %5285
        %5287 = vmax.xlane.f32.xlu0 %v5056
        %v5288 = vpop.xlane.xlu0 %5287
        %5289 = vmax.xlane.f32.xlu0 %v5059
        %v5290 = vpop.xlane.xlu0 %5289
        %5291 = vmax.xlane.f32.xlu0 %v5064
        %v5292 = vpop.xlane.xlu0 %5291
        %5293 = vmax.xlane.f32.xlu0 %v5067
        %v5294 = vpop.xlane.xlu0 %5293
        %5295 = vmax.xlane.f32.xlu0 %v5072
        %v5296 = vpop.xlane.xlu0 %5295
        %5297 = vmax.xlane.f32.xlu0 %v5075
        %v5298 = vpop.xlane.xlu0 %5297
        %5299 = vmax.xlane.f32.xlu0 %v5080
        %v5300 = vpop.xlane.xlu0 %5299
        %5301 = vmax.xlane.f32.xlu0 %v5083
        %v5302 = vpop.xlane.xlu0 %5301
        %5303 = vmax.xlane.f32.xlu0 %v5088
        %v5304 = vpop.xlane.xlu0 %5303
        %5305 = vmax.xlane.f32.xlu0 %v5091
        %v5306 = vpop.xlane.xlu0 %5305
        %5307 = vmax.xlane.f32.xlu0 %v5096
        %v5308 = vpop.xlane.xlu0 %5307
        %5309 = vmax.xlane.f32.xlu0 %v5099
        %v5310 = vpop.xlane.xlu0 %5309
        %5311 = vmax.xlane.f32.xlu0 %v5217
        %v5312 = vpop.xlane.xlu0 %5311
        %5313 = vmax.xlane.f32.xlu0 %v5220
        %v5314 = vpop.xlane.xlu0 %5313
        %5315 = vmax.xlane.f32.xlu0 %v5225
        %v5316 = vpop.xlane.xlu0 %5315
        %5317 = vmax.xlane.f32.xlu0 %v5228
        %v5318 = vpop.xlane.xlu0 %5317
        %5319 = vmax.xlane.f32.xlu0 %v5233
        %v5320 = vpop.xlane.xlu0 %5319
        %5321 = vmax.xlane.f32.xlu0 %v5236
        %v5322 = vpop.xlane.xlu0 %5321
        %5323 = vmax.xlane.f32.xlu0 %v5241
        %v5324 = vpop.xlane.xlu0 %5323
        %5325 = vmax.xlane.f32.xlu0 %v5244
        %v5326 = vpop.xlane.xlu0 %5325
        %5327 = vmax.xlane.f32.xlu0 %v5249
        %v5328 = vpop.xlane.xlu0 %5327
        %5329 = vmax.xlane.f32.xlu0 %v5252
        %v5330 = vpop.xlane.xlu0 %5329
        %5331 = vmax.xlane.f32.xlu0 %v5257
        %v5332 = vpop.xlane.xlu0 %5331
        %5333 = vmax.xlane.f32.xlu0 %v5260
        %v5334 = vpop.xlane.xlu0 %5333
        %5335 = vmax.xlane.f32.xlu0 %v5265
        %v5336 = vpop.xlane.xlu0 %5335
        %5337 = vmax.xlane.f32.xlu0 %v5268
        %v5338 = vpop.xlane.xlu0 %5337
        %5339 = vmax.xlane.f32.xlu0 %v5273
        %v5340 = vpop.xlane.xlu0 %5339
        %5341 = vmax.xlane.f32.xlu0 %v5276
        %v5342 = vpop.xlane.xlu0 %5341
        %v5343 = vsub.f32 %v5040, %v5280
        %v5344 = vsub.f32 %v5043, %v5282
        %v5345 = vsub.f32 %v5048, %v5284
        %v5346 = vsub.f32 %v5051, %v5286
        %v5347 = vsub.f32 %v5056, %v5288
        %v5348 = vsub.f32 %v5059, %v5290
        %v5349 = vsub.f32 %v5064, %v5292
        %v5350 = vsub.f32 %v5067, %v5294
        %v5351 = vsub.f32 %v5072, %v5296
        %v5352 = vsub.f32 %v5075, %v5298
        %v5353 = vsub.f32 %v5080, %v5300
        %v5354 = vsub.f32 %v5083, %v5302
        %v5355 = vsub.f32 %v5088, %v5304
        %v5356 = vsub.f32 %v5091, %v5306
        %v5357 = vsub.f32 %v5096, %v5308
        %v5358 = vsub.f32 %v5099, %v5310
        %v5359 = vsub.f32 %v5217, %v5312
        %v5360 = vsub.f32 %v5220, %v5314
        %v5361 = vsub.f32 %v5225, %v5316
        %v5362 = vsub.f32 %v5228, %v5318
        %v5363 = vsub.f32 %v5233, %v5320
        %v5364 = vsub.f32 %v5236, %v5322
        %v5365 = vsub.f32 %v5241, %v5324
        %v5366 = vsub.f32 %v5244, %v5326
        %v5367 = vsub.f32 %v5249, %v5328
        %v5368 = vsub.f32 %v5252, %v5330
        %v5369 = vsub.f32 %v5257, %v5332
        %v5370 = vsub.f32 %v5260, %v5334
        %v5371 = vsub.f32 %v5265, %v5336
        %v5372 = vsub.f32 %v5268, %v5338
        %v5373 = vsub.f32 %v5273, %v5340
        %v5374 = vsub.f32 %v5276, %v5342
        %v5375 = vmul.f32 %v5343, 1.442695
        %v5376 = vpow.pop %v5375
        %v5377 = vmul.f32 %v5344, 1.442695
        %v5378 = vpow.pop %v5377
        %v5379 = vmul.f32 %v5345, 1.442695
        %v5380 = vpow.pop %v5379
        %v5381 = vmul.f32 %v5346, 1.442695
        %v5382 = vpow.pop %v5381
        %v5383 = vmul.f32 %v5347, 1.442695
        %v5384 = vpow.pop %v5383
        %v5385 = vmul.f32 %v5348, 1.442695
        %v5386 = vpow.pop %v5385
        %v5387 = vmul.f32 %v5349, 1.442695
        %v5388 = vpow.pop %v5387
        %v5389 = vmul.f32 %v5350, 1.442695
        %v5390 = vpow.pop %v5389
        %v5391 = vmul.f32 %v5351, 1.442695
        %v5392 = vpow.pop %v5391
        %v5393 = vmul.f32 %v5352, 1.442695
        %v5394 = vpow.pop %v5393
        %v5395 = vmul.f32 %v5353, 1.442695
        %v5396 = vpow.pop %v5395
        %v5397 = vmul.f32 %v5354, 1.442695
        %v5398 = vpow.pop %v5397
        %v5399 = vmul.f32 %v5355, 1.442695
        %v5400 = vpow.pop %v5399
        %v5401 = vmul.f32 %v5356, 1.442695
        %v5402 = vpow.pop %v5401
        %v5403 = vmul.f32 %v5357, 1.442695
        %v5404 = vpow.pop %v5403
        %v5405 = vmul.f32 %v5358, 1.442695
        %v5406 = vpow.pop %v5405
        %v5407 = vmul.f32 %v5359, 1.442695
        %v5408 = vpow.pop %v5407
        %v5409 = vmul.f32 %v5360, 1.442695
        %v5410 = vpow.pop %v5409
        %v5411 = vmul.f32 %v5361, 1.442695
        %v5412 = vpow.pop %v5411
        %v5413 = vmul.f32 %v5362, 1.442695
        %v5414 = vpow.pop %v5413
        %v5415 = vmul.f32 %v5363, 1.442695
        %v5416 = vpow.pop %v5415
        %v5417 = vmul.f32 %v5364, 1.442695
        %v5418 = vpow.pop %v5417
        %v5419 = vmul.f32 %v5365, 1.442695
        %v5420 = vpow.pop %v5419
        %v5421 = vmul.f32 %v5366, 1.442695
        %v5422 = vpow.pop %v5421
        %v5423 = vmul.f32 %v5367, 1.442695
        %v5424 = vpow.pop %v5423
        %v5425 = vmul.f32 %v5368, 1.442695
        %v5426 = vpow.pop %v5425
        %v5427 = vmul.f32 %v5369, 1.442695
        %v5428 = vpow.pop %v5427
        %v5429 = vmul.f32 %v5370, 1.442695
        %v5430 = vpow.pop %v5429
        %v5431 = vmul.f32 %v5371, 1.442695
        %v5432 = vpow.pop %v5431
        %v5433 = vmul.f32 %v5372, 1.442695
        %v5434 = vpow.pop %v5433
        %v5435 = vmul.f32 %v5373, 1.442695
        %v5436 = vpow.pop %v5435
        %v5437 = vmul.f32 %v5374, 1.442695
        %v5438 = vpow.pop %v5437
        %v5439 = vpack.c.bf16 %v5378, %v5376
        %v5440 = vpack.c.bf16 %v5382, %v5380
        %v5441 = vpack.c.bf16 %v5386, %v5384
        %v5442 = vpack.c.bf16 %v5390, %v5388
        %v5443 = vpack.c.bf16 %v5394, %v5392
        %v5444 = vpack.c.bf16 %v5398, %v5396
        %v5445 = vpack.c.bf16 %v5402, %v5400
        %v5446 = vpack.c.bf16 %v5406, %v5404
        %v5447 = vpack.c.bf16 %v5410, %v5408
        %v5448 = vpack.c.bf16 %v5414, %v5412
        %v5449 = vpack.c.bf16 %v5418, %v5416
        %v5450 = vpack.c.bf16 %v5422, %v5420
        %v5451 = vpack.c.bf16 %v5426, %v5424
        %v5452 = vpack.c.bf16 %v5430, %v5428
        %v5453 = vpack.c.bf16 %v5434, %v5432
        %v5454 = vpack.c.bf16 %v5438, %v5436
        %5455 = vrot.lane.b32.xlu0 %v1342, 64
        %v5456 = vpop.permute.xlu0 %5455
        %5457 = vrot.lane.b32.xlu0 %v1345, 64
        %v5458 = vpop.permute.xlu0 %5457
        %5459 = vrot.lane.b32.xlu0 %v1348, 64
        %v5460 = vpop.permute.xlu0 %5459
        %5461 = vrot.lane.b32.xlu0 %v1351, 64
        %v5462 = vpop.permute.xlu0 %5461
        %5463 = vrot.lane.b32.xlu0 %v1354, 64
        %v5464 = vpop.permute.xlu0 %5463
        %5465 = vrot.lane.b32.xlu0 %v1357, 64
        %v5466 = vpop.permute.xlu0 %5465
        %5467 = vrot.lane.b32.xlu0 %v1360, 64
        %v5468 = vpop.permute.xlu0 %5467
        %5469 = vrot.lane.b32.xlu0 %v1363, 64
        %v5470 = vpop.permute.xlu0 %5469
        %5479 = vmatprep.subr.bf16.mxu0 0
        %5480 = vmatpush1.bf16.msra.mxu0 %v5456
        %5481 = vmatprep.subr.bf16.mxu0 0
        %5482 = vmatpush1.bf16.msra.mxu0 %v5458
        %5483 = vmatprep.subr.bf16.mxu0 0
        %5484 = vmatpush1.bf16.msra.mxu0 %v5460
        %5485 = vmatprep.subr.bf16.mxu0 0
        %5486 = vmatpush1.bf16.msra.mxu0 %v5462
        %5487 = vmatprep.subr.bf16.mxu0 0
        %5488 = vmatpush1.bf16.msra.mxu0 %v5464
        %5489 = vmatprep.subr.bf16.mxu0 0
        %5490 = vmatpush1.bf16.msra.mxu0 %v5466
        %5491 = vmatprep.subr.bf16.mxu0 0
        %5492 = vmatpush1.bf16.msra.mxu0 %v5468
        %5493 = vmatprep.subr.bf16.mxu0 0
        %5494 = vmatpush1.bf16.msra.mxu0 %v5470
        %5495 = vmatprep.subr.bf16.mxu0 0
        %5496 = vmatpush1.bf16.msra.mxu0 0
        %5497 = vmatprep.subr.bf16.mxu0 0
        %5498 = vmatpush1.bf16.msra.mxu0 0
        %5499 = vmatprep.subr.bf16.mxu0 0
        %5500 = vmatpush1.bf16.msra.mxu0 0
        %5501 = vmatprep.subr.bf16.mxu0 0
        %5502 = vmatpush1.bf16.msra.mxu0 0
        %5503 = vmatprep.subr.bf16.mxu0 0
        %5504 = vmatpush1.bf16.msra.mxu0 0
        %5505 = vmatprep.subr.bf16.mxu0 0
        %5506 = vmatpush1.bf16.msra.mxu0 0
        %5507 = vmatprep.subr.bf16.mxu0 0
        %5508 = vmatpush1.bf16.msra.mxu0 0
        %5509 = vmatprep.subr.bf16.mxu0 0
        %5510 = vmatpush1.bf16.msra.mxu0 0
        %5511 = vmatprep.mubr.bf16.mxu0 0
        %5512 = vmatmul.mubr.bf16.gmra.mrb[0].mxu0 %v5439
        %v5513 = vpop.f32.mrb[0].mxu0
        %v5514 = vadd.f32 0.0, %v5513
        %v5515 = vpop.f32.mrb[0].mxu0
        %v5516 = vpop.f32.mrb[0].mxu0
        %v5517 = vadd.f32 0.0, %v5516
        %v5518 = vpop.f32.mrb[0].mxu0
        %5519 = vmatprep.mubr.bf16.mxu0 0
        %5520 = vmatmul.mubr.bf16.gmra.mrb[0].mxu0 %v5440
        %v5521 = vpop.f32.mrb[0].mxu0
        %v5522 = vadd.f32 0.0, %v5521
        %v5523 = vpop.f32.mrb[0].mxu0
        %v5524 = vpop.f32.mrb[0].mxu0
        %v5525 = vadd.f32 0.0, %v5524
        %v5526 = vpop.f32.mrb[0].mxu0
        %5527 = vmatprep.mubr.bf16.mxu0 0
        %5528 = vmatmul.mubr.bf16.gmra.mrb[0].mxu0 %v5441
        %v5529 = vpop.f32.mrb[0].mxu0
        %v5530 = vadd.f32 0.0, %v5529
        %v5531 = vpop.f32.mrb[0].mxu0
        %v5532 = vpop.f32.mrb[0].mxu0
        %v5533 = vadd.f32 0.0, %v5532
        %v5534 = vpop.f32.mrb[0].mxu0
        %5535 = vmatprep.mubr.bf16.mxu0 0
        %5536 = vmatmul.mubr.bf16.gmra.mrb[0].mxu0 %v5442
        %v5537 = vpop.f32.mrb[0].mxu0
        %v5538 = vadd.f32 0.0, %v5537
        %v5539 = vpop.f32.mrb[0].mxu0
        %v5540 = vpop.f32.mrb[0].mxu0
        %v5541 = vadd.f32 0.0, %v5540
        %v5542 = vpop.f32.mrb[0].mxu0
        %5543 = vmatprep.mubr.bf16.mxu0 0
        %5544 = vmatmul.mubr.bf16.gmra.mrb[0].mxu0 %v5443
        %v5545 = vpop.f32.mrb[0].mxu0
        %v5546 = vadd.f32 0.0, %v5545
        %v5547 = vpop.f32.mrb[0].mxu0
        %v5548 = vpop.f32.mrb[0].mxu0
        %v5549 = vadd.f32 0.0, %v5548
        %v5550 = vpop.f32.mrb[0].mxu0
        %5551 = vmatprep.mubr.bf16.mxu0 0
        %5552 = vmatmul.mubr.bf16.gmra.mrb[0].mxu0 %v5444
        %v5553 = vpop.f32.mrb[0].mxu0
        %v5554 = vadd.f32 0.0, %v5553
        %v5555 = vpop.f32.mrb[0].mxu0
        %v5556 = vpop.f32.mrb[0].mxu0
        %v5557 = vadd.f32 0.0, %v5556
        %v5558 = vpop.f32.mrb[0].mxu0
        %5559 = vmatprep.mubr.bf16.mxu0 0
        %5560 = vmatmul.mubr.bf16.gmra.mrb[0].mxu0 %v5445
        %v5561 = vpop.f32.mrb[0].mxu0
        %v5562 = vadd.f32 0.0, %v5561
        %v5563 = vpop.f32.mrb[0].mxu0
        %v5564 = vpop.f32.mrb[0].mxu0
        %v5565 = vadd.f32 0.0, %v5564
        %v5566 = vpop.f32.mrb[0].mxu0
        %5567 = vmatprep.mubr.bf16.mxu0 0
        %5568 = vmatmul.mubr.bf16.gmra.mrb[0].mxu0 %v5446
        %v5569 = vpop.f32.mrb[0].mxu0
        %v5570 = vadd.f32 0.0, %v5569
        %v5571 = vpop.f32.mrb[0].mxu0
        %v5572 = vpop.f32.mrb[0].mxu0
        %v5573 = vadd.f32 0.0, %v5572
        %v5574 = vpop.f32.mrb[0].mxu0
        %5575 = vdwg.mxu0
        %5576 = vrot.lane.b32.xlu0 %v1366, 64
        %v5577 = vpop.permute.xlu0 %5576
        %5578 = vrot.lane.b32.xlu0 %v1369, 64
        %v5579 = vpop.permute.xlu0 %5578
        %5580 = vrot.lane.b32.xlu0 %v1372, 64
        %v5581 = vpop.permute.xlu0 %5580
        %5582 = vrot.lane.b32.xlu0 %v1375, 64
        %v5583 = vpop.permute.xlu0 %5582
        %5584 = vrot.lane.b32.xlu0 %v1378, 64
        %v5585 = vpop.permute.xlu0 %5584
        %5586 = vrot.lane.b32.xlu0 %v1381, 64
        %v5587 = vpop.permute.xlu0 %5586
        %5588 = vrot.lane.b32.xlu0 %v1384, 64
        %v5589 = vpop.permute.xlu0 %5588
        %5590 = vrot.lane.b32.xlu0 %v1387, 64
        %v5591 = vpop.permute.xlu0 %5590
        %5600 = vmatprep.subr.bf16.mxu0 0
        %5601 = vmatpush1.bf16.msra.mxu0 %v5577
        %5602 = vmatprep.subr.bf16.mxu0 0
        %5603 = vmatpush1.bf16.msra.mxu0 %v5579
        %5604 = vmatprep.subr.bf16.mxu0 0
        %5605 = vmatpush1.bf16.msra.mxu0 %v5581
        %5606 = vmatprep.subr.bf16.mxu0 0
        %5607 = vmatpush1.bf16.msra.mxu0 %v5583
        %5608 = vmatprep.subr.bf16.mxu0 0
        %5609 = vmatpush1.bf16.msra.mxu0 %v5585
        %5610 = vmatprep.subr.bf16.mxu0 0
        %5611 = vmatpush1.bf16.msra.mxu0 %v5587
        %5612 = vmatprep.subr.bf16.mxu0 0
        %5613 = vmatpush1.bf16.msra.mxu0 %v5589
        %5614 = vmatprep.subr.bf16.mxu0 0
        %5615 = vmatpush1.bf16.msra.mxu0 %v5591
        %5616 = vmatprep.subr.bf16.mxu0 0
        %5617 = vmatpush1.bf16.msra.mxu0 0
        %5618 = vmatprep.subr.bf16.mxu0 0
        %5619 = vmatpush1.bf16.msra.mxu0 0
        %5620 = vmatprep.subr.bf16.mxu0 0
        %5621 = vmatpush1.bf16.msra.mxu0 0
        %5622 = vmatprep.subr.bf16.mxu0 0
        %5623 = vmatpush1.bf16.msra.mxu0 0
        %5624 = vmatprep.subr.bf16.mxu0 0
        %5625 = vmatpush1.bf16.msra.mxu0 0
        %5626 = vmatprep.subr.bf16.mxu0 0
        %5627 = vmatpush1.bf16.msra.mxu0 0
        %5628 = vmatprep.subr.bf16.mxu0 0
        %5629 = vmatpush1.bf16.msra.mxu0 0
        %5630 = vmatprep.subr.bf16.mxu0 0
        %5631 = vmatpush1.bf16.msra.mxu0 0
        %5632 = vmatprep.mubr.bf16.mxu0 0
        %5633 = vmatmul.mubr.bf16.gmra.mrb[0].mxu0 %v5447
        %v5634 = vpop.f32.mrb[0].mxu0
        %v5635 = vadd.f32 0.0, %v5634
        %v5636 = vpop.f32.mrb[0].mxu0
        %v5637 = vpop.f32.mrb[0].mxu0
        %v5638 = vadd.f32 0.0, %v5637
        %v5639 = vpop.f32.mrb[0].mxu0
        %5640 = vmatprep.mubr.bf16.mxu0 0
        %5641 = vmatmul.mubr.bf16.gmra.mrb[0].mxu0 %v5448
        %v5642 = vpop.f32.mrb[0].mxu0
        %v5643 = vadd.f32 0.0, %v5642
        %v5644 = vpop.f32.mrb[0].mxu0
        %v5645 = vpop.f32.mrb[0].mxu0
        %v5646 = vadd.f32 0.0, %v5645
        %v5647 = vpop.f32.mrb[0].mxu0
        %5648 = vmatprep.mubr.bf16.mxu0 0
        %5649 = vmatmul.mubr.bf16.gmra.mrb[0].mxu0 %v5449
        %v5650 = vpop.f32.mrb[0].mxu0
        %v5651 = vadd.f32 0.0, %v5650
        %v5652 = vpop.f32.mrb[0].mxu0
        %v5653 = vpop.f32.mrb[0].mxu0
        %v5654 = vadd.f32 0.0, %v5653
        %v5655 = vpop.f32.mrb[0].mxu0
        %5656 = vmatprep.mubr.bf16.mxu0 0
        %5657 = vmatmul.mubr.bf16.gmra.mrb[0].mxu0 %v5450
        %v5658 = vpop.f32.mrb[0].mxu0
        %v5659 = vadd.f32 0.0, %v5658
        %v5660 = vpop.f32.mrb[0].mxu0
        %v5661 = vpop.f32.mrb[0].mxu0
        %v5662 = vadd.f32 0.0, %v5661
        %v5663 = vpop.f32.mrb[0].mxu0
        %5664 = vmatprep.mubr.bf16.mxu0 0
        %5665 = vmatmul.mubr.bf16.gmra.mrb[0].mxu0 %v5451
        %v5666 = vpop.f32.mrb[0].mxu0
        %v5667 = vadd.f32 0.0, %v5666
        %v5668 = vpop.f32.mrb[0].mxu0
        %v5669 = vpop.f32.mrb[0].mxu0
        %v5670 = vadd.f32 0.0, %v5669
        %v5671 = vpop.f32.mrb[0].mxu0
        %5672 = vmatprep.mubr.bf16.mxu0 0
        %5673 = vmatmul.mubr.bf16.gmra.mrb[0].mxu0 %v5452
        %v5674 = vpop.f32.mrb[0].mxu0
        %v5675 = vadd.f32 0.0, %v5674
        %v5676 = vpop.f32.mrb[0].mxu0
        %v5677 = vpop.f32.mrb[0].mxu0
        %v5678 = vadd.f32 0.0, %v5677
        %v5679 = vpop.f32.mrb[0].mxu0
        %5680 = vmatprep.mubr.bf16.mxu0 0
        %5681 = vmatmul.mubr.bf16.gmra.mrb[0].mxu0 %v5453
        %v5682 = vpop.f32.mrb[0].mxu0
        %v5683 = vadd.f32 0.0, %v5682
        %v5684 = vpop.f32.mrb[0].mxu0
        %v5685 = vpop.f32.mrb[0].mxu0
        %v5686 = vadd.f32 0.0, %v5685
        %v5687 = vpop.f32.mrb[0].mxu0
        %5688 = vmatprep.mubr.bf16.mxu0 0
        %5689 = vmatmul.mubr.bf16.gmra.mrb[0].mxu0 %v5454
        %v5690 = vpop.f32.mrb[0].mxu0
        %v5691 = vadd.f32 0.0, %v5690
        %v5692 = vpop.f32.mrb[0].mxu0
        %v5693 = vpop.f32.mrb[0].mxu0
        %v5694 = vadd.f32 0.0, %v5693
        %v5695 = vpop.f32.mrb[0].mxu0
        %5696 = vdwg.mxu0
        %5697 = vadd.xlane.f32.xlu0 %v5376
        %v5698 = vpop.xlane.xlu0 %5697
        %5699 = vadd.xlane.f32.xlu0 %v5378
        %v5700 = vpop.xlane.xlu0 %5699
        %5701 = vadd.xlane.f32.xlu0 %v5380
        %v5702 = vpop.xlane.xlu0 %5701
        %5703 = vadd.xlane.f32.xlu0 %v5382
        %v5704 = vpop.xlane.xlu0 %5703
        %5705 = vadd.xlane.f32.xlu0 %v5384
        %v5706 = vpop.xlane.xlu0 %5705
        %5707 = vadd.xlane.f32.xlu0 %v5386
        %v5708 = vpop.xlane.xlu0 %5707
        %5709 = vadd.xlane.f32.xlu0 %v5388
        %v5710 = vpop.xlane.xlu0 %5709
        %5711 = vadd.xlane.f32.xlu0 %v5390
        %v5712 = vpop.xlane.xlu0 %5711
        %5713 = vadd.xlane.f32.xlu0 %v5392
        %v5714 = vpop.xlane.xlu0 %5713
        %5715 = vadd.xlane.f32.xlu0 %v5394
        %v5716 = vpop.xlane.xlu0 %5715
        %5717 = vadd.xlane.f32.xlu0 %v5396
        %v5718 = vpop.xlane.xlu0 %5717
        %5719 = vadd.xlane.f32.xlu0 %v5398
        %v5720 = vpop.xlane.xlu0 %5719
        %5721 = vadd.xlane.f32.xlu0 %v5400
        %v5722 = vpop.xlane.xlu0 %5721
        %5723 = vadd.xlane.f32.xlu0 %v5402
        %v5724 = vpop.xlane.xlu0 %5723
        %5725 = vadd.xlane.f32.xlu0 %v5404
        %v5726 = vpop.xlane.xlu0 %5725
        %5727 = vadd.xlane.f32.xlu0 %v5406
        %v5728 = vpop.xlane.xlu0 %5727
        %5729 = vadd.xlane.f32.xlu0 %v5408
        %v5730 = vpop.xlane.xlu0 %5729
        %5731 = vadd.xlane.f32.xlu0 %v5410
        %v5732 = vpop.xlane.xlu0 %5731
        %5733 = vadd.xlane.f32.xlu0 %v5412
        %v5734 = vpop.xlane.xlu0 %5733
        %5735 = vadd.xlane.f32.xlu0 %v5414
        %v5736 = vpop.xlane.xlu0 %5735
        %5737 = vadd.xlane.f32.xlu0 %v5416
        %v5738 = vpop.xlane.xlu0 %5737
        %5739 = vadd.xlane.f32.xlu0 %v5418
        %v5740 = vpop.xlane.xlu0 %5739
        %5741 = vadd.xlane.f32.xlu0 %v5420
        %v5742 = vpop.xlane.xlu0 %5741
        %5743 = vadd.xlane.f32.xlu0 %v5422
        %v5744 = vpop.xlane.xlu0 %5743
        %5745 = vadd.xlane.f32.xlu0 %v5424
        %v5746 = vpop.xlane.xlu0 %5745
        %5747 = vadd.xlane.f32.xlu0 %v5426
        %v5748 = vpop.xlane.xlu0 %5747
        %5749 = vadd.xlane.f32.xlu0 %v5428
        %v5750 = vpop.xlane.xlu0 %5749
        %5751 = vadd.xlane.f32.xlu0 %v5430
        %v5752 = vpop.xlane.xlu0 %5751
        %5753 = vadd.xlane.f32.xlu0 %v5432
        %v5754 = vpop.xlane.xlu0 %5753
        %5755 = vadd.xlane.f32.xlu0 %v5434
        %v5756 = vpop.xlane.xlu0 %5755
        %5757 = vadd.xlane.f32.xlu0 %v5436
        %v5758 = vpop.xlane.xlu0 %5757
        %5759 = vadd.xlane.f32.xlu0 %v5438
        %v5760 = vpop.xlane.xlu0 %5759
        %v5761 = vrcp.pop %v5698
        %v5762 = vrcp.pop %v5700
        %v5763 = vrcp.pop %v5702
        %v5764 = vrcp.pop %v5704
        %v5765 = vrcp.pop %v5706
        %v5766 = vrcp.pop %v5708
        %v5767 = vrcp.pop %v5710
        %v5768 = vrcp.pop %v5712
        %v5769 = vrcp.pop %v5714
        %v5770 = vrcp.pop %v5716
        %v5771 = vrcp.pop %v5718
        %v5772 = vrcp.pop %v5720
        %v5773 = vrcp.pop %v5722
        %v5774 = vrcp.pop %v5724
        %v5775 = vrcp.pop %v5726
        %v5776 = vrcp.pop %v5728
        %v5777 = vrcp.pop %v5730
        %v5778 = vrcp.pop %v5732
        %v5779 = vrcp.pop %v5734
        %v5780 = vrcp.pop %v5736
        %v5781 = vrcp.pop %v5738
        %v5782 = vrcp.pop %v5740
        %v5783 = vrcp.pop %v5742
        %v5784 = vrcp.pop %v5744
        %v5785 = vrcp.pop %v5746
        %v5786 = vrcp.pop %v5748
        %v5787 = vrcp.pop %v5750
        %v5788 = vrcp.pop %v5752
        %v5789 = vrcp.pop %v5754
        %v5790 = vrcp.pop %v5756
        %v5791 = vrcp.pop %v5758
        %v5792 = vrcp.pop %v5760
        %v5793 = vmul.f32 %v5514, %v5761
        %v5794 = vmul.f32 %v5517, %v5762
        %v5795 = vmul.f32 %v5522, %v5763
        %v5796 = vmul.f32 %v5525, %v5764
        %v5797 = vmul.f32 %v5530, %v5765
        %v5798 = vmul.f32 %v5533, %v5766
        %v5799 = vmul.f32 %v5538, %v5767
        %v5800 = vmul.f32 %v5541, %v5768
        %v5801 = vmul.f32 %v5546, %v5769
        %v5802 = vmul.f32 %v5549, %v5770
        %v5803 = vmul.f32 %v5554, %v5771
        %v5804 = vmul.f32 %v5557, %v5772
        %v5805 = vmul.f32 %v5562, %v5773
        %v5806 = vmul.f32 %v5565, %v5774
        %v5807 = vmul.f32 %v5570, %v5775
        %v5808 = vmul.f32 %v5573, %v5776
        %v5809 = vmul.f32 %v5635, %v5777
        %v5810 = vmul.f32 %v5638, %v5778
        %v5811 = vmul.f32 %v5643, %v5779
        %v5812 = vmul.f32 %v5646, %v5780
        %v5813 = vmul.f32 %v5651, %v5781
        %v5814 = vmul.f32 %v5654, %v5782
        %v5815 = vmul.f32 %v5659, %v5783
        %v5816 = vmul.f32 %v5662, %v5784
        %v5817 = vmul.f32 %v5667, %v5785
        %v5818 = vmul.f32 %v5670, %v5786
        %v5819 = vmul.f32 %v5675, %v5787
        %v5820 = vmul.f32 %v5678, %v5788
        %v5821 = vmul.f32 %v5683, %v5789
        %v5822 = vmul.f32 %v5686, %v5790
        %v5823 = vmul.f32 %v5691, %v5791
        %v5824 = vmul.f32 %v5694, %v5792
        %5825 = vrot.lane.b32.xlu0 %v1340, 48
        %v5826 = vpop.permute.xlu0 %5825
        %5827 = vrot.lane.b32.xlu0 %v1343, 48
        %v5828 = vpop.permute.xlu0 %5827
        %5829 = vrot.lane.b32.xlu0 %v1346, 48
        %v5830 = vpop.permute.xlu0 %5829
        %5831 = vrot.lane.b32.xlu0 %v1349, 48
        %v5832 = vpop.permute.xlu0 %5831
        %5833 = vrot.lane.b32.xlu0 %v1352, 48
        %v5834 = vpop.permute.xlu0 %5833
        %5835 = vrot.lane.b32.xlu0 %v1355, 48
        %v5836 = vpop.permute.xlu0 %5835
        %5837 = vrot.lane.b32.xlu0 %v1358, 48
        %v5838 = vpop.permute.xlu0 %5837
        %5839 = vrot.lane.b32.xlu0 %v1361, 48
        %v5840 = vpop.permute.xlu0 %5839
        %5841 = vrot.lane.b32.xlu0 %v1341, 48
        %v5842 = vpop.permute.xlu0 %5841
        %5843 = vrot.lane.b32.xlu0 %v1344, 48
        %v5844 = vpop.permute.xlu0 %5843
        %5845 = vrot.lane.b32.xlu0 %v1347, 48
        %v5846 = vpop.permute.xlu0 %5845
        %5847 = vrot.lane.b32.xlu0 %v1350, 48
        %v5848 = vpop.permute.xlu0 %5847
        %5849 = vrot.lane.b32.xlu0 %v1353, 48
        %v5850 = vpop.permute.xlu0 %5849
        %5851 = vrot.lane.b32.xlu0 %v1356, 48
        %v5852 = vpop.permute.xlu0 %5851
        %5853 = vrot.lane.b32.xlu0 %v1359, 48
        %v5854 = vpop.permute.xlu0 %5853
        %5855 = vrot.lane.b32.xlu0 %v1362, 48
        %v5856 = vpop.permute.xlu0 %5855
        %v5858 = vsel %vm1388, %v5826, 0
        %v5861 = vsel %vm1388, %v5828, 0
        %v5864 = vsel %vm1388, %v5830, 0
        %v5867 = vsel %vm1388, %v5832, 0
        %v5870 = vsel %vm1388, %v5834, 0
        %v5873 = vsel %vm1388, %v5836, 0
        %v5876 = vsel %vm1388, %v5838, 0
        %v5879 = vsel %vm1388, %v5840, 0
        %v5882 = vsel %vm1388, %v5842, 0
        %v5885 = vsel %vm1388, %v5844, 0
        %v5888 = vsel %vm1388, %v5846, 0
        %v5891 = vsel %vm1388, %v5848, 0
        %v5894 = vsel %vm1388, %v5850, 0
        %v5897 = vsel %vm1388, %v5852, 0
        %v5900 = vsel %vm1388, %v5854, 0
        %v5903 = vsel %vm1388, %v5856, 0
        %5905 = vmatprep.subr.bf16.mxu0 0
        %5906 = vmatpush1.bf16.xpose.msra.mxu0 %v5882
        %5907 = vmatprep.subr.bf16.mxu0 0
        %5908 = vmatpush1.bf16.xpose.msra.mxu0 %v5885
        %5909 = vmatprep.subr.bf16.mxu0 0
        %5910 = vmatpush1.bf16.xpose.msra.mxu0 %v5888
        %5911 = vmatprep.subr.bf16.mxu0 0
        %5912 = vmatpush1.bf16.xpose.msra.mxu0 %v5891
        %5913 = vmatprep.subr.bf16.mxu0 0
        %5914 = vmatpush1.bf16.xpose.msra.mxu0 %v5894
        %5915 = vmatprep.subr.bf16.mxu0 0
        %5916 = vmatpush1.bf16.xpose.msra.mxu0 %v5897
        %5917 = vmatprep.subr.bf16.mxu0 0
        %5918 = vmatpush1.bf16.xpose.msra.mxu0 %v5900
        %5919 = vmatprep.subr.bf16.mxu0 0
        %5920 = vmatpush1.bf16.xpose.msra.mxu0 %v5903
        %5921 = vmatprep.subr.bf16.mxu0 0
        %5922 = vmatpush1.bf16.xpose.msra.mxu0 0
        %5923 = vmatprep.subr.bf16.mxu0 0
        %5924 = vmatpush1.bf16.xpose.msra.mxu0 0
        %5925 = vmatprep.subr.bf16.mxu0 0
        %5926 = vmatpush1.bf16.xpose.msra.mxu0 0
        %5927 = vmatprep.subr.bf16.mxu0 0
        %5928 = vmatpush1.bf16.xpose.msra.mxu0 0
        %5929 = vmatprep.subr.bf16.mxu0 0
        %5930 = vmatpush1.bf16.xpose.msra.mxu0 0
        %5931 = vmatprep.subr.bf16.mxu0 0
        %5932 = vmatpush1.bf16.xpose.msra.mxu0 0
        %5933 = vmatprep.subr.bf16.mxu0 0
        %5934 = vmatpush1.bf16.xpose.msra.mxu0 0
        %5935 = vmatprep.subr.bf16.mxu0 0
        %5936 = vmatpush1.bf16.xpose.msra.mxu0 0
        %5937 = vmatprep.mubr.bf16.mxu0 0
        %5938 = vmatmul.mubr.bf16.gmra.mrb[0].mxu0 %v5858
        %v5939 = vpop.f32.mrb[0].mxu0
        %v5940 = vadd.f32 0.0, %v5939
        %v5941 = vpop.f32.mrb[0].mxu0
        %v5942 = vpop.f32.mrb[0].mxu0
        %v5943 = vadd.f32 0.0, %v5942
        %v5944 = vpop.f32.mrb[0].mxu0
        %5945 = vmatprep.mubr.bf16.mxu0 0
        %5946 = vmatmul.mubr.bf16.gmra.mrb[0].mxu0 %v5861
        %v5947 = vpop.f32.mrb[0].mxu0
        %v5948 = vadd.f32 0.0, %v5947
        %v5949 = vpop.f32.mrb[0].mxu0
        %v5950 = vpop.f32.mrb[0].mxu0
        %v5951 = vadd.f32 0.0, %v5950
        %v5952 = vpop.f32.mrb[0].mxu0
        %5953 = vmatprep.mubr.bf16.mxu0 0
        %5954 = vmatmul.mubr.bf16.gmra.mrb[0].mxu0 %v5864
        %v5955 = vpop.f32.mrb[0].mxu0
        %v5956 = vadd.f32 0.0, %v5955
        %v5957 = vpop.f32.mrb[0].mxu0
        %v5958 = vpop.f32.mrb[0].mxu0
        %v5959 = vadd.f32 0.0, %v5958
        %v5960 = vpop.f32.mrb[0].mxu0
        %5961 = vmatprep.mubr.bf16.mxu0 0
        %5962 = vmatmul.mubr.bf16.gmra.mrb[0].mxu0 %v5867
        %v5963 = vpop.f32.mrb[0].mxu0
        %v5964 = vadd.f32 0.0, %v5963
        %v5965 = vpop.f32.mrb[0].mxu0
        %v5966 = vpop.f32.mrb[0].mxu0
        %v5967 = vadd.f32 0.0, %v5966
        %v5968 = vpop.f32.mrb[0].mxu0
        %5969 = vmatprep.mubr.bf16.mxu0 0
        %5970 = vmatmul.mubr.bf16.gmra.mrb[0].mxu0 %v5870
        %v5971 = vpop.f32.mrb[0].mxu0
        %v5972 = vadd.f32 0.0, %v5971
        %v5973 = vpop.f32.mrb[0].mxu0
        %v5974 = vpop.f32.mrb[0].mxu0
        %v5975 = vadd.f32 0.0, %v5974
        %v5976 = vpop.f32.mrb[0].mxu0
        %5977 = vmatprep.mubr.bf16.mxu0 0
        %5978 = vmatmul.mubr.bf16.gmra.mrb[0].mxu0 %v5873
        %v5979 = vpop.f32.mrb[0].mxu0
        %v5980 = vadd.f32 0.0, %v5979
        %v5981 = vpop.f32.mrb[0].mxu0
        %v5982 = vpop.f32.mrb[0].mxu0
        %v5983 = vadd.f32 0.0, %v5982
        %v5984 = vpop.f32.mrb[0].mxu0
        %5985 = vmatprep.mubr.bf16.mxu0 0
        %5986 = vmatmul.mubr.bf16.gmra.mrb[0].mxu0 %v5876
        %v5987 = vpop.f32.mrb[0].mxu0
        %v5988 = vadd.f32 0.0, %v5987
        %v5989 = vpop.f32.mrb[0].mxu0
        %v5990 = vpop.f32.mrb[0].mxu0
        %v5991 = vadd.f32 0.0, %v5990
        %v5992 = vpop.f32.mrb[0].mxu0
        %5993 = vmatprep.mubr.bf16.mxu0 0
        %5994 = vmatmul.mubr.bf16.gmra.mrb[0].mxu0 %v5879
        %v5995 = vpop.f32.mrb[0].mxu0
        %v5996 = vadd.f32 0.0, %v5995
        %v5997 = vpop.f32.mrb[0].mxu0
        %v5998 = vpop.f32.mrb[0].mxu0
        %v5999 = vadd.f32 0.0, %v5998
        %v6000 = vpop.f32.mrb[0].mxu0
        %6001 = vdwg.mxu0
        %6002 = vrot.lane.b32.xlu0 %v1364, 48
        %v6003 = vpop.permute.xlu0 %6002
        %6004 = vrot.lane.b32.xlu0 %v1367, 48
        %v6005 = vpop.permute.xlu0 %6004
        %6006 = vrot.lane.b32.xlu0 %v1370, 48
        %v6007 = vpop.permute.xlu0 %6006
        %6008 = vrot.lane.b32.xlu0 %v1373, 48
        %v6009 = vpop.permute.xlu0 %6008
        %6010 = vrot.lane.b32.xlu0 %v1376, 48
        %v6011 = vpop.permute.xlu0 %6010
        %6012 = vrot.lane.b32.xlu0 %v1379, 48
        %v6013 = vpop.permute.xlu0 %6012
        %6014 = vrot.lane.b32.xlu0 %v1382, 48
        %v6015 = vpop.permute.xlu0 %6014
        %6016 = vrot.lane.b32.xlu0 %v1385, 48
        %v6017 = vpop.permute.xlu0 %6016
        %6018 = vrot.lane.b32.xlu0 %v1365, 48
        %v6019 = vpop.permute.xlu0 %6018
        %6020 = vrot.lane.b32.xlu0 %v1368, 48
        %v6021 = vpop.permute.xlu0 %6020
        %6022 = vrot.lane.b32.xlu0 %v1371, 48
        %v6023 = vpop.permute.xlu0 %6022
        %6024 = vrot.lane.b32.xlu0 %v1374, 48
        %v6025 = vpop.permute.xlu0 %6024
        %6026 = vrot.lane.b32.xlu0 %v1377, 48
        %v6027 = vpop.permute.xlu0 %6026
        %6028 = vrot.lane.b32.xlu0 %v1380, 48
        %v6029 = vpop.permute.xlu0 %6028
        %6030 = vrot.lane.b32.xlu0 %v1383, 48
        %v6031 = vpop.permute.xlu0 %6030
        %6032 = vrot.lane.b32.xlu0 %v1386, 48
        %v6033 = vpop.permute.xlu0 %6032
        %v6035 = vsel %vm1388, %v6003, 0
        %v6038 = vsel %vm1388, %v6005, 0
        %v6041 = vsel %vm1388, %v6007, 0
        %v6044 = vsel %vm1388, %v6009, 0
        %v6047 = vsel %vm1388, %v6011, 0
        %v6050 = vsel %vm1388, %v6013, 0
        %v6053 = vsel %vm1388, %v6015, 0
        %v6056 = vsel %vm1388, %v6017, 0
        %v6059 = vsel %vm1388, %v6019, 0
        %v6062 = vsel %vm1388, %v6021, 0
        %v6065 = vsel %vm1388, %v6023, 0
        %v6068 = vsel %vm1388, %v6025, 0
        %v6071 = vsel %vm1388, %v6027, 0
        %v6074 = vsel %vm1388, %v6029, 0
        %v6077 = vsel %vm1388, %v6031, 0
        %v6080 = vsel %vm1388, %v6033, 0
        %6082 = vmatprep.subr.bf16.mxu0 0
        %6083 = vmatpush1.bf16.xpose.msra.mxu0 %v6059
        %6084 = vmatprep.subr.bf16.mxu0 0
        %6085 = vmatpush1.bf16.xpose.msra.mxu0 %v6062
        %6086 = vmatprep.subr.bf16.mxu0 0
        %6087 = vmatpush1.bf16.xpose.msra.mxu0 %v6065
        %6088 = vmatprep.subr.bf16.mxu0 0
        %6089 = vmatpush1.bf16.xpose.msra.mxu0 %v6068
        %6090 = vmatprep.subr.bf16.mxu0 0
        %6091 = vmatpush1.bf16.xpose.msra.mxu0 %v6071
        %6092 = vmatprep.subr.bf16.mxu0 0
        %6093 = vmatpush1.bf16.xpose.msra.mxu0 %v6074
        %6094 = vmatprep.subr.bf16.mxu0 0
        %6095 = vmatpush1.bf16.xpose.msra.mxu0 %v6077
        %6096 = vmatprep.subr.bf16.mxu0 0
        %6097 = vmatpush1.bf16.xpose.msra.mxu0 %v6080
        %6098 = vmatprep.subr.bf16.mxu0 0
        %6099 = vmatpush1.bf16.xpose.msra.mxu0 0
        %6100 = vmatprep.subr.bf16.mxu0 0
        %6101 = vmatpush1.bf16.xpose.msra.mxu0 0
        %6102 = vmatprep.subr.bf16.mxu0 0
        %6103 = vmatpush1.bf16.xpose.msra.mxu0 0
        %6104 = vmatprep.subr.bf16.mxu0 0
        %6105 = vmatpush1.bf16.xpose.msra.mxu0 0
        %6106 = vmatprep.subr.bf16.mxu0 0
        %6107 = vmatpush1.bf16.xpose.msra.mxu0 0
        %6108 = vmatprep.subr.bf16.mxu0 0
        %6109 = vmatpush1.bf16.xpose.msra.mxu0 0
        %6110 = vmatprep.subr.bf16.mxu0 0
        %6111 = vmatpush1.bf16.xpose.msra.mxu0 0
        %6112 = vmatprep.subr.bf16.mxu0 0
        %6113 = vmatpush1.bf16.xpose.msra.mxu0 0
        %6114 = vmatprep.mubr.bf16.mxu0 0
        %6115 = vmatmul.mubr.bf16.gmra.mrb[0].mxu0 %v6035
        %v6116 = vpop.f32.mrb[0].mxu0
        %v6117 = vadd.f32 0.0, %v6116
        %v6118 = vpop.f32.mrb[0].mxu0
        %v6119 = vpop.f32.mrb[0].mxu0
        %v6120 = vadd.f32 0.0, %v6119
        %v6121 = vpop.f32.mrb[0].mxu0
        %6122 = vmatprep.mubr.bf16.mxu0 0
        %6123 = vmatmul.mubr.bf16.gmra.mrb[0].mxu0 %v6038
        %v6124 = vpop.f32.mrb[0].mxu0
        %v6125 = vadd.f32 0.0, %v6124
        %v6126 = vpop.f32.mrb[0].mxu0
        %v6127 = vpop.f32.mrb[0].mxu0
        %v6128 = vadd.f32 0.0, %v6127
        %v6129 = vpop.f32.mrb[0].mxu0
        %6130 = vmatprep.mubr.bf16.mxu0 0
        %6131 = vmatmul.mubr.bf16.gmra.mrb[0].mxu0 %v6041
        %v6132 = vpop.f32.mrb[0].mxu0
        %v6133 = vadd.f32 0.0, %v6132
        %v6134 = vpop.f32.mrb[0].mxu0
        %v6135 = vpop.f32.mrb[0].mxu0
        %v6136 = vadd.f32 0.0, %v6135
        %v6137 = vpop.f32.mrb[0].mxu0
        %6138 = vmatprep.mubr.bf16.mxu0 0
        %6139 = vmatmul.mubr.bf16.gmra.mrb[0].mxu0 %v6044
        %v6140 = vpop.f32.mrb[0].mxu0
        %v6141 = vadd.f32 0.0, %v6140
        %v6142 = vpop.f32.mrb[0].mxu0
        %v6143 = vpop.f32.mrb[0].mxu0
        %v6144 = vadd.f32 0.0, %v6143
        %v6145 = vpop.f32.mrb[0].mxu0
        %6146 = vmatprep.mubr.bf16.mxu0 0
        %6147 = vmatmul.mubr.bf16.gmra.mrb[0].mxu0 %v6047
        %v6148 = vpop.f32.mrb[0].mxu0
        %v6149 = vadd.f32 0.0, %v6148
        %v6150 = vpop.f32.mrb[0].mxu0
        %v6151 = vpop.f32.mrb[0].mxu0
        %v6152 = vadd.f32 0.0, %v6151
        %v6153 = vpop.f32.mrb[0].mxu0
        %6154 = vmatprep.mubr.bf16.mxu0 0
        %6155 = vmatmul.mubr.bf16.gmra.mrb[0].mxu0 %v6050
        %v6156 = vpop.f32.mrb[0].mxu0
        %v6157 = vadd.f32 0.0, %v6156
        %v6158 = vpop.f32.mrb[0].mxu0
        %v6159 = vpop.f32.mrb[0].mxu0
        %v6160 = vadd.f32 0.0, %v6159
        %v6161 = vpop.f32.mrb[0].mxu0
        %6162 = vmatprep.mubr.bf16.mxu0 0
        %6163 = vmatmul.mubr.bf16.gmra.mrb[0].mxu0 %v6053
        %v6164 = vpop.f32.mrb[0].mxu0
        %v6165 = vadd.f32 0.0, %v6164
        %v6166 = vpop.f32.mrb[0].mxu0
        %v6167 = vpop.f32.mrb[0].mxu0
        %v6168 = vadd.f32 0.0, %v6167
        %v6169 = vpop.f32.mrb[0].mxu0
        %6170 = vmatprep.mubr.bf16.mxu0 0
        %6171 = vmatmul.mubr.bf16.gmra.mrb[0].mxu0 %v6056
        %v6172 = vpop.f32.mrb[0].mxu0
        %v6173 = vadd.f32 0.0, %v6172
        %v6174 = vpop.f32.mrb[0].mxu0
        %v6175 = vpop.f32.mrb[0].mxu0
        %v6176 = vadd.f32 0.0, %v6175
        %v6177 = vpop.f32.mrb[0].mxu0
        %6178 = vdwg.mxu0
        %6179 = vmax.xlane.f32.xlu0 %v5940
        %v6180 = vpop.xlane.xlu0 %6179
        %6181 = vmax.xlane.f32.xlu0 %v5943
        %v6182 = vpop.xlane.xlu0 %6181
        %6183 = vmax.xlane.f32.xlu0 %v5948
        %v6184 = vpop.xlane.xlu0 %6183
        %6185 = vmax.xlane.f32.xlu0 %v5951
        %v6186 = vpop.xlane.xlu0 %6185
        %6187 = vmax.xlane.f32.xlu0 %v5956
        %v6188 = vpop.xlane.xlu0 %6187
        %6189 = vmax.xlane.f32.xlu0 %v5959
        %v6190 = vpop.xlane.xlu0 %6189
        %6191 = vmax.xlane.f32.xlu0 %v5964
        %v6192 = vpop.xlane.xlu0 %6191
        %6193 = vmax.xlane.f32.xlu0 %v5967
        %v6194 = vpop.xlane.xlu0 %6193
        %6195 = vmax.xlane.f32.xlu0 %v5972
        %v6196 = vpop.xlane.xlu0 %6195
        %6197 = vmax.xlane.f32.xlu0 %v5975
        %v6198 = vpop.xlane.xlu0 %6197
        %6199 = vmax.xlane.f32.xlu0 %v5980
        %v6200 = vpop.xlane.xlu0 %6199
        %6201 = vmax.xlane.f32.xlu0 %v5983
        %v6202 = vpop.xlane.xlu0 %6201
        %6203 = vmax.xlane.f32.xlu0 %v5988
        %v6204 = vpop.xlane.xlu0 %6203
        %6205 = vmax.xlane.f32.xlu0 %v5991
        %v6206 = vpop.xlane.xlu0 %6205
        %6207 = vmax.xlane.f32.xlu0 %v5996
        %v6208 = vpop.xlane.xlu0 %6207
        %6209 = vmax.xlane.f32.xlu0 %v5999
        %v6210 = vpop.xlane.xlu0 %6209
        %6211 = vmax.xlane.f32.xlu0 %v6117
        %v6212 = vpop.xlane.xlu0 %6211
        %6213 = vmax.xlane.f32.xlu0 %v6120
        %v6214 = vpop.xlane.xlu0 %6213
        %6215 = vmax.xlane.f32.xlu0 %v6125
        %v6216 = vpop.xlane.xlu0 %6215
        %6217 = vmax.xlane.f32.xlu0 %v6128
        %v6218 = vpop.xlane.xlu0 %6217
        %6219 = vmax.xlane.f32.xlu0 %v6133
        %v6220 = vpop.xlane.xlu0 %6219
        %6221 = vmax.xlane.f32.xlu0 %v6136
        %v6222 = vpop.xlane.xlu0 %6221
        %6223 = vmax.xlane.f32.xlu0 %v6141
        %v6224 = vpop.xlane.xlu0 %6223
        %6225 = vmax.xlane.f32.xlu0 %v6144
        %v6226 = vpop.xlane.xlu0 %6225
        %6227 = vmax.xlane.f32.xlu0 %v6149
        %v6228 = vpop.xlane.xlu0 %6227
        %6229 = vmax.xlane.f32.xlu0 %v6152
        %v6230 = vpop.xlane.xlu0 %6229
        %6231 = vmax.xlane.f32.xlu0 %v6157
        %v6232 = vpop.xlane.xlu0 %6231
        %6233 = vmax.xlane.f32.xlu0 %v6160
        %v6234 = vpop.xlane.xlu0 %6233
        %6235 = vmax.xlane.f32.xlu0 %v6165
        %v6236 = vpop.xlane.xlu0 %6235
        %6237 = vmax.xlane.f32.xlu0 %v6168
        %v6238 = vpop.xlane.xlu0 %6237
        %6239 = vmax.xlane.f32.xlu0 %v6173
        %v6240 = vpop.xlane.xlu0 %6239
        %6241 = vmax.xlane.f32.xlu0 %v6176
        %v6242 = vpop.xlane.xlu0 %6241
        %v6243 = vsub.f32 %v5940, %v6180
        %v6244 = vsub.f32 %v5943, %v6182
        %v6245 = vsub.f32 %v5948, %v6184
        %v6246 = vsub.f32 %v5951, %v6186
        %v6247 = vsub.f32 %v5956, %v6188
        %v6248 = vsub.f32 %v5959, %v6190
        %v6249 = vsub.f32 %v5964, %v6192
        %v6250 = vsub.f32 %v5967, %v6194
        %v6251 = vsub.f32 %v5972, %v6196
        %v6252 = vsub.f32 %v5975, %v6198
        %v6253 = vsub.f32 %v5980, %v6200
        %v6254 = vsub.f32 %v5983, %v6202
        %v6255 = vsub.f32 %v5988, %v6204
        %v6256 = vsub.f32 %v5991, %v6206
        %v6257 = vsub.f32 %v5996, %v6208
        %v6258 = vsub.f32 %v5999, %v6210
        %v6259 = vsub.f32 %v6117, %v6212
        %v6260 = vsub.f32 %v6120, %v6214
        %v6261 = vsub.f32 %v6125, %v6216
        %v6262 = vsub.f32 %v6128, %v6218
        %v6263 = vsub.f32 %v6133, %v6220
        %v6264 = vsub.f32 %v6136, %v6222
        %v6265 = vsub.f32 %v6141, %v6224
        %v6266 = vsub.f32 %v6144, %v6226
        %v6267 = vsub.f32 %v6149, %v6228
        %v6268 = vsub.f32 %v6152, %v6230
        %v6269 = vsub.f32 %v6157, %v6232
        %v6270 = vsub.f32 %v6160, %v6234
        %v6271 = vsub.f32 %v6165, %v6236
        %v6272 = vsub.f32 %v6168, %v6238
        %v6273 = vsub.f32 %v6173, %v6240
        %v6274 = vsub.f32 %v6176, %v6242
        %v6275 = vmul.f32 %v6243, 1.442695
        %v6276 = vpow.pop %v6275
        %v6277 = vmul.f32 %v6244, 1.442695
        %v6278 = vpow.pop %v6277
        %v6279 = vmul.f32 %v6245, 1.442695
        %v6280 = vpow.pop %v6279
        %v6281 = vmul.f32 %v6246, 1.442695
        %v6282 = vpow.pop %v6281
        %v6283 = vmul.f32 %v6247, 1.442695
        %v6284 = vpow.pop %v6283
        %v6285 = vmul.f32 %v6248, 1.442695
        %v6286 = vpow.pop %v6285
        %v6287 = vmul.f32 %v6249, 1.442695
        %v6288 = vpow.pop %v6287
        %v6289 = vmul.f32 %v6250, 1.442695
        %v6290 = vpow.pop %v6289
        %v6291 = vmul.f32 %v6251, 1.442695
        %v6292 = vpow.pop %v6291
        %v6293 = vmul.f32 %v6252, 1.442695
        %v6294 = vpow.pop %v6293
        %v6295 = vmul.f32 %v6253, 1.442695
        %v6296 = vpow.pop %v6295
        %v6297 = vmul.f32 %v6254, 1.442695
        %v6298 = vpow.pop %v6297
        %v6299 = vmul.f32 %v6255, 1.442695
        %v6300 = vpow.pop %v6299
        %v6301 = vmul.f32 %v6256, 1.442695
        %v6302 = vpow.pop %v6301
        %v6303 = vmul.f32 %v6257, 1.442695
        %v6304 = vpow.pop %v6303
        %v6305 = vmul.f32 %v6258, 1.442695
        %v6306 = vpow.pop %v6305
        %v6307 = vmul.f32 %v6259, 1.442695
        %v6308 = vpow.pop %v6307
        %v6309 = vmul.f32 %v6260, 1.442695
        %v6310 = vpow.pop %v6309
        %v6311 = vmul.f32 %v6261, 1.442695
        %v6312 = vpow.pop %v6311
        %v6313 = vmul.f32 %v6262, 1.442695
        %v6314 = vpow.pop %v6313
        %v6315 = vmul.f32 %v6263, 1.442695
        %v6316 = vpow.pop %v6315
        %v6317 = vmul.f32 %v6264, 1.442695
        %v6318 = vpow.pop %v6317
        %v6319 = vmul.f32 %v6265, 1.442695
        %v6320 = vpow.pop %v6319
        %v6321 = vmul.f32 %v6266, 1.442695
        %v6322 = vpow.pop %v6321
        %v6323 = vmul.f32 %v6267, 1.442695
        %v6324 = vpow.pop %v6323
        %v6325 = vmul.f32 %v6268, 1.442695
        %v6326 = vpow.pop %v6325
        %v6327 = vmul.f32 %v6269, 1.442695
        %v6328 = vpow.pop %v6327
        %v6329 = vmul.f32 %v6270, 1.442695
        %v6330 = vpow.pop %v6329
        %v6331 = vmul.f32 %v6271, 1.442695
        %v6332 = vpow.pop %v6331
        %v6333 = vmul.f32 %v6272, 1.442695
        %v6334 = vpow.pop %v6333
        %v6335 = vmul.f32 %v6273, 1.442695
        %v6336 = vpow.pop %v6335
        %v6337 = vmul.f32 %v6274, 1.442695
        %v6338 = vpow.pop %v6337
        %v6339 = vpack.c.bf16 %v6278, %v6276
        %v6340 = vpack.c.bf16 %v6282, %v6280
        %v6341 = vpack.c.bf16 %v6286, %v6284
        %v6342 = vpack.c.bf16 %v6290, %v6288
        %v6343 = vpack.c.bf16 %v6294, %v6292
        %v6344 = vpack.c.bf16 %v6298, %v6296
        %v6345 = vpack.c.bf16 %v6302, %v6300
        %v6346 = vpack.c.bf16 %v6306, %v6304
        %v6347 = vpack.c.bf16 %v6310, %v6308
        %v6348 = vpack.c.bf16 %v6314, %v6312
        %v6349 = vpack.c.bf16 %v6318, %v6316
        %v6350 = vpack.c.bf16 %v6322, %v6320
        %v6351 = vpack.c.bf16 %v6326, %v6324
        %v6352 = vpack.c.bf16 %v6330, %v6328
        %v6353 = vpack.c.bf16 %v6334, %v6332
        %v6354 = vpack.c.bf16 %v6338, %v6336
        %6355 = vrot.lane.b32.xlu0 %v1342, 48
        %v6356 = vpop.permute.xlu0 %6355
        %6357 = vrot.lane.b32.xlu0 %v1345, 48
        %v6358 = vpop.permute.xlu0 %6357
        %6359 = vrot.lane.b32.xlu0 %v1348, 48
        %v6360 = vpop.permute.xlu0 %6359
        %6361 = vrot.lane.b32.xlu0 %v1351, 48
        %v6362 = vpop.permute.xlu0 %6361
        %6363 = vrot.lane.b32.xlu0 %v1354, 48
        %v6364 = vpop.permute.xlu0 %6363
        %6365 = vrot.lane.b32.xlu0 %v1357, 48
        %v6366 = vpop.permute.xlu0 %6365
        %6367 = vrot.lane.b32.xlu0 %v1360, 48
        %v6368 = vpop.permute.xlu0 %6367
        %6369 = vrot.lane.b32.xlu0 %v1363, 48
        %v6370 = vpop.permute.xlu0 %6369
        %6379 = vmatprep.subr.bf16.mxu0 0
        %6380 = vmatpush1.bf16.msra.mxu0 %v6356
        %6381 = vmatprep.subr.bf16.mxu0 0
        %6382 = vmatpush1.bf16.msra.mxu0 %v6358
        %6383 = vmatprep.subr.bf16.mxu0 0
        %6384 = vmatpush1.bf16.msra.mxu0 %v6360
        %6385 = vmatprep.subr.bf16.mxu0 0
        %6386 = vmatpush1.bf16.msra.mxu0 %v6362
        %6387 = vmatprep.subr.bf16.mxu0 0
        %6388 = vmatpush1.bf16.msra.mxu0 %v6364
        %6389 = vmatprep.subr.bf16.mxu0 0
        %6390 = vmatpush1.bf16.msra.mxu0 %v6366
        %6391 = vmatprep.subr.bf16.mxu0 0
        %6392 = vmatpush1.bf16.msra.mxu0 %v6368
        %6393 = vmatprep.subr.bf16.mxu0 0
        %6394 = vmatpush1.bf16.msra.mxu0 %v6370
        %6395 = vmatprep.subr.bf16.mxu0 0
        %6396 = vmatpush1.bf16.msra.mxu0 0
        %6397 = vmatprep.subr.bf16.mxu0 0
        %6398 = vmatpush1.bf16.msra.mxu0 0
        %6399 = vmatprep.subr.bf16.mxu0 0
        %6400 = vmatpush1.bf16.msra.mxu0 0
        %6401 = vmatprep.subr.bf16.mxu0 0
        %6402 = vmatpush1.bf16.msra.mxu0 0
        %6403 = vmatprep.subr.bf16.mxu0 0
        %6404 = vmatpush1.bf16.msra.mxu0 0
        %6405 = vmatprep.subr.bf16.mxu0 0
        %6406 = vmatpush1.bf16.msra.mxu0 0
        %6407 = vmatprep.subr.bf16.mxu0 0
        %6408 = vmatpush1.bf16.msra.mxu0 0
        %6409 = vmatprep.subr.bf16.mxu0 0
        %6410 = vmatpush1.bf16.msra.mxu0 0
        %6411 = vmatprep.mubr.bf16.mxu0 0
        %6412 = vmatmul.mubr.bf16.gmra.mrb[0].mxu0 %v6339
        %v6413 = vpop.f32.mrb[0].mxu0
        %v6414 = vadd.f32 0.0, %v6413
        %v6415 = vpop.f32.mrb[0].mxu0
        %v6416 = vpop.f32.mrb[0].mxu0
        %v6417 = vadd.f32 0.0, %v6416
        %v6418 = vpop.f32.mrb[0].mxu0
        %6419 = vmatprep.mubr.bf16.mxu0 0
        %6420 = vmatmul.mubr.bf16.gmra.mrb[0].mxu0 %v6340
        %v6421 = vpop.f32.mrb[0].mxu0
        %v6422 = vadd.f32 0.0, %v6421
        %v6423 = vpop.f32.mrb[0].mxu0
        %v6424 = vpop.f32.mrb[0].mxu0
        %v6425 = vadd.f32 0.0, %v6424
        %v6426 = vpop.f32.mrb[0].mxu0
        %6427 = vmatprep.mubr.bf16.mxu0 0
        %6428 = vmatmul.mubr.bf16.gmra.mrb[0].mxu0 %v6341
        %v6429 = vpop.f32.mrb[0].mxu0
        %v6430 = vadd.f32 0.0, %v6429
        %v6431 = vpop.f32.mrb[0].mxu0
        %v6432 = vpop.f32.mrb[0].mxu0
        %v6433 = vadd.f32 0.0, %v6432
        %v6434 = vpop.f32.mrb[0].mxu0
        %6435 = vmatprep.mubr.bf16.mxu0 0
        %6436 = vmatmul.mubr.bf16.gmra.mrb[0].mxu0 %v6342
        %v6437 = vpop.f32.mrb[0].mxu0
        %v6438 = vadd.f32 0.0, %v6437
        %v6439 = vpop.f32.mrb[0].mxu0
        %v6440 = vpop.f32.mrb[0].mxu0
        %v6441 = vadd.f32 0.0, %v6440
        %v6442 = vpop.f32.mrb[0].mxu0
        %6443 = vmatprep.mubr.bf16.mxu0 0
        %6444 = vmatmul.mubr.bf16.gmra.mrb[0].mxu0 %v6343
        %v6445 = vpop.f32.mrb[0].mxu0
        %v6446 = vadd.f32 0.0, %v6445
        %v6447 = vpop.f32.mrb[0].mxu0
        %v6448 = vpop.f32.mrb[0].mxu0
        %v6449 = vadd.f32 0.0, %v6448
        %v6450 = vpop.f32.mrb[0].mxu0
        %6451 = vmatprep.mubr.bf16.mxu0 0
        %6452 = vmatmul.mubr.bf16.gmra.mrb[0].mxu0 %v6344
        %v6453 = vpop.f32.mrb[0].mxu0
        %v6454 = vadd.f32 0.0, %v6453
        %v6455 = vpop.f32.mrb[0].mxu0
        %v6456 = vpop.f32.mrb[0].mxu0
        %v6457 = vadd.f32 0.0, %v6456
        %v6458 = vpop.f32.mrb[0].mxu0
        %6459 = vmatprep.mubr.bf16.mxu0 0
        %6460 = vmatmul.mubr.bf16.gmra.mrb[0].mxu0 %v6345
        %v6461 = vpop.f32.mrb[0].mxu0
        %v6462 = vadd.f32 0.0, %v6461
        %v6463 = vpop.f32.mrb[0].mxu0
        %v6464 = vpop.f32.mrb[0].mxu0
        %v6465 = vadd.f32 0.0, %v6464
        %v6466 = vpop.f32.mrb[0].mxu0
        %6467 = vmatprep.mubr.bf16.mxu0 0
        %6468 = vmatmul.mubr.bf16.gmra.mrb[0].mxu0 %v6346
        %v6469 = vpop.f32.mrb[0].mxu0
        %v6470 = vadd.f32 0.0, %v6469
        %v6471 = vpop.f32.mrb[0].mxu0
        %v6472 = vpop.f32.mrb[0].mxu0
        %v6473 = vadd.f32 0.0, %v6472
        %v6474 = vpop.f32.mrb[0].mxu0
        %6475 = vdwg.mxu0
        %6476 = vrot.lane.b32.xlu0 %v1366, 48
        %v6477 = vpop.permute.xlu0 %6476
        %6478 = vrot.lane.b32.xlu0 %v1369, 48
        %v6479 = vpop.permute.xlu0 %6478
        %6480 = vrot.lane.b32.xlu0 %v1372, 48
        %v6481 = vpop.permute.xlu0 %6480
        %6482 = vrot.lane.b32.xlu0 %v1375, 48
        %v6483 = vpop.permute.xlu0 %6482
        %6484 = vrot.lane.b32.xlu0 %v1378, 48
        %v6485 = vpop.permute.xlu0 %6484
        %6486 = vrot.lane.b32.xlu0 %v1381, 48
        %v6487 = vpop.permute.xlu0 %6486
        %6488 = vrot.lane.b32.xlu0 %v1384, 48
        %v6489 = vpop.permute.xlu0 %6488
        %6490 = vrot.lane.b32.xlu0 %v1387, 48
        %v6491 = vpop.permute.xlu0 %6490
        %6500 = vmatprep.subr.bf16.mxu0 0
        %6501 = vmatpush1.bf16.msra.mxu0 %v6477
        %6502 = vmatprep.subr.bf16.mxu0 0
        %6503 = vmatpush1.bf16.msra.mxu0 %v6479
        %6504 = vmatprep.subr.bf16.mxu0 0
        %6505 = vmatpush1.bf16.msra.mxu0 %v6481
        %6506 = vmatprep.subr.bf16.mxu0 0
        %6507 = vmatpush1.bf16.msra.mxu0 %v6483
        %6508 = vmatprep.subr.bf16.mxu0 0
        %6509 = vmatpush1.bf16.msra.mxu0 %v6485
        %6510 = vmatprep.subr.bf16.mxu0 0
        %6511 = vmatpush1.bf16.msra.mxu0 %v6487
        %6512 = vmatprep.subr.bf16.mxu0 0
        %6513 = vmatpush1.bf16.msra.mxu0 %v6489
        %6514 = vmatprep.subr.bf16.mxu0 0
        %6515 = vmatpush1.bf16.msra.mxu0 %v6491
        %6516 = vmatprep.subr.bf16.mxu0 0
        %6517 = vmatpush1.bf16.msra.mxu0 0
        %6518 = vmatprep.subr.bf16.mxu0 0
        %6519 = vmatpush1.bf16.msra.mxu0 0
        %6520 = vmatprep.subr.bf16.mxu0 0
        %6521 = vmatpush1.bf16.msra.mxu0 0
        %6522 = vmatprep.subr.bf16.mxu0 0
        %6523 = vmatpush1.bf16.msra.mxu0 0
        %6524 = vmatprep.subr.bf16.mxu0 0
        %6525 = vmatpush1.bf16.msra.mxu0 0
        %6526 = vmatprep.subr.bf16.mxu0 0
        %6527 = vmatpush1.bf16.msra.mxu0 0
        %6528 = vmatprep.subr.bf16.mxu0 0
        %6529 = vmatpush1.bf16.msra.mxu0 0
        %6530 = vmatprep.subr.bf16.mxu0 0
        %6531 = vmatpush1.bf16.msra.mxu0 0
        %6532 = vmatprep.mubr.bf16.mxu0 0
        %6533 = vmatmul.mubr.bf16.gmra.mrb[0].mxu0 %v6347
        %v6534 = vpop.f32.mrb[0].mxu0
        %v6535 = vadd.f32 0.0, %v6534
        %v6536 = vpop.f32.mrb[0].mxu0
        %v6537 = vpop.f32.mrb[0].mxu0
        %v6538 = vadd.f32 0.0, %v6537
        %v6539 = vpop.f32.mrb[0].mxu0
        %6540 = vmatprep.mubr.bf16.mxu0 0
        %6541 = vmatmul.mubr.bf16.gmra.mrb[0].mxu0 %v6348
        %v6542 = vpop.f32.mrb[0].mxu0
        %v6543 = vadd.f32 0.0, %v6542
        %v6544 = vpop.f32.mrb[0].mxu0
        %v6545 = vpop.f32.mrb[0].mxu0
        %v6546 = vadd.f32 0.0, %v6545
        %v6547 = vpop.f32.mrb[0].mxu0
        %6548 = vmatprep.mubr.bf16.mxu0 0
        %6549 = vmatmul.mubr.bf16.gmra.mrb[0].mxu0 %v6349
        %v6550 = vpop.f32.mrb[0].mxu0
        %v6551 = vadd.f32 0.0, %v6550
        %v6552 = vpop.f32.mrb[0].mxu0
        %v6553 = vpop.f32.mrb[0].mxu0
        %v6554 = vadd.f32 0.0, %v6553
        %v6555 = vpop.f32.mrb[0].mxu0
        %6556 = vmatprep.mubr.bf16.mxu0 0
        %6557 = vmatmul.mubr.bf16.gmra.mrb[0].mxu0 %v6350
        %v6558 = vpop.f32.mrb[0].mxu0
        %v6559 = vadd.f32 0.0, %v6558
        %v6560 = vpop.f32.mrb[0].mxu0
        %v6561 = vpop.f32.mrb[0].mxu0
        %v6562 = vadd.f32 0.0, %v6561
        %v6563 = vpop.f32.mrb[0].mxu0
        %6564 = vmatprep.mubr.bf16.mxu0 0
        %6565 = vmatmul.mubr.bf16.gmra.mrb[0].mxu0 %v6351
        %v6566 = vpop.f32.mrb[0].mxu0
        %v6567 = vadd.f32 0.0, %v6566
        %v6568 = vpop.f32.mrb[0].mxu0
        %v6569 = vpop.f32.mrb[0].mxu0
        %v6570 = vadd.f32 0.0, %v6569
        %v6571 = vpop.f32.mrb[0].mxu0
        %6572 = vmatprep.mubr.bf16.mxu0 0
        %6573 = vmatmul.mubr.bf16.gmra.mrb[0].mxu0 %v6352
        %v6574 = vpop.f32.mrb[0].mxu0
        %v6575 = vadd.f32 0.0, %v6574
        %v6576 = vpop.f32.mrb[0].mxu0
        %v6577 = vpop.f32.mrb[0].mxu0
        %v6578 = vadd.f32 0.0, %v6577
        %v6579 = vpop.f32.mrb[0].mxu0
        %6580 = vmatprep.mubr.bf16.mxu0 0
        %6581 = vmatmul.mubr.bf16.gmra.mrb[0].mxu0 %v6353
        %v6582 = vpop.f32.mrb[0].mxu0
        %v6583 = vadd.f32 0.0, %v6582
        %v6584 = vpop.f32.mrb[0].mxu0
        %v6585 = vpop.f32.mrb[0].mxu0
        %v6586 = vadd.f32 0.0, %v6585
        %v6587 = vpop.f32.mrb[0].mxu0
        %6588 = vmatprep.mubr.bf16.mxu0 0
        %6589 = vmatmul.mubr.bf16.gmra.mrb[0].mxu0 %v6354
        %v6590 = vpop.f32.mrb[0].mxu0
        %v6591 = vadd.f32 0.0, %v6590
        %v6592 = vpop.f32.mrb[0].mxu0
        %v6593 = vpop.f32.mrb[0].mxu0
        %v6594 = vadd.f32 0.0, %v6593
        %v6595 = vpop.f32.mrb[0].mxu0
        %6596 = vdwg.mxu0
        %6597 = vadd.xlane.f32.xlu0 %v6276
        %v6598 = vpop.xlane.xlu0 %6597
        %6599 = vadd.xlane.f32.xlu0 %v6278
        %v6600 = vpop.xlane.xlu0 %6599
        %6601 = vadd.xlane.f32.xlu0 %v6280
        %v6602 = vpop.xlane.xlu0 %6601
        %6603 = vadd.xlane.f32.xlu0 %v6282
        %v6604 = vpop.xlane.xlu0 %6603
        %6605 = vadd.xlane.f32.xlu0 %v6284
        %v6606 = vpop.xlane.xlu0 %6605
        %6607 = vadd.xlane.f32.xlu0 %v6286
        %v6608 = vpop.xlane.xlu0 %6607
        %6609 = vadd.xlane.f32.xlu0 %v6288
        %v6610 = vpop.xlane.xlu0 %6609
        %6611 = vadd.xlane.f32.xlu0 %v6290
        %v6612 = vpop.xlane.xlu0 %6611
        %6613 = vadd.xlane.f32.xlu0 %v6292
        %v6614 = vpop.xlane.xlu0 %6613
        %6615 = vadd.xlane.f32.xlu0 %v6294
        %v6616 = vpop.xlane.xlu0 %6615
        %6617 = vadd.xlane.f32.xlu0 %v6296
        %v6618 = vpop.xlane.xlu0 %6617
        %6619 = vadd.xlane.f32.xlu0 %v6298
        %v6620 = vpop.xlane.xlu0 %6619
        %6621 = vadd.xlane.f32.xlu0 %v6300
        %v6622 = vpop.xlane.xlu0 %6621
        %6623 = vadd.xlane.f32.xlu0 %v6302
        %v6624 = vpop.xlane.xlu0 %6623
        %6625 = vadd.xlane.f32.xlu0 %v6304
        %v6626 = vpop.xlane.xlu0 %6625
        %6627 = vadd.xlane.f32.xlu0 %v6306
        %v6628 = vpop.xlane.xlu0 %6627
        %6629 = vadd.xlane.f32.xlu0 %v6308
        %v6630 = vpop.xlane.xlu0 %6629
        %6631 = vadd.xlane.f32.xlu0 %v6310
        %v6632 = vpop.xlane.xlu0 %6631
        %6633 = vadd.xlane.f32.xlu0 %v6312
        %v6634 = vpop.xlane.xlu0 %6633
        %6635 = vadd.xlane.f32.xlu0 %v6314
        %v6636 = vpop.xlane.xlu0 %6635
        %6637 = vadd.xlane.f32.xlu0 %v6316
        %v6638 = vpop.xlane.xlu0 %6637
        %6639 = vadd.xlane.f32.xlu0 %v6318
        %v6640 = vpop.xlane.xlu0 %6639
        %6641 = vadd.xlane.f32.xlu0 %v6320
        %v6642 = vpop.xlane.xlu0 %6641
        %6643 = vadd.xlane.f32.xlu0 %v6322
        %v6644 = vpop.xlane.xlu0 %6643
        %6645 = vadd.xlane.f32.xlu0 %v6324
        %v6646 = vpop.xlane.xlu0 %6645
        %6647 = vadd.xlane.f32.xlu0 %v6326
        %v6648 = vpop.xlane.xlu0 %6647
        %6649 = vadd.xlane.f32.xlu0 %v6328
        %v6650 = vpop.xlane.xlu0 %6649
        %6651 = vadd.xlane.f32.xlu0 %v6330
        %v6652 = vpop.xlane.xlu0 %6651
        %6653 = vadd.xlane.f32.xlu0 %v6332
        %v6654 = vpop.xlane.xlu0 %6653
        %6655 = vadd.xlane.f32.xlu0 %v6334
        %v6656 = vpop.xlane.xlu0 %6655
        %6657 = vadd.xlane.f32.xlu0 %v6336
        %v6658 = vpop.xlane.xlu0 %6657
        %6659 = vadd.xlane.f32.xlu0 %v6338
        %v6660 = vpop.xlane.xlu0 %6659
        %v6661 = vrcp.pop %v6598
        %v6662 = vrcp.pop %v6600
        %v6663 = vrcp.pop %v6602
        %v6664 = vrcp.pop %v6604
        %v6665 = vrcp.pop %v6606
        %v6666 = vrcp.pop %v6608
        %v6667 = vrcp.pop %v6610
        %v6668 = vrcp.pop %v6612
        %v6669 = vrcp.pop %v6614
        %v6670 = vrcp.pop %v6616
        %v6671 = vrcp.pop %v6618
        %v6672 = vrcp.pop %v6620
        %v6673 = vrcp.pop %v6622
        %v6674 = vrcp.pop %v6624
        %v6675 = vrcp.pop %v6626
        %v6676 = vrcp.pop %v6628
        %v6677 = vrcp.pop %v6630
        %v6678 = vrcp.pop %v6632
        %v6679 = vrcp.pop %v6634
        %v6680 = vrcp.pop %v6636
        %v6681 = vrcp.pop %v6638
        %v6682 = vrcp.pop %v6640
        %v6683 = vrcp.pop %v6642
        %v6684 = vrcp.pop %v6644
        %v6685 = vrcp.pop %v6646
        %v6686 = vrcp.pop %v6648
        %v6687 = vrcp.pop %v6650
        %v6688 = vrcp.pop %v6652
        %v6689 = vrcp.pop %v6654
        %v6690 = vrcp.pop %v6656
        %v6691 = vrcp.pop %v6658
        %v6692 = vrcp.pop %v6660
        %v6693 = vmul.f32 %v6414, %v6661
        %v6694 = vmul.f32 %v6417, %v6662
        %v6695 = vmul.f32 %v6422, %v6663
        %v6696 = vmul.f32 %v6425, %v6664
        %v6697 = vmul.f32 %v6430, %v6665
        %v6698 = vmul.f32 %v6433, %v6666
        %v6699 = vmul.f32 %v6438, %v6667
        %v6700 = vmul.f32 %v6441, %v6668
        %v6701 = vmul.f32 %v6446, %v6669
        %v6702 = vmul.f32 %v6449, %v6670
        %v6703 = vmul.f32 %v6454, %v6671
        %v6704 = vmul.f32 %v6457, %v6672
        %v6705 = vmul.f32 %v6462, %v6673
        %v6706 = vmul.f32 %v6465, %v6674
        %v6707 = vmul.f32 %v6470, %v6675
        %v6708 = vmul.f32 %v6473, %v6676
        %v6709 = vmul.f32 %v6535, %v6677
        %v6710 = vmul.f32 %v6538, %v6678
        %v6711 = vmul.f32 %v6543, %v6679
        %v6712 = vmul.f32 %v6546, %v6680
        %v6713 = vmul.f32 %v6551, %v6681
        %v6714 = vmul.f32 %v6554, %v6682
        %v6715 = vmul.f32 %v6559, %v6683
        %v6716 = vmul.f32 %v6562, %v6684
        %v6717 = vmul.f32 %v6567, %v6685
        %v6718 = vmul.f32 %v6570, %v6686
        %v6719 = vmul.f32 %v6575, %v6687
        %v6720 = vmul.f32 %v6578, %v6688
        %v6721 = vmul.f32 %v6583, %v6689
        %v6722 = vmul.f32 %v6586, %v6690
        %v6723 = vmul.f32 %v6591, %v6691
        %v6724 = vmul.f32 %v6594, %v6692
        %6725 = vrot.lane.b32.xlu0 %v1340, 32
        %v6726 = vpop.permute.xlu0 %6725
        %6727 = vrot.lane.b32.xlu0 %v1343, 32
        %v6728 = vpop.permute.xlu0 %6727
        %6729 = vrot.lane.b32.xlu0 %v1346, 32
        %v6730 = vpop.permute.xlu0 %6729
        %6731 = vrot.lane.b32.xlu0 %v1349, 32
        %v6732 = vpop.permute.xlu0 %6731
        %6733 = vrot.lane.b32.xlu0 %v1352, 32
        %v6734 = vpop.permute.xlu0 %6733
        %6735 = vrot.lane.b32.xlu0 %v1355, 32
        %v6736 = vpop.permute.xlu0 %6735
        %6737 = vrot.lane.b32.xlu0 %v1358, 32
        %v6738 = vpop.permute.xlu0 %6737
        %6739 = vrot.lane.b32.xlu0 %v1361, 32
        %v6740 = vpop.permute.xlu0 %6739
        %6741 = vrot.lane.b32.xlu0 %v1341, 32
        %v6742 = vpop.permute.xlu0 %6741
        %6743 = vrot.lane.b32.xlu0 %v1344, 32
        %v6744 = vpop.permute.xlu0 %6743
        %6745 = vrot.lane.b32.xlu0 %v1347, 32
        %v6746 = vpop.permute.xlu0 %6745
        %6747 = vrot.lane.b32.xlu0 %v1350, 32
        %v6748 = vpop.permute.xlu0 %6747
        %6749 = vrot.lane.b32.xlu0 %v1353, 32
        %v6750 = vpop.permute.xlu0 %6749
        %6751 = vrot.lane.b32.xlu0 %v1356, 32
        %v6752 = vpop.permute.xlu0 %6751
        %6753 = vrot.lane.b32.xlu0 %v1359, 32
        %v6754 = vpop.permute.xlu0 %6753
        %6755 = vrot.lane.b32.xlu0 %v1362, 32
        %v6756 = vpop.permute.xlu0 %6755
        %v6758 = vsel %vm1388, %v6726, 0
        %v6761 = vsel %vm1388, %v6728, 0
        %v6764 = vsel %vm1388, %v6730, 0
        %v6767 = vsel %vm1388, %v6732, 0
        %v6770 = vsel %vm1388, %v6734, 0
        %v6773 = vsel %vm1388, %v6736, 0
        %v6776 = vsel %vm1388, %v6738, 0
        %v6779 = vsel %vm1388, %v6740, 0
        %v6782 = vsel %vm1388, %v6742, 0
        %v6785 = vsel %vm1388, %v6744, 0
        %v6788 = vsel %vm1388, %v6746, 0
        %v6791 = vsel %vm1388, %v6748, 0
        %v6794 = vsel %vm1388, %v6750, 0
        %v6797 = vsel %vm1388, %v6752, 0
        %v6800 = vsel %vm1388, %v6754, 0
        %v6803 = vsel %vm1388, %v6756, 0
        %6805 = vmatprep.subr.bf16.mxu0 0
        %6806 = vmatpush1.bf16.xpose.msra.mxu0 %v6782
        %6807 = vmatprep.subr.bf16.mxu0 0
        %6808 = vmatpush1.bf16.xpose.msra.mxu0 %v6785
        %6809 = vmatprep.subr.bf16.mxu0 0
        %6810 = vmatpush1.bf16.xpose.msra.mxu0 %v6788
        %6811 = vmatprep.subr.bf16.mxu0 0
        %6812 = vmatpush1.bf16.xpose.msra.mxu0 %v6791
        %6813 = vmatprep.subr.bf16.mxu0 0
        %6814 = vmatpush1.bf16.xpose.msra.mxu0 %v6794
        %6815 = vmatprep.subr.bf16.mxu0 0
        %6816 = vmatpush1.bf16.xpose.msra.mxu0 %v6797
        %6817 = vmatprep.subr.bf16.mxu0 0
        %6818 = vmatpush1.bf16.xpose.msra.mxu0 %v6800
        %6819 = vmatprep.subr.bf16.mxu0 0
        %6820 = vmatpush1.bf16.xpose.msra.mxu0 %v6803
        %6821 = vmatprep.subr.bf16.mxu0 0
        %6822 = vmatpush1.bf16.xpose.msra.mxu0 0
        %6823 = vmatprep.subr.bf16.mxu0 0
        %6824 = vmatpush1.bf16.xpose.msra.mxu0 0
        %6825 = vmatprep.subr.bf16.mxu0 0
        %6826 = vmatpush1.bf16.xpose.msra.mxu0 0
        %6827 = vmatprep.subr.bf16.mxu0 0
        %6828 = vmatpush1.bf16.xpose.msra.mxu0 0
        %6829 = vmatprep.subr.bf16.mxu0 0
        %6830 = vmatpush1.bf16.xpose.msra.mxu0 0
        %6831 = vmatprep.subr.bf16.mxu0 0
        %6832 = vmatpush1.bf16.xpose.msra.mxu0 0
        %6833 = vmatprep.subr.bf16.mxu0 0
        %6834 = vmatpush1.bf16.xpose.msra.mxu0 0
        %6835 = vmatprep.subr.bf16.mxu0 0
        %6836 = vmatpush1.bf16.xpose.msra.mxu0 0
        %6837 = vmatprep.mubr.bf16.mxu0 0
        %6838 = vmatmul.mubr.bf16.gmra.mrb[0].mxu0 %v6758
        %v6839 = vpop.f32.mrb[0].mxu0
        %v6840 = vadd.f32 0.0, %v6839
        %v6841 = vpop.f32.mrb[0].mxu0
        %v6842 = vpop.f32.mrb[0].mxu0
        %v6843 = vadd.f32 0.0, %v6842
        %v6844 = vpop.f32.mrb[0].mxu0
        %6845 = vmatprep.mubr.bf16.mxu0 0
        %6846 = vmatmul.mubr.bf16.gmra.mrb[0].mxu0 %v6761
        %v6847 = vpop.f32.mrb[0].mxu0
        %v6848 = vadd.f32 0.0, %v6847
        %v6849 = vpop.f32.mrb[0].mxu0
        %v6850 = vpop.f32.mrb[0].mxu0
        %v6851 = vadd.f32 0.0, %v6850
        %v6852 = vpop.f32.mrb[0].mxu0
        %6853 = vmatprep.mubr.bf16.mxu0 0
        %6854 = vmatmul.mubr.bf16.gmra.mrb[0].mxu0 %v6764
        %v6855 = vpop.f32.mrb[0].mxu0
        %v6856 = vadd.f32 0.0, %v6855
        %v6857 = vpop.f32.mrb[0].mxu0
        %v6858 = vpop.f32.mrb[0].mxu0
        %v6859 = vadd.f32 0.0, %v6858
        %v6860 = vpop.f32.mrb[0].mxu0
        %6861 = vmatprep.mubr.bf16.mxu0 0
        %6862 = vmatmul.mubr.bf16.gmra.mrb[0].mxu0 %v6767
        %v6863 = vpop.f32.mrb[0].mxu0
        %v6864 = vadd.f32 0.0, %v6863
        %v6865 = vpop.f32.mrb[0].mxu0
        %v6866 = vpop.f32.mrb[0].mxu0
        %v6867 = vadd.f32 0.0, %v6866
        %v6868 = vpop.f32.mrb[0].mxu0
        %6869 = vmatprep.mubr.bf16.mxu0 0
        %6870 = vmatmul.mubr.bf16.gmra.mrb[0].mxu0 %v6770
        %v6871 = vpop.f32.mrb[0].mxu0
        %v6872 = vadd.f32 0.0, %v6871
        %v6873 = vpop.f32.mrb[0].mxu0
        %v6874 = vpop.f32.mrb[0].mxu0
        %v6875 = vadd.f32 0.0, %v6874
        %v6876 = vpop.f32.mrb[0].mxu0
        %6877 = vmatprep.mubr.bf16.mxu0 0
        %6878 = vmatmul.mubr.bf16.gmra.mrb[0].mxu0 %v6773
        %v6879 = vpop.f32.mrb[0].mxu0
        %v6880 = vadd.f32 0.0, %v6879
        %v6881 = vpop.f32.mrb[0].mxu0
        %v6882 = vpop.f32.mrb[0].mxu0
        %v6883 = vadd.f32 0.0, %v6882
        %v6884 = vpop.f32.mrb[0].mxu0
        %6885 = vmatprep.mubr.bf16.mxu0 0
        %6886 = vmatmul.mubr.bf16.gmra.mrb[0].mxu0 %v6776
        %v6887 = vpop.f32.mrb[0].mxu0
        %v6888 = vadd.f32 0.0, %v6887
        %v6889 = vpop.f32.mrb[0].mxu0
        %v6890 = vpop.f32.mrb[0].mxu0
        %v6891 = vadd.f32 0.0, %v6890
        %v6892 = vpop.f32.mrb[0].mxu0
        %6893 = vmatprep.mubr.bf16.mxu0 0
        %6894 = vmatmul.mubr.bf16.gmra.mrb[0].mxu0 %v6779
        %v6895 = vpop.f32.mrb[0].mxu0
        %v6896 = vadd.f32 0.0, %v6895
        %v6897 = vpop.f32.mrb[0].mxu0
        %v6898 = vpop.f32.mrb[0].mxu0
        %v6899 = vadd.f32 0.0, %v6898
        %v6900 = vpop.f32.mrb[0].mxu0
        %6901 = vdwg.mxu0
        %6902 = vrot.lane.b32.xlu0 %v1364, 32
        %v6903 = vpop.permute.xlu0 %6902
        %6904 = vrot.lane.b32.xlu0 %v1367, 32
        %v6905 = vpop.permute.xlu0 %6904
        %6906 = vrot.lane.b32.xlu0 %v1370, 32
        %v6907 = vpop.permute.xlu0 %6906
        %6908 = vrot.lane.b32.xlu0 %v1373, 32
        %v6909 = vpop.permute.xlu0 %6908
        %6910 = vrot.lane.b32.xlu0 %v1376, 32
        %v6911 = vpop.permute.xlu0 %6910
        %6912 = vrot.lane.b32.xlu0 %v1379, 32
        %v6913 = vpop.permute.xlu0 %6912
        %6914 = vrot.lane.b32.xlu0 %v1382, 32
        %v6915 = vpop.permute.xlu0 %6914
        %6916 = vrot.lane.b32.xlu0 %v1385, 32
        %v6917 = vpop.permute.xlu0 %6916
        %6918 = vrot.lane.b32.xlu0 %v1365, 32
        %v6919 = vpop.permute.xlu0 %6918
        %6920 = vrot.lane.b32.xlu0 %v1368, 32
        %v6921 = vpop.permute.xlu0 %6920
        %6922 = vrot.lane.b32.xlu0 %v1371, 32
        %v6923 = vpop.permute.xlu0 %6922
        %6924 = vrot.lane.b32.xlu0 %v1374, 32
        %v6925 = vpop.permute.xlu0 %6924
        %6926 = vrot.lane.b32.xlu0 %v1377, 32
        %v6927 = vpop.permute.xlu0 %6926
        %6928 = vrot.lane.b32.xlu0 %v1380, 32
        %v6929 = vpop.permute.xlu0 %6928
        %6930 = vrot.lane.b32.xlu0 %v1383, 32
        %v6931 = vpop.permute.xlu0 %6930
        %6932 = vrot.lane.b32.xlu0 %v1386, 32
        %v6933 = vpop.permute.xlu0 %6932
        %v6935 = vsel %vm1388, %v6903, 0
        %v6938 = vsel %vm1388, %v6905, 0
        %v6941 = vsel %vm1388, %v6907, 0
        %v6944 = vsel %vm1388, %v6909, 0
        %v6947 = vsel %vm1388, %v6911, 0
        %v6950 = vsel %vm1388, %v6913, 0
        %v6953 = vsel %vm1388, %v6915, 0
        %v6956 = vsel %vm1388, %v6917, 0
        %v6959 = vsel %vm1388, %v6919, 0
        %v6962 = vsel %vm1388, %v6921, 0
        %v6965 = vsel %vm1388, %v6923, 0
        %v6968 = vsel %vm1388, %v6925, 0
        %v6971 = vsel %vm1388, %v6927, 0
        %v6974 = vsel %vm1388, %v6929, 0
        %v6977 = vsel %vm1388, %v6931, 0
        %v6980 = vsel %vm1388, %v6933, 0
        %6982 = vmatprep.subr.bf16.mxu0 0
        %6983 = vmatpush1.bf16.xpose.msra.mxu0 %v6959
        %6984 = vmatprep.subr.bf16.mxu0 0
        %6985 = vmatpush1.bf16.xpose.msra.mxu0 %v6962
        %6986 = vmatprep.subr.bf16.mxu0 0
        %6987 = vmatpush1.bf16.xpose.msra.mxu0 %v6965
        %6988 = vmatprep.subr.bf16.mxu0 0
        %6989 = vmatpush1.bf16.xpose.msra.mxu0 %v6968
        %6990 = vmatprep.subr.bf16.mxu0 0
        %6991 = vmatpush1.bf16.xpose.msra.mxu0 %v6971
        %6992 = vmatprep.subr.bf16.mxu0 0
        %6993 = vmatpush1.bf16.xpose.msra.mxu0 %v6974
        %6994 = vmatprep.subr.bf16.mxu0 0
        %6995 = vmatpush1.bf16.xpose.msra.mxu0 %v6977
        %6996 = vmatprep.subr.bf16.mxu0 0
        %6997 = vmatpush1.bf16.xpose.msra.mxu0 %v6980
        %6998 = vmatprep.subr.bf16.mxu0 0
        %6999 = vmatpush1.bf16.xpose.msra.mxu0 0
        %7000 = vmatprep.subr.bf16.mxu0 0
        %7001 = vmatpush1.bf16.xpose.msra.mxu0 0
        %7002 = vmatprep.subr.bf16.mxu0 0
        %7003 = vmatpush1.bf16.xpose.msra.mxu0 0
        %7004 = vmatprep.subr.bf16.mxu0 0
        %7005 = vmatpush1.bf16.xpose.msra.mxu0 0
        %7006 = vmatprep.subr.bf16.mxu0 0
        %7007 = vmatpush1.bf16.xpose.msra.mxu0 0
        %7008 = vmatprep.subr.bf16.mxu0 0
        %7009 = vmatpush1.bf16.xpose.msra.mxu0 0
        %7010 = vmatprep.subr.bf16.mxu0 0
        %7011 = vmatpush1.bf16.xpose.msra.mxu0 0
        %7012 = vmatprep.subr.bf16.mxu0 0
        %7013 = vmatpush1.bf16.xpose.msra.mxu0 0
        %7014 = vmatprep.mubr.bf16.mxu0 0
        %7015 = vmatmul.mubr.bf16.gmra.mrb[0].mxu0 %v6935
        %v7016 = vpop.f32.mrb[0].mxu0
        %v7017 = vadd.f32 0.0, %v7016
        %v7018 = vpop.f32.mrb[0].mxu0
        %v7019 = vpop.f32.mrb[0].mxu0
        %v7020 = vadd.f32 0.0, %v7019
        %v7021 = vpop.f32.mrb[0].mxu0
        %7022 = vmatprep.mubr.bf16.mxu0 0
        %7023 = vmatmul.mubr.bf16.gmra.mrb[0].mxu0 %v6938
        %v7024 = vpop.f32.mrb[0].mxu0
        %v7025 = vadd.f32 0.0, %v7024
        %v7026 = vpop.f32.mrb[0].mxu0
        %v7027 = vpop.f32.mrb[0].mxu0
        %v7028 = vadd.f32 0.0, %v7027
        %v7029 = vpop.f32.mrb[0].mxu0
        %7030 = vmatprep.mubr.bf16.mxu0 0
        %7031 = vmatmul.mubr.bf16.gmra.mrb[0].mxu0 %v6941
        %v7032 = vpop.f32.mrb[0].mxu0
        %v7033 = vadd.f32 0.0, %v7032
        %v7034 = vpop.f32.mrb[0].mxu0
        %v7035 = vpop.f32.mrb[0].mxu0
        %v7036 = vadd.f32 0.0, %v7035
        %v7037 = vpop.f32.mrb[0].mxu0
        %7038 = vmatprep.mubr.bf16.mxu0 0
        %7039 = vmatmul.mubr.bf16.gmra.mrb[0].mxu0 %v6944
        %v7040 = vpop.f32.mrb[0].mxu0
        %v7041 = vadd.f32 0.0, %v7040
        %v7042 = vpop.f32.mrb[0].mxu0
        %v7043 = vpop.f32.mrb[0].mxu0
        %v7044 = vadd.f32 0.0, %v7043
        %v7045 = vpop.f32.mrb[0].mxu0
        %7046 = vmatprep.mubr.bf16.mxu0 0
        %7047 = vmatmul.mubr.bf16.gmra.mrb[0].mxu0 %v6947
        %v7048 = vpop.f32.mrb[0].mxu0
        %v7049 = vadd.f32 0.0, %v7048
        %v7050 = vpop.f32.mrb[0].mxu0
        %v7051 = vpop.f32.mrb[0].mxu0
        %v7052 = vadd.f32 0.0, %v7051
        %v7053 = vpop.f32.mrb[0].mxu0
        %7054 = vmatprep.mubr.bf16.mxu0 0
        %7055 = vmatmul.mubr.bf16.gmra.mrb[0].mxu0 %v6950
        %v7056 = vpop.f32.mrb[0].mxu0
        %v7057 = vadd.f32 0.0, %v7056
        %v7058 = vpop.f32.mrb[0].mxu0
        %v7059 = vpop.f32.mrb[0].mxu0
        %v7060 = vadd.f32 0.0, %v7059
        %v7061 = vpop.f32.mrb[0].mxu0
        %7062 = vmatprep.mubr.bf16.mxu0 0
        %7063 = vmatmul.mubr.bf16.gmra.mrb[0].mxu0 %v6953
        %v7064 = vpop.f32.mrb[0].mxu0
        %v7065 = vadd.f32 0.0, %v7064
        %v7066 = vpop.f32.mrb[0].mxu0
        %v7067 = vpop.f32.mrb[0].mxu0
        %v7068 = vadd.f32 0.0, %v7067
        %v7069 = vpop.f32.mrb[0].mxu0
        %7070 = vmatprep.mubr.bf16.mxu0 0
        %7071 = vmatmul.mubr.bf16.gmra.mrb[0].mxu0 %v6956
        %v7072 = vpop.f32.mrb[0].mxu0
        %v7073 = vadd.f32 0.0, %v7072
        %v7074 = vpop.f32.mrb[0].mxu0
        %v7075 = vpop.f32.mrb[0].mxu0
        %v7076 = vadd.f32 0.0, %v7075
        %v7077 = vpop.f32.mrb[0].mxu0
        %7078 = vdwg.mxu0
        %7079 = vmax.xlane.f32.xlu0 %v6840
        %v7080 = vpop.xlane.xlu0 %7079
        %7081 = vmax.xlane.f32.xlu0 %v6843
        %v7082 = vpop.xlane.xlu0 %7081
        %7083 = vmax.xlane.f32.xlu0 %v6848
        %v7084 = vpop.xlane.xlu0 %7083
        %7085 = vmax.xlane.f32.xlu0 %v6851
        %v7086 = vpop.xlane.xlu0 %7085
        %7087 = vmax.xlane.f32.xlu0 %v6856
        %v7088 = vpop.xlane.xlu0 %7087
        %7089 = vmax.xlane.f32.xlu0 %v6859
        %v7090 = vpop.xlane.xlu0 %7089
        %7091 = vmax.xlane.f32.xlu0 %v6864
        %v7092 = vpop.xlane.xlu0 %7091
        %7093 = vmax.xlane.f32.xlu0 %v6867
        %v7094 = vpop.xlane.xlu0 %7093
        %7095 = vmax.xlane.f32.xlu0 %v6872
        %v7096 = vpop.xlane.xlu0 %7095
        %7097 = vmax.xlane.f32.xlu0 %v6875
        %v7098 = vpop.xlane.xlu0 %7097
        %7099 = vmax.xlane.f32.xlu0 %v6880
        %v7100 = vpop.xlane.xlu0 %7099
        %7101 = vmax.xlane.f32.xlu0 %v6883
        %v7102 = vpop.xlane.xlu0 %7101
        %7103 = vmax.xlane.f32.xlu0 %v6888
        %v7104 = vpop.xlane.xlu0 %7103
        %7105 = vmax.xlane.f32.xlu0 %v6891
        %v7106 = vpop.xlane.xlu0 %7105
        %7107 = vmax.xlane.f32.xlu0 %v6896
        %v7108 = vpop.xlane.xlu0 %7107
        %7109 = vmax.xlane.f32.xlu0 %v6899
        %v7110 = vpop.xlane.xlu0 %7109
        %7111 = vmax.xlane.f32.xlu0 %v7017
        %v7112 = vpop.xlane.xlu0 %7111
        %7113 = vmax.xlane.f32.xlu0 %v7020
        %v7114 = vpop.xlane.xlu0 %7113
        %7115 = vmax.xlane.f32.xlu0 %v7025
        %v7116 = vpop.xlane.xlu0 %7115
        %7117 = vmax.xlane.f32.xlu0 %v7028
        %v7118 = vpop.xlane.xlu0 %7117
        %7119 = vmax.xlane.f32.xlu0 %v7033
        %v7120 = vpop.xlane.xlu0 %7119
        %7121 = vmax.xlane.f32.xlu0 %v7036
        %v7122 = vpop.xlane.xlu0 %7121
        %7123 = vmax.xlane.f32.xlu0 %v7041
        %v7124 = vpop.xlane.xlu0 %7123
        %7125 = vmax.xlane.f32.xlu0 %v7044
        %v7126 = vpop.xlane.xlu0 %7125
        %7127 = vmax.xlane.f32.xlu0 %v7049
        %v7128 = vpop.xlane.xlu0 %7127
        %7129 = vmax.xlane.f32.xlu0 %v7052
        %v7130 = vpop.xlane.xlu0 %7129
        %7131 = vmax.xlane.f32.xlu0 %v7057
        %v7132 = vpop.xlane.xlu0 %7131
        %7133 = vmax.xlane.f32.xlu0 %v7060
        %v7134 = vpop.xlane.xlu0 %7133
        %7135 = vmax.xlane.f32.xlu0 %v7065
        %v7136 = vpop.xlane.xlu0 %7135
        %7137 = vmax.xlane.f32.xlu0 %v7068
        %v7138 = vpop.xlane.xlu0 %7137
        %7139 = vmax.xlane.f32.xlu0 %v7073
        %v7140 = vpop.xlane.xlu0 %7139
        %7141 = vmax.xlane.f32.xlu0 %v7076
        %v7142 = vpop.xlane.xlu0 %7141
        %v7143 = vsub.f32 %v6840, %v7080
        %v7144 = vsub.f32 %v6843, %v7082
        %v7145 = vsub.f32 %v6848, %v7084
        %v7146 = vsub.f32 %v6851, %v7086
        %v7147 = vsub.f32 %v6856, %v7088
        %v7148 = vsub.f32 %v6859, %v7090
        %v7149 = vsub.f32 %v6864, %v7092
        %v7150 = vsub.f32 %v6867, %v7094
        %v7151 = vsub.f32 %v6872, %v7096
        %v7152 = vsub.f32 %v6875, %v7098
        %v7153 = vsub.f32 %v6880, %v7100
        %v7154 = vsub.f32 %v6883, %v7102
        %v7155 = vsub.f32 %v6888, %v7104
        %v7156 = vsub.f32 %v6891, %v7106
        %v7157 = vsub.f32 %v6896, %v7108
        %v7158 = vsub.f32 %v6899, %v7110
        %v7159 = vsub.f32 %v7017, %v7112
        %v7160 = vsub.f32 %v7020, %v7114
        %v7161 = vsub.f32 %v7025, %v7116
        %v7162 = vsub.f32 %v7028, %v7118
        %v7163 = vsub.f32 %v7033, %v7120
        %v7164 = vsub.f32 %v7036, %v7122
        %v7165 = vsub.f32 %v7041, %v7124
        %v7166 = vsub.f32 %v7044, %v7126
        %v7167 = vsub.f32 %v7049, %v7128
        %v7168 = vsub.f32 %v7052, %v7130
        %v7169 = vsub.f32 %v7057, %v7132
        %v7170 = vsub.f32 %v7060, %v7134
        %v7171 = vsub.f32 %v7065, %v7136
        %v7172 = vsub.f32 %v7068, %v7138
        %v7173 = vsub.f32 %v7073, %v7140
        %v7174 = vsub.f32 %v7076, %v7142
        %v7175 = vmul.f32 %v7143, 1.442695
        %v7176 = vpow.pop %v7175
        %v7177 = vmul.f32 %v7144, 1.442695
        %v7178 = vpow.pop %v7177
        %v7179 = vmul.f32 %v7145, 1.442695
        %v7180 = vpow.pop %v7179
        %v7181 = vmul.f32 %v7146, 1.442695
        %v7182 = vpow.pop %v7181
        %v7183 = vmul.f32 %v7147, 1.442695
        %v7184 = vpow.pop %v7183
        %v7185 = vmul.f32 %v7148, 1.442695
        %v7186 = vpow.pop %v7185
        %v7187 = vmul.f32 %v7149, 1.442695
        %v7188 = vpow.pop %v7187
        %v7189 = vmul.f32 %v7150, 1.442695
        %v7190 = vpow.pop %v7189
        %v7191 = vmul.f32 %v7151, 1.442695
        %v7192 = vpow.pop %v7191
        %v7193 = vmul.f32 %v7152, 1.442695
        %v7194 = vpow.pop %v7193
        %v7195 = vmul.f32 %v7153, 1.442695
        %v7196 = vpow.pop %v7195
        %v7197 = vmul.f32 %v7154, 1.442695
        %v7198 = vpow.pop %v7197
        %v7199 = vmul.f32 %v7155, 1.442695
        %v7200 = vpow.pop %v7199
        %v7201 = vmul.f32 %v7156, 1.442695
        %v7202 = vpow.pop %v7201
        %v7203 = vmul.f32 %v7157, 1.442695
        %v7204 = vpow.pop %v7203
        %v7205 = vmul.f32 %v7158, 1.442695
        %v7206 = vpow.pop %v7205
        %v7207 = vmul.f32 %v7159, 1.442695
        %v7208 = vpow.pop %v7207
        %v7209 = vmul.f32 %v7160, 1.442695
        %v7210 = vpow.pop %v7209
        %v7211 = vmul.f32 %v7161, 1.442695
        %v7212 = vpow.pop %v7211
        %v7213 = vmul.f32 %v7162, 1.442695
        %v7214 = vpow.pop %v7213
        %v7215 = vmul.f32 %v7163, 1.442695
        %v7216 = vpow.pop %v7215
        %v7217 = vmul.f32 %v7164, 1.442695
        %v7218 = vpow.pop %v7217
        %v7219 = vmul.f32 %v7165, 1.442695
        %v7220 = vpow.pop %v7219
        %v7221 = vmul.f32 %v7166, 1.442695
        %v7222 = vpow.pop %v7221
        %v7223 = vmul.f32 %v7167, 1.442695
        %v7224 = vpow.pop %v7223
        %v7225 = vmul.f32 %v7168, 1.442695
        %v7226 = vpow.pop %v7225
        %v7227 = vmul.f32 %v7169, 1.442695
        %v7228 = vpow.pop %v7227
        %v7229 = vmul.f32 %v7170, 1.442695
        %v7230 = vpow.pop %v7229
        %v7231 = vmul.f32 %v7171, 1.442695
        %v7232 = vpow.pop %v7231
        %v7233 = vmul.f32 %v7172, 1.442695
        %v7234 = vpow.pop %v7233
        %v7235 = vmul.f32 %v7173, 1.442695
        %v7236 = vpow.pop %v7235
        %v7237 = vmul.f32 %v7174, 1.442695
        %v7238 = vpow.pop %v7237
        %v7239 = vpack.c.bf16 %v7178, %v7176
        %v7240 = vpack.c.bf16 %v7182, %v7180
        %v7241 = vpack.c.bf16 %v7186, %v7184
        %v7242 = vpack.c.bf16 %v7190, %v7188
        %v7243 = vpack.c.bf16 %v7194, %v7192
        %v7244 = vpack.c.bf16 %v7198, %v7196
        %v7245 = vpack.c.bf16 %v7202, %v7200
        %v7246 = vpack.c.bf16 %v7206, %v7204
        %v7247 = vpack.c.bf16 %v7210, %v7208
        %v7248 = vpack.c.bf16 %v7214, %v7212
        %v7249 = vpack.c.bf16 %v7218, %v7216
        %v7250 = vpack.c.bf16 %v7222, %v7220
        %v7251 = vpack.c.bf16 %v7226, %v7224
        %v7252 = vpack.c.bf16 %v7230, %v7228
        %v7253 = vpack.c.bf16 %v7234, %v7232
        %v7254 = vpack.c.bf16 %v7238, %v7236
        %7255 = vrot.lane.b32.xlu0 %v1342, 32
        %v7256 = vpop.permute.xlu0 %7255
        %7257 = vrot.lane.b32.xlu0 %v1345, 32
        %v7258 = vpop.permute.xlu0 %7257
        %7259 = vrot.lane.b32.xlu0 %v1348, 32
        %v7260 = vpop.permute.xlu0 %7259
        %7261 = vrot.lane.b32.xlu0 %v1351, 32
        %v7262 = vpop.permute.xlu0 %7261
        %7263 = vrot.lane.b32.xlu0 %v1354, 32
        %v7264 = vpop.permute.xlu0 %7263
        %7265 = vrot.lane.b32.xlu0 %v1357, 32
        %v7266 = vpop.permute.xlu0 %7265
        %7267 = vrot.lane.b32.xlu0 %v1360, 32
        %v7268 = vpop.permute.xlu0 %7267
        %7269 = vrot.lane.b32.xlu0 %v1363, 32
        %v7270 = vpop.permute.xlu0 %7269
        %7279 = vmatprep.subr.bf16.mxu0 0
        %7280 = vmatpush1.bf16.msra.mxu0 %v7256
        %7281 = vmatprep.subr.bf16.mxu0 0
        %7282 = vmatpush1.bf16.msra.mxu0 %v7258
        %7283 = vmatprep.subr.bf16.mxu0 0
        %7284 = vmatpush1.bf16.msra.mxu0 %v7260
        %7285 = vmatprep.subr.bf16.mxu0 0
        %7286 = vmatpush1.bf16.msra.mxu0 %v7262
        %7287 = vmatprep.subr.bf16.mxu0 0
        %7288 = vmatpush1.bf16.msra.mxu0 %v7264
        %7289 = vmatprep.subr.bf16.mxu0 0
        %7290 = vmatpush1.bf16.msra.mxu0 %v7266
        %7291 = vmatprep.subr.bf16.mxu0 0
        %7292 = vmatpush1.bf16.msra.mxu0 %v7268
        %7293 = vmatprep.subr.bf16.mxu0 0
        %7294 = vmatpush1.bf16.msra.mxu0 %v7270
        %7295 = vmatprep.subr.bf16.mxu0 0
        %7296 = vmatpush1.bf16.msra.mxu0 0
        %7297 = vmatprep.subr.bf16.mxu0 0
        %7298 = vmatpush1.bf16.msra.mxu0 0
        %7299 = vmatprep.subr.bf16.mxu0 0
        %7300 = vmatpush1.bf16.msra.mxu0 0
        %7301 = vmatprep.subr.bf16.mxu0 0
        %7302 = vmatpush1.bf16.msra.mxu0 0
        %7303 = vmatprep.subr.bf16.mxu0 0
        %7304 = vmatpush1.bf16.msra.mxu0 0
        %7305 = vmatprep.subr.bf16.mxu0 0
        %7306 = vmatpush1.bf16.msra.mxu0 0
        %7307 = vmatprep.subr.bf16.mxu0 0
        %7308 = vmatpush1.bf16.msra.mxu0 0
        %7309 = vmatprep.subr.bf16.mxu0 0
        %7310 = vmatpush1.bf16.msra.mxu0 0
        %7311 = vmatprep.mubr.bf16.mxu0 0
        %7312 = vmatmul.mubr.bf16.gmra.mrb[0].mxu0 %v7239
        %v7313 = vpop.f32.mrb[0].mxu0
        %v7314 = vadd.f32 0.0, %v7313
        %v7315 = vpop.f32.mrb[0].mxu0
        %v7316 = vpop.f32.mrb[0].mxu0
        %v7317 = vadd.f32 0.0, %v7316
        %v7318 = vpop.f32.mrb[0].mxu0
        %7319 = vmatprep.mubr.bf16.mxu0 0
        %7320 = vmatmul.mubr.bf16.gmra.mrb[0].mxu0 %v7240
        %v7321 = vpop.f32.mrb[0].mxu0
        %v7322 = vadd.f32 0.0, %v7321
        %v7323 = vpop.f32.mrb[0].mxu0
        %v7324 = vpop.f32.mrb[0].mxu0
        %v7325 = vadd.f32 0.0, %v7324
        %v7326 = vpop.f32.mrb[0].mxu0
        %7327 = vmatprep.mubr.bf16.mxu0 0
        %7328 = vmatmul.mubr.bf16.gmra.mrb[0].mxu0 %v7241
        %v7329 = vpop.f32.mrb[0].mxu0
        %v7330 = vadd.f32 0.0, %v7329
        %v7331 = vpop.f32.mrb[0].mxu0
        %v7332 = vpop.f32.mrb[0].mxu0
        %v7333 = vadd.f32 0.0, %v7332
        %v7334 = vpop.f32.mrb[0].mxu0
        %7335 = vmatprep.mubr.bf16.mxu0 0
        %7336 = vmatmul.mubr.bf16.gmra.mrb[0].mxu0 %v7242
        %v7337 = vpop.f32.mrb[0].mxu0
        %v7338 = vadd.f32 0.0, %v7337
        %v7339 = vpop.f32.mrb[0].mxu0
        %v7340 = vpop.f32.mrb[0].mxu0
        %v7341 = vadd.f32 0.0, %v7340
        %v7342 = vpop.f32.mrb[0].mxu0
        %7343 = vmatprep.mubr.bf16.mxu0 0
        %7344 = vmatmul.mubr.bf16.gmra.mrb[0].mxu0 %v7243
        %v7345 = vpop.f32.mrb[0].mxu0
        %v7346 = vadd.f32 0.0, %v7345
        %v7347 = vpop.f32.mrb[0].mxu0
        %v7348 = vpop.f32.mrb[0].mxu0
        %v7349 = vadd.f32 0.0, %v7348
        %v7350 = vpop.f32.mrb[0].mxu0
        %7351 = vmatprep.mubr.bf16.mxu0 0
        %7352 = vmatmul.mubr.bf16.gmra.mrb[0].mxu0 %v7244
        %v7353 = vpop.f32.mrb[0].mxu0
        %v7354 = vadd.f32 0.0, %v7353
        %v7355 = vpop.f32.mrb[0].mxu0
        %v7356 = vpop.f32.mrb[0].mxu0
        %v7357 = vadd.f32 0.0, %v7356
        %v7358 = vpop.f32.mrb[0].mxu0
        %7359 = vmatprep.mubr.bf16.mxu0 0
        %7360 = vmatmul.mubr.bf16.gmra.mrb[0].mxu0 %v7245
        %v7361 = vpop.f32.mrb[0].mxu0
        %v7362 = vadd.f32 0.0, %v7361
        %v7363 = vpop.f32.mrb[0].mxu0
        %v7364 = vpop.f32.mrb[0].mxu0
        %v7365 = vadd.f32 0.0, %v7364
        %v7366 = vpop.f32.mrb[0].mxu0
        %7367 = vmatprep.mubr.bf16.mxu0 0
        %7368 = vmatmul.mubr.bf16.gmra.mrb[0].mxu0 %v7246
        %v7369 = vpop.f32.mrb[0].mxu0
        %v7370 = vadd.f32 0.0, %v7369
        %v7371 = vpop.f32.mrb[0].mxu0
        %v7372 = vpop.f32.mrb[0].mxu0
        %v7373 = vadd.f32 0.0, %v7372
        %v7374 = vpop.f32.mrb[0].mxu0
        %7375 = vdwg.mxu0
        %7376 = vrot.lane.b32.xlu0 %v1366, 32
        %v7377 = vpop.permute.xlu0 %7376
        %7378 = vrot.lane.b32.xlu0 %v1369, 32
        %v7379 = vpop.permute.xlu0 %7378
        %7380 = vrot.lane.b32.xlu0 %v1372, 32
        %v7381 = vpop.permute.xlu0 %7380
        %7382 = vrot.lane.b32.xlu0 %v1375, 32
        %v7383 = vpop.permute.xlu0 %7382
        %7384 = vrot.lane.b32.xlu0 %v1378, 32
        %v7385 = vpop.permute.xlu0 %7384
        %7386 = vrot.lane.b32.xlu0 %v1381, 32
        %v7387 = vpop.permute.xlu0 %7386
        %7388 = vrot.lane.b32.xlu0 %v1384, 32
        %v7389 = vpop.permute.xlu0 %7388
        %7390 = vrot.lane.b32.xlu0 %v1387, 32
        %v7391 = vpop.permute.xlu0 %7390
        %7400 = vmatprep.subr.bf16.mxu0 0
        %7401 = vmatpush1.bf16.msra.mxu0 %v7377
        %7402 = vmatprep.subr.bf16.mxu0 0
        %7403 = vmatpush1.bf16.msra.mxu0 %v7379
        %7404 = vmatprep.subr.bf16.mxu0 0
        %7405 = vmatpush1.bf16.msra.mxu0 %v7381
        %7406 = vmatprep.subr.bf16.mxu0 0
        %7407 = vmatpush1.bf16.msra.mxu0 %v7383
        %7408 = vmatprep.subr.bf16.mxu0 0
        %7409 = vmatpush1.bf16.msra.mxu0 %v7385
        %7410 = vmatprep.subr.bf16.mxu0 0
        %7411 = vmatpush1.bf16.msra.mxu0 %v7387
        %7412 = vmatprep.subr.bf16.mxu0 0
        %7413 = vmatpush1.bf16.msra.mxu0 %v7389
        %7414 = vmatprep.subr.bf16.mxu0 0
        %7415 = vmatpush1.bf16.msra.mxu0 %v7391
        %7416 = vmatprep.subr.bf16.mxu0 0
        %7417 = vmatpush1.bf16.msra.mxu0 0
        %7418 = vmatprep.subr.bf16.mxu0 0
        %7419 = vmatpush1.bf16.msra.mxu0 0
        %7420 = vmatprep.subr.bf16.mxu0 0
        %7421 = vmatpush1.bf16.msra.mxu0 0
        %7422 = vmatprep.subr.bf16.mxu0 0
        %7423 = vmatpush1.bf16.msra.mxu0 0
        %7424 = vmatprep.subr.bf16.mxu0 0
        %7425 = vmatpush1.bf16.msra.mxu0 0
        %7426 = vmatprep.subr.bf16.mxu0 0
        %7427 = vmatpush1.bf16.msra.mxu0 0
        %7428 = vmatprep.subr.bf16.mxu0 0
        %7429 = vmatpush1.bf16.msra.mxu0 0
        %7430 = vmatprep.subr.bf16.mxu0 0
        %7431 = vmatpush1.bf16.msra.mxu0 0
        %7432 = vmatprep.mubr.bf16.mxu0 0
        %7433 = vmatmul.mubr.bf16.gmra.mrb[0].mxu0 %v7247
        %v7434 = vpop.f32.mrb[0].mxu0
        %v7435 = vadd.f32 0.0, %v7434
        %v7436 = vpop.f32.mrb[0].mxu0
        %v7437 = vpop.f32.mrb[0].mxu0
        %v7438 = vadd.f32 0.0, %v7437
        %v7439 = vpop.f32.mrb[0].mxu0
        %7440 = vmatprep.mubr.bf16.mxu0 0
        %7441 = vmatmul.mubr.bf16.gmra.mrb[0].mxu0 %v7248
        %v7442 = vpop.f32.mrb[0].mxu0
        %v7443 = vadd.f32 0.0, %v7442
        %v7444 = vpop.f32.mrb[0].mxu0
        %v7445 = vpop.f32.mrb[0].mxu0
        %v7446 = vadd.f32 0.0, %v7445
        %v7447 = vpop.f32.mrb[0].mxu0
        %7448 = vmatprep.mubr.bf16.mxu0 0
        %7449 = vmatmul.mubr.bf16.gmra.mrb[0].mxu0 %v7249
        %v7450 = vpop.f32.mrb[0].mxu0
        %v7451 = vadd.f32 0.0, %v7450
        %v7452 = vpop.f32.mrb[0].mxu0
        %v7453 = vpop.f32.mrb[0].mxu0
        %v7454 = vadd.f32 0.0, %v7453
        %v7455 = vpop.f32.mrb[0].mxu0
        %7456 = vmatprep.mubr.bf16.mxu0 0
        %7457 = vmatmul.mubr.bf16.gmra.mrb[0].mxu0 %v7250
        %v7458 = vpop.f32.mrb[0].mxu0
        %v7459 = vadd.f32 0.0, %v7458
        %v7460 = vpop.f32.mrb[0].mxu0
        %v7461 = vpop.f32.mrb[0].mxu0
        %v7462 = vadd.f32 0.0, %v7461
        %v7463 = vpop.f32.mrb[0].mxu0
        %7464 = vmatprep.mubr.bf16.mxu0 0
        %7465 = vmatmul.mubr.bf16.gmra.mrb[0].mxu0 %v7251
        %v7466 = vpop.f32.mrb[0].mxu0
        %v7467 = vadd.f32 0.0, %v7466
        %v7468 = vpop.f32.mrb[0].mxu0
        %v7469 = vpop.f32.mrb[0].mxu0
        %v7470 = vadd.f32 0.0, %v7469
        %v7471 = vpop.f32.mrb[0].mxu0
        %7472 = vmatprep.mubr.bf16.mxu0 0
        %7473 = vmatmul.mubr.bf16.gmra.mrb[0].mxu0 %v7252
        %v7474 = vpop.f32.mrb[0].mxu0
        %v7475 = vadd.f32 0.0, %v7474
        %v7476 = vpop.f32.mrb[0].mxu0
        %v7477 = vpop.f32.mrb[0].mxu0
        %v7478 = vadd.f32 0.0, %v7477
        %v7479 = vpop.f32.mrb[0].mxu0
        %7480 = vmatprep.mubr.bf16.mxu0 0
        %7481 = vmatmul.mubr.bf16.gmra.mrb[0].mxu0 %v7253
        %v7482 = vpop.f32.mrb[0].mxu0
        %v7483 = vadd.f32 0.0, %v7482
        %v7484 = vpop.f32.mrb[0].mxu0
        %v7485 = vpop.f32.mrb[0].mxu0
        %v7486 = vadd.f32 0.0, %v7485
        %v7487 = vpop.f32.mrb[0].mxu0
        %7488 = vmatprep.mubr.bf16.mxu0 0
        %7489 = vmatmul.mubr.bf16.gmra.mrb[0].mxu0 %v7254
        %v7490 = vpop.f32.mrb[0].mxu0
        %v7491 = vadd.f32 0.0, %v7490
        %v7492 = vpop.f32.mrb[0].mxu0
        %v7493 = vpop.f32.mrb[0].mxu0
        %v7494 = vadd.f32 0.0, %v7493
        %v7495 = vpop.f32.mrb[0].mxu0
        %7496 = vdwg.mxu0
        %7497 = vadd.xlane.f32.xlu0 %v7176
        %v7498 = vpop.xlane.xlu0 %7497
        %7499 = vadd.xlane.f32.xlu0 %v7178
        %v7500 = vpop.xlane.xlu0 %7499
        %7501 = vadd.xlane.f32.xlu0 %v7180
        %v7502 = vpop.xlane.xlu0 %7501
        %7503 = vadd.xlane.f32.xlu0 %v7182
        %v7504 = vpop.xlane.xlu0 %7503
        %7505 = vadd.xlane.f32.xlu0 %v7184
        %v7506 = vpop.xlane.xlu0 %7505
        %7507 = vadd.xlane.f32.xlu0 %v7186
        %v7508 = vpop.xlane.xlu0 %7507
        %7509 = vadd.xlane.f32.xlu0 %v7188
        %v7510 = vpop.xlane.xlu0 %7509
        %7511 = vadd.xlane.f32.xlu0 %v7190
        %v7512 = vpop.xlane.xlu0 %7511
        %7513 = vadd.xlane.f32.xlu0 %v7192
        %v7514 = vpop.xlane.xlu0 %7513
        %7515 = vadd.xlane.f32.xlu0 %v7194
        %v7516 = vpop.xlane.xlu0 %7515
        %7517 = vadd.xlane.f32.xlu0 %v7196
        %v7518 = vpop.xlane.xlu0 %7517
        %7519 = vadd.xlane.f32.xlu0 %v7198
        %v7520 = vpop.xlane.xlu0 %7519
        %7521 = vadd.xlane.f32.xlu0 %v7200
        %v7522 = vpop.xlane.xlu0 %7521
        %7523 = vadd.xlane.f32.xlu0 %v7202
        %v7524 = vpop.xlane.xlu0 %7523
        %7525 = vadd.xlane.f32.xlu0 %v7204
        %v7526 = vpop.xlane.xlu0 %7525
        %7527 = vadd.xlane.f32.xlu0 %v7206
        %v7528 = vpop.xlane.xlu0 %7527
        %7529 = vadd.xlane.f32.xlu0 %v7208
        %v7530 = vpop.xlane.xlu0 %7529
        %7531 = vadd.xlane.f32.xlu0 %v7210
        %v7532 = vpop.xlane.xlu0 %7531
        %7533 = vadd.xlane.f32.xlu0 %v7212
        %v7534 = vpop.xlane.xlu0 %7533
        %7535 = vadd.xlane.f32.xlu0 %v7214
        %v7536 = vpop.xlane.xlu0 %7535
        %7537 = vadd.xlane.f32.xlu0 %v7216
        %v7538 = vpop.xlane.xlu0 %7537
        %7539 = vadd.xlane.f32.xlu0 %v7218
        %v7540 = vpop.xlane.xlu0 %7539
        %7541 = vadd.xlane.f32.xlu0 %v7220
        %v7542 = vpop.xlane.xlu0 %7541
        %7543 = vadd.xlane.f32.xlu0 %v7222
        %v7544 = vpop.xlane.xlu0 %7543
        %7545 = vadd.xlane.f32.xlu0 %v7224
        %v7546 = vpop.xlane.xlu0 %7545
        %7547 = vadd.xlane.f32.xlu0 %v7226
        %v7548 = vpop.xlane.xlu0 %7547
        %7549 = vadd.xlane.f32.xlu0 %v7228
        %v7550 = vpop.xlane.xlu0 %7549
        %7551 = vadd.xlane.f32.xlu0 %v7230
        %v7552 = vpop.xlane.xlu0 %7551
        %7553 = vadd.xlane.f32.xlu0 %v7232
        %v7554 = vpop.xlane.xlu0 %7553
        %7555 = vadd.xlane.f32.xlu0 %v7234
        %v7556 = vpop.xlane.xlu0 %7555
        %7557 = vadd.xlane.f32.xlu0 %v7236
        %v7558 = vpop.xlane.xlu0 %7557
        %7559 = vadd.xlane.f32.xlu0 %v7238
        %v7560 = vpop.xlane.xlu0 %7559
        %v7561 = vrcp.pop %v7498
        %v7562 = vrcp.pop %v7500
        %v7563 = vrcp.pop %v7502
        %v7564 = vrcp.pop %v7504
        %v7565 = vrcp.pop %v7506
        %v7566 = vrcp.pop %v7508
        %v7567 = vrcp.pop %v7510
        %v7568 = vrcp.pop %v7512
        %v7569 = vrcp.pop %v7514
        %v7570 = vrcp.pop %v7516
        %v7571 = vrcp.pop %v7518
        %v7572 = vrcp.pop %v7520
        %v7573 = vrcp.pop %v7522
        %v7574 = vrcp.pop %v7524
        %v7575 = vrcp.pop %v7526
        %v7576 = vrcp.pop %v7528
        %v7577 = vrcp.pop %v7530
        %v7578 = vrcp.pop %v7532
        %v7579 = vrcp.pop %v7534
        %v7580 = vrcp.pop %v7536
        %v7581 = vrcp.pop %v7538
        %v7582 = vrcp.pop %v7540
        %v7583 = vrcp.pop %v7542
        %v7584 = vrcp.pop %v7544
        %v7585 = vrcp.pop %v7546
        %v7586 = vrcp.pop %v7548
        %v7587 = vrcp.pop %v7550
        %v7588 = vrcp.pop %v7552
        %v7589 = vrcp.pop %v7554
        %v7590 = vrcp.pop %v7556
        %v7591 = vrcp.pop %v7558
        %v7592 = vrcp.pop %v7560
        %v7593 = vmul.f32 %v7314, %v7561
        %v7594 = vmul.f32 %v7317, %v7562
        %v7595 = vmul.f32 %v7322, %v7563
        %v7596 = vmul.f32 %v7325, %v7564
        %v7597 = vmul.f32 %v7330, %v7565
        %v7598 = vmul.f32 %v7333, %v7566
        %v7599 = vmul.f32 %v7338, %v7567
        %v7600 = vmul.f32 %v7341, %v7568
        %v7601 = vmul.f32 %v7346, %v7569
        %v7602 = vmul.f32 %v7349, %v7570
        %v7603 = vmul.f32 %v7354, %v7571
        %v7604 = vmul.f32 %v7357, %v7572
        %v7605 = vmul.f32 %v7362, %v7573
        %v7606 = vmul.f32 %v7365, %v7574
        %v7607 = vmul.f32 %v7370, %v7575
        %v7608 = vmul.f32 %v7373, %v7576
        %v7609 = vmul.f32 %v7435, %v7577
        %v7610 = vmul.f32 %v7438, %v7578
        %v7611 = vmul.f32 %v7443, %v7579
        %v7612 = vmul.f32 %v7446, %v7580
        %v7613 = vmul.f32 %v7451, %v7581
        %v7614 = vmul.f32 %v7454, %v7582
        %v7615 = vmul.f32 %v7459, %v7583
        %v7616 = vmul.f32 %v7462, %v7584
        %v7617 = vmul.f32 %v7467, %v7585
        %v7618 = vmul.f32 %v7470, %v7586
        %v7619 = vmul.f32 %v7475, %v7587
        %v7620 = vmul.f32 %v7478, %v7588
        %v7621 = vmul.f32 %v7483, %v7589
        %v7622 = vmul.f32 %v7486, %v7590
        %v7623 = vmul.f32 %v7491, %v7591
        %v7624 = vmul.f32 %v7494, %v7592
        %7625 = vrot.lane.b32.xlu0 %v1340, 16
        %v7626 = vpop.permute.xlu0 %7625
        %7627 = vrot.lane.b32.xlu0 %v1343, 16
        %v7628 = vpop.permute.xlu0 %7627
        %7629 = vrot.lane.b32.xlu0 %v1346, 16
        %v7630 = vpop.permute.xlu0 %7629
        %7631 = vrot.lane.b32.xlu0 %v1349, 16
        %v7632 = vpop.permute.xlu0 %7631
        %7633 = vrot.lane.b32.xlu0 %v1352, 16
        %v7634 = vpop.permute.xlu0 %7633
        %7635 = vrot.lane.b32.xlu0 %v1355, 16
        %v7636 = vpop.permute.xlu0 %7635
        %7637 = vrot.lane.b32.xlu0 %v1358, 16
        %v7638 = vpop.permute.xlu0 %7637
        %7639 = vrot.lane.b32.xlu0 %v1361, 16
        %v7640 = vpop.permute.xlu0 %7639
        %7641 = vrot.lane.b32.xlu0 %v1341, 16
        %v7642 = vpop.permute.xlu0 %7641
        %7643 = vrot.lane.b32.xlu0 %v1344, 16
        %v7644 = vpop.permute.xlu0 %7643
        %7645 = vrot.lane.b32.xlu0 %v1347, 16
        %v7646 = vpop.permute.xlu0 %7645
        %7647 = vrot.lane.b32.xlu0 %v1350, 16
        %v7648 = vpop.permute.xlu0 %7647
        %7649 = vrot.lane.b32.xlu0 %v1353, 16
        %v7650 = vpop.permute.xlu0 %7649
        %7651 = vrot.lane.b32.xlu0 %v1356, 16
        %v7652 = vpop.permute.xlu0 %7651
        %7653 = vrot.lane.b32.xlu0 %v1359, 16
        %v7654 = vpop.permute.xlu0 %7653
        %7655 = vrot.lane.b32.xlu0 %v1362, 16
        %v7656 = vpop.permute.xlu0 %7655
        %v7658 = vsel %vm1388, %v7626, 0
        %v7661 = vsel %vm1388, %v7628, 0
        %v7664 = vsel %vm1388, %v7630, 0
        %v7667 = vsel %vm1388, %v7632, 0
        %v7670 = vsel %vm1388, %v7634, 0
        %v7673 = vsel %vm1388, %v7636, 0
        %v7676 = vsel %vm1388, %v7638, 0
        %v7679 = vsel %vm1388, %v7640, 0
        %v7682 = vsel %vm1388, %v7642, 0
        %v7685 = vsel %vm1388, %v7644, 0
        %v7688 = vsel %vm1388, %v7646, 0
        %v7691 = vsel %vm1388, %v7648, 0
        %v7694 = vsel %vm1388, %v7650, 0
        %v7697 = vsel %vm1388, %v7652, 0
        %v7700 = vsel %vm1388, %v7654, 0
        %v7703 = vsel %vm1388, %v7656, 0
        %7705 = vmatprep.subr.bf16.mxu0 0
        %7706 = vmatpush1.bf16.xpose.msra.mxu0 %v7682
        %7707 = vmatprep.subr.bf16.mxu0 0
        %7708 = vmatpush1.bf16.xpose.msra.mxu0 %v7685
        %7709 = vmatprep.subr.bf16.mxu0 0
        %7710 = vmatpush1.bf16.xpose.msra.mxu0 %v7688
        %7711 = vmatprep.subr.bf16.mxu0 0
        %7712 = vmatpush1.bf16.xpose.msra.mxu0 %v7691
        %7713 = vmatprep.subr.bf16.mxu0 0
        %7714 = vmatpush1.bf16.xpose.msra.mxu0 %v7694
        %7715 = vmatprep.subr.bf16.mxu0 0
        %7716 = vmatpush1.bf16.xpose.msra.mxu0 %v7697
        %7717 = vmatprep.subr.bf16.mxu0 0
        %7718 = vmatpush1.bf16.xpose.msra.mxu0 %v7700
        %7719 = vmatprep.subr.bf16.mxu0 0
        %7720 = vmatpush1.bf16.xpose.msra.mxu0 %v7703
        %7721 = vmatprep.subr.bf16.mxu0 0
        %7722 = vmatpush1.bf16.xpose.msra.mxu0 0
        %7723 = vmatprep.subr.bf16.mxu0 0
        %7724 = vmatpush1.bf16.xpose.msra.mxu0 0
        %7725 = vmatprep.subr.bf16.mxu0 0
        %7726 = vmatpush1.bf16.xpose.msra.mxu0 0
        %7727 = vmatprep.subr.bf16.mxu0 0
        %7728 = vmatpush1.bf16.xpose.msra.mxu0 0
        %7729 = vmatprep.subr.bf16.mxu0 0
        %7730 = vmatpush1.bf16.xpose.msra.mxu0 0
        %7731 = vmatprep.subr.bf16.mxu0 0
        %7732 = vmatpush1.bf16.xpose.msra.mxu0 0
        %7733 = vmatprep.subr.bf16.mxu0 0
        %7734 = vmatpush1.bf16.xpose.msra.mxu0 0
        %7735 = vmatprep.subr.bf16.mxu0 0
        %7736 = vmatpush1.bf16.xpose.msra.mxu0 0
        %7737 = vmatprep.mubr.bf16.mxu0 0
        %7738 = vmatmul.mubr.bf16.gmra.mrb[0].mxu0 %v7658
        %v7739 = vpop.f32.mrb[0].mxu0
        %v7740 = vadd.f32 0.0, %v7739
        %v7741 = vpop.f32.mrb[0].mxu0
        %v7742 = vpop.f32.mrb[0].mxu0
        %v7743 = vadd.f32 0.0, %v7742
        %v7744 = vpop.f32.mrb[0].mxu0
        %7745 = vmatprep.mubr.bf16.mxu0 0
        %7746 = vmatmul.mubr.bf16.gmra.mrb[0].mxu0 %v7661
        %v7747 = vpop.f32.mrb[0].mxu0
        %v7748 = vadd.f32 0.0, %v7747
        %v7749 = vpop.f32.mrb[0].mxu0
        %v7750 = vpop.f32.mrb[0].mxu0
        %v7751 = vadd.f32 0.0, %v7750
        %v7752 = vpop.f32.mrb[0].mxu0
        %7753 = vmatprep.mubr.bf16.mxu0 0
        %7754 = vmatmul.mubr.bf16.gmra.mrb[0].mxu0 %v7664
        %v7755 = vpop.f32.mrb[0].mxu0
        %v7756 = vadd.f32 0.0, %v7755
        %v7757 = vpop.f32.mrb[0].mxu0
        %v7758 = vpop.f32.mrb[0].mxu0
        %v7759 = vadd.f32 0.0, %v7758
        %v7760 = vpop.f32.mrb[0].mxu0
        %7761 = vmatprep.mubr.bf16.mxu0 0
        %7762 = vmatmul.mubr.bf16.gmra.mrb[0].mxu0 %v7667
        %v7763 = vpop.f32.mrb[0].mxu0
        %v7764 = vadd.f32 0.0, %v7763
        %v7765 = vpop.f32.mrb[0].mxu0
        %v7766 = vpop.f32.mrb[0].mxu0
        %v7767 = vadd.f32 0.0, %v7766
        %v7768 = vpop.f32.mrb[0].mxu0
        %7769 = vmatprep.mubr.bf16.mxu0 0
        %7770 = vmatmul.mubr.bf16.gmra.mrb[0].mxu0 %v7670
        %v7771 = vpop.f32.mrb[0].mxu0
        %v7772 = vadd.f32 0.0, %v7771
        %v7773 = vpop.f32.mrb[0].mxu0
        %v7774 = vpop.f32.mrb[0].mxu0
        %v7775 = vadd.f32 0.0, %v7774
        %v7776 = vpop.f32.mrb[0].mxu0
        %7777 = vmatprep.mubr.bf16.mxu0 0
        %7778 = vmatmul.mubr.bf16.gmra.mrb[0].mxu0 %v7673
        %v7779 = vpop.f32.mrb[0].mxu0
        %v7780 = vadd.f32 0.0, %v7779
        %v7781 = vpop.f32.mrb[0].mxu0
        %v7782 = vpop.f32.mrb[0].mxu0
        %v7783 = vadd.f32 0.0, %v7782
        %v7784 = vpop.f32.mrb[0].mxu0
        %7785 = vmatprep.mubr.bf16.mxu0 0
        %7786 = vmatmul.mubr.bf16.gmra.mrb[0].mxu0 %v7676
        %v7787 = vpop.f32.mrb[0].mxu0
        %v7788 = vadd.f32 0.0, %v7787
        %v7789 = vpop.f32.mrb[0].mxu0
        %v7790 = vpop.f32.mrb[0].mxu0
        %v7791 = vadd.f32 0.0, %v7790
        %v7792 = vpop.f32.mrb[0].mxu0
        %7793 = vmatprep.mubr.bf16.mxu0 0
        %7794 = vmatmul.mubr.bf16.gmra.mrb[0].mxu0 %v7679
        %v7795 = vpop.f32.mrb[0].mxu0
        %v7796 = vadd.f32 0.0, %v7795
        %v7797 = vpop.f32.mrb[0].mxu0
        %v7798 = vpop.f32.mrb[0].mxu0
        %v7799 = vadd.f32 0.0, %v7798
        %v7800 = vpop.f32.mrb[0].mxu0
        %7801 = vdwg.mxu0
        %7802 = vrot.lane.b32.xlu0 %v1364, 16
        %v7803 = vpop.permute.xlu0 %7802
        %7804 = vrot.lane.b32.xlu0 %v1367, 16
        %v7805 = vpop.permute.xlu0 %7804
        %7806 = vrot.lane.b32.xlu0 %v1370, 16
        %v7807 = vpop.permute.xlu0 %7806
        %7808 = vrot.lane.b32.xlu0 %v1373, 16
        %v7809 = vpop.permute.xlu0 %7808
        %7810 = vrot.lane.b32.xlu0 %v1376, 16
        %v7811 = vpop.permute.xlu0 %7810
        %7812 = vrot.lane.b32.xlu0 %v1379, 16
        %v7813 = vpop.permute.xlu0 %7812
        %7814 = vrot.lane.b32.xlu0 %v1382, 16
        %v7815 = vpop.permute.xlu0 %7814
        %7816 = vrot.lane.b32.xlu0 %v1385, 16
        %v7817 = vpop.permute.xlu0 %7816
        %7818 = vrot.lane.b32.xlu0 %v1365, 16
        %v7819 = vpop.permute.xlu0 %7818
        %7820 = vrot.lane.b32.xlu0 %v1368, 16
        %v7821 = vpop.permute.xlu0 %7820
        %7822 = vrot.lane.b32.xlu0 %v1371, 16
        %v7823 = vpop.permute.xlu0 %7822
        %7824 = vrot.lane.b32.xlu0 %v1374, 16
        %v7825 = vpop.permute.xlu0 %7824
        %7826 = vrot.lane.b32.xlu0 %v1377, 16
        %v7827 = vpop.permute.xlu0 %7826
        %7828 = vrot.lane.b32.xlu0 %v1380, 16
        %v7829 = vpop.permute.xlu0 %7828
        %7830 = vrot.lane.b32.xlu0 %v1383, 16
        %v7831 = vpop.permute.xlu0 %7830
        %7832 = vrot.lane.b32.xlu0 %v1386, 16
        %v7833 = vpop.permute.xlu0 %7832
        %v7835 = vsel %vm1388, %v7803, 0
        %v7838 = vsel %vm1388, %v7805, 0
        %v7841 = vsel %vm1388, %v7807, 0
        %v7844 = vsel %vm1388, %v7809, 0
        %v7847 = vsel %vm1388, %v7811, 0
        %v7850 = vsel %vm1388, %v7813, 0
        %v7853 = vsel %vm1388, %v7815, 0
        %v7856 = vsel %vm1388, %v7817, 0
        %v7859 = vsel %vm1388, %v7819, 0
        %v7862 = vsel %vm1388, %v7821, 0
        %v7865 = vsel %vm1388, %v7823, 0
        %v7868 = vsel %vm1388, %v7825, 0
        %v7871 = vsel %vm1388, %v7827, 0
        %v7874 = vsel %vm1388, %v7829, 0
        %v7877 = vsel %vm1388, %v7831, 0
        %v7880 = vsel %vm1388, %v7833, 0
        %7882 = vmatprep.subr.bf16.mxu0 0
        %7883 = vmatpush1.bf16.xpose.msra.mxu0 %v7859
        %7884 = vmatprep.subr.bf16.mxu0 0
        %7885 = vmatpush1.bf16.xpose.msra.mxu0 %v7862
        %7886 = vmatprep.subr.bf16.mxu0 0
        %7887 = vmatpush1.bf16.xpose.msra.mxu0 %v7865
        %7888 = vmatprep.subr.bf16.mxu0 0
        %7889 = vmatpush1.bf16.xpose.msra.mxu0 %v7868
        %7890 = vmatprep.subr.bf16.mxu0 0
        %7891 = vmatpush1.bf16.xpose.msra.mxu0 %v7871
        %7892 = vmatprep.subr.bf16.mxu0 0
        %7893 = vmatpush1.bf16.xpose.msra.mxu0 %v7874
        %7894 = vmatprep.subr.bf16.mxu0 0
        %7895 = vmatpush1.bf16.xpose.msra.mxu0 %v7877
        %7896 = vmatprep.subr.bf16.mxu0 0
        %7897 = vmatpush1.bf16.xpose.msra.mxu0 %v7880
        %7898 = vmatprep.subr.bf16.mxu0 0
        %7899 = vmatpush1.bf16.xpose.msra.mxu0 0
        %7900 = vmatprep.subr.bf16.mxu0 0
        %7901 = vmatpush1.bf16.xpose.msra.mxu0 0
        %7902 = vmatprep.subr.bf16.mxu0 0
        %7903 = vmatpush1.bf16.xpose.msra.mxu0 0
        %7904 = vmatprep.subr.bf16.mxu0 0
        %7905 = vmatpush1.bf16.xpose.msra.mxu0 0
        %7906 = vmatprep.subr.bf16.mxu0 0
        %7907 = vmatpush1.bf16.xpose.msra.mxu0 0
        %7908 = vmatprep.subr.bf16.mxu0 0
        %7909 = vmatpush1.bf16.xpose.msra.mxu0 0
        %7910 = vmatprep.subr.bf16.mxu0 0
        %7911 = vmatpush1.bf16.xpose.msra.mxu0 0
        %7912 = vmatprep.subr.bf16.mxu0 0
        %7913 = vmatpush1.bf16.xpose.msra.mxu0 0
        %7914 = vmatprep.mubr.bf16.mxu0 0
        %7915 = vmatmul.mubr.bf16.gmra.mrb[0].mxu0 %v7835
        %v7916 = vpop.f32.mrb[0].mxu0
        %v7917 = vadd.f32 0.0, %v7916
        %v7918 = vpop.f32.mrb[0].mxu0
        %v7919 = vpop.f32.mrb[0].mxu0
        %v7920 = vadd.f32 0.0, %v7919
        %v7921 = vpop.f32.mrb[0].mxu0
        %7922 = vmatprep.mubr.bf16.mxu0 0
        %7923 = vmatmul.mubr.bf16.gmra.mrb[0].mxu0 %v7838
        %v7924 = vpop.f32.mrb[0].mxu0
        %v7925 = vadd.f32 0.0, %v7924
        %v7926 = vpop.f32.mrb[0].mxu0
        %v7927 = vpop.f32.mrb[0].mxu0
        %v7928 = vadd.f32 0.0, %v7927
        %v7929 = vpop.f32.mrb[0].mxu0
        %7930 = vmatprep.mubr.bf16.mxu0 0
        %7931 = vmatmul.mubr.bf16.gmra.mrb[0].mxu0 %v7841
        %v7932 = vpop.f32.mrb[0].mxu0
        %v7933 = vadd.f32 0.0, %v7932
        %v7934 = vpop.f32.mrb[0].mxu0
        %v7935 = vpop.f32.mrb[0].mxu0
        %v7936 = vadd.f32 0.0, %v7935
        %v7937 = vpop.f32.mrb[0].mxu0
        %7938 = vmatprep.mubr.bf16.mxu0 0
        %7939 = vmatmul.mubr.bf16.gmra.mrb[0].mxu0 %v7844
        %v7940 = vpop.f32.mrb[0].mxu0
        %v7941 = vadd.f32 0.0, %v7940
        %v7942 = vpop.f32.mrb[0].mxu0
        %v7943 = vpop.f32.mrb[0].mxu0
        %v7944 = vadd.f32 0.0, %v7943
        %v7945 = vpop.f32.mrb[0].mxu0
        %7946 = vmatprep.mubr.bf16.mxu0 0
        %7947 = vmatmul.mubr.bf16.gmra.mrb[0].mxu0 %v7847
        %v7948 = vpop.f32.mrb[0].mxu0
        %v7949 = vadd.f32 0.0, %v7948
        %v7950 = vpop.f32.mrb[0].mxu0
        %v7951 = vpop.f32.mrb[0].mxu0
        %v7952 = vadd.f32 0.0, %v7951
        %v7953 = vpop.f32.mrb[0].mxu0
        %7954 = vmatprep.mubr.bf16.mxu0 0
        %7955 = vmatmul.mubr.bf16.gmra.mrb[0].mxu0 %v7850
        %v7956 = vpop.f32.mrb[0].mxu0
        %v7957 = vadd.f32 0.0, %v7956
        %v7958 = vpop.f32.mrb[0].mxu0
        %v7959 = vpop.f32.mrb[0].mxu0
        %v7960 = vadd.f32 0.0, %v7959
        %v7961 = vpop.f32.mrb[0].mxu0
        %7962 = vmatprep.mubr.bf16.mxu0 0
        %7963 = vmatmul.mubr.bf16.gmra.mrb[0].mxu0 %v7853
        %v7964 = vpop.f32.mrb[0].mxu0
        %v7965 = vadd.f32 0.0, %v7964
        %v7966 = vpop.f32.mrb[0].mxu0
        %v7967 = vpop.f32.mrb[0].mxu0
        %v7968 = vadd.f32 0.0, %v7967
        %v7969 = vpop.f32.mrb[0].mxu0
        %7970 = vmatprep.mubr.bf16.mxu0 0
        %7971 = vmatmul.mubr.bf16.gmra.mrb[0].mxu0 %v7856
        %v7972 = vpop.f32.mrb[0].mxu0
        %v7973 = vadd.f32 0.0, %v7972
        %v7974 = vpop.f32.mrb[0].mxu0
        %v7975 = vpop.f32.mrb[0].mxu0
        %v7976 = vadd.f32 0.0, %v7975
        %v7977 = vpop.f32.mrb[0].mxu0
        %7978 = vdwg.mxu0
        %7979 = vmax.xlane.f32.xlu0 %v7740
        %v7980 = vpop.xlane.xlu0 %7979
        %7981 = vmax.xlane.f32.xlu0 %v7743
        %v7982 = vpop.xlane.xlu0 %7981
        %7983 = vmax.xlane.f32.xlu0 %v7748
        %v7984 = vpop.xlane.xlu0 %7983
        %7985 = vmax.xlane.f32.xlu0 %v7751
        %v7986 = vpop.xlane.xlu0 %7985
        %7987 = vmax.xlane.f32.xlu0 %v7756
        %v7988 = vpop.xlane.xlu0 %7987
        %7989 = vmax.xlane.f32.xlu0 %v7759
        %v7990 = vpop.xlane.xlu0 %7989
        %7991 = vmax.xlane.f32.xlu0 %v7764
        %v7992 = vpop.xlane.xlu0 %7991
        %7993 = vmax.xlane.f32.xlu0 %v7767
        %v7994 = vpop.xlane.xlu0 %7993
        %7995 = vmax.xlane.f32.xlu0 %v7772
        %v7996 = vpop.xlane.xlu0 %7995
        %7997 = vmax.xlane.f32.xlu0 %v7775
        %v7998 = vpop.xlane.xlu0 %7997
        %7999 = vmax.xlane.f32.xlu0 %v7780
        %v8000 = vpop.xlane.xlu0 %7999
        %8001 = vmax.xlane.f32.xlu0 %v7783
        %v8002 = vpop.xlane.xlu0 %8001
        %8003 = vmax.xlane.f32.xlu0 %v7788
        %v8004 = vpop.xlane.xlu0 %8003
        %8005 = vmax.xlane.f32.xlu0 %v7791
        %v8006 = vpop.xlane.xlu0 %8005
        %8007 = vmax.xlane.f32.xlu0 %v7796
        %v8008 = vpop.xlane.xlu0 %8007
        %8009 = vmax.xlane.f32.xlu0 %v7799
        %v8010 = vpop.xlane.xlu0 %8009
        %8011 = vmax.xlane.f32.xlu0 %v7917
        %v8012 = vpop.xlane.xlu0 %8011
        %8013 = vmax.xlane.f32.xlu0 %v7920
        %v8014 = vpop.xlane.xlu0 %8013
        %8015 = vmax.xlane.f32.xlu0 %v7925
        %v8016 = vpop.xlane.xlu0 %8015
        %8017 = vmax.xlane.f32.xlu0 %v7928
        %v8018 = vpop.xlane.xlu0 %8017
        %8019 = vmax.xlane.f32.xlu0 %v7933
        %v8020 = vpop.xlane.xlu0 %8019
        %8021 = vmax.xlane.f32.xlu0 %v7936
        %v8022 = vpop.xlane.xlu0 %8021
        %8023 = vmax.xlane.f32.xlu0 %v7941
        %v8024 = vpop.xlane.xlu0 %8023
        %8025 = vmax.xlane.f32.xlu0 %v7944
        %v8026 = vpop.xlane.xlu0 %8025
        %8027 = vmax.xlane.f32.xlu0 %v7949
        %v8028 = vpop.xlane.xlu0 %8027
        %8029 = vmax.xlane.f32.xlu0 %v7952
        %v8030 = vpop.xlane.xlu0 %8029
        %8031 = vmax.xlane.f32.xlu0 %v7957
        %v8032 = vpop.xlane.xlu0 %8031
        %8033 = vmax.xlane.f32.xlu0 %v7960
        %v8034 = vpop.xlane.xlu0 %8033
        %8035 = vmax.xlane.f32.xlu0 %v7965
        %v8036 = vpop.xlane.xlu0 %8035
        %8037 = vmax.xlane.f32.xlu0 %v7968
        %v8038 = vpop.xlane.xlu0 %8037
        %8039 = vmax.xlane.f32.xlu0 %v7973
        %v8040 = vpop.xlane.xlu0 %8039
        %8041 = vmax.xlane.f32.xlu0 %v7976
        %v8042 = vpop.xlane.xlu0 %8041
        %v8043 = vsub.f32 %v7740, %v7980
        %v8044 = vsub.f32 %v7743, %v7982
        %v8045 = vsub.f32 %v7748, %v7984
        %v8046 = vsub.f32 %v7751, %v7986
        %v8047 = vsub.f32 %v7756, %v7988
        %v8048 = vsub.f32 %v7759, %v7990
        %v8049 = vsub.f32 %v7764, %v7992
        %v8050 = vsub.f32 %v7767, %v7994
        %v8051 = vsub.f32 %v7772, %v7996
        %v8052 = vsub.f32 %v7775, %v7998
        %v8053 = vsub.f32 %v7780, %v8000
        %v8054 = vsub.f32 %v7783, %v8002
        %v8055 = vsub.f32 %v7788, %v8004
        %v8056 = vsub.f32 %v7791, %v8006
        %v8057 = vsub.f32 %v7796, %v8008
        %v8058 = vsub.f32 %v7799, %v8010
        %v8059 = vsub.f32 %v7917, %v8012
        %v8060 = vsub.f32 %v7920, %v8014
        %v8061 = vsub.f32 %v7925, %v8016
        %v8062 = vsub.f32 %v7928, %v8018
        %v8063 = vsub.f32 %v7933, %v8020
        %v8064 = vsub.f32 %v7936, %v8022
        %v8065 = vsub.f32 %v7941, %v8024
        %v8066 = vsub.f32 %v7944, %v8026
        %v8067 = vsub.f32 %v7949, %v8028
        %v8068 = vsub.f32 %v7952, %v8030
        %v8069 = vsub.f32 %v7957, %v8032
        %v8070 = vsub.f32 %v7960, %v8034
        %v8071 = vsub.f32 %v7965, %v8036
        %v8072 = vsub.f32 %v7968, %v8038
        %v8073 = vsub.f32 %v7973, %v8040
        %v8074 = vsub.f32 %v7976, %v8042
        %v8075 = vmul.f32 %v8043, 1.442695
        %v8076 = vpow.pop %v8075
        %v8077 = vmul.f32 %v8044, 1.442695
        %v8078 = vpow.pop %v8077
        %v8079 = vmul.f32 %v8045, 1.442695
        %v8080 = vpow.pop %v8079
        %v8081 = vmul.f32 %v8046, 1.442695
        %v8082 = vpow.pop %v8081
        %v8083 = vmul.f32 %v8047, 1.442695
        %v8084 = vpow.pop %v8083
        %v8085 = vmul.f32 %v8048, 1.442695
        %v8086 = vpow.pop %v8085
        %v8087 = vmul.f32 %v8049, 1.442695
        %v8088 = vpow.pop %v8087
        %v8089 = vmul.f32 %v8050, 1.442695
        %v8090 = vpow.pop %v8089
        %v8091 = vmul.f32 %v8051, 1.442695
        %v8092 = vpow.pop %v8091
        %v8093 = vmul.f32 %v8052, 1.442695
        %v8094 = vpow.pop %v8093
        %v8095 = vmul.f32 %v8053, 1.442695
        %v8096 = vpow.pop %v8095
        %v8097 = vmul.f32 %v8054, 1.442695
        %v8098 = vpow.pop %v8097
        %v8099 = vmul.f32 %v8055, 1.442695
        %v8100 = vpow.pop %v8099
        %v8101 = vmul.f32 %v8056, 1.442695
        %v8102 = vpow.pop %v8101
        %v8103 = vmul.f32 %v8057, 1.442695
        %v8104 = vpow.pop %v8103
        %v8105 = vmul.f32 %v8058, 1.442695
        %v8106 = vpow.pop %v8105
        %v8107 = vmul.f32 %v8059, 1.442695
        %v8108 = vpow.pop %v8107
        %v8109 = vmul.f32 %v8060, 1.442695
        %v8110 = vpow.pop %v8109
        %v8111 = vmul.f32 %v8061, 1.442695
        %v8112 = vpow.pop %v8111
        %v8113 = vmul.f32 %v8062, 1.442695
        %v8114 = vpow.pop %v8113
        %v8115 = vmul.f32 %v8063, 1.442695
        %v8116 = vpow.pop %v8115
        %v8117 = vmul.f32 %v8064, 1.442695
        %v8118 = vpow.pop %v8117
        %v8119 = vmul.f32 %v8065, 1.442695
        %v8120 = vpow.pop %v8119
        %v8121 = vmul.f32 %v8066, 1.442695
        %v8122 = vpow.pop %v8121
        %v8123 = vmul.f32 %v8067, 1.442695
        %v8124 = vpow.pop %v8123
        %v8125 = vmul.f32 %v8068, 1.442695
        %v8126 = vpow.pop %v8125
        %v8127 = vmul.f32 %v8069, 1.442695
        %v8128 = vpow.pop %v8127
        %v8129 = vmul.f32 %v8070, 1.442695
        %v8130 = vpow.pop %v8129
        %v8131 = vmul.f32 %v8071, 1.442695
        %v8132 = vpow.pop %v8131
        %v8133 = vmul.f32 %v8072, 1.442695
        %v8134 = vpow.pop %v8133
        %v8135 = vmul.f32 %v8073, 1.442695
        %v8136 = vpow.pop %v8135
        %v8137 = vmul.f32 %v8074, 1.442695
        %v8138 = vpow.pop %v8137
        %v8139 = vpack.c.bf16 %v8078, %v8076
        %v8140 = vpack.c.bf16 %v8082, %v8080
        %v8141 = vpack.c.bf16 %v8086, %v8084
        %v8142 = vpack.c.bf16 %v8090, %v8088
        %v8143 = vpack.c.bf16 %v8094, %v8092
        %v8144 = vpack.c.bf16 %v8098, %v8096
        %v8145 = vpack.c.bf16 %v8102, %v8100
        %v8146 = vpack.c.bf16 %v8106, %v8104
        %v8147 = vpack.c.bf16 %v8110, %v8108
        %v8148 = vpack.c.bf16 %v8114, %v8112
        %v8149 = vpack.c.bf16 %v8118, %v8116
        %v8150 = vpack.c.bf16 %v8122, %v8120
        %v8151 = vpack.c.bf16 %v8126, %v8124
        %v8152 = vpack.c.bf16 %v8130, %v8128
        %v8153 = vpack.c.bf16 %v8134, %v8132
        %v8154 = vpack.c.bf16 %v8138, %v8136
        %8155 = vrot.lane.b32.xlu0 %v1342, 16
        %v8156 = vpop.permute.xlu0 %8155
        %8157 = vrot.lane.b32.xlu0 %v1345, 16
        %v8158 = vpop.permute.xlu0 %8157
        %8159 = vrot.lane.b32.xlu0 %v1348, 16
        %v8160 = vpop.permute.xlu0 %8159
        %8161 = vrot.lane.b32.xlu0 %v1351, 16
        %v8162 = vpop.permute.xlu0 %8161
        %8163 = vrot.lane.b32.xlu0 %v1354, 16
        %v8164 = vpop.permute.xlu0 %8163
        %8165 = vrot.lane.b32.xlu0 %v1357, 16
        %v8166 = vpop.permute.xlu0 %8165
        %8167 = vrot.lane.b32.xlu0 %v1360, 16
        %v8168 = vpop.permute.xlu0 %8167
        %8169 = vrot.lane.b32.xlu0 %v1363, 16
        %v8170 = vpop.permute.xlu0 %8169
        %8179 = vmatprep.subr.bf16.mxu0 0
        %8180 = vmatpush1.bf16.msra.mxu0 %v8156
        %8181 = vmatprep.subr.bf16.mxu0 0
        %8182 = vmatpush1.bf16.msra.mxu0 %v8158
        %8183 = vmatprep.subr.bf16.mxu0 0
        %8184 = vmatpush1.bf16.msra.mxu0 %v8160
        %8185 = vmatprep.subr.bf16.mxu0 0
        %8186 = vmatpush1.bf16.msra.mxu0 %v8162
        %8187 = vmatprep.subr.bf16.mxu0 0
        %8188 = vmatpush1.bf16.msra.mxu0 %v8164
        %8189 = vmatprep.subr.bf16.mxu0 0
        %8190 = vmatpush1.bf16.msra.mxu0 %v8166
        %8191 = vmatprep.subr.bf16.mxu0 0
        %8192 = vmatpush1.bf16.msra.mxu0 %v8168
        %8193 = vmatprep.subr.bf16.mxu0 0
        %8194 = vmatpush1.bf16.msra.mxu0 %v8170
        %8195 = vmatprep.subr.bf16.mxu0 0
        %8196 = vmatpush1.bf16.msra.mxu0 0
        %8197 = vmatprep.subr.bf16.mxu0 0
        %8198 = vmatpush1.bf16.msra.mxu0 0
        %8199 = vmatprep.subr.bf16.mxu0 0
        %8200 = vmatpush1.bf16.msra.mxu0 0
        %8201 = vmatprep.subr.bf16.mxu0 0
        %8202 = vmatpush1.bf16.msra.mxu0 0
        %8203 = vmatprep.subr.bf16.mxu0 0
        %8204 = vmatpush1.bf16.msra.mxu0 0
        %8205 = vmatprep.subr.bf16.mxu0 0
        %8206 = vmatpush1.bf16.msra.mxu0 0
        %8207 = vmatprep.subr.bf16.mxu0 0
        %8208 = vmatpush1.bf16.msra.mxu0 0
        %8209 = vmatprep.subr.bf16.mxu0 0
        %8210 = vmatpush1.bf16.msra.mxu0 0
        %8211 = vmatprep.mubr.bf16.mxu0 0
        %8212 = vmatmul.mubr.bf16.gmra.mrb[0].mxu0 %v8139
        %v8213 = vpop.f32.mrb[0].mxu0
        %v8214 = vadd.f32 0.0, %v8213
        %v8215 = vpop.f32.mrb[0].mxu0
        %v8216 = vpop.f32.mrb[0].mxu0
        %v8217 = vadd.f32 0.0, %v8216
        %v8218 = vpop.f32.mrb[0].mxu0
        %8219 = vmatprep.mubr.bf16.mxu0 0
        %8220 = vmatmul.mubr.bf16.gmra.mrb[0].mxu0 %v8140
        %v8221 = vpop.f32.mrb[0].mxu0
        %v8222 = vadd.f32 0.0, %v8221
        %v8223 = vpop.f32.mrb[0].mxu0
        %v8224 = vpop.f32.mrb[0].mxu0
        %v8225 = vadd.f32 0.0, %v8224
        %v8226 = vpop.f32.mrb[0].mxu0
        %8227 = vmatprep.mubr.bf16.mxu0 0
        %8228 = vmatmul.mubr.bf16.gmra.mrb[0].mxu0 %v8141
        %v8229 = vpop.f32.mrb[0].mxu0
        %v8230 = vadd.f32 0.0, %v8229
        %v8231 = vpop.f32.mrb[0].mxu0
        %v8232 = vpop.f32.mrb[0].mxu0
        %v8233 = vadd.f32 0.0, %v8232
        %v8234 = vpop.f32.mrb[0].mxu0
        %8235 = vmatprep.mubr.bf16.mxu0 0
        %8236 = vmatmul.mubr.bf16.gmra.mrb[0].mxu0 %v8142
        %v8237 = vpop.f32.mrb[0].mxu0
        %v8238 = vadd.f32 0.0, %v8237
        %v8239 = vpop.f32.mrb[0].mxu0
        %v8240 = vpop.f32.mrb[0].mxu0
        %v8241 = vadd.f32 0.0, %v8240
        %v8242 = vpop.f32.mrb[0].mxu0
        %8243 = vmatprep.mubr.bf16.mxu0 0
        %8244 = vmatmul.mubr.bf16.gmra.mrb[0].mxu0 %v8143
        %v8245 = vpop.f32.mrb[0].mxu0
        %v8246 = vadd.f32 0.0, %v8245
        %v8247 = vpop.f32.mrb[0].mxu0
        %v8248 = vpop.f32.mrb[0].mxu0
        %v8249 = vadd.f32 0.0, %v8248
        %v8250 = vpop.f32.mrb[0].mxu0
        %8251 = vmatprep.mubr.bf16.mxu0 0
        %8252 = vmatmul.mubr.bf16.gmra.mrb[0].mxu0 %v8144
        %v8253 = vpop.f32.mrb[0].mxu0
        %v8254 = vadd.f32 0.0, %v8253
        %v8255 = vpop.f32.mrb[0].mxu0
        %v8256 = vpop.f32.mrb[0].mxu0
        %v8257 = vadd.f32 0.0, %v8256
        %v8258 = vpop.f32.mrb[0].mxu0
        %8259 = vmatprep.mubr.bf16.mxu0 0
        %8260 = vmatmul.mubr.bf16.gmra.mrb[0].mxu0 %v8145
        %v8261 = vpop.f32.mrb[0].mxu0
        %v8262 = vadd.f32 0.0, %v8261
        %v8263 = vpop.f32.mrb[0].mxu0
        %v8264 = vpop.f32.mrb[0].mxu0
        %v8265 = vadd.f32 0.0, %v8264
        %v8266 = vpop.f32.mrb[0].mxu0
        %8267 = vmatprep.mubr.bf16.mxu0 0
        %8268 = vmatmul.mubr.bf16.gmra.mrb[0].mxu0 %v8146
        %v8269 = vpop.f32.mrb[0].mxu0
        %v8270 = vadd.f32 0.0, %v8269
        %v8271 = vpop.f32.mrb[0].mxu0
        %v8272 = vpop.f32.mrb[0].mxu0
        %v8273 = vadd.f32 0.0, %v8272
        %v8274 = vpop.f32.mrb[0].mxu0
        %8275 = vdwg.mxu0
        %8276 = vrot.lane.b32.xlu0 %v1366, 16
        %v8277 = vpop.permute.xlu0 %8276
        %8278 = vrot.lane.b32.xlu0 %v1369, 16
        %v8279 = vpop.permute.xlu0 %8278
        %8280 = vrot.lane.b32.xlu0 %v1372, 16
        %v8281 = vpop.permute.xlu0 %8280
        %8282 = vrot.lane.b32.xlu0 %v1375, 16
        %v8283 = vpop.permute.xlu0 %8282
        %8284 = vrot.lane.b32.xlu0 %v1378, 16
        %v8285 = vpop.permute.xlu0 %8284
        %8286 = vrot.lane.b32.xlu0 %v1381, 16
        %v8287 = vpop.permute.xlu0 %8286
        %8288 = vrot.lane.b32.xlu0 %v1384, 16
        %v8289 = vpop.permute.xlu0 %8288
        %8290 = vrot.lane.b32.xlu0 %v1387, 16
        %v8291 = vpop.permute.xlu0 %8290
        %8300 = vmatprep.subr.bf16.mxu0 0
        %8301 = vmatpush1.bf16.msra.mxu0 %v8277
        %8302 = vmatprep.subr.bf16.mxu0 0
        %8303 = vmatpush1.bf16.msra.mxu0 %v8279
        %8304 = vmatprep.subr.bf16.mxu0 0
        %8305 = vmatpush1.bf16.msra.mxu0 %v8281
        %8306 = vmatprep.subr.bf16.mxu0 0
        %8307 = vmatpush1.bf16.msra.mxu0 %v8283
        %8308 = vmatprep.subr.bf16.mxu0 0
        %8309 = vmatpush1.bf16.msra.mxu0 %v8285
        %8310 = vmatprep.subr.bf16.mxu0 0
        %8311 = vmatpush1.bf16.msra.mxu0 %v8287
        %8312 = vmatprep.subr.bf16.mxu0 0
        %8313 = vmatpush1.bf16.msra.mxu0 %v8289
        %8314 = vmatprep.subr.bf16.mxu0 0
        %8315 = vmatpush1.bf16.msra.mxu0 %v8291
        %8316 = vmatprep.subr.bf16.mxu0 0
        %8317 = vmatpush1.bf16.msra.mxu0 0
        %8318 = vmatprep.subr.bf16.mxu0 0
        %8319 = vmatpush1.bf16.msra.mxu0 0
        %8320 = vmatprep.subr.bf16.mxu0 0
        %8321 = vmatpush1.bf16.msra.mxu0 0
        %8322 = vmatprep.subr.bf16.mxu0 0
        %8323 = vmatpush1.bf16.msra.mxu0 0
        %8324 = vmatprep.subr.bf16.mxu0 0
        %8325 = vmatpush1.bf16.msra.mxu0 0
        %8326 = vmatprep.subr.bf16.mxu0 0
        %8327 = vmatpush1.bf16.msra.mxu0 0
        %8328 = vmatprep.subr.bf16.mxu0 0
        %8329 = vmatpush1.bf16.msra.mxu0 0
        %8330 = vmatprep.subr.bf16.mxu0 0
        %8331 = vmatpush1.bf16.msra.mxu0 0
        %8332 = vmatprep.mubr.bf16.mxu0 0
        %8333 = vmatmul.mubr.bf16.gmra.mrb[0].mxu0 %v8147
        %v8334 = vpop.f32.mrb[0].mxu0
        %v8335 = vadd.f32 0.0, %v8334
        %v8336 = vpop.f32.mrb[0].mxu0
        %v8337 = vpop.f32.mrb[0].mxu0
        %v8338 = vadd.f32 0.0, %v8337
        %v8339 = vpop.f32.mrb[0].mxu0
        %8340 = vmatprep.mubr.bf16.mxu0 0
        %8341 = vmatmul.mubr.bf16.gmra.mrb[0].mxu0 %v8148
        %v8342 = vpop.f32.mrb[0].mxu0
        %v8343 = vadd.f32 0.0, %v8342
        %v8344 = vpop.f32.mrb[0].mxu0
        %v8345 = vpop.f32.mrb[0].mxu0
        %v8346 = vadd.f32 0.0, %v8345
        %v8347 = vpop.f32.mrb[0].mxu0
        %8348 = vmatprep.mubr.bf16.mxu0 0
        %8349 = vmatmul.mubr.bf16.gmra.mrb[0].mxu0 %v8149
        %v8350 = vpop.f32.mrb[0].mxu0
        %v8351 = vadd.f32 0.0, %v8350
        %v8352 = vpop.f32.mrb[0].mxu0
        %v8353 = vpop.f32.mrb[0].mxu0
        %v8354 = vadd.f32 0.0, %v8353
        %v8355 = vpop.f32.mrb[0].mxu0
        %8356 = vmatprep.mubr.bf16.mxu0 0
        %8357 = vmatmul.mubr.bf16.gmra.mrb[0].mxu0 %v8150
        %v8358 = vpop.f32.mrb[0].mxu0
        %v8359 = vadd.f32 0.0, %v8358
        %v8360 = vpop.f32.mrb[0].mxu0
        %v8361 = vpop.f32.mrb[0].mxu0
        %v8362 = vadd.f32 0.0, %v8361
        %v8363 = vpop.f32.mrb[0].mxu0
        %8364 = vmatprep.mubr.bf16.mxu0 0
        %8365 = vmatmul.mubr.bf16.gmra.mrb[0].mxu0 %v8151
        %v8366 = vpop.f32.mrb[0].mxu0
        %v8367 = vadd.f32 0.0, %v8366
        %v8368 = vpop.f32.mrb[0].mxu0
        %v8369 = vpop.f32.mrb[0].mxu0
        %v8370 = vadd.f32 0.0, %v8369
        %v8371 = vpop.f32.mrb[0].mxu0
        %8372 = vmatprep.mubr.bf16.mxu0 0
        %8373 = vmatmul.mubr.bf16.gmra.mrb[0].mxu0 %v8152
        %v8374 = vpop.f32.mrb[0].mxu0
        %v8375 = vadd.f32 0.0, %v8374
        %v8376 = vpop.f32.mrb[0].mxu0
        %v8377 = vpop.f32.mrb[0].mxu0
        %v8378 = vadd.f32 0.0, %v8377
        %v8379 = vpop.f32.mrb[0].mxu0
        %8380 = vmatprep.mubr.bf16.mxu0 0
        %8381 = vmatmul.mubr.bf16.gmra.mrb[0].mxu0 %v8153
        %v8382 = vpop.f32.mrb[0].mxu0
        %v8383 = vadd.f32 0.0, %v8382
        %v8384 = vpop.f32.mrb[0].mxu0
        %v8385 = vpop.f32.mrb[0].mxu0
        %v8386 = vadd.f32 0.0, %v8385
        %v8387 = vpop.f32.mrb[0].mxu0
        %8388 = vmatprep.mubr.bf16.mxu0 0
        %8389 = vmatmul.mubr.bf16.gmra.mrb[0].mxu0 %v8154
        %v8390 = vpop.f32.mrb[0].mxu0
        %v8391 = vadd.f32 0.0, %v8390
        %v8392 = vpop.f32.mrb[0].mxu0
        %v8393 = vpop.f32.mrb[0].mxu0
        %v8394 = vadd.f32 0.0, %v8393
        %v8395 = vpop.f32.mrb[0].mxu0
        %8396 = vdwg.mxu0
        %8397 = vadd.xlane.f32.xlu0 %v8076
        %v8398 = vpop.xlane.xlu0 %8397
        %8399 = vadd.xlane.f32.xlu0 %v8078
        %v8400 = vpop.xlane.xlu0 %8399
        %8401 = vadd.xlane.f32.xlu0 %v8080
        %v8402 = vpop.xlane.xlu0 %8401
        %8403 = vadd.xlane.f32.xlu0 %v8082
        %v8404 = vpop.xlane.xlu0 %8403
        %8405 = vadd.xlane.f32.xlu0 %v8084
        %v8406 = vpop.xlane.xlu0 %8405
        %8407 = vadd.xlane.f32.xlu0 %v8086
        %v8408 = vpop.xlane.xlu0 %8407
        %8409 = vadd.xlane.f32.xlu0 %v8088
        %v8410 = vpop.xlane.xlu0 %8409
        %8411 = vadd.xlane.f32.xlu0 %v8090
        %v8412 = vpop.xlane.xlu0 %8411
        %8413 = vadd.xlane.f32.xlu0 %v8092
        %v8414 = vpop.xlane.xlu0 %8413
        %8415 = vadd.xlane.f32.xlu0 %v8094
        %v8416 = vpop.xlane.xlu0 %8415
        %8417 = vadd.xlane.f32.xlu0 %v8096
        %v8418 = vpop.xlane.xlu0 %8417
        %8419 = vadd.xlane.f32.xlu0 %v8098
        %v8420 = vpop.xlane.xlu0 %8419
        %8421 = vadd.xlane.f32.xlu0 %v8100
        %v8422 = vpop.xlane.xlu0 %8421
        %8423 = vadd.xlane.f32.xlu0 %v8102
        %v8424 = vpop.xlane.xlu0 %8423
        %8425 = vadd.xlane.f32.xlu0 %v8104
        %v8426 = vpop.xlane.xlu0 %8425
        %8427 = vadd.xlane.f32.xlu0 %v8106
        %v8428 = vpop.xlane.xlu0 %8427
        %8429 = vadd.xlane.f32.xlu0 %v8108
        %v8430 = vpop.xlane.xlu0 %8429
        %8431 = vadd.xlane.f32.xlu0 %v8110
        %v8432 = vpop.xlane.xlu0 %8431
        %8433 = vadd.xlane.f32.xlu0 %v8112
        %v8434 = vpop.xlane.xlu0 %8433
        %8435 = vadd.xlane.f32.xlu0 %v8114
        %v8436 = vpop.xlane.xlu0 %8435
        %8437 = vadd.xlane.f32.xlu0 %v8116
        %v8438 = vpop.xlane.xlu0 %8437
        %8439 = vadd.xlane.f32.xlu0 %v8118
        %v8440 = vpop.xlane.xlu0 %8439
        %8441 = vadd.xlane.f32.xlu0 %v8120
        %v8442 = vpop.xlane.xlu0 %8441
        %8443 = vadd.xlane.f32.xlu0 %v8122
        %v8444 = vpop.xlane.xlu0 %8443
        %8445 = vadd.xlane.f32.xlu0 %v8124
        %v8446 = vpop.xlane.xlu0 %8445
        %8447 = vadd.xlane.f32.xlu0 %v8126
        %v8448 = vpop.xlane.xlu0 %8447
        %8449 = vadd.xlane.f32.xlu0 %v8128
        %v8450 = vpop.xlane.xlu0 %8449
        %8451 = vadd.xlane.f32.xlu0 %v8130
        %v8452 = vpop.xlane.xlu0 %8451
        %8453 = vadd.xlane.f32.xlu0 %v8132
        %v8454 = vpop.xlane.xlu0 %8453
        %8455 = vadd.xlane.f32.xlu0 %v8134
        %v8456 = vpop.xlane.xlu0 %8455
        %8457 = vadd.xlane.f32.xlu0 %v8136
        %v8458 = vpop.xlane.xlu0 %8457
        %8459 = vadd.xlane.f32.xlu0 %v8138
        %v8460 = vpop.xlane.xlu0 %8459
        %v8461 = vrcp.pop %v8398
        %v8462 = vrcp.pop %v8400
        %v8463 = vrcp.pop %v8402
        %v8464 = vrcp.pop %v8404
        %v8465 = vrcp.pop %v8406
        %v8466 = vrcp.pop %v8408
        %v8467 = vrcp.pop %v8410
        %v8468 = vrcp.pop %v8412
        %v8469 = vrcp.pop %v8414
        %v8470 = vrcp.pop %v8416
        %v8471 = vrcp.pop %v8418
        %v8472 = vrcp.pop %v8420
        %v8473 = vrcp.pop %v8422
        %v8474 = vrcp.pop %v8424
        %v8475 = vrcp.pop %v8426
        %v8476 = vrcp.pop %v8428
        %v8477 = vrcp.pop %v8430
        %v8478 = vrcp.pop %v8432
        %v8479 = vrcp.pop %v8434
        %v8480 = vrcp.pop %v8436
        %v8481 = vrcp.pop %v8438
        %v8482 = vrcp.pop %v8440
        %v8483 = vrcp.pop %v8442
        %v8484 = vrcp.pop %v8444
        %v8485 = vrcp.pop %v8446
        %v8486 = vrcp.pop %v8448
        %v8487 = vrcp.pop %v8450
        %v8488 = vrcp.pop %v8452
        %v8489 = vrcp.pop %v8454
        %v8490 = vrcp.pop %v8456
        %v8491 = vrcp.pop %v8458
        %v8492 = vrcp.pop %v8460
        %v8493 = vmul.f32 %v8214, %v8461
        %v8494 = vmul.f32 %v8217, %v8462
        %v8495 = vmul.f32 %v8222, %v8463
        %v8496 = vmul.f32 %v8225, %v8464
        %v8497 = vmul.f32 %v8230, %v8465
        %v8498 = vmul.f32 %v8233, %v8466
        %v8499 = vmul.f32 %v8238, %v8467
        %v8500 = vmul.f32 %v8241, %v8468
        %v8501 = vmul.f32 %v8246, %v8469
        %v8502 = vmul.f32 %v8249, %v8470
        %v8503 = vmul.f32 %v8254, %v8471
        %v8504 = vmul.f32 %v8257, %v8472
        %v8505 = vmul.f32 %v8262, %v8473
        %v8506 = vmul.f32 %v8265, %v8474
        %v8507 = vmul.f32 %v8270, %v8475
        %v8508 = vmul.f32 %v8273, %v8476
        %v8509 = vmul.f32 %v8335, %v8477
        %v8510 = vmul.f32 %v8338, %v8478
        %v8511 = vmul.f32 %v8343, %v8479
        %v8512 = vmul.f32 %v8346, %v8480
        %v8513 = vmul.f32 %v8351, %v8481
        %v8514 = vmul.f32 %v8354, %v8482
        %v8515 = vmul.f32 %v8359, %v8483
        %v8516 = vmul.f32 %v8362, %v8484
        %v8517 = vmul.f32 %v8367, %v8485
        %v8518 = vmul.f32 %v8370, %v8486
        %v8519 = vmul.f32 %v8375, %v8487
        %v8520 = vmul.f32 %v8378, %v8488
        %v8521 = vmul.f32 %v8383, %v8489
        %v8522 = vmul.f32 %v8386, %v8490
        %v8523 = vmul.f32 %v8391, %v8491
        %v8524 = vmul.f32 %v8394, %v8492
        %8557 = vrot.lane.b32.xlu0 %v3093, 16
        %v8558 = vpop.permute.xlu0 %8557
        %8559 = vrot.lane.b32.xlu0 %v3094, 16
        %v8560 = vpop.permute.xlu0 %8559
        %8561 = vrot.lane.b32.xlu0 %v3095, 16
        %v8562 = vpop.permute.xlu0 %8561
        %8563 = vrot.lane.b32.xlu0 %v3096, 16
        %v8564 = vpop.permute.xlu0 %8563
        %8565 = vrot.lane.b32.xlu0 %v3097, 16
        %v8566 = vpop.permute.xlu0 %8565
        %8567 = vrot.lane.b32.xlu0 %v3098, 16
        %v8568 = vpop.permute.xlu0 %8567
        %8569 = vrot.lane.b32.xlu0 %v3099, 16
        %v8570 = vpop.permute.xlu0 %8569
        %8571 = vrot.lane.b32.xlu0 %v3100, 16
        %v8572 = vpop.permute.xlu0 %8571
        %8573 = vrot.lane.b32.xlu0 %v3101, 16
        %v8574 = vpop.permute.xlu0 %8573
        %8575 = vrot.lane.b32.xlu0 %v3102, 16
        %v8576 = vpop.permute.xlu0 %8575
        %8577 = vrot.lane.b32.xlu0 %v3103, 16
        %v8578 = vpop.permute.xlu0 %8577
        %8579 = vrot.lane.b32.xlu0 %v3104, 16
        %v8580 = vpop.permute.xlu0 %8579
        %8581 = vrot.lane.b32.xlu0 %v3105, 16
        %v8582 = vpop.permute.xlu0 %8581
        %8583 = vrot.lane.b32.xlu0 %v3106, 16
        %v8584 = vpop.permute.xlu0 %8583
        %8585 = vrot.lane.b32.xlu0 %v3107, 16
        %v8586 = vpop.permute.xlu0 %8585
        %8587 = vrot.lane.b32.xlu0 %v3108, 16
        %v8588 = vpop.permute.xlu0 %8587
        %8589 = vrot.lane.b32.xlu0 %v3109, 16
        %v8590 = vpop.permute.xlu0 %8589
        %8591 = vrot.lane.b32.xlu0 %v3110, 16
        %v8592 = vpop.permute.xlu0 %8591
        %8593 = vrot.lane.b32.xlu0 %v3111, 16
        %v8594 = vpop.permute.xlu0 %8593
        %8595 = vrot.lane.b32.xlu0 %v3112, 16
        %v8596 = vpop.permute.xlu0 %8595
        %8597 = vrot.lane.b32.xlu0 %v3113, 16
        %v8598 = vpop.permute.xlu0 %8597
        %8599 = vrot.lane.b32.xlu0 %v3114, 16
        %v8600 = vpop.permute.xlu0 %8599
        %8601 = vrot.lane.b32.xlu0 %v3115, 16
        %v8602 = vpop.permute.xlu0 %8601
        %8603 = vrot.lane.b32.xlu0 %v3116, 16
        %v8604 = vpop.permute.xlu0 %8603
        %8605 = vrot.lane.b32.xlu0 %v3117, 16
        %v8606 = vpop.permute.xlu0 %8605
        %8607 = vrot.lane.b32.xlu0 %v3118, 16
        %v8608 = vpop.permute.xlu0 %8607
        %8609 = vrot.lane.b32.xlu0 %v3119, 16
        %v8610 = vpop.permute.xlu0 %8609
        %8611 = vrot.lane.b32.xlu0 %v3120, 16
        %v8612 = vpop.permute.xlu0 %8611
        %8613 = vrot.lane.b32.xlu0 %v3121, 16
        %v8614 = vpop.permute.xlu0 %8613
        %8615 = vrot.lane.b32.xlu0 %v3122, 16
        %v8616 = vpop.permute.xlu0 %8615
        %8617 = vrot.lane.b32.xlu0 %v3123, 16
        %v8618 = vpop.permute.xlu0 %8617
        %8619 = vrot.lane.b32.xlu0 %v3124, 16
        %v8620 = vpop.permute.xlu0 %8619
        %8685 = vrot.lane.b32.xlu0 %v3993, 32
        %v8686 = vpop.permute.xlu0 %8685
        %8687 = vrot.lane.b32.xlu0 %v3994, 32
        %v8688 = vpop.permute.xlu0 %8687
        %8689 = vrot.lane.b32.xlu0 %v3995, 32
        %v8690 = vpop.permute.xlu0 %8689
        %8691 = vrot.lane.b32.xlu0 %v3996, 32
        %v8692 = vpop.permute.xlu0 %8691
        %8693 = vrot.lane.b32.xlu0 %v3997, 32
        %v8694 = vpop.permute.xlu0 %8693
        %8695 = vrot.lane.b32.xlu0 %v3998, 32
        %v8696 = vpop.permute.xlu0 %8695
        %8697 = vrot.lane.b32.xlu0 %v3999, 32
        %v8698 = vpop.permute.xlu0 %8697
        %8699 = vrot.lane.b32.xlu0 %v4000, 32
        %v8700 = vpop.permute.xlu0 %8699
        %8701 = vrot.lane.b32.xlu0 %v4001, 32
        %v8702 = vpop.permute.xlu0 %8701
        %8703 = vrot.lane.b32.xlu0 %v4002, 32
        %v8704 = vpop.permute.xlu0 %8703
        %8705 = vrot.lane.b32.xlu0 %v4003, 32
        %v8706 = vpop.permute.xlu0 %8705
        %8707 = vrot.lane.b32.xlu0 %v4004, 32
        %v8708 = vpop.permute.xlu0 %8707
        %8709 = vrot.lane.b32.xlu0 %v4005, 32
        %v8710 = vpop.permute.xlu0 %8709
        %8711 = vrot.lane.b32.xlu0 %v4006, 32
        %v8712 = vpop.permute.xlu0 %8711
        %8713 = vrot.lane.b32.xlu0 %v4007, 32
        %v8714 = vpop.permute.xlu0 %8713
        %8715 = vrot.lane.b32.xlu0 %v4008, 32
        %v8716 = vpop.permute.xlu0 %8715
        %8717 = vrot.lane.b32.xlu0 %v4009, 32
        %v8718 = vpop.permute.xlu0 %8717
        %8719 = vrot.lane.b32.xlu0 %v4010, 32
        %v8720 = vpop.permute.xlu0 %8719
        %8721 = vrot.lane.b32.xlu0 %v4011, 32
        %v8722 = vpop.permute.xlu0 %8721
        %8723 = vrot.lane.b32.xlu0 %v4012, 32
        %v8724 = vpop.permute.xlu0 %8723
        %8725 = vrot.lane.b32.xlu0 %v4013, 32
        %v8726 = vpop.permute.xlu0 %8725
        %8727 = vrot.lane.b32.xlu0 %v4014, 32
        %v8728 = vpop.permute.xlu0 %8727
        %8729 = vrot.lane.b32.xlu0 %v4015, 32
        %v8730 = vpop.permute.xlu0 %8729
        %8731 = vrot.lane.b32.xlu0 %v4016, 32
        %v8732 = vpop.permute.xlu0 %8731
        %8733 = vrot.lane.b32.xlu0 %v4017, 32
        %v8734 = vpop.permute.xlu0 %8733
        %8735 = vrot.lane.b32.xlu0 %v4018, 32
        %v8736 = vpop.permute.xlu0 %8735
        %8737 = vrot.lane.b32.xlu0 %v4019, 32
        %v8738 = vpop.permute.xlu0 %8737
        %8739 = vrot.lane.b32.xlu0 %v4020, 32
        %v8740 = vpop.permute.xlu0 %8739
        %8741 = vrot.lane.b32.xlu0 %v4021, 32
        %v8742 = vpop.permute.xlu0 %8741
        %8743 = vrot.lane.b32.xlu0 %v4022, 32
        %v8744 = vpop.permute.xlu0 %8743
        %8745 = vrot.lane.b32.xlu0 %v4023, 32
        %v8746 = vpop.permute.xlu0 %8745
        %8747 = vrot.lane.b32.xlu0 %v4024, 32
        %v8748 = vpop.permute.xlu0 %8747
        %8813 = vrot.lane.b32.xlu0 %v4893, 48
        %v8814 = vpop.permute.xlu0 %8813
        %8815 = vrot.lane.b32.xlu0 %v4894, 48
        %v8816 = vpop.permute.xlu0 %8815
        %8817 = vrot.lane.b32.xlu0 %v4895, 48
        %v8818 = vpop.permute.xlu0 %8817
        %8819 = vrot.lane.b32.xlu0 %v4896, 48
        %v8820 = vpop.permute.xlu0 %8819
        %8821 = vrot.lane.b32.xlu0 %v4897, 48
        %v8822 = vpop.permute.xlu0 %8821
        %8823 = vrot.lane.b32.xlu0 %v4898, 48
        %v8824 = vpop.permute.xlu0 %8823
        %8825 = vrot.lane.b32.xlu0 %v4899, 48
        %v8826 = vpop.permute.xlu0 %8825
        %8827 = vrot.lane.b32.xlu0 %v4900, 48
        %v8828 = vpop.permute.xlu0 %8827
        %8829 = vrot.lane.b32.xlu0 %v4901, 48
        %v8830 = vpop.permute.xlu0 %8829
        %8831 = vrot.lane.b32.xlu0 %v4902, 48
        %v8832 = vpop.permute.xlu0 %8831
        %8833 = vrot.lane.b32.xlu0 %v4903, 48
        %v8834 = vpop.permute.xlu0 %8833
        %8835 = vrot.lane.b32.xlu0 %v4904, 48
        %v8836 = vpop.permute.xlu0 %8835
        %8837 = vrot.lane.b32.xlu0 %v4905, 48
        %v8838 = vpop.permute.xlu0 %8837
        %8839 = vrot.lane.b32.xlu0 %v4906, 48
        %v8840 = vpop.permute.xlu0 %8839
        %8841 = vrot.lane.b32.xlu0 %v4907, 48
        %v8842 = vpop.permute.xlu0 %8841
        %8843 = vrot.lane.b32.xlu0 %v4908, 48
        %v8844 = vpop.permute.xlu0 %8843
        %8845 = vrot.lane.b32.xlu0 %v4909, 48
        %v8846 = vpop.permute.xlu0 %8845
        %8847 = vrot.lane.b32.xlu0 %v4910, 48
        %v8848 = vpop.permute.xlu0 %8847
        %8849 = vrot.lane.b32.xlu0 %v4911, 48
        %v8850 = vpop.permute.xlu0 %8849
        %8851 = vrot.lane.b32.xlu0 %v4912, 48
        %v8852 = vpop.permute.xlu0 %8851
        %8853 = vrot.lane.b32.xlu0 %v4913, 48
        %v8854 = vpop.permute.xlu0 %8853
        %8855 = vrot.lane.b32.xlu0 %v4914, 48
        %v8856 = vpop.permute.xlu0 %8855
        %8857 = vrot.lane.b32.xlu0 %v4915, 48
        %v8858 = vpop.permute.xlu0 %8857
        %8859 = vrot.lane.b32.xlu0 %v4916, 48
        %v8860 = vpop.permute.xlu0 %8859
        %8861 = vrot.lane.b32.xlu0 %v4917, 48
        %v8862 = vpop.permute.xlu0 %8861
        %8863 = vrot.lane.b32.xlu0 %v4918, 48
        %v8864 = vpop.permute.xlu0 %8863
        %8865 = vrot.lane.b32.xlu0 %v4919, 48
        %v8866 = vpop.permute.xlu0 %8865
        %8867 = vrot.lane.b32.xlu0 %v4920, 48
        %v8868 = vpop.permute.xlu0 %8867
        %8869 = vrot.lane.b32.xlu0 %v4921, 48
        %v8870 = vpop.permute.xlu0 %8869
        %8871 = vrot.lane.b32.xlu0 %v4922, 48
        %v8872 = vpop.permute.xlu0 %8871
        %8873 = vrot.lane.b32.xlu0 %v4923, 48
        %v8874 = vpop.permute.xlu0 %8873
        %8875 = vrot.lane.b32.xlu0 %v4924, 48
        %v8876 = vpop.permute.xlu0 %8875
        %8941 = vrot.lane.b32.xlu0 %v5793, 64
        %v8942 = vpop.permute.xlu0 %8941
        %8943 = vrot.lane.b32.xlu0 %v5794, 64
        %v8944 = vpop.permute.xlu0 %8943
        %8945 = vrot.lane.b32.xlu0 %v5795, 64
        %v8946 = vpop.permute.xlu0 %8945
        %8947 = vrot.lane.b32.xlu0 %v5796, 64
        %v8948 = vpop.permute.xlu0 %8947
        %8949 = vrot.lane.b32.xlu0 %v5797, 64
        %v8950 = vpop.permute.xlu0 %8949
        %8951 = vrot.lane.b32.xlu0 %v5798, 64
        %v8952 = vpop.permute.xlu0 %8951
        %8953 = vrot.lane.b32.xlu0 %v5799, 64
        %v8954 = vpop.permute.xlu0 %8953
        %8955 = vrot.lane.b32.xlu0 %v5800, 64
        %v8956 = vpop.permute.xlu0 %8955
        %8957 = vrot.lane.b32.xlu0 %v5801, 64
        %v8958 = vpop.permute.xlu0 %8957
        %8959 = vrot.lane.b32.xlu0 %v5802, 64
        %v8960 = vpop.permute.xlu0 %8959
        %8961 = vrot.lane.b32.xlu0 %v5803, 64
        %v8962 = vpop.permute.xlu0 %8961
        %8963 = vrot.lane.b32.xlu0 %v5804, 64
        %v8964 = vpop.permute.xlu0 %8963
        %8965 = vrot.lane.b32.xlu0 %v5805, 64
        %v8966 = vpop.permute.xlu0 %8965
        %8967 = vrot.lane.b32.xlu0 %v5806, 64
        %v8968 = vpop.permute.xlu0 %8967
        %8969 = vrot.lane.b32.xlu0 %v5807, 64
        %v8970 = vpop.permute.xlu0 %8969
        %8971 = vrot.lane.b32.xlu0 %v5808, 64
        %v8972 = vpop.permute.xlu0 %8971
        %8973 = vrot.lane.b32.xlu0 %v5809, 64
        %v8974 = vpop.permute.xlu0 %8973
        %8975 = vrot.lane.b32.xlu0 %v5810, 64
        %v8976 = vpop.permute.xlu0 %8975
        %8977 = vrot.lane.b32.xlu0 %v5811, 64
        %v8978 = vpop.permute.xlu0 %8977
        %8979 = vrot.lane.b32.xlu0 %v5812, 64
        %v8980 = vpop.permute.xlu0 %8979
        %8981 = vrot.lane.b32.xlu0 %v5813, 64
        %v8982 = vpop.permute.xlu0 %8981
        %8983 = vrot.lane.b32.xlu0 %v5814, 64
        %v8984 = vpop.permute.xlu0 %8983
        %8985 = vrot.lane.b32.xlu0 %v5815, 64
        %v8986 = vpop.permute.xlu0 %8985
        %8987 = vrot.lane.b32.xlu0 %v5816, 64
        %v8988 = vpop.permute.xlu0 %8987
        %8989 = vrot.lane.b32.xlu0 %v5817, 64
        %v8990 = vpop.permute.xlu0 %8989
        %8991 = vrot.lane.b32.xlu0 %v5818, 64
        %v8992 = vpop.permute.xlu0 %8991
        %8993 = vrot.lane.b32.xlu0 %v5819, 64
        %v8994 = vpop.permute.xlu0 %8993
        %8995 = vrot.lane.b32.xlu0 %v5820, 64
        %v8996 = vpop.permute.xlu0 %8995
        %8997 = vrot.lane.b32.xlu0 %v5821, 64
        %v8998 = vpop.permute.xlu0 %8997
        %8999 = vrot.lane.b32.xlu0 %v5822, 64
        %v9000 = vpop.permute.xlu0 %8999
        %9001 = vrot.lane.b32.xlu0 %v5823, 64
        %v9002 = vpop.permute.xlu0 %9001
        %9003 = vrot.lane.b32.xlu0 %v5824, 64
        %v9004 = vpop.permute.xlu0 %9003
        %9069 = vrot.lane.b32.xlu0 %v6693, 80
        %v9070 = vpop.permute.xlu0 %9069
        %9071 = vrot.lane.b32.xlu0 %v6694, 80
        %v9072 = vpop.permute.xlu0 %9071
        %9073 = vrot.lane.b32.xlu0 %v6695, 80
        %v9074 = vpop.permute.xlu0 %9073
        %9075 = vrot.lane.b32.xlu0 %v6696, 80
        %v9076 = vpop.permute.xlu0 %9075
        %9077 = vrot.lane.b32.xlu0 %v6697, 80
        %v9078 = vpop.permute.xlu0 %9077
        %9079 = vrot.lane.b32.xlu0 %v6698, 80
        %v9080 = vpop.permute.xlu0 %9079
        %9081 = vrot.lane.b32.xlu0 %v6699, 80
        %v9082 = vpop.permute.xlu0 %9081
        %9083 = vrot.lane.b32.xlu0 %v6700, 80
        %v9084 = vpop.permute.xlu0 %9083
        %9085 = vrot.lane.b32.xlu0 %v6701, 80
        %v9086 = vpop.permute.xlu0 %9085
        %9087 = vrot.lane.b32.xlu0 %v6702, 80
        %v9088 = vpop.permute.xlu0 %9087
        %9089 = vrot.lane.b32.xlu0 %v6703, 80
        %v9090 = vpop.permute.xlu0 %9089
        %9091 = vrot.lane.b32.xlu0 %v6704, 80
        %v9092 = vpop.permute.xlu0 %9091
        %9093 = vrot.lane.b32.xlu0 %v6705, 80
        %v9094 = vpop.permute.xlu0 %9093
        %9095 = vrot.lane.b32.xlu0 %v6706, 80
        %v9096 = vpop.permute.xlu0 %9095
        %9097 = vrot.lane.b32.xlu0 %v6707, 80
        %v9098 = vpop.permute.xlu0 %9097
        %9099 = vrot.lane.b32.xlu0 %v6708, 80
        %v9100 = vpop.permute.xlu0 %9099
        %9101 = vrot.lane.b32.xlu0 %v6709, 80
        %v9102 = vpop.permute.xlu0 %9101
        %9103 = vrot.lane.b32.xlu0 %v6710, 80
        %v9104 = vpop.permute.xlu0 %9103
        %9105 = vrot.lane.b32.xlu0 %v6711, 80
        %v9106 = vpop.permute.xlu0 %9105
        %9107 = vrot.lane.b32.xlu0 %v6712, 80
        %v9108 = vpop.permute.xlu0 %9107
        %9109 = vrot.lane.b32.xlu0 %v6713, 80
        %v9110 = vpop.permute.xlu0 %9109
        %9111 = vrot.lane.b32.xlu0 %v6714, 80
        %v9112 = vpop.permute.xlu0 %9111
        %9113 = vrot.lane.b32.xlu0 %v6715, 80
        %v9114 = vpop.permute.xlu0 %9113
        %9115 = vrot.lane.b32.xlu0 %v6716, 80
        %v9116 = vpop.permute.xlu0 %9115
        %9117 = vrot.lane.b32.xlu0 %v6717, 80
        %v9118 = vpop.permute.xlu0 %9117
        %9119 = vrot.lane.b32.xlu0 %v6718, 80
        %v9120 = vpop.permute.xlu0 %9119
        %9121 = vrot.lane.b32.xlu0 %v6719, 80
        %v9122 = vpop.permute.xlu0 %9121
        %9123 = vrot.lane.b32.xlu0 %v6720, 80
        %v9124 = vpop.permute.xlu0 %9123
        %9125 = vrot.lane.b32.xlu0 %v6721, 80
        %v9126 = vpop.permute.xlu0 %9125
        %9127 = vrot.lane.b32.xlu0 %v6722, 80
        %v9128 = vpop.permute.xlu0 %9127
        %9129 = vrot.lane.b32.xlu0 %v6723, 80
        %v9130 = vpop.permute.xlu0 %9129
        %9131 = vrot.lane.b32.xlu0 %v6724, 80
        %v9132 = vpop.permute.xlu0 %9131
        %9197 = vrot.lane.b32.xlu0 %v7593, 96
        %v9198 = vpop.permute.xlu0 %9197
        %9199 = vrot.lane.b32.xlu0 %v7594, 96
        %v9200 = vpop.permute.xlu0 %9199
        %9201 = vrot.lane.b32.xlu0 %v7595, 96
        %v9202 = vpop.permute.xlu0 %9201
        %9203 = vrot.lane.b32.xlu0 %v7596, 96
        %v9204 = vpop.permute.xlu0 %9203
        %9205 = vrot.lane.b32.xlu0 %v7597, 96
        %v9206 = vpop.permute.xlu0 %9205
        %9207 = vrot.lane.b32.xlu0 %v7598, 96
        %v9208 = vpop.permute.xlu0 %9207
        %9209 = vrot.lane.b32.xlu0 %v7599, 96
        %v9210 = vpop.permute.xlu0 %9209
        %9211 = vrot.lane.b32.xlu0 %v7600, 96
        %v9212 = vpop.permute.xlu0 %9211
        %9213 = vrot.lane.b32.xlu0 %v7601, 96
        %v9214 = vpop.permute.xlu0 %9213
        %9215 = vrot.lane.b32.xlu0 %v7602, 96
        %v9216 = vpop.permute.xlu0 %9215
        %9217 = vrot.lane.b32.xlu0 %v7603, 96
        %v9218 = vpop.permute.xlu0 %9217
        %9219 = vrot.lane.b32.xlu0 %v7604, 96
        %v9220 = vpop.permute.xlu0 %9219
        %9221 = vrot.lane.b32.xlu0 %v7605, 96
        %v9222 = vpop.permute.xlu0 %9221
        %9223 = vrot.lane.b32.xlu0 %v7606, 96
        %v9224 = vpop.permute.xlu0 %9223
        %9225 = vrot.lane.b32.xlu0 %v7607, 96
        %v9226 = vpop.permute.xlu0 %9225
        %9227 = vrot.lane.b32.xlu0 %v7608, 96
        %v9228 = vpop.permute.xlu0 %9227
        %9229 = vrot.lane.b32.xlu0 %v7609, 96
        %v9230 = vpop.permute.xlu0 %9229
        %9231 = vrot.lane.b32.xlu0 %v7610, 96
        %v9232 = vpop.permute.xlu0 %9231
        %9233 = vrot.lane.b32.xlu0 %v7611, 96
        %v9234 = vpop.permute.xlu0 %9233
        %9235 = vrot.lane.b32.xlu0 %v7612, 96
        %v9236 = vpop.permute.xlu0 %9235
        %9237 = vrot.lane.b32.xlu0 %v7613, 96
        %v9238 = vpop.permute.xlu0 %9237
        %9239 = vrot.lane.b32.xlu0 %v7614, 96
        %v9240 = vpop.permute.xlu0 %9239
        %9241 = vrot.lane.b32.xlu0 %v7615, 96
        %v9242 = vpop.permute.xlu0 %9241
        %9243 = vrot.lane.b32.xlu0 %v7616, 96
        %v9244 = vpop.permute.xlu0 %9243
        %9245 = vrot.lane.b32.xlu0 %v7617, 96
        %v9246 = vpop.permute.xlu0 %9245
        %9247 = vrot.lane.b32.xlu0 %v7618, 96
        %v9248 = vpop.permute.xlu0 %9247
        %9249 = vrot.lane.b32.xlu0 %v7619, 96
        %v9250 = vpop.permute.xlu0 %9249
        %9251 = vrot.lane.b32.xlu0 %v7620, 96
        %v9252 = vpop.permute.xlu0 %9251
        %9253 = vrot.lane.b32.xlu0 %v7621, 96
        %v9254 = vpop.permute.xlu0 %9253
        %9255 = vrot.lane.b32.xlu0 %v7622, 96
        %v9256 = vpop.permute.xlu0 %9255
        %9257 = vrot.lane.b32.xlu0 %v7623, 96
        %v9258 = vpop.permute.xlu0 %9257
        %9259 = vrot.lane.b32.xlu0 %v7624, 96
        %v9260 = vpop.permute.xlu0 %9259
        %9325 = vrot.lane.b32.xlu0 %v8493, 112
        %v9326 = vpop.permute.xlu0 %9325
        %9327 = vrot.lane.b32.xlu0 %v8494, 112
        %v9328 = vpop.permute.xlu0 %9327
        %9329 = vrot.lane.b32.xlu0 %v8495, 112
        %v9330 = vpop.permute.xlu0 %9329
        %9331 = vrot.lane.b32.xlu0 %v8496, 112
        %v9332 = vpop.permute.xlu0 %9331
        %9333 = vrot.lane.b32.xlu0 %v8497, 112
        %v9334 = vpop.permute.xlu0 %9333
        %9335 = vrot.lane.b32.xlu0 %v8498, 112
        %v9336 = vpop.permute.xlu0 %9335
        %9337 = vrot.lane.b32.xlu0 %v8499, 112
        %v9338 = vpop.permute.xlu0 %9337
        %9339 = vrot.lane.b32.xlu0 %v8500, 112
        %v9340 = vpop.permute.xlu0 %9339
        %9341 = vrot.lane.b32.xlu0 %v8501, 112
        %v9342 = vpop.permute.xlu0 %9341
        %9343 = vrot.lane.b32.xlu0 %v8502, 112
        %v9344 = vpop.permute.xlu0 %9343
        %9345 = vrot.lane.b32.xlu0 %v8503, 112
        %v9346 = vpop.permute.xlu0 %9345
        %9347 = vrot.lane.b32.xlu0 %v8504, 112
        %v9348 = vpop.permute.xlu0 %9347
        %9349 = vrot.lane.b32.xlu0 %v8505, 112
        %v9350 = vpop.permute.xlu0 %9349
        %9351 = vrot.lane.b32.xlu0 %v8506, 112
        %v9352 = vpop.permute.xlu0 %9351
        %9353 = vrot.lane.b32.xlu0 %v8507, 112
        %v9354 = vpop.permute.xlu0 %9353
        %9355 = vrot.lane.b32.xlu0 %v8508, 112
        %v9356 = vpop.permute.xlu0 %9355
        %9357 = vrot.lane.b32.xlu0 %v8509, 112
        %v9358 = vpop.permute.xlu0 %9357
        %9359 = vrot.lane.b32.xlu0 %v8510, 112
        %v9360 = vpop.permute.xlu0 %9359
        %9361 = vrot.lane.b32.xlu0 %v8511, 112
        %v9362 = vpop.permute.xlu0 %9361
        %9363 = vrot.lane.b32.xlu0 %v8512, 112
        %v9364 = vpop.permute.xlu0 %9363
        %9365 = vrot.lane.b32.xlu0 %v8513, 112
        %v9366 = vpop.permute.xlu0 %9365
        %9367 = vrot.lane.b32.xlu0 %v8514, 112
        %v9368 = vpop.permute.xlu0 %9367
        %9369 = vrot.lane.b32.xlu0 %v8515, 112
        %v9370 = vpop.permute.xlu0 %9369
        %9371 = vrot.lane.b32.xlu0 %v8516, 112
        %v9372 = vpop.permute.xlu0 %9371
        %9373 = vrot.lane.b32.xlu0 %v8517, 112
        %v9374 = vpop.permute.xlu0 %9373
        %9375 = vrot.lane.b32.xlu0 %v8518, 112
        %v9376 = vpop.permute.xlu0 %9375
        %9377 = vrot.lane.b32.xlu0 %v8519, 112
        %v9378 = vpop.permute.xlu0 %9377
        %9379 = vrot.lane.b32.xlu0 %v8520, 112
        %v9380 = vpop.permute.xlu0 %9379
        %9381 = vrot.lane.b32.xlu0 %v8521, 112
        %v9382 = vpop.permute.xlu0 %9381
        %9383 = vrot.lane.b32.xlu0 %v8522, 112
        %v9384 = vpop.permute.xlu0 %9383
        %9385 = vrot.lane.b32.xlu0 %v8523, 112
        %v9386 = vpop.permute.xlu0 %9385
        %9387 = vrot.lane.b32.xlu0 %v8524, 112
        %v9388 = vpop.permute.xlu0 %9387
        %v9421 = vsel %vm1388, %v2145, %v8558
        %v9422 = vsel %vm1388, %v2146, %v8560
        %v9423 = vsel %vm1388, %v2147, %v8562
        %v9424 = vsel %vm1388, %v2148, %v8564
        %v9425 = vsel %vm1388, %v2149, %v8566
        %v9426 = vsel %vm1388, %v2150, %v8568
        %v9427 = vsel %vm1388, %v2151, %v8570
        %v9428 = vsel %vm1388, %v2152, %v8572
        %v9429 = vsel %vm1388, %v2153, %v8574
        %v9430 = vsel %vm1388, %v2154, %v8576
        %v9431 = vsel %vm1388, %v2155, %v8578
        %v9432 = vsel %vm1388, %v2156, %v8580
        %v9433 = vsel %vm1388, %v2157, %v8582
        %v9434 = vsel %vm1388, %v2158, %v8584
        %v9435 = vsel %vm1388, %v2159, %v8586
        %v9436 = vsel %vm1388, %v2160, %v8588
        %v9437 = vsel %vm1388, %v2161, %v8590
        %v9438 = vsel %vm1388, %v2162, %v8592
        %v9439 = vsel %vm1388, %v2163, %v8594
        %v9440 = vsel %vm1388, %v2164, %v8596
        %v9441 = vsel %vm1388, %v2165, %v8598
        %v9442 = vsel %vm1388, %v2166, %v8600
        %v9443 = vsel %vm1388, %v2167, %v8602
        %v9444 = vsel %vm1388, %v2168, %v8604
        %v9445 = vsel %vm1388, %v2169, %v8606
        %v9446 = vsel %vm1388, %v2170, %v8608
        %v9447 = vsel %vm1388, %v2171, %v8610
        %v9448 = vsel %vm1388, %v2172, %v8612
        %v9449 = vsel %vm1388, %v2173, %v8614
        %v9450 = vsel %vm1388, %v2174, %v8616
        %v9451 = vsel %vm1388, %v2175, %v8618
        %v9452 = vsel %vm1388, %v2176, %v8620
        %vm9453 = vcmask 261120
        %v9454 = vsel %vm9453, %v9421, %v8686
        %v9455 = vsel %vm9453, %v9422, %v8688
        %v9456 = vsel %vm9453, %v9423, %v8690
        %v9457 = vsel %vm9453, %v9424, %v8692
        %v9458 = vsel %vm9453, %v9425, %v8694
        %v9459 = vsel %vm9453, %v9426, %v8696
        %v9460 = vsel %vm9453, %v9427, %v8698
        %v9461 = vsel %vm9453, %v9428, %v8700
        %v9462 = vsel %vm9453, %v9429, %v8702
        %v9463 = vsel %vm9453, %v9430, %v8704
        %v9464 = vsel %vm9453, %v9431, %v8706
        %v9465 = vsel %vm9453, %v9432, %v8708
        %v9466 = vsel %vm9453, %v9433, %v8710
        %v9467 = vsel %vm9453, %v9434, %v8712
        %v9468 = vsel %vm9453, %v9435, %v8714
        %v9469 = vsel %vm9453, %v9436, %v8716
        %v9470 = vsel %vm9453, %v9437, %v8718
        %v9471 = vsel %vm9453, %v9438, %v8720
        %v9472 = vsel %vm9453, %v9439, %v8722
        %v9473 = vsel %vm9453, %v9440, %v8724
        %v9474 = vsel %vm9453, %v9441, %v8726
        %v9475 = vsel %vm9453, %v9442, %v8728
        %v9476 = vsel %vm9453, %v9443, %v8730
        %v9477 = vsel %vm9453, %v9444, %v8732
        %v9478 = vsel %vm9453, %v9445, %v8734
        %v9479 = vsel %vm9453, %v9446, %v8736
        %v9480 = vsel %vm9453, %v9447, %v8738
        %v9481 = vsel %vm9453, %v9448, %v8740
        %v9482 = vsel %vm9453, %v9449, %v8742
        %v9483 = vsel %vm9453, %v9450, %v8744
        %v9484 = vsel %vm9453, %v9451, %v8746
        %v9485 = vsel %vm9453, %v9452, %v8748
        %vm9486 = vcmask 392192
        %v9487 = vsel %vm9486, %v9454, %v8814
        %v9488 = vsel %vm9486, %v9455, %v8816
        %v9489 = vsel %vm9486, %v9456, %v8818
        %v9490 = vsel %vm9486, %v9457, %v8820
        %v9491 = vsel %vm9486, %v9458, %v8822
        %v9492 = vsel %vm9486, %v9459, %v8824
        %v9493 = vsel %vm9486, %v9460, %v8826
        %v9494 = vsel %vm9486, %v9461, %v8828
        %v9495 = vsel %vm9486, %v9462, %v8830
        %v9496 = vsel %vm9486, %v9463, %v8832
        %v9497 = vsel %vm9486, %v9464, %v8834
        %v9498 = vsel %vm9486, %v9465, %v8836
        %v9499 = vsel %vm9486, %v9466, %v8838
        %v9500 = vsel %vm9486, %v9467, %v8840
        %v9501 = vsel %vm9486, %v9468, %v8842
        %v9502 = vsel %vm9486, %v9469, %v8844
        %v9503 = vsel %vm9486, %v9470, %v8846
        %v9504 = vsel %vm9486, %v9471, %v8848
        %v9505 = vsel %vm9486, %v9472, %v8850
        %v9506 = vsel %vm9486, %v9473, %v8852
        %v9507 = vsel %vm9486, %v9474, %v8854
        %v9508 = vsel %vm9486, %v9475, %v8856
        %v9509 = vsel %vm9486, %v9476, %v8858
        %v9510 = vsel %vm9486, %v9477, %v8860
        %v9511 = vsel %vm9486, %v9478, %v8862
        %v9512 = vsel %vm9486, %v9479, %v8864
        %v9513 = vsel %vm9486, %v9480, %v8866
        %v9514 = vsel %vm9486, %v9481, %v8868
        %v9515 = vsel %vm9486, %v9482, %v8870
        %v9516 = vsel %vm9486, %v9483, %v8872
        %v9517 = vsel %vm9486, %v9484, %v8874
        %v9518 = vsel %vm9486, %v9485, %v8876
        %vm9519 = vcmask 523264
        %v9520 = vsel %vm9519, %v9487, %v8942
        %v9521 = vsel %vm9519, %v9488, %v8944
        %v9522 = vsel %vm9519, %v9489, %v8946
        %v9523 = vsel %vm9519, %v9490, %v8948
        %v9524 = vsel %vm9519, %v9491, %v8950
        %v9525 = vsel %vm9519, %v9492, %v8952
        %v9526 = vsel %vm9519, %v9493, %v8954
        %v9527 = vsel %vm9519, %v9494, %v8956
        %v9528 = vsel %vm9519, %v9495, %v8958
        %v9529 = vsel %vm9519, %v9496, %v8960
        %v9530 = vsel %vm9519, %v9497, %v8962
        %v9531 = vsel %vm9519, %v9498, %v8964
        %v9532 = vsel %vm9519, %v9499, %v8966
        %v9533 = vsel %vm9519, %v9500, %v8968
        %v9534 = vsel %vm9519, %v9501, %v8970
        %v9535 = vsel %vm9519, %v9502, %v8972
        %v9536 = vsel %vm9519, %v9503, %v8974
        %v9537 = vsel %vm9519, %v9504, %v8976
        %v9538 = vsel %vm9519, %v9505, %v8978
        %v9539 = vsel %vm9519, %v9506, %v8980
        %v9540 = vsel %vm9519, %v9507, %v8982
        %v9541 = vsel %vm9519, %v9508, %v8984
        %v9542 = vsel %vm9519, %v9509, %v8986
        %v9543 = vsel %vm9519, %v9510, %v8988
        %v9544 = vsel %vm9519, %v9511, %v8990
        %v9545 = vsel %vm9519, %v9512, %v8992
        %v9546 = vsel %vm9519, %v9513, %v8994
        %v9547 = vsel %vm9519, %v9514, %v8996
        %v9548 = vsel %vm9519, %v9515, %v8998
        %v9549 = vsel %vm9519, %v9516, %v9000
        %v9550 = vsel %vm9519, %v9517, %v9002
        %v9551 = vsel %vm9519, %v9518, %v9004
        %vm9552 = vcmask 654336
        %v9553 = vsel %vm9552, %v9520, %v9070
        %v9554 = vsel %vm9552, %v9521, %v9072
        %v9555 = vsel %vm9552, %v9522, %v9074
        %v9556 = vsel %vm9552, %v9523, %v9076
        %v9557 = vsel %vm9552, %v9524, %v9078
        %v9558 = vsel %vm9552, %v9525, %v9080
        %v9559 = vsel %vm9552, %v9526, %v9082
        %v9560 = vsel %vm9552, %v9527, %v9084
        %v9561 = vsel %vm9552, %v9528, %v9086
        %v9562 = vsel %vm9552, %v9529, %v9088
        %v9563 = vsel %vm9552, %v9530, %v9090
        %v9564 = vsel %vm9552, %v9531, %v9092
        %v9565 = vsel %vm9552, %v9532, %v9094
        %v9566 = vsel %vm9552, %v9533, %v9096
        %v9567 = vsel %vm9552, %v9534, %v9098
        %v9568 = vsel %vm9552, %v9535, %v9100
        %v9569 = vsel %vm9552, %v9536, %v9102
        %v9570 = vsel %vm9552, %v9537, %v9104
        %v9571 = vsel %vm9552, %v9538, %v9106
        %v9572 = vsel %vm9552, %v9539, %v9108
        %v9573 = vsel %vm9552, %v9540, %v9110
        %v9574 = vsel %vm9552, %v9541, %v9112
        %v9575 = vsel %vm9552, %v9542, %v9114
        %v9576 = vsel %vm9552, %v9543, %v9116
        %v9577 = vsel %vm9552, %v9544, %v9118
        %v9578 = vsel %vm9552, %v9545, %v9120
        %v9579 = vsel %vm9552, %v9546, %v9122
        %v9580 = vsel %vm9552, %v9547, %v9124
        %v9581 = vsel %vm9552, %v9548, %v9126
        %v9582 = vsel %vm9552, %v9549, %v9128
        %v9583 = vsel %vm9552, %v9550, %v9130
        %v9584 = vsel %vm9552, %v9551, %v9132
        %vm9585 = vcmask 785408
        %v9586 = vsel %vm9585, %v9553, %v9198
        %v9587 = vsel %vm9585, %v9554, %v9200
        %v9588 = vsel %vm9585, %v9555, %v9202
        %v9589 = vsel %vm9585, %v9556, %v9204
        %v9590 = vsel %vm9585, %v9557, %v9206
        %v9591 = vsel %vm9585, %v9558, %v9208
        %v9592 = vsel %vm9585, %v9559, %v9210
        %v9593 = vsel %vm9585, %v9560, %v9212
        %v9594 = vsel %vm9585, %v9561, %v9214
        %v9595 = vsel %vm9585, %v9562, %v9216
        %v9596 = vsel %vm9585, %v9563, %v9218
        %v9597 = vsel %vm9585, %v9564, %v9220
        %v9598 = vsel %vm9585, %v9565, %v9222
        %v9599 = vsel %vm9585, %v9566, %v9224
        %v9600 = vsel %vm9585, %v9567, %v9226
        %v9601 = vsel %vm9585, %v9568, %v9228
        %v9602 = vsel %vm9585, %v9569, %v9230
        %v9603 = vsel %vm9585, %v9570, %v9232
        %v9604 = vsel %vm9585, %v9571, %v9234
        %v9605 = vsel %vm9585, %v9572, %v9236
        %v9606 = vsel %vm9585, %v9573, %v9238
        %v9607 = vsel %vm9585, %v9574, %v9240
        %v9608 = vsel %vm9585, %v9575, %v9242
        %v9609 = vsel %vm9585, %v9576, %v9244
        %v9610 = vsel %vm9585, %v9577, %v9246
        %v9611 = vsel %vm9585, %v9578, %v9248
        %v9612 = vsel %vm9585, %v9579, %v9250
        %v9613 = vsel %vm9585, %v9580, %v9252
        %v9614 = vsel %vm9585, %v9581, %v9254
        %v9615 = vsel %vm9585, %v9582, %v9256
        %v9616 = vsel %vm9585, %v9583, %v9258
        %v9617 = vsel %vm9585, %v9584, %v9260
        %vm9618 = vcmask 916480
        %v9619 = vsel %vm9618, %v9586, %v9326
        %v9620 = vsel %vm9618, %v9587, %v9328
        %v9621 = vsel %vm9618, %v9588, %v9330
        %v9622 = vsel %vm9618, %v9589, %v9332
        %v9623 = vsel %vm9618, %v9590, %v9334
        %v9624 = vsel %vm9618, %v9591, %v9336
        %v9625 = vsel %vm9618, %v9592, %v9338
        %v9626 = vsel %vm9618, %v9593, %v9340
        %v9627 = vsel %vm9618, %v9594, %v9342
        %v9628 = vsel %vm9618, %v9595, %v9344
        %v9629 = vsel %vm9618, %v9596, %v9346
        %v9630 = vsel %vm9618, %v9597, %v9348
        %v9631 = vsel %vm9618, %v9598, %v9350
        %v9632 = vsel %vm9618, %v9599, %v9352
        %v9633 = vsel %vm9618, %v9600, %v9354
        %v9634 = vsel %vm9618, %v9601, %v9356
        %v9635 = vsel %vm9618, %v9602, %v9358
        %v9636 = vsel %vm9618, %v9603, %v9360
        %v9637 = vsel %vm9618, %v9604, %v9362
        %v9638 = vsel %vm9618, %v9605, %v9364
        %v9639 = vsel %vm9618, %v9606, %v9366
        %v9640 = vsel %vm9618, %v9607, %v9368
        %v9641 = vsel %vm9618, %v9608, %v9370
        %v9642 = vsel %vm9618, %v9609, %v9372
        %v9643 = vsel %vm9618, %v9610, %v9374
        %v9644 = vsel %vm9618, %v9611, %v9376
        %v9645 = vsel %vm9618, %v9612, %v9378
        %v9646 = vsel %vm9618, %v9613, %v9380
        %v9647 = vsel %vm9618, %v9614, %v9382
        %v9648 = vsel %vm9618, %v9615, %v9384
        %v9649 = vsel %vm9618, %v9616, %v9386
        %v9650 = vsel %vm9618, %v9617, %v9388
        %v9651 = vpack.c.bf16 %v9620, %v9619
        %v9652 = vpack.c.bf16 %v9622, %v9621
        %v9653 = vpack.c.bf16 %v9624, %v9623
        %v9654 = vpack.c.bf16 %v9626, %v9625
        %v9655 = vpack.c.bf16 %v9628, %v9627
        %v9656 = vpack.c.bf16 %v9630, %v9629
        %v9657 = vpack.c.bf16 %v9632, %v9631
        %v9658 = vpack.c.bf16 %v9634, %v9633
        %v9659 = vpack.c.bf16 %v9636, %v9635
        %v9660 = vpack.c.bf16 %v9638, %v9637
        %v9661 = vpack.c.bf16 %v9640, %v9639
        %v9662 = vpack.c.bf16 %v9642, %v9641
        %v9663 = vpack.c.bf16 %v9644, %v9643
        %v9664 = vpack.c.bf16 %v9646, %v9645
        %v9665 = vpack.c.bf16 %v9648, %v9647
        %v9666 = vpack.c.bf16 %v9650, %v9649
        %v9667 = vld [vmem:[#allocation7] sm:$0xf]
        %v9668 = vld [vmem:[#allocation7 + $0x4] sm:$0xf]
        %v9669 = vld [vmem:[#allocation7 + $0x8] sm:$0xf]
        %v9670 = vld [vmem:[#allocation7 + $0xc] sm:$0xf]
        %v9671 = vld [vmem:[#allocation7 + $0x10] sm:$0xf]
        %v9672 = vld [vmem:[#allocation7 + $0x14] sm:$0xf]
        %v9673 = vld [vmem:[#allocation7 + $0x18] sm:$0xf]
        %v9674 = vld [vmem:[#allocation7 + $0x1c] sm:$0xf]
        %v9675 = vld [vmem:[#allocation7 + $0x20] sm:$0xf]
        %v9676 = vld [vmem:[#allocation7 + $0x24] sm:$0xf]
        %v9677 = vld [vmem:[#allocation7 + $0x28] sm:$0xf]
        %v9678 = vld [vmem:[#allocation7 + $0x2c] sm:$0xf]
        %v9679 = vld [vmem:[#allocation7 + $0x30] sm:$0xf]
        %v9680 = vld [vmem:[#allocation7 + $0x34] sm:$0xf]
        %v9681 = vld [vmem:[#allocation7 + $0x38] sm:$0xf]
        %v9682 = vld [vmem:[#allocation7 + $0x3c] sm:$0xf]
        %v9683 = vld [vmem:[%s6] sm:$0x1]
        %v9685 = vlaneseq
        %v9686 = vshrl.u32 %v9685, 7
        %v9687 = vsub.s32 0, %v9686
        %v9688 = vrot.slane %v9683, %v9687
        %v9706 = vunpack.c.l.b16 %v9667
        %v9707 = vunpack.c.l.b16 %v9668
        %v9708 = vunpack.c.l.b16 %v9669
        %v9709 = vunpack.c.l.b16 %v9670
        %v9710 = vunpack.c.l.b16 %v9671
        %v9711 = vunpack.c.l.b16 %v9672
        %v9712 = vunpack.c.l.b16 %v9673
        %v9713 = vunpack.c.l.b16 %v9674
        %v9714 = vunpack.c.l.b16 %v9675
        %v9715 = vunpack.c.l.b16 %v9676
        %v9716 = vunpack.c.l.b16 %v9677
        %v9717 = vunpack.c.l.b16 %v9678
        %v9718 = vunpack.c.l.b16 %v9679
        %v9719 = vunpack.c.l.b16 %v9680
        %v9720 = vunpack.c.l.b16 %v9681
        %v9721 = vunpack.c.l.b16 %v9682
        %v9722 = vpack.c.b16 %v9707, %v9706
        %v9723 = vpack.c.b16 %v9709, %v9708
        %v9724 = vpack.c.b16 %v9711, %v9710
        %v9725 = vpack.c.b16 %v9713, %v9712
        %v9726 = vpack.c.b16 %v9715, %v9714
        %v9727 = vpack.c.b16 %v9717, %v9716
        %v9728 = vpack.c.b16 %v9719, %v9718
        %v9729 = vpack.c.b16 %v9721, %v9720
        %9738 = vmatprep.subr.bf16.mxu0 0
        %9739 = vmatpush1.bf16.msra.mxu0 %v9722
        %9740 = vmatprep.subr.bf16.mxu0 0
        %9741 = vmatpush1.bf16.msra.mxu0 %v9723
        %9742 = vmatprep.subr.bf16.mxu0 0
        %9743 = vmatpush1.bf16.msra.mxu0 %v9724
        %9744 = vmatprep.subr.bf16.mxu0 0
        %9745 = vmatpush1.bf16.msra.mxu0 %v9725
        %9746 = vmatprep.subr.bf16.mxu0 0
        %9747 = vmatpush1.bf16.msra.mxu0 %v9726
        %9748 = vmatprep.subr.bf16.mxu0 0
        %9749 = vmatpush1.bf16.msra.mxu0 %v9727
        %9750 = vmatprep.subr.bf16.mxu0 0
        %9751 = vmatpush1.bf16.msra.mxu0 %v9728
        %9752 = vmatprep.subr.bf16.mxu0 0
        %9753 = vmatpush1.bf16.msra.mxu0 %v9729
        %9754 = vmatprep.subr.bf16.mxu0 0
        %9755 = vmatpush1.bf16.msra.mxu0 0
        %9756 = vmatprep.subr.bf16.mxu0 0
        %9757 = vmatpush1.bf16.msra.mxu0 0
        %9758 = vmatprep.subr.bf16.mxu0 0
        %9759 = vmatpush1.bf16.msra.mxu0 0
        %9760 = vmatprep.subr.bf16.mxu0 0
        %9761 = vmatpush1.bf16.msra.mxu0 0
        %9762 = vmatprep.subr.bf16.mxu0 0
        %9763 = vmatpush1.bf16.msra.mxu0 0
        %9764 = vmatprep.subr.bf16.mxu0 0
        %9765 = vmatpush1.bf16.msra.mxu0 0
        %9766 = vmatprep.subr.bf16.mxu0 0
        %9767 = vmatpush1.bf16.msra.mxu0 0
        %9768 = vmatprep.subr.bf16.mxu0 0
        %9769 = vmatpush1.bf16.msra.mxu0 0
        %9770 = vmatprep.mubr.bf16.mxu0 0
        %9771 = vmatmul.mubr.bf16.gmra.mrb[0].mxu0 %v9651
        %v9772 = vpop.f32.mrb[0].mxu0
        %v9773 = vadd.f32 %v9688, %v9772
        %v9774 = vpop.f32.mrb[0].mxu0
        %v9775 = vpop.f32.mrb[0].mxu0
        %v9776 = vadd.f32 %v9688, %v9775
        %v9777 = vpop.f32.mrb[0].mxu0
        %9778 = vmatprep.mubr.bf16.mxu0 0
        %9779 = vmatmul.mubr.bf16.gmra.mrb[0].mxu0 %v9652
        %v9780 = vpop.f32.mrb[0].mxu0
        %v9781 = vadd.f32 %v9688, %v9780
        %v9782 = vpop.f32.mrb[0].mxu0
        %v9783 = vpop.f32.mrb[0].mxu0
        %v9784 = vadd.f32 %v9688, %v9783
        %v9785 = vpop.f32.mrb[0].mxu0
        %9786 = vmatprep.mubr.bf16.mxu0 0
        %9787 = vmatmul.mubr.bf16.gmra.mrb[0].mxu0 %v9653
        %v9788 = vpop.f32.mrb[0].mxu0
        %v9789 = vadd.f32 %v9688, %v9788
        %v9790 = vpop.f32.mrb[0].mxu0
        %v9791 = vpop.f32.mrb[0].mxu0
        %v9792 = vadd.f32 %v9688, %v9791
        %v9793 = vpop.f32.mrb[0].mxu0
        %9794 = vmatprep.mubr.bf16.mxu0 0
        %9795 = vmatmul.mubr.bf16.gmra.mrb[0].mxu0 %v9654
        %v9796 = vpop.f32.mrb[0].mxu0
        %v9797 = vadd.f32 %v9688, %v9796
        %v9798 = vpop.f32.mrb[0].mxu0
        %v9799 = vpop.f32.mrb[0].mxu0
        %v9800 = vadd.f32 %v9688, %v9799
        %v9801 = vpop.f32.mrb[0].mxu0
        %9802 = vmatprep.mubr.bf16.mxu0 0
        %9803 = vmatmul.mubr.bf16.gmra.mrb[0].mxu0 %v9655
        %v9804 = vpop.f32.mrb[0].mxu0
        %v9805 = vadd.f32 %v9688, %v9804
        %v9806 = vpop.f32.mrb[0].mxu0
        %v9807 = vpop.f32.mrb[0].mxu0
        %v9808 = vadd.f32 %v9688, %v9807
        %v9809 = vpop.f32.mrb[0].mxu0
        %9810 = vmatprep.mubr.bf16.mxu0 0
        %9811 = vmatmul.mubr.bf16.gmra.mrb[0].mxu0 %v9656
        %v9812 = vpop.f32.mrb[0].mxu0
        %v9813 = vadd.f32 %v9688, %v9812
        %v9814 = vpop.f32.mrb[0].mxu0
        %v9815 = vpop.f32.mrb[0].mxu0
        %v9816 = vadd.f32 %v9688, %v9815
        %v9817 = vpop.f32.mrb[0].mxu0
        %9818 = vmatprep.mubr.bf16.mxu0 0
        %9819 = vmatmul.mubr.bf16.gmra.mrb[0].mxu0 %v9657
        %v9820 = vpop.f32.mrb[0].mxu0
        %v9821 = vadd.f32 %v9688, %v9820
        %v9822 = vpop.f32.mrb[0].mxu0
        %v9823 = vpop.f32.mrb[0].mxu0
        %v9824 = vadd.f32 %v9688, %v9823
        %v9825 = vpop.f32.mrb[0].mxu0
        %9826 = vmatprep.mubr.bf16.mxu0 0
        %9827 = vmatmul.mubr.bf16.gmra.mrb[0].mxu0 %v9658
        %v9828 = vpop.f32.mrb[0].mxu0
        %v9829 = vadd.f32 %v9688, %v9828
        %v9830 = vpop.f32.mrb[0].mxu0
        %v9831 = vpop.f32.mrb[0].mxu0
        %v9832 = vadd.f32 %v9688, %v9831
        %v9833 = vpop.f32.mrb[0].mxu0
        %9834 = vmatprep.mubr.bf16.mxu0 0
        %9835 = vmatmul.mubr.bf16.gmra.mrb[0].mxu0 %v9659
        %v9836 = vpop.f32.mrb[0].mxu0
        %v9837 = vadd.f32 %v9688, %v9836
        %v9838 = vpop.f32.mrb[0].mxu0
        %v9839 = vpop.f32.mrb[0].mxu0
        %v9840 = vadd.f32 %v9688, %v9839
        %v9841 = vpop.f32.mrb[0].mxu0
        %9842 = vmatprep.mubr.bf16.mxu0 0
        %9843 = vmatmul.mubr.bf16.gmra.mrb[0].mxu0 %v9660
        %v9844 = vpop.f32.mrb[0].mxu0
        %v9845 = vadd.f32 %v9688, %v9844
        %v9846 = vpop.f32.mrb[0].mxu0
        %v9847 = vpop.f32.mrb[0].mxu0
        %v9848 = vadd.f32 %v9688, %v9847
        %v9849 = vpop.f32.mrb[0].mxu0
        %9850 = vmatprep.mubr.bf16.mxu0 0
        %9851 = vmatmul.mubr.bf16.gmra.mrb[0].mxu0 %v9661
        %v9852 = vpop.f32.mrb[0].mxu0
        %v9853 = vadd.f32 %v9688, %v9852
        %v9854 = vpop.f32.mrb[0].mxu0
        %v9855 = vpop.f32.mrb[0].mxu0
        %v9856 = vadd.f32 %v9688, %v9855
        %v9857 = vpop.f32.mrb[0].mxu0
        %9858 = vmatprep.mubr.bf16.mxu0 0
        %9859 = vmatmul.mubr.bf16.gmra.mrb[0].mxu0 %v9662
        %v9860 = vpop.f32.mrb[0].mxu0
        %v9861 = vadd.f32 %v9688, %v9860
        %v9862 = vpop.f32.mrb[0].mxu0
        %v9863 = vpop.f32.mrb[0].mxu0
        %v9864 = vadd.f32 %v9688, %v9863
        %v9865 = vpop.f32.mrb[0].mxu0
        %9866 = vmatprep.mubr.bf16.mxu0 0
        %9867 = vmatmul.mubr.bf16.gmra.mrb[0].mxu0 %v9663
        %v9868 = vpop.f32.mrb[0].mxu0
        %v9869 = vadd.f32 %v9688, %v9868
        %v9870 = vpop.f32.mrb[0].mxu0
        %v9871 = vpop.f32.mrb[0].mxu0
        %v9872 = vadd.f32 %v9688, %v9871
        %v9873 = vpop.f32.mrb[0].mxu0
        %9874 = vmatprep.mubr.bf16.mxu0 0
        %9875 = vmatmul.mubr.bf16.gmra.mrb[0].mxu0 %v9664
        %v9876 = vpop.f32.mrb[0].mxu0
        %v9877 = vadd.f32 %v9688, %v9876
        %v9878 = vpop.f32.mrb[0].mxu0
        %v9879 = vpop.f32.mrb[0].mxu0
        %v9880 = vadd.f32 %v9688, %v9879
        %v9881 = vpop.f32.mrb[0].mxu0
        %9882 = vmatprep.mubr.bf16.mxu0 0
        %9883 = vmatmul.mubr.bf16.gmra.mrb[0].mxu0 %v9665
        %v9884 = vpop.f32.mrb[0].mxu0
        %v9885 = vadd.f32 %v9688, %v9884
        %v9886 = vpop.f32.mrb[0].mxu0
        %v9887 = vpop.f32.mrb[0].mxu0
        %v9888 = vadd.f32 %v9688, %v9887
        %v9889 = vpop.f32.mrb[0].mxu0
        %9890 = vmatprep.mubr.bf16.mxu0 0
        %9891 = vmatmul.mubr.bf16.gmra.mrb[0].mxu0 %v9666
        %v9892 = vpop.f32.mrb[0].mxu0
        %v9893 = vadd.f32 %v9688, %v9892
        %v9894 = vpop.f32.mrb[0].mxu0
        %v9895 = vpop.f32.mrb[0].mxu0
        %v9896 = vadd.f32 %v9688, %v9895
        %v9897 = vpop.f32.mrb[0].mxu0
        %9898 = vdwg.mxu0
        %9899 = vst [vmem:[%s326] sm:$0xff] %v9773
        %9900 = vst [vmem:[%s326 + $0x8] sm:$0xff] %v9776
        %9901 = vst [vmem:[%s326 + $0x10] sm:$0xff] %v9781
        %9902 = vst [vmem:[%s326 + $0x18] sm:$0xff] %v9784
        %9903 = vst [vmem:[%s326 + $0x20] sm:$0xff] %v9789
        %9904 = vst [vmem:[%s326 + $0x28] sm:$0xff] %v9792
        %9905 = vst [vmem:[%s326 + $0x30] sm:$0xff] %v9797
        %9906 = vst [vmem:[%s326 + $0x38] sm:$0xff] %v9800
        %9907 = vst [vmem:[%s326 + $0x40] sm:$0xff] %v9805
        %9908 = vst [vmem:[%s326 + $0x48] sm:$0xff] %v9808
        %9909 = vst [vmem:[%s326 + $0x50] sm:$0xff] %v9813
        %9910 = vst [vmem:[%s326 + $0x58] sm:$0xff] %v9816
        %9911 = vst [vmem:[%s326 + $0x60] sm:$0xff] %v9821
        %9912 = vst [vmem:[%s326 + $0x68] sm:$0xff] %v9824
        %9913 = vst [vmem:[%s326 + $0x70] sm:$0xff] %v9829
        %9914 = vst [vmem:[%s326 + $0x78] sm:$0xff] %v9832
        %9915 = vst [vmem:[%s326 + $0x80] sm:$0xff] %v9837
        %9916 = vst [vmem:[%s326 + $0x88] sm:$0xff] %v9840
        %9917 = vst [vmem:[%s326 + $0x90] sm:$0xff] %v9845
        %9918 = vst [vmem:[%s326 + $0x98] sm:$0xff] %v9848
        %9919 = vst [vmem:[%s326 + $0xa0] sm:$0xff] %v9853
        %9920 = vst [vmem:[%s326 + $0xa8] sm:$0xff] %v9856
        %9921 = vst [vmem:[%s326 + $0xb0] sm:$0xff] %v9861
        %9922 = vst [vmem:[%s326 + $0xb8] sm:$0xff] %v9864
        %9923 = vst [vmem:[%s326 + $0xc0] sm:$0xff] %v9869
        %9924 = vst [vmem:[%s326 + $0xc8] sm:$0xff] %v9872
        %9925 = vst [vmem:[%s326 + $0xd0] sm:$0xff] %v9877
        %9926 = vst [vmem:[%s326 + $0xd8] sm:$0xff] %v9880
        %9927 = vst [vmem:[%s326 + $0xe0] sm:$0xff] %v9885
        %9928 = vst [vmem:[%s326 + $0xe8] sm:$0xff] %v9888
        %9929 = vst [vmem:[%s326 + $0xf0] sm:$0xff] %v9893
        %9930 = vst [vmem:[%s326 + $0xf8] sm:$0xff] %v9896
        %s9931 = sand.u32 %s185, 1
        %s9932 = scalar_lea.sflag [#allocation4], %s9931
        %s9933 = sand.u32 %s185, 1
        %s9934 = smul.addr %s9933, 256
        %s9935 = scalar_lea.vmem [#allocation8], %s9934
        // Predicated region
        $region61: #{tpu_custom_call.1} parent=47 // pred_check
          %p9936 = pneg %p195
        $region62: #{tpu_custom_call.1} parent=47 // pred_check_branch
          %9938 = sbr.rel (%p9936) target = $region64
        $region63: #{tpu_custom_call.1} parent=47 // pred_region
          %s9939 = smul.u32 2, %s25
          %s9941 = ssub.s32 4096, 4096
          %9942 = vsyncadd %s9932, %s9941
          %s9943 = smul.addr %s9939, 16
          %s9944 = smul.addr %s9943, 128
          %s9945 = scalar_lea.hbm %s7, %s9944
          %s9946 = sshll.u32 %s9935, 4
          %s9947 = int_to_ptr.vmem [resolvable:$true] %s9946
          %9952 = dma.vmem_to_hbm [thread:$0]  %s9947, 4096, %s9945, %s9932, 128, 128, 8
        $region64: #{tpu_custom_call.1} parent=47 // pred_fallthru
          _
      $region48: #{tpu_custom_call.1} parent=5 // pred_fallthru
        _
      %p9953 = scmp.le.s32.totalorder 2, %s20
      // Predicated region
      $region65: #{tpu_custom_call.1} parent=5 // pred_check
        %p9954 = pneg %p9953
      $region66: #{tpu_custom_call.1} parent=5 // pred_check_branch
        %9956 = sbr.rel (%p9954) target = $region68
      $region67: #{tpu_custom_call.1} parent=5 // pred_region
        %s9957 = ssub.s32 %s20, 2
        // Predicated region
        $region69: #{tpu_custom_call.1} parent=67 // pred_check
          %p9958 = pneg %p201
        $region70: #{tpu_custom_call.1} parent=67 // pred_check_branch
          %9960 = sbr.rel (%p9958) target = $region72
        $region71: #{tpu_custom_call.1} parent=67 // pred_region
          %s9961 = sand.u32 %s186, 1
          %s9962 = scalar_lea.sflag [#allocation4], %s9961
          %s9963 = sand.u32 %s186, 1
          %s9964 = smul.addr %s9963, 256
          %s9965 = scalar_lea.vmem [#allocation8], %s9964
          %9966 = dma.done %s9962, 4096
        $region72: #{tpu_custom_call.1} parent=67 // pred_fallthru
          _
      $region68: #{tpu_custom_call.1} parent=5 // pred_fallthru
        _
    $region6: #{tpu_custom_call.1} parent=1 // loop_footer
      %s24 = sadd.s32 1, %s20
    $region7: #{tpu_custom_call.1} parent=1 // loop_footer_branch
      %19 = sbr.rel target = $region3
    $region8: #{tpu_custom_call.1} parent=1 // loop_exit
      _
    %9967 = vsyncpa [#allocation3], 1
    %s9968 = scalar_lea.sflag [#allocation3], 1
    %9969 = vsyncpa %s9968, 1
    %9970 = vsyncpa [#allocation6], 1
    %9971 = vsyncpa [#allocation4], 1
    %s9972 = scalar_lea.sflag [#allocation4], 1
    %9973 = vsyncpa %s9972, 1

</llo_original>
